<compile_context>
chip_gen: v6e
topology: v6e:2x2x1
jax: 0.10.0
libtpu: 0.0.40
codegen_flags: <defaults>
</compile_context>

<pallas_src>
import functools

import jax
import jax.numpy as jnp
from jax import lax
from jax.experimental import pallas as pl
from jax.experimental.pallas import tpu as pltpu

EPS = 1e-5


def _full_spec(shape):
    return pl.BlockSpec(shape, lambda i, _s=shape: (0,) * len(_s))


def _round_up(v, m):
    return ((v + m - 1) // m) * m


# --------------- fused DoubleConvBlock kernel (optionally with leading maxpool) ---------------
def _double_conv_kernel(*refs, N, H, W, P, pool, half, has_scale):
    if has_scale:
        (x_ref, w1_ref, w2_ref, g1_ref, b1_ref, g2_ref, b2_ref, sc_ref,
         o_ref, xp_ref, yp_ref) = refs
    else:
        (x_ref, w1_ref, w2_ref, g1_ref, b1_ref, g2_ref, b2_ref,
         o_ref, xp_ref, yp_ref) = refs
        sc_ref = None

    HW = H * W
    S = HW + 2 * P                     # padded rows per sample
    T = N * S
    Tacc = (N - 1) * S + HW            # conv-result rows; row n*S + r  <->  pixel r of sample n

    # ---- zero the padded scratch buffers (guard rows act as the conv zero padding) ----
    xp_ref[...] = jnp.zeros_like(xp_ref)
    yp_ref[...] = jnp.zeros_like(yp_ref)

    # ---- optional fused MaxPool2d(2), then copy into the padded flat-row layout ----
    for n in range(N):                 # N is tiny and static
        if pool:
            xv = x_ref[n]                                   # (H, 2, W, 2, Cin)
            m = jnp.max(jnp.max(xv, axis=3), axis=1)        # (H, W, Cin)
            for y in range(H):
                xp_ref[pl.ds(n * S + P + y * W, W), :] = m[y]
        else:
            xp_ref[pl.ds(n * S + P, HW), :] = x_ref[n]      # (HW, Cin)

    # x-coordinate of each padded row (value on guard rows is irrelevant: they are zero).
    adj = _round_up(P, W) - P
    xcol = (lax.broadcasted_iota(jnp.int32, (T, 1), 0) % S + adj) % W

    def conv_ibn_relu(src_ref, wcol_ref, gamma_ref, beta_ref):
        """3x3 conv (pad=1) as ONE im2col matmul over the whole batch + IBN + ReLU."""
        Cs = src_ref.shape[1]
        src = src_ref[...]                                  # (T, Cs)
        # Hoisted dx masks: 2 masked copies for the whole batch.  The left taps must never
        # read source column W-1, the right taps never column 0 (row-wrap pixels that stand
        # in for the out-of-image -1 / W columns).
        src_l = jnp.where(xcol == (W - 1), 0.0, src)
        src_r = jnp.where(xcol == 0, 0.0, src)
        # im2col LHS: 9 shifted whole-batch windows concatenated on the channel axis ->
        # one MXU matmul with K = 9*Cs and the batch folded into M.
        taps = []
        for dy in range(3):
            base = P + (dy - 1) * W
            taps.append(src_l[base - 1:base - 1 + Tacc, :])     # dx = 0
            taps.append(src[base:base + Tacc, :])               # dx = 1
            taps.append(src_r[base + 1:base + 1 + Tacc, :])     # dx = 2
        lhs = jnp.concatenate(taps, axis=-1)                    # (Tacc, 9*Cs)
        acc = jnp.dot(lhs, wcol_ref[...],
                      preferred_element_type=jnp.float32)       # (Tacc, Co)
        # Conv bias intentionally omitted: IN/BN mean subtraction cancels it exactly.

        gamma = gamma_ref[...]                                  # (1, Co)
        beta = beta_ref[...]
        Co = gamma.shape[1]
        is_in = lax.broadcasted_iota(jnp.int32, (1, Co), 1) < half
        # One-pass sum / sum-of-squares; per-sample slices cover image rows only, so the
        # junk in guard rows never enters the statistics.
        samples = [acc[n * S:n * S + HW, :] for n in range(N)]
        sums = [jnp.sum(a, axis=0, keepdims=True) for a in samples]
        sqs = [jnp.sum(a * a, axis=0, keepdims=True) for a in samples]
        tot = functools.reduce(lambda u, v: u + v, sums)
        tot2 = functools.reduce(lambda u, v: u + v, sqs)
        m_bn = tot * (1.0 / (N * HW))                           # BatchNorm half (N, H, W)
        v_bn = jnp.maximum(tot2 * (1.0 / (N * HW)) - m_bn * m_bn, 0.0)
        outs = []
        for n in range(N):
            a = samples[n]
            m_in = sums[n] * (1.0 / HW)                         # InstanceNorm half (H, W)
            v_in = jnp.maximum(sqs[n] * (1.0 / HW) - m_in * m_in, 0.0)
            mean = jnp.where(is_in, m_in, m_bn)
            var = jnp.where(is_in, v_in, v_bn)
            y = (a - mean) * lax.rsqrt(var + EPS) * gamma + beta
            outs.append(jnp.maximum(y, 0.0))                    # ReLU
        return outs

    # ---- conv1 + IBN + ReLU -> padded scratch (input of conv2) ----
    y1 = conv_ibn_relu(xp_ref, w1_ref, g1_ref, b1_ref)
    for n in range(N):
        yp_ref[pl.ds(n * S + P, HW), :] = y1[n]

    # ---- conv2 + IBN + ReLU (+ Dropout2d channel scale) -> output ----
    y2 = conv_ibn_relu(yp_ref, w2_ref, g2_ref, b2_ref)
    if has_scale:
        sc = sc_ref[...]                                        # (N, 1, Co)
        for n in range(N):
            o_ref[n] = y2[n] * sc[n]
    else:
        for n in range(N):
            o_ref[n] = y2[n]


def double_conv_block(x, p1, p2, *, pool, scale=None):
    """x: (N, H, W, Cin) NHWC.  Returns (N, Ho, Wo, C) NHWC with Ho = H//2 if pool."""
    N, H, W, Cin = (int(d) for d in x.shape)
    C = int(p1["w"].shape[-1])
    if pool:
        H, W = H // 2, W // 2
        xk = x.reshape(N, H, 2, W, 2, Cin)          # free row-major reshape (glue)
    else:
        xk = x.reshape(N, H * W, Cin)
    HW = H * W
    P = _round_up(W + 1, 8)                         # zero-guard rows per side (>= W+1)
    S = HW + 2 * P
    T = N * S
    Tacc = (N - 1) * S + HW

    w1 = p1["w"].reshape(9 * Cin, C)                # im2col weight layout (glue)
    w2 = p2["w"].reshape(9 * C, C)
    g1 = jnp.concatenate([p1["gi"], p1["gb"]]).reshape(1, C)
    b1 = jnp.concatenate([p1["bi"], p1["bb"]]).reshape(1, C)
    g2 = jnp.concatenate([p2["gi"], p2["gb"]]).reshape(1, C)
    b2 = jnp.concatenate([p2["bi"], p2["bb"]]).reshape(1, C)

    inputs = [xk, w1, w2, g1, b1, g2, b2]
    in_specs = ([_full_spec(tuple(xk.shape)),
                 _full_spec((9 * Cin, C)), _full_spec((9 * C, C))]
                + [_full_spec((1, C))] * 4)
    has_scale = scale is not None
    if has_scale:
        inputs.append(scale)
        in_specs.append(_full_spec((N, 1, C)))

    kernel = functools.partial(_double_conv_kernel, N=N, H=H, W=W, P=P, pool=pool,
                               half=C // 2, has_scale=has_scale)

    # Explicit, shape-derived VMEM budget (stays far below a v7x core's 64 MiB).
    # TODO(synk): for large H*W this whole-batch design should switch to a spatially tiled
    # grid with two-phase (partial-sum) BatchNorm statistics; not needed at these sizes.
    elems = (xk.size + N * HW * C + 2 * T * (Cin + C)
             + 3 * T * max(Cin, C)
             + Tacc * 9 * max(Cin, C) + Tacc * C
             + 9 * (Cin + C) * C)
    vmem_limit = int(min(max(8 * 4 * elems, 16 << 20), 48 << 20))

    out = pl.pallas_call(
        kernel,
        out_shape=jax.ShapeDtypeStruct((N, HW, C), jnp.float32),
        grid=(1,),
        in_specs=in_specs,
        out_specs=_full_spec((N, HW, C)),
        scratch_shapes=[pltpu.VMEM((T, Cin), jnp.float32),   # padded conv1 input
                        pltpu.VMEM((T, C), jnp.float32)],    # padded conv1 output
        # TODO(synk): single grid step keeps the fused BatchNorm batch stats simple but
        # leaves the second v7x TensorCore idle; a cross-core two-phase BN reduction over a
        # parallel N/spatial grid would recover it.
        compiler_params=pltpu.CompilerParams(
            dimension_semantics=("arbitrary",),
            vmem_limit_bytes=vmem_limit),
        cost_estimate=pl.CostEstimate(
            flops=2 * N * HW * 9 * (Cin * C + C * C),
            transcendentals=0,
            bytes_accessed=4 * (int(xk.size) + N * HW * C + 9 * C * (Cin + C))),
    )(*inputs)
    return out.reshape(N, H, W, C)


# ------------------------------------ Encoder forward ------------------------------------
def encoder_forward(params, x_nchw, dropout_key, has_dropout=True):
    x = jnp.transpose(x_nchw, (0, 2, 3, 1)).astype(jnp.float32)     # NCHW -> NHWC (glue)
    x1 = double_conv_block(x, params[0], params[1], pool=False)     # in_block
    x2 = double_conv_block(x1, params[2], params[3], pool=True)     # down1 (pool fused)
    x3 = double_conv_block(x2, params[4], params[5], pool=True)     # down2
    x4 = double_conv_block(x3, params[6], params[7], pool=True)     # down3
    scale = None
    if has_dropout:
        # TODO(synk): torch's RNG stream is not reproducible; a deterministic jax.random
        # per-(sample, channel) keep mask gives the same Dropout2d(p=0.5) semantics.
        N = x.shape[0]
        C = params[9]["w"].shape[-1]
        keep = jax.random.bernoulli(dropout_key, 0.5, (N, 1, C)).astype(jnp.float32)
        scale = keep * 2.0                                          # 1/(1-p), p = 0.5
    x5 = double_conv_block(x4, params[8], params[9], pool=True, scale=scale)  # down4 + dropout
    to_nchw = lambda t: jnp.transpose(t, (0, 3, 1, 2))
    return [to_nchw(t) for t in (x1, x2, x3, x4, x5)]


def init_params(key, in_channels, base_filter):
    # Conv2d(ci, co, 3) weights in HWIO; norm affine params at PyTorch defaults.
    # `b` mirrors PyTorch's conv bias but is unused by the kernel: a per-channel constant
    # before training-mode IN/BN is exactly cancelled by the mean subtraction.
    dims = [(in_channels, base_filter), (base_filter, base_filter)]
    ch = base_filter
    for mult in (2, 4, 8, 8):
        out = base_filter * mult
        dims += [(ch, out), (out, out)]
        ch = out
    params = []
    for (ci, co) in dims:
        key, kw, kb = jax.random.split(key, 3)
        bound = 1.0 / float(ci * 9) ** 0.5
        half = co // 2
        params.append(dict(
            w=jax.random.uniform(kw, (3, 3, ci, co), jnp.float32, -bound, bound),
            b=jax.random.uniform(kb, (co,), jnp.float32, -bound, bound),
            gi=jnp.ones((half,), jnp.float32),
            bi=jnp.zeros((half,), jnp.float32),
            gb=jnp.ones((co - half,), jnp.float32),
            bb=jnp.zeros((co - half,), jnp.float32),
        ))
    return params


if __name__ == "__main__":
    key = jax.random.PRNGKey(0)
    kx, kp, kd = jax.random.split(key, 3)
    in_channels, base_filter = 4, 8
    x = jax.random.normal(kx, (2, in_channels, 16, 16), jnp.float32)   # NCHW input
    params = init_params(kp, in_channels, base_filter)

    outs = encoder_forward(params, x, kd, has_dropout=True)
    outs = jax.block_until_ready(outs)

    expected = [(2, base_filter, 16, 16),
                (2, base_filter * 2, 8, 8),
                (2, base_filter * 4, 4, 4),
                (2, base_filter * 8, 2, 2),
                (2, base_filter * 8, 1, 1)]
    got = [tuple(int(d) for d in o.shape) for o in outs]
    assert got == expected, got
    assert all(bool(jnp.isfinite(o).all()) for o in outs)
    print("KERNEL_OK")
</pallas_src>

<mosaic_0001>
module attributes {stable_mosaic.version = 11 : i64} {
  func.func @_double_conv_kernel(%arg0: i32, %arg1: memref<2x256x4xf32, #tpu.memory_space<vmem>>, %arg2: memref<36x8xf32, #tpu.memory_space<vmem>>, %arg3: memref<72x8xf32, #tpu.memory_space<vmem>>, %arg4: memref<1x8xf32, #tpu.memory_space<vmem>>, %arg5: memref<1x8xf32, #tpu.memory_space<vmem>>, %arg6: memref<1x8xf32, #tpu.memory_space<vmem>>, %arg7: memref<1x8xf32, #tpu.memory_space<vmem>>, %arg8: memref<2x256x8xf32, #tpu.memory_space<vmem>>, %arg9: memref<608x4xf32, #tpu.memory_space<vmem>>, %arg10: memref<608x8xf32, #tpu.memory_space<vmem>>) attributes {dimension_semantics = [#tpu.dimension_semantics<arbitrary>], iteration_bounds = array<i64: 1>, scalar_prefetch = 0 : i64, scratch_operands = 2 : i64, tpu.core_type = #tpu.core_type<tc>, window_params = [{pipeline_mode = #tpu.pipeline_mode<synchronous>, transform_indices = @transform_0, window_bounds = array<i64: 2, 256, 4>}, {pipeline_mode = #tpu.pipeline_mode<synchronous>, transform_indices = @transform_1, window_bounds = array<i64: 36, 8>}, {pipeline_mode = #tpu.pipeline_mode<synchronous>, transform_indices = @transform_2, window_bounds = array<i64: 72, 8>}, {pipeline_mode = #tpu.pipeline_mode<synchronous>, transform_indices = @transform_3, window_bounds = array<i64: 1, 8>}, {pipeline_mode = #tpu.pipeline_mode<synchronous>, transform_indices = @transform_4, window_bounds = array<i64: 1, 8>}, {pipeline_mode = #tpu.pipeline_mode<synchronous>, transform_indices = @transform_5, window_bounds = array<i64: 1, 8>}, {pipeline_mode = #tpu.pipeline_mode<synchronous>, transform_indices = @transform_6, window_bounds = array<i64: 1, 8>}, {pipeline_mode = #tpu.pipeline_mode<synchronous>, transform_indices = @transform_7, window_bounds = array<i64: 2, 256, 8>}]} {
    %cst = arith.constant 0.000000e+00 : f32
    %0 = vector.broadcast %cst : f32 to vector<608x4xf32>
    %c0 = arith.constant 0 : index
    %c0_0 = arith.constant 0 : index
    %1 = vector.load %arg9[%c0, %c0_0] : memref<608x4xf32, #tpu.memory_space<vmem>>, vector<608x4xf32>
    tpu.vector_store %arg9[%c0, %c0_0], %0 {strides = array<i32>} : memref<608x4xf32, #tpu.memory_space<vmem>>, vector<608x4xf32>,
    %cst_1 = arith.constant 0.000000e+00 : f32
    %2 = vector.broadcast %cst_1 : f32 to vector<608x8xf32>
    %c0_2 = arith.constant 0 : index
    %c0_3 = arith.constant 0 : index
    %3 = vector.load %arg10[%c0_2, %c0_3] : memref<608x8xf32, #tpu.memory_space<vmem>>, vector<608x8xf32>
    tpu.vector_store %arg10[%c0_2, %c0_3], %2 {strides = array<i32>} : memref<608x8xf32, #tpu.memory_space<vmem>>, vector<608x8xf32>,
    %c0_4 = arith.constant 0 : index
    %c0_5 = arith.constant 0 : index
    %c0_6 = arith.constant 0 : index
    %4 = vector.load %arg1[%c0_4, %c0_5, %c0_6] : memref<2x256x4xf32, #tpu.memory_space<vmem>>, vector<1x256x4xf32>
    %5 = vector.shape_cast %4 : vector<1x256x4xf32> to vector<256x4xf32>
    %c24 = arith.constant 24 : index
    %c0_7 = arith.constant 0 : index
    %6 = vector.load %arg9[%c24, %c0_7] : memref<608x4xf32, #tpu.memory_space<vmem>>, vector<256x4xf32>
    tpu.vector_store %arg9[%c24, %c0_7], %5 {strides = array<i32>} : memref<608x4xf32, #tpu.memory_space<vmem>>, vector<256x4xf32>,
    %c1 = arith.constant 1 : index
    %c0_8 = arith.constant 0 : index
    %c0_9 = arith.constant 0 : index
    %7 = vector.load %arg1[%c1, %c0_8, %c0_9] : memref<2x256x4xf32, #tpu.memory_space<vmem>>, vector<1x256x4xf32>
    %8 = vector.shape_cast %7 : vector<1x256x4xf32> to vector<256x4xf32>
    %c328 = arith.constant 328 : index
    %c0_10 = arith.constant 0 : index
    %9 = vector.load %arg9[%c328, %c0_10] : memref<608x4xf32, #tpu.memory_space<vmem>>, vector<256x4xf32>
    tpu.vector_store %arg9[%c328, %c0_10], %8 {strides = array<i32>} : memref<608x4xf32, #tpu.memory_space<vmem>>, vector<256x4xf32>,
    %10 = tpu.iota {dimensions = array<i32: 0>} : vector<608x1xi32>
    %c304_i32 = arith.constant 304 : i32
    %c0_i32 = arith.constant 0 : i32
    %11 = arith.cmpi eq, %c304_i32, %c0_i32 : i32
    %c1_i32 = arith.constant 1 : i32
    %12 = arith.select %11, %c1_i32, %c304_i32 : i32
    %13 = vector.broadcast %12 : i32 to vector<608x1xi32>
    %14 = arith.remsi %10, %13 : vector<608x1xi32>
    %c0_i32_11 = arith.constant 0 : i32
    %15 = vector.broadcast %c0_i32_11 : i32 to vector<608x1xi32>
    %16 = arith.cmpi ne, %14, %15 : vector<608x1xi32>
    %c0_i32_12 = arith.constant 0 : i32
    %17 = vector.broadcast %c0_i32_12 : i32 to vector<608x1xi32>
    %18 = arith.cmpi slt, %14, %17 : vector<608x1xi32>
    %c0_i32_13 = arith.constant 0 : i32
    %19 = arith.cmpi slt, %12, %c0_i32_13 : i32
    %20 = vector.broadcast %19 : i1 to vector<608x1xi1>
    %21 = vector.broadcast %20 : vector<608x1xi1> to vector<608x1xi1>
    %22 = arith.xori %18, %21 : vector<608x1xi1>
    %23 = arith.andi %22, %16 : vector<608x1xi1>
    %24 = vector.broadcast %12 : i32 to vector<608x1xi32>
    %25 = arith.addi %14, %24 : vector<608x1xi32>
    %26 = arith.select %23, %25, %14 : vector<608x1xi1>, vector<608x1xi32>
    %c8_i32 = arith.constant 8 : i32
    %27 = vector.broadcast %c8_i32 : i32 to vector<608x1xi32>
    %28 = arith.addi %26, %27 : vector<608x1xi32>
    %c16_i32 = arith.constant 16 : i32
    %c0_i32_14 = arith.constant 0 : i32
    %29 = arith.cmpi eq, %c16_i32, %c0_i32_14 : i32
    %c1_i32_15 = arith.constant 1 : i32
    %30 = arith.select %29, %c1_i32_15, %c16_i32 : i32
    %31 = vector.broadcast %30 : i32 to vector<608x1xi32>
    %32 = arith.remsi %28, %31 : vector<608x1xi32>
    %c0_i32_16 = arith.constant 0 : i32
    %33 = vector.broadcast %c0_i32_16 : i32 to vector<608x1xi32>
    %34 = arith.cmpi ne, %32, %33 : vector<608x1xi32>
    %c0_i32_17 = arith.constant 0 : i32
    %35 = vector.broadcast %c0_i32_17 : i32 to vector<608x1xi32>
    %36 = arith.cmpi slt, %32, %35 : vector<608x1xi32>
    %c0_i32_18 = arith.constant 0 : i32
    %37 = arith.cmpi slt, %30, %c0_i32_18 : i32
    %38 = vector.broadcast %37 : i1 to vector<608x1xi1>
    %39 = vector.broadcast %38 : vector<608x1xi1> to vector<608x1xi1>
    %40 = arith.xori %36, %39 : vector<608x1xi1>
    %41 = arith.andi %40, %34 : vector<608x1xi1>
    %42 = vector.broadcast %30 : i32 to vector<608x1xi32>
    %43 = arith.addi %32, %42 : vector<608x1xi32>
    %44 = arith.select %41, %43, %32 : vector<608x1xi1>, vector<608x1xi32>
    %c0_19 = arith.constant 0 : index
    %c0_20 = arith.constant 0 : index
    %45 = vector.load %arg9[%c0_19, %c0_20] : memref<608x4xf32, #tpu.memory_space<vmem>>, vector<608x4xf32>
    %c15_i32 = arith.constant 15 : i32
    %46 = vector.broadcast %c15_i32 : i32 to vector<608x1xi32>
    %47 = arith.cmpi eq, %44, %46 : vector<608x1xi32>
    %cst_21 = arith.constant 0.000000e+00 : f32
    %48 = vector.shape_cast %47 : vector<608x1xi1> to vector<608x1xi1>
    %49 = vector.broadcast %48 : vector<608x1xi1> to vector<608x4xi1>
    %50 = vector.broadcast %cst_21 : f32 to vector<608x4xf32>
    %51 = arith.select %49, %50, %45 : vector<608x4xi1>, vector<608x4xf32>
    %c0_i32_22 = arith.constant 0 : i32
    %52 = vector.broadcast %c0_i32_22 : i32 to vector<608x1xi32>
    %53 = arith.cmpi eq, %44, %52 : vector<608x1xi32>
    %cst_23 = arith.constant 0.000000e+00 : f32
    %54 = vector.shape_cast %53 : vector<608x1xi1> to vector<608x1xi1>
    %55 = vector.broadcast %54 : vector<608x1xi1> to vector<608x4xi1>
    %56 = vector.broadcast %cst_23 : f32 to vector<608x4xf32>
    %57 = arith.select %55, %56, %45 : vector<608x4xi1>, vector<608x4xf32>
    %58 = vector.extract_strided_slice %51 {offsets = [7, 0], sizes = [560, 4], strides = [1, 1]} : vector<608x4xf32> to vector<560x4xf32>
    %59 = vector.extract_strided_slice %45 {offsets = [8, 0], sizes = [560, 4], strides = [1, 1]} : vector<608x4xf32> to vector<560x4xf32>
    %60 = vector.extract_strided_slice %57 {offsets = [9, 0], sizes = [560, 4], strides = [1, 1]} : vector<608x4xf32> to vector<560x4xf32>
    %61 = vector.extract_strided_slice %51 {offsets = [23, 0], sizes = [560, 4], strides = [1, 1]} : vector<608x4xf32> to vector<560x4xf32>
    %62 = vector.extract_strided_slice %45 {offsets = [24, 0], sizes = [560, 4], strides = [1, 1]} : vector<608x4xf32> to vector<560x4xf32>
    %63 = vector.extract_strided_slice %57 {offsets = [25, 0], sizes = [560, 4], strides = [1, 1]} : vector<608x4xf32> to vector<560x4xf32>
    %64 = vector.extract_strided_slice %51 {offsets = [39, 0], sizes = [560, 4], strides = [1, 1]} : vector<608x4xf32> to vector<560x4xf32>
    %65 = vector.extract_strided_slice %45 {offsets = [40, 0], sizes = [560, 4], strides = [1, 1]} : vector<608x4xf32> to vector<560x4xf32>
    %66 = vector.extract_strided_slice %57 {offsets = [41, 0], sizes = [560, 4], strides = [1, 1]} : vector<608x4xf32> to vector<560x4xf32>
    %67 = tpu.concatenate %58, %59, %60, %61, %62, %63, %64, %65, %66 in 1 : vector<560x4xf32>, vector<560x4xf32>, vector<560x4xf32>, vector<560x4xf32>, vector<560x4xf32>, vector<560x4xf32>, vector<560x4xf32>, vector<560x4xf32>, vector<560x4xf32> -> vector<560x36xf32>
    %c0_24 = arith.constant 0 : index
    %c0_25 = arith.constant 0 : index
    %68 = vector.load %arg2[%c0_24, %c0_25] : memref<36x8xf32, #tpu.memory_space<vmem>>, vector<36x8xf32>
    %cst_26 = arith.constant dense<0.000000e+00> : vector<560x8xf32>
    %69 = tpu.matmul %67, %68, %cst_26 {dimension_numbers = #tpu.dot_dimension_numbers<[1], [0], [0], [1], [0, 0, 1, 1], [], []>} : vector<560x36xf32>, vector<36x8xf32>, vector<560x8xf32> -> vector<560x8xf32>
    %c0_27 = arith.constant 0 : index
    %c0_28 = arith.constant 0 : index
    %70 = vector.load %arg4[%c0_27, %c0_28] : memref<1x8xf32, #tpu.memory_space<vmem>>, vector<1x8xf32>
    %c0_29 = arith.constant 0 : index
    %c0_30 = arith.constant 0 : index
    %71 = vector.load %arg5[%c0_29, %c0_30] : memref<1x8xf32, #tpu.memory_space<vmem>>, vector<1x8xf32>
    %72 = tpu.iota {dimensions = array<i32: 1>} : vector<1x8xi32>
    %c4_i32 = arith.constant 4 : i32
    %73 = vector.broadcast %c4_i32 : i32 to vector<1x8xi32>
    %74 = arith.cmpi slt, %72, %73 : vector<1x8xi32>
    %75 = vector.extract_strided_slice %69 {offsets = [0, 0], sizes = [256, 8], strides = [1, 1]} : vector<560x8xf32> to vector<256x8xf32>
    %76 = vector.extract_strided_slice %69 {offsets = [304, 0], sizes = [256, 8], strides = [1, 1]} : vector<560x8xf32> to vector<256x8xf32>
    %cst_31 = arith.constant dense<0.000000e+00> : vector<8xf32>
    %77 = vector.multi_reduction <add>, %75, %cst_31 [0] : vector<256x8xf32> to vector<8xf32>
    %78 = vector.shape_cast %77 : vector<8xf32> to vector<1x8xf32>
    %cst_32 = arith.constant dense<0.000000e+00> : vector<8xf32>
    %79 = vector.multi_reduction <add>, %76, %cst_32 [0] : vector<256x8xf32> to vector<8xf32>
    %80 = vector.shape_cast %79 : vector<8xf32> to vector<1x8xf32>
    %81 = arith.mulf %75, %75 : vector<256x8xf32>
    %cst_33 = arith.constant dense<0.000000e+00> : vector<8xf32>
    %82 = vector.multi_reduction <add>, %81, %cst_33 [0] : vector<256x8xf32> to vector<8xf32>
    %83 = vector.shape_cast %82 : vector<8xf32> to vector<1x8xf32>
    %84 = arith.mulf %76, %76 : vector<256x8xf32>
    %cst_34 = arith.constant dense<0.000000e+00> : vector<8xf32>
    %85 = vector.multi_reduction <add>, %84, %cst_34 [0] : vector<256x8xf32> to vector<8xf32>
    %86 = vector.shape_cast %85 : vector<8xf32> to vector<1x8xf32>
    %87 = arith.addf %78, %80 : vector<1x8xf32>
    %88 = arith.addf %83, %86 : vector<1x8xf32>
    %cst_35 = arith.constant 0.001953125 : f32
    %89 = vector.broadcast %cst_35 : f32 to vector<1x8xf32>
    %90 = arith.mulf %87, %89 : vector<1x8xf32>
    %cst_36 = arith.constant 0.001953125 : f32
    %91 = vector.broadcast %cst_36 : f32 to vector<1x8xf32>
    %92 = arith.mulf %88, %91 : vector<1x8xf32>
    %93 = arith.mulf %90, %90 : vector<1x8xf32>
    %94 = arith.subf %92, %93 : vector<1x8xf32>
    %cst_37 = arith.constant 0.000000e+00 : f32
    %95 = vector.broadcast %cst_37 : f32 to vector<1x8xf32>
    %96 = arith.maximumf %94, %95 : vector<1x8xf32>
    %cst_38 = arith.constant 3.906250e-03 : f32
    %97 = vector.broadcast %cst_38 : f32 to vector<1x8xf32>
    %98 = arith.mulf %78, %97 : vector<1x8xf32>
    %cst_39 = arith.constant 3.906250e-03 : f32
    %99 = vector.broadcast %cst_39 : f32 to vector<1x8xf32>
    %100 = arith.mulf %83, %99 : vector<1x8xf32>
    %101 = arith.mulf %98, %98 : vector<1x8xf32>
    %102 = arith.subf %100, %101 : vector<1x8xf32>
    %cst_40 = arith.constant 0.000000e+00 : f32
    %103 = vector.broadcast %cst_40 : f32 to vector<1x8xf32>
    %104 = arith.maximumf %102, %103 : vector<1x8xf32>
    %105 = arith.select %74, %98, %90 : vector<1x8xi1>, vector<1x8xf32>
    %106 = arith.select %74, %104, %96 : vector<1x8xi1>, vector<1x8xf32>
    %107 = vector.broadcast %105 : vector<1x8xf32> to vector<256x8xf32>
    %108 = arith.subf %75, %107 : vector<256x8xf32>
    %cst_41 = arith.constant 9.99999974E-6 : f32
    %109 = vector.broadcast %cst_41 : f32 to vector<1x8xf32>
    %110 = arith.addf %106, %109 : vector<1x8xf32>
    %111 = math.rsqrt %110 : vector<1x8xf32>
    %112 = vector.broadcast %111 : vector<1x8xf32> to vector<256x8xf32>
    %113 = arith.mulf %108, %112 : vector<256x8xf32>
    %114 = vector.broadcast %70 : vector<1x8xf32> to vector<256x8xf32>
    %115 = arith.mulf %113, %114 : vector<256x8xf32>
    %116 = vector.broadcast %71 : vector<1x8xf32> to vector<256x8xf32>
    %117 = arith.addf %115, %116 : vector<256x8xf32>
    %cst_42 = arith.constant 0.000000e+00 : f32
    %118 = vector.broadcast %cst_42 : f32 to vector<256x8xf32>
    %119 = arith.maximumf %117, %118 : vector<256x8xf32>
    %cst_43 = arith.constant 3.906250e-03 : f32
    %120 = vector.broadcast %cst_43 : f32 to vector<1x8xf32>
    %121 = arith.mulf %80, %120 : vector<1x8xf32>
    %cst_44 = arith.constant 3.906250e-03 : f32
    %122 = vector.broadcast %cst_44 : f32 to vector<1x8xf32>
    %123 = arith.mulf %86, %122 : vector<1x8xf32>
    %124 = arith.mulf %121, %121 : vector<1x8xf32>
    %125 = arith.subf %123, %124 : vector<1x8xf32>
    %cst_45 = arith.constant 0.000000e+00 : f32
    %126 = vector.broadcast %cst_45 : f32 to vector<1x8xf32>
    %127 = arith.maximumf %125, %126 : vector<1x8xf32>
    %128 = arith.select %74, %121, %90 : vector<1x8xi1>, vector<1x8xf32>
    %129 = arith.select %74, %127, %96 : vector<1x8xi1>, vector<1x8xf32>
    %130 = vector.broadcast %128 : vector<1x8xf32> to vector<256x8xf32>
    %131 = arith.subf %76, %130 : vector<256x8xf32>
    %cst_46 = arith.constant 9.99999974E-6 : f32
    %132 = vector.broadcast %cst_46 : f32 to vector<1x8xf32>
    %133 = arith.addf %129, %132 : vector<1x8xf32>
    %134 = math.rsqrt %133 : vector<1x8xf32>
    %135 = vector.broadcast %134 : vector<1x8xf32> to vector<256x8xf32>
    %136 = arith.mulf %131, %135 : vector<256x8xf32>
    %137 = vector.broadcast %70 : vector<1x8xf32> to vector<256x8xf32>
    %138 = arith.mulf %136, %137 : vector<256x8xf32>
    %139 = vector.broadcast %71 : vector<1x8xf32> to vector<256x8xf32>
    %140 = arith.addf %138, %139 : vector<256x8xf32>
    %cst_47 = arith.constant 0.000000e+00 : f32
    %141 = vector.broadcast %cst_47 : f32 to vector<256x8xf32>
    %142 = arith.maximumf %140, %141 : vector<256x8xf32>
    %c24_48 = arith.constant 24 : index
    %c0_49 = arith.constant 0 : index
    %143 = vector.load %arg10[%c24_48, %c0_49] : memref<608x8xf32, #tpu.memory_space<vmem>>, vector<256x8xf32>
    tpu.vector_store %arg10[%c24_48, %c0_49], %119 {strides = array<i32>} : memref<608x8xf32, #tpu.memory_space<vmem>>, vector<256x8xf32>,
    %c328_50 = arith.constant 328 : index
    %c0_51 = arith.constant 0 : index
    %144 = vector.load %arg10[%c328_50, %c0_51] : memref<608x8xf32, #tpu.memory_space<vmem>>, vector<256x8xf32>
    tpu.vector_store %arg10[%c328_50, %c0_51], %142 {strides = array<i32>} : memref<608x8xf32, #tpu.memory_space<vmem>>, vector<256x8xf32>,
    %c0_52 = arith.constant 0 : index
    %c0_53 = arith.constant 0 : index
    %145 = vector.load %arg10[%c0_52, %c0_53] : memref<608x8xf32, #tpu.memory_space<vmem>>, vector<608x8xf32>
    %c15_i32_54 = arith.constant 15 : i32
    %146 = vector.broadcast %c15_i32_54 : i32 to vector<608x1xi32>
    %147 = arith.cmpi eq, %44, %146 : vector<608x1xi32>
    %cst_55 = arith.constant 0.000000e+00 : f32
    %148 = vector.shape_cast %147 : vector<608x1xi1> to vector<608x1xi1>
    %149 = vector.broadcast %148 : vector<608x1xi1> to vector<608x8xi1>
    %150 = vector.broadcast %cst_55 : f32 to vector<608x8xf32>
    %151 = arith.select %149, %150, %145 : vector<608x8xi1>, vector<608x8xf32>
    %c0_i32_56 = arith.constant 0 : i32
    %152 = vector.broadcast %c0_i32_56 : i32 to vector<608x1xi32>
    %153 = arith.cmpi eq, %44, %152 : vector<608x1xi32>
    %cst_57 = arith.constant 0.000000e+00 : f32
    %154 = vector.shape_cast %153 : vector<608x1xi1> to vector<608x1xi1>
    %155 = vector.broadcast %154 : vector<608x1xi1> to vector<608x8xi1>
    %156 = vector.broadcast %cst_57 : f32 to vector<608x8xf32>
    %157 = arith.select %155, %156, %145 : vector<608x8xi1>, vector<608x8xf32>
    %158 = vector.extract_strided_slice %151 {offsets = [7, 0], sizes = [560, 8], strides = [1, 1]} : vector<608x8xf32> to vector<560x8xf32>
    %159 = vector.extract_strided_slice %145 {offsets = [8, 0], sizes = [560, 8], strides = [1, 1]} : vector<608x8xf32> to vector<560x8xf32>
    %160 = vector.extract_strided_slice %157 {offsets = [9, 0], sizes = [560, 8], strides = [1, 1]} : vector<608x8xf32> to vector<560x8xf32>
    %161 = vector.extract_strided_slice %151 {offsets = [23, 0], sizes = [560, 8], strides = [1, 1]} : vector<608x8xf32> to vector<560x8xf32>
    %162 = vector.extract_strided_slice %145 {offsets = [24, 0], sizes = [560, 8], strides = [1, 1]} : vector<608x8xf32> to vector<560x8xf32>
    %163 = vector.extract_strided_slice %157 {offsets = [25, 0], sizes = [560, 8], strides = [1, 1]} : vector<608x8xf32> to vector<560x8xf32>
    %164 = vector.extract_strided_slice %151 {offsets = [39, 0], sizes = [560, 8], strides = [1, 1]} : vector<608x8xf32> to vector<560x8xf32>
    %165 = vector.extract_strided_slice %145 {offsets = [40, 0], sizes = [560, 8], strides = [1, 1]} : vector<608x8xf32> to vector<560x8xf32>
    %166 = vector.extract_strided_slice %157 {offsets = [41, 0], sizes = [560, 8], strides = [1, 1]} : vector<608x8xf32> to vector<560x8xf32>
    %167 = tpu.concatenate %158, %159, %160, %161, %162, %163, %164, %165, %166 in 1 : vector<560x8xf32>, vector<560x8xf32>, vector<560x8xf32>, vector<560x8xf32>, vector<560x8xf32>, vector<560x8xf32>, vector<560x8xf32>, vector<560x8xf32>, vector<560x8xf32> -> vector<560x72xf32>
    %c0_58 = arith.constant 0 : index
    %c0_59 = arith.constant 0 : index
    %168 = vector.load %arg3[%c0_58, %c0_59] : memref<72x8xf32, #tpu.memory_space<vmem>>, vector<72x8xf32>
    %cst_60 = arith.constant dense<0.000000e+00> : vector<560x8xf32>
    %169 = tpu.matmul %167, %168, %cst_60 {dimension_numbers = #tpu.dot_dimension_numbers<[1], [0], [0], [1], [0, 0, 1, 1], [], []>} : vector<560x72xf32>, vector<72x8xf32>, vector<560x8xf32> -> vector<560x8xf32>
    %c0_61 = arith.constant 0 : index
    %c0_62 = arith.constant 0 : index
    %170 = vector.load %arg6[%c0_61, %c0_62] : memref<1x8xf32, #tpu.memory_space<vmem>>, vector<1x8xf32>
    %c0_63 = arith.constant 0 : index
    %c0_64 = arith.constant 0 : index
    %171 = vector.load %arg7[%c0_63, %c0_64] : memref<1x8xf32, #tpu.memory_space<vmem>>, vector<1x8xf32>
    %172 = tpu.iota {dimensions = array<i32: 1>} : vector<1x8xi32>
    %c4_i32_65 = arith.constant 4 : i32
    %173 = vector.broadcast %c4_i32_65 : i32 to vector<1x8xi32>
    %174 = arith.cmpi slt, %172, %173 : vector<1x8xi32>
    %175 = vector.extract_strided_slice %169 {offsets = [0, 0], sizes = [256, 8], strides = [1, 1]} : vector<560x8xf32> to vector<256x8xf32>
    %176 = vector.extract_strided_slice %169 {offsets = [304, 0], sizes = [256, 8], strides = [1, 1]} : vector<560x8xf32> to vector<256x8xf32>
    %cst_66 = arith.constant dense<0.000000e+00> : vector<8xf32>
    %177 = vector.multi_reduction <add>, %175, %cst_66 [0] : vector<256x8xf32> to vector<8xf32>
    %178 = vector.shape_cast %177 : vector<8xf32> to vector<1x8xf32>
    %cst_67 = arith.constant dense<0.000000e+00> : vector<8xf32>
    %179 = vector.multi_reduction <add>, %176, %cst_67 [0] : vector<256x8xf32> to vector<8xf32>
    %180 = vector.shape_cast %179 : vector<8xf32> to vector<1x8xf32>
    %181 = arith.mulf %175, %175 : vector<256x8xf32>
    %cst_68 = arith.constant dense<0.000000e+00> : vector<8xf32>
    %182 = vector.multi_reduction <add>, %181, %cst_68 [0] : vector<256x8xf32> to vector<8xf32>
    %183 = vector.shape_cast %182 : vector<8xf32> to vector<1x8xf32>
    %184 = arith.mulf %176, %176 : vector<256x8xf32>
    %cst_69 = arith.constant dense<0.000000e+00> : vector<8xf32>
    %185 = vector.multi_reduction <add>, %184, %cst_69 [0] : vector<256x8xf32> to vector<8xf32>
    %186 = vector.shape_cast %185 : vector<8xf32> to vector<1x8xf32>
    %187 = arith.addf %178, %180 : vector<1x8xf32>
    %188 = arith.addf %183, %186 : vector<1x8xf32>
    %cst_70 = arith.constant 0.001953125 : f32
    %189 = vector.broadcast %cst_70 : f32 to vector<1x8xf32>
    %190 = arith.mulf %187, %189 : vector<1x8xf32>
    %cst_71 = arith.constant 0.001953125 : f32
    %191 = vector.broadcast %cst_71 : f32 to vector<1x8xf32>
    %192 = arith.mulf %188, %191 : vector<1x8xf32>
    %193 = arith.mulf %190, %190 : vector<1x8xf32>
    %194 = arith.subf %192, %193 : vector<1x8xf32>
    %cst_72 = arith.constant 0.000000e+00 : f32
    %195 = vector.broadcast %cst_72 : f32 to vector<1x8xf32>
    %196 = arith.maximumf %194, %195 : vector<1x8xf32>
    %cst_73 = arith.constant 3.906250e-03 : f32
    %197 = vector.broadcast %cst_73 : f32 to vector<1x8xf32>
    %198 = arith.mulf %178, %197 : vector<1x8xf32>
    %cst_74 = arith.constant 3.906250e-03 : f32
    %199 = vector.broadcast %cst_74 : f32 to vector<1x8xf32>
    %200 = arith.mulf %183, %199 : vector<1x8xf32>
    %201 = arith.mulf %198, %198 : vector<1x8xf32>
    %202 = arith.subf %200, %201 : vector<1x8xf32>
    %cst_75 = arith.constant 0.000000e+00 : f32
    %203 = vector.broadcast %cst_75 : f32 to vector<1x8xf32>
    %204 = arith.maximumf %202, %203 : vector<1x8xf32>
    %205 = arith.select %174, %198, %190 : vector<1x8xi1>, vector<1x8xf32>
    %206 = arith.select %174, %204, %196 : vector<1x8xi1>, vector<1x8xf32>
    %207 = vector.broadcast %205 : vector<1x8xf32> to vector<256x8xf32>
    %208 = arith.subf %175, %207 : vector<256x8xf32>
    %cst_76 = arith.constant 9.99999974E-6 : f32
    %209 = vector.broadcast %cst_76 : f32 to vector<1x8xf32>
    %210 = arith.addf %206, %209 : vector<1x8xf32>
    %211 = math.rsqrt %210 : vector<1x8xf32>
    %212 = vector.broadcast %211 : vector<1x8xf32> to vector<256x8xf32>
    %213 = arith.mulf %208, %212 : vector<256x8xf32>
    %214 = vector.broadcast %170 : vector<1x8xf32> to vector<256x8xf32>
    %215 = arith.mulf %213, %214 : vector<256x8xf32>
    %216 = vector.broadcast %171 : vector<1x8xf32> to vector<256x8xf32>
    %217 = arith.addf %215, %216 : vector<256x8xf32>
    %cst_77 = arith.constant 0.000000e+00 : f32
    %218 = vector.broadcast %cst_77 : f32 to vector<256x8xf32>
    %219 = arith.maximumf %217, %218 : vector<256x8xf32>
    %cst_78 = arith.constant 3.906250e-03 : f32
    %220 = vector.broadcast %cst_78 : f32 to vector<1x8xf32>
    %221 = arith.mulf %180, %220 : vector<1x8xf32>
    %cst_79 = arith.constant 3.906250e-03 : f32
    %222 = vector.broadcast %cst_79 : f32 to vector<1x8xf32>
    %223 = arith.mulf %186, %222 : vector<1x8xf32>
    %224 = arith.mulf %221, %221 : vector<1x8xf32>
    %225 = arith.subf %223, %224 : vector<1x8xf32>
    %cst_80 = arith.constant 0.000000e+00 : f32
    %226 = vector.broadcast %cst_80 : f32 to vector<1x8xf32>
    %227 = arith.maximumf %225, %226 : vector<1x8xf32>
    %228 = arith.select %174, %221, %190 : vector<1x8xi1>, vector<1x8xf32>
    %229 = arith.select %174, %227, %196 : vector<1x8xi1>, vector<1x8xf32>
    %230 = vector.broadcast %228 : vector<1x8xf32> to vector<256x8xf32>
    %231 = arith.subf %176, %230 : vector<256x8xf32>
    %cst_81 = arith.constant 9.99999974E-6 : f32
    %232 = vector.broadcast %cst_81 : f32 to vector<1x8xf32>
    %233 = arith.addf %229, %232 : vector<1x8xf32>
    %234 = math.rsqrt %233 : vector<1x8xf32>
    %235 = vector.broadcast %234 : vector<1x8xf32> to vector<256x8xf32>
    %236 = arith.mulf %231, %235 : vector<256x8xf32>
    %237 = vector.broadcast %170 : vector<1x8xf32> to vector<256x8xf32>
    %238 = arith.mulf %236, %237 : vector<256x8xf32>
    %239 = vector.broadcast %171 : vector<1x8xf32> to vector<256x8xf32>
    %240 = arith.addf %238, %239 : vector<256x8xf32>
    %cst_82 = arith.constant 0.000000e+00 : f32
    %241 = vector.broadcast %cst_82 : f32 to vector<256x8xf32>
    %242 = arith.maximumf %240, %241 : vector<256x8xf32>
    %c0_83 = arith.constant 0 : index
    %c0_84 = arith.constant 0 : index
    %c0_85 = arith.constant 0 : index
    %243 = vector.load %arg8[%c0_83, %c0_84, %c0_85] : memref<2x256x8xf32, #tpu.memory_space<vmem>>, vector<1x256x8xf32>
    %244 = vector.shape_cast %243 : vector<1x256x8xf32> to vector<256x8xf32>
    %245 = vector.shape_cast %219 : vector<256x8xf32> to vector<1x256x8xf32>
    tpu.vector_store %arg8[%c0_83, %c0_84, %c0_85], %245 {strides = array<i32>} : memref<2x256x8xf32, #tpu.memory_space<vmem>>, vector<1x256x8xf32>,
    %c1_86 = arith.constant 1 : index
    %c0_87 = arith.constant 0 : index
    %c0_88 = arith.constant 0 : index
    %246 = vector.load %arg8[%c1_86, %c0_87, %c0_88] : memref<2x256x8xf32, #tpu.memory_space<vmem>>, vector<1x256x8xf32>
    %247 = vector.shape_cast %246 : vector<1x256x8xf32> to vector<256x8xf32>
    %248 = vector.shape_cast %242 : vector<256x8xf32> to vector<1x256x8xf32>
    tpu.vector_store %arg8[%c1_86, %c0_87, %c0_88], %248 {strides = array<i32>} : memref<2x256x8xf32, #tpu.memory_space<vmem>>, vector<1x256x8xf32>,
    return
  }
  func.func @transform_0(%arg0: i32) -> (i32, i32, i32) {
    %c0_i32 = arith.constant 0 : i32
    %c0_i32_0 = arith.constant 0 : i32
    %c0_i32_1 = arith.constant 0 : i32
    %c0_i32_2 = arith.constant 0 : i32
    return %c0_i32, %c0_i32_0, %c0_i32_1 : i32, i32, i32
  }
  func.func @transform_1(%arg0: i32) -> (i32, i32) {
    %c0_i32 = arith.constant 0 : i32
    %c0_i32_0 = arith.constant 0 : i32
    %c0_i32_1 = arith.constant 0 : i32
    return %c0_i32, %c0_i32_0 : i32, i32
  }
  func.func @transform_2(%arg0: i32) -> (i32, i32) {
    %c0_i32 = arith.constant 0 : i32
    %c0_i32_0 = arith.constant 0 : i32
    %c0_i32_1 = arith.constant 0 : i32
    return %c0_i32, %c0_i32_0 : i32, i32
  }
  func.func @transform_3(%arg0: i32) -> (i32, i32) {
    %c0_i32 = arith.constant 0 : i32
    %c0_i32_0 = arith.constant 0 : i32
    %c0_i32_1 = arith.constant 0 : i32
    return %c0_i32, %c0_i32_0 : i32, i32
  }
  func.func @transform_4(%arg0: i32) -> (i32, i32) {
    %c0_i32 = arith.constant 0 : i32
    %c0_i32_0 = arith.constant 0 : i32
    %c0_i32_1 = arith.constant 0 : i32
    return %c0_i32, %c0_i32_0 : i32, i32
  }
  func.func @transform_5(%arg0: i32) -> (i32, i32) {
    %c0_i32 = arith.constant 0 : i32
    %c0_i32_0 = arith.constant 0 : i32
    %c0_i32_1 = arith.constant 0 : i32
    return %c0_i32, %c0_i32_0 : i32, i32
  }
  func.func @transform_6(%arg0: i32) -> (i32, i32) {
    %c0_i32 = arith.constant 0 : i32
    %c0_i32_0 = arith.constant 0 : i32
    %c0_i32_1 = arith.constant 0 : i32
    return %c0_i32, %c0_i32_0 : i32, i32
  }
  func.func @transform_7(%arg0: i32) -> (i32, i32, i32) {
    %c0_i32 = arith.constant 0 : i32
    %c0_i32_0 = arith.constant 0 : i32
    %c0_i32_1 = arith.constant 0 : i32
    %c0_i32_2 = arith.constant 0 : i32
    return %c0_i32, %c0_i32_0, %c0_i32_1 : i32, i32, i32
  }
}

</mosaic_0001>

<llo_original>
// kernel: tpu_custom_call.1
$region0: #{tpu_custom_call.1}
  #allocation0 [shape = 'u32[]', space=smem, size = 0x4, offset = 0x4, fixed_abs, tag = 'smem constant byte address 0x4 - core index']
  #allocation1 [shape = 'u32[144,128]{1,0:T(1,128)}', space=vmem, size = 0x12000, scoped, tag = 'internal scratch']
  #allocation2 [shape = 'f32[608,4]{1,0:T(8,128)}', space=vmem, size = 0x4c000, scoped, tag = 'scratch operand']
  #allocation3 [shape = 'f32[608,8]{1,0:T(8,128)}', space=vmem, size = 0x4c000, scoped, tag = 'scratch operand']
  %s0 = inlined_call_operand.vmem [shape: f32[2,256,4], index: 0, kind: input, shape index: {}]
  %s1 = inlined_call_operand.vmem [shape: f32[36,8], index: 1, kind: input, shape index: {}]
  %s2 = inlined_call_operand.vmem [shape: f32[72,8], index: 2, kind: input, shape index: {}]
  %s3 = inlined_call_operand.vmem [shape: f32[1,8], index: 3, kind: input, shape index: {}]
  %s4 = inlined_call_operand.vmem [shape: f32[1,8], index: 4, kind: input, shape index: {}]
  %s5 = inlined_call_operand.vmem [shape: f32[1,8], index: 5, kind: input, shape index: {}]
  %s6 = inlined_call_operand.vmem [shape: f32[1,8], index: 6, kind: input, shape index: {}]
  %s7 = inlined_call_operand.vmem [shape: f32[2,256,8], index: 7, kind: output, shape index: {}]
  %s8 = sld [smem:[#allocation0]]
  $region38: #{tpu_custom_call.1} parent=0
    _
  %s10 = ssub.s32 1, %s8
  %s11 = scalar_select 0, %s10, %s8
  // Predicated region
  $region2: #{tpu_custom_call.1} parent=0 // pred_check
    _
  $region3: #{tpu_custom_call.1} parent=0 // pred_check_branch
    %13 = sbr.rel (0) target = $region5
  $region4: #{tpu_custom_call.1} parent=0 // pred_region
    _
  $region5: #{tpu_custom_call.1} parent=0 // pred_fallthru
    _
  // Predicated region
  $region6: #{tpu_custom_call.1} parent=0 // pred_check
    _
  $region7: #{tpu_custom_call.1} parent=0 // pred_check_branch
    %15 = sbr.rel (0) target = $region9
  $region8: #{tpu_custom_call.1} parent=0 // pred_region
    _
  $region9: #{tpu_custom_call.1} parent=0 // pred_fallthru
    _
  // Predicated region
  $region10: #{tpu_custom_call.1} parent=0 // pred_check
    _
  $region11: #{tpu_custom_call.1} parent=0 // pred_check_branch
    %17 = sbr.rel (0) target = $region13
  $region12: #{tpu_custom_call.1} parent=0 // pred_region
    _
  $region13: #{tpu_custom_call.1} parent=0 // pred_fallthru
    _
  // Predicated region
  $region14: #{tpu_custom_call.1} parent=0 // pred_check
    _
  $region15: #{tpu_custom_call.1} parent=0 // pred_check_branch
    %19 = sbr.rel (0) target = $region17
  $region16: #{tpu_custom_call.1} parent=0 // pred_region
    _
  $region17: #{tpu_custom_call.1} parent=0 // pred_fallthru
    _
  // Predicated region
  $region18: #{tpu_custom_call.1} parent=0 // pred_check
    _
  $region19: #{tpu_custom_call.1} parent=0 // pred_check_branch
    %21 = sbr.rel (0) target = $region21
  $region20: #{tpu_custom_call.1} parent=0 // pred_region
    _
  $region21: #{tpu_custom_call.1} parent=0 // pred_fallthru
    _
  // Predicated region
  $region22: #{tpu_custom_call.1} parent=0 // pred_check
    _
  $region23: #{tpu_custom_call.1} parent=0 // pred_check_branch
    %23 = sbr.rel (0) target = $region25
  $region24: #{tpu_custom_call.1} parent=0 // pred_region
    _
  $region25: #{tpu_custom_call.1} parent=0 // pred_fallthru
    _
  // Predicated region
  $region26: #{tpu_custom_call.1} parent=0 // pred_check
    _
  $region27: #{tpu_custom_call.1} parent=0 // pred_check_branch
    %25 = sbr.rel (0) target = $region29
  $region28: #{tpu_custom_call.1} parent=0 // pred_region
    _
  $region29: #{tpu_custom_call.1} parent=0 // pred_fallthru
    _
  %vm26 = vcmask 31744
  %27 = vst.msk [vmem:[#allocation2] sm:$0xff] %vm26, 0.0
  %28 = vst.msk [vmem:[#allocation2 + $0x8] sm:$0xff] %vm26, 0.0
  %29 = vst.msk [vmem:[#allocation2 + $0x10] sm:$0xff] %vm26, 0.0
  %30 = vst.msk [vmem:[#allocation2 + $0x18] sm:$0xff] %vm26, 0.0
  %31 = vst.msk [vmem:[#allocation2 + $0x20] sm:$0xff] %vm26, 0.0
  %32 = vst.msk [vmem:[#allocation2 + $0x28] sm:$0xff] %vm26, 0.0
  %33 = vst.msk [vmem:[#allocation2 + $0x30] sm:$0xff] %vm26, 0.0
  %34 = vst.msk [vmem:[#allocation2 + $0x38] sm:$0xff] %vm26, 0.0
  %35 = vst.msk [vmem:[#allocation2 + $0x40] sm:$0xff] %vm26, 0.0
  %36 = vst.msk [vmem:[#allocation2 + $0x48] sm:$0xff] %vm26, 0.0
  %37 = vst.msk [vmem:[#allocation2 + $0x50] sm:$0xff] %vm26, 0.0
  %38 = vst.msk [vmem:[#allocation2 + $0x58] sm:$0xff] %vm26, 0.0
  %39 = vst.msk [vmem:[#allocation2 + $0x60] sm:$0xff] %vm26, 0.0
  %40 = vst.msk [vmem:[#allocation2 + $0x68] sm:$0xff] %vm26, 0.0
  %41 = vst.msk [vmem:[#allocation2 + $0x70] sm:$0xff] %vm26, 0.0
  %42 = vst.msk [vmem:[#allocation2 + $0x78] sm:$0xff] %vm26, 0.0
  %43 = vst.msk [vmem:[#allocation2 + $0x80] sm:$0xff] %vm26, 0.0
  %44 = vst.msk [vmem:[#allocation2 + $0x88] sm:$0xff] %vm26, 0.0
  %45 = vst.msk [vmem:[#allocation2 + $0x90] sm:$0xff] %vm26, 0.0
  %46 = vst.msk [vmem:[#allocation2 + $0x98] sm:$0xff] %vm26, 0.0
  %47 = vst.msk [vmem:[#allocation2 + $0xa0] sm:$0xff] %vm26, 0.0
  %48 = vst.msk [vmem:[#allocation2 + $0xa8] sm:$0xff] %vm26, 0.0
  %49 = vst.msk [vmem:[#allocation2 + $0xb0] sm:$0xff] %vm26, 0.0
  %50 = vst.msk [vmem:[#allocation2 + $0xb8] sm:$0xff] %vm26, 0.0
  %51 = vst.msk [vmem:[#allocation2 + $0xc0] sm:$0xff] %vm26, 0.0
  %52 = vst.msk [vmem:[#allocation2 + $0xc8] sm:$0xff] %vm26, 0.0
  %53 = vst.msk [vmem:[#allocation2 + $0xd0] sm:$0xff] %vm26, 0.0
  %54 = vst.msk [vmem:[#allocation2 + $0xd8] sm:$0xff] %vm26, 0.0
  %55 = vst.msk [vmem:[#allocation2 + $0xe0] sm:$0xff] %vm26, 0.0
  %56 = vst.msk [vmem:[#allocation2 + $0xe8] sm:$0xff] %vm26, 0.0
  %57 = vst.msk [vmem:[#allocation2 + $0xf0] sm:$0xff] %vm26, 0.0
  %58 = vst.msk [vmem:[#allocation2 + $0xf8] sm:$0xff] %vm26, 0.0
  %59 = vst.msk [vmem:[#allocation2 + $0x100] sm:$0xff] %vm26, 0.0
  %60 = vst.msk [vmem:[#allocation2 + $0x108] sm:$0xff] %vm26, 0.0
  %61 = vst.msk [vmem:[#allocation2 + $0x110] sm:$0xff] %vm26, 0.0
  %62 = vst.msk [vmem:[#allocation2 + $0x118] sm:$0xff] %vm26, 0.0
  %63 = vst.msk [vmem:[#allocation2 + $0x120] sm:$0xff] %vm26, 0.0
  %64 = vst.msk [vmem:[#allocation2 + $0x128] sm:$0xff] %vm26, 0.0
  %65 = vst.msk [vmem:[#allocation2 + $0x130] sm:$0xff] %vm26, 0.0
  %66 = vst.msk [vmem:[#allocation2 + $0x138] sm:$0xff] %vm26, 0.0
  %67 = vst.msk [vmem:[#allocation2 + $0x140] sm:$0xff] %vm26, 0.0
  %68 = vst.msk [vmem:[#allocation2 + $0x148] sm:$0xff] %vm26, 0.0
  %69 = vst.msk [vmem:[#allocation2 + $0x150] sm:$0xff] %vm26, 0.0
  %70 = vst.msk [vmem:[#allocation2 + $0x158] sm:$0xff] %vm26, 0.0
  %71 = vst.msk [vmem:[#allocation2 + $0x160] sm:$0xff] %vm26, 0.0
  %72 = vst.msk [vmem:[#allocation2 + $0x168] sm:$0xff] %vm26, 0.0
  %73 = vst.msk [vmem:[#allocation2 + $0x170] sm:$0xff] %vm26, 0.0
  %74 = vst.msk [vmem:[#allocation2 + $0x178] sm:$0xff] %vm26, 0.0
  %75 = vst.msk [vmem:[#allocation2 + $0x180] sm:$0xff] %vm26, 0.0
  %76 = vst.msk [vmem:[#allocation2 + $0x188] sm:$0xff] %vm26, 0.0
  %77 = vst.msk [vmem:[#allocation2 + $0x190] sm:$0xff] %vm26, 0.0
  %78 = vst.msk [vmem:[#allocation2 + $0x198] sm:$0xff] %vm26, 0.0
  %79 = vst.msk [vmem:[#allocation2 + $0x1a0] sm:$0xff] %vm26, 0.0
  %80 = vst.msk [vmem:[#allocation2 + $0x1a8] sm:$0xff] %vm26, 0.0
  %81 = vst.msk [vmem:[#allocation2 + $0x1b0] sm:$0xff] %vm26, 0.0
  %82 = vst.msk [vmem:[#allocation2 + $0x1b8] sm:$0xff] %vm26, 0.0
  %83 = vst.msk [vmem:[#allocation2 + $0x1c0] sm:$0xff] %vm26, 0.0
  %84 = vst.msk [vmem:[#allocation2 + $0x1c8] sm:$0xff] %vm26, 0.0
  %85 = vst.msk [vmem:[#allocation2 + $0x1d0] sm:$0xff] %vm26, 0.0
  %86 = vst.msk [vmem:[#allocation2 + $0x1d8] sm:$0xff] %vm26, 0.0
  %87 = vst.msk [vmem:[#allocation2 + $0x1e0] sm:$0xff] %vm26, 0.0
  %88 = vst.msk [vmem:[#allocation2 + $0x1e8] sm:$0xff] %vm26, 0.0
  %89 = vst.msk [vmem:[#allocation2 + $0x1f0] sm:$0xff] %vm26, 0.0
  %90 = vst.msk [vmem:[#allocation2 + $0x1f8] sm:$0xff] %vm26, 0.0
  %91 = vst.msk [vmem:[#allocation2 + $0x200] sm:$0xff] %vm26, 0.0
  %92 = vst.msk [vmem:[#allocation2 + $0x208] sm:$0xff] %vm26, 0.0
  %93 = vst.msk [vmem:[#allocation2 + $0x210] sm:$0xff] %vm26, 0.0
  %94 = vst.msk [vmem:[#allocation2 + $0x218] sm:$0xff] %vm26, 0.0
  %95 = vst.msk [vmem:[#allocation2 + $0x220] sm:$0xff] %vm26, 0.0
  %96 = vst.msk [vmem:[#allocation2 + $0x228] sm:$0xff] %vm26, 0.0
  %97 = vst.msk [vmem:[#allocation2 + $0x230] sm:$0xff] %vm26, 0.0
  %98 = vst.msk [vmem:[#allocation2 + $0x238] sm:$0xff] %vm26, 0.0
  %99 = vst.msk [vmem:[#allocation2 + $0x240] sm:$0xff] %vm26, 0.0
  %100 = vst.msk [vmem:[#allocation2 + $0x248] sm:$0xff] %vm26, 0.0
  %101 = vst.msk [vmem:[#allocation2 + $0x250] sm:$0xff] %vm26, 0.0
  %102 = vst.msk [vmem:[#allocation2 + $0x258] sm:$0xff] %vm26, 0.0
  %vm103 = vcmask 64512
  %104 = vst.msk [vmem:[#allocation3] sm:$0xff] %vm103, 0.0
  %105 = vst.msk [vmem:[#allocation3 + $0x8] sm:$0xff] %vm103, 0.0
  %106 = vst.msk [vmem:[#allocation3 + $0x10] sm:$0xff] %vm103, 0.0
  %107 = vst.msk [vmem:[#allocation3 + $0x18] sm:$0xff] %vm103, 0.0
  %108 = vst.msk [vmem:[#allocation3 + $0x20] sm:$0xff] %vm103, 0.0
  %109 = vst.msk [vmem:[#allocation3 + $0x28] sm:$0xff] %vm103, 0.0
  %110 = vst.msk [vmem:[#allocation3 + $0x30] sm:$0xff] %vm103, 0.0
  %111 = vst.msk [vmem:[#allocation3 + $0x38] sm:$0xff] %vm103, 0.0
  %112 = vst.msk [vmem:[#allocation3 + $0x40] sm:$0xff] %vm103, 0.0
  %113 = vst.msk [vmem:[#allocation3 + $0x48] sm:$0xff] %vm103, 0.0
  %114 = vst.msk [vmem:[#allocation3 + $0x50] sm:$0xff] %vm103, 0.0
  %115 = vst.msk [vmem:[#allocation3 + $0x58] sm:$0xff] %vm103, 0.0
  %116 = vst.msk [vmem:[#allocation3 + $0x60] sm:$0xff] %vm103, 0.0
  %117 = vst.msk [vmem:[#allocation3 + $0x68] sm:$0xff] %vm103, 0.0
  %118 = vst.msk [vmem:[#allocation3 + $0x70] sm:$0xff] %vm103, 0.0
  %119 = vst.msk [vmem:[#allocation3 + $0x78] sm:$0xff] %vm103, 0.0
  %120 = vst.msk [vmem:[#allocation3 + $0x80] sm:$0xff] %vm103, 0.0
  %121 = vst.msk [vmem:[#allocation3 + $0x88] sm:$0xff] %vm103, 0.0
  %122 = vst.msk [vmem:[#allocation3 + $0x90] sm:$0xff] %vm103, 0.0
  %123 = vst.msk [vmem:[#allocation3 + $0x98] sm:$0xff] %vm103, 0.0
  %124 = vst.msk [vmem:[#allocation3 + $0xa0] sm:$0xff] %vm103, 0.0
  %125 = vst.msk [vmem:[#allocation3 + $0xa8] sm:$0xff] %vm103, 0.0
  %126 = vst.msk [vmem:[#allocation3 + $0xb0] sm:$0xff] %vm103, 0.0
  %127 = vst.msk [vmem:[#allocation3 + $0xb8] sm:$0xff] %vm103, 0.0
  %128 = vst.msk [vmem:[#allocation3 + $0xc0] sm:$0xff] %vm103, 0.0
  %129 = vst.msk [vmem:[#allocation3 + $0xc8] sm:$0xff] %vm103, 0.0
  %130 = vst.msk [vmem:[#allocation3 + $0xd0] sm:$0xff] %vm103, 0.0
  %131 = vst.msk [vmem:[#allocation3 + $0xd8] sm:$0xff] %vm103, 0.0
  %132 = vst.msk [vmem:[#allocation3 + $0xe0] sm:$0xff] %vm103, 0.0
  %133 = vst.msk [vmem:[#allocation3 + $0xe8] sm:$0xff] %vm103, 0.0
  %134 = vst.msk [vmem:[#allocation3 + $0xf0] sm:$0xff] %vm103, 0.0
  %135 = vst.msk [vmem:[#allocation3 + $0xf8] sm:$0xff] %vm103, 0.0
  %136 = vst.msk [vmem:[#allocation3 + $0x100] sm:$0xff] %vm103, 0.0
  %137 = vst.msk [vmem:[#allocation3 + $0x108] sm:$0xff] %vm103, 0.0
  %138 = vst.msk [vmem:[#allocation3 + $0x110] sm:$0xff] %vm103, 0.0
  %139 = vst.msk [vmem:[#allocation3 + $0x118] sm:$0xff] %vm103, 0.0
  %140 = vst.msk [vmem:[#allocation3 + $0x120] sm:$0xff] %vm103, 0.0
  %141 = vst.msk [vmem:[#allocation3 + $0x128] sm:$0xff] %vm103, 0.0
  %142 = vst.msk [vmem:[#allocation3 + $0x130] sm:$0xff] %vm103, 0.0
  %143 = vst.msk [vmem:[#allocation3 + $0x138] sm:$0xff] %vm103, 0.0
  %144 = vst.msk [vmem:[#allocation3 + $0x140] sm:$0xff] %vm103, 0.0
  %145 = vst.msk [vmem:[#allocation3 + $0x148] sm:$0xff] %vm103, 0.0
  %146 = vst.msk [vmem:[#allocation3 + $0x150] sm:$0xff] %vm103, 0.0
  %147 = vst.msk [vmem:[#allocation3 + $0x158] sm:$0xff] %vm103, 0.0
  %148 = vst.msk [vmem:[#allocation3 + $0x160] sm:$0xff] %vm103, 0.0
  %149 = vst.msk [vmem:[#allocation3 + $0x168] sm:$0xff] %vm103, 0.0
  %150 = vst.msk [vmem:[#allocation3 + $0x170] sm:$0xff] %vm103, 0.0
  %151 = vst.msk [vmem:[#allocation3 + $0x178] sm:$0xff] %vm103, 0.0
  %152 = vst.msk [vmem:[#allocation3 + $0x180] sm:$0xff] %vm103, 0.0
  %153 = vst.msk [vmem:[#allocation3 + $0x188] sm:$0xff] %vm103, 0.0
  %154 = vst.msk [vmem:[#allocation3 + $0x190] sm:$0xff] %vm103, 0.0
  %155 = vst.msk [vmem:[#allocation3 + $0x198] sm:$0xff] %vm103, 0.0
  %156 = vst.msk [vmem:[#allocation3 + $0x1a0] sm:$0xff] %vm103, 0.0
  %157 = vst.msk [vmem:[#allocation3 + $0x1a8] sm:$0xff] %vm103, 0.0
  %158 = vst.msk [vmem:[#allocation3 + $0x1b0] sm:$0xff] %vm103, 0.0
  %159 = vst.msk [vmem:[#allocation3 + $0x1b8] sm:$0xff] %vm103, 0.0
  %160 = vst.msk [vmem:[#allocation3 + $0x1c0] sm:$0xff] %vm103, 0.0
  %161 = vst.msk [vmem:[#allocation3 + $0x1c8] sm:$0xff] %vm103, 0.0
  %162 = vst.msk [vmem:[#allocation3 + $0x1d0] sm:$0xff] %vm103, 0.0
  %163 = vst.msk [vmem:[#allocation3 + $0x1d8] sm:$0xff] %vm103, 0.0
  %164 = vst.msk [vmem:[#allocation3 + $0x1e0] sm:$0xff] %vm103, 0.0
  %165 = vst.msk [vmem:[#allocation3 + $0x1e8] sm:$0xff] %vm103, 0.0
  %166 = vst.msk [vmem:[#allocation3 + $0x1f0] sm:$0xff] %vm103, 0.0
  %167 = vst.msk [vmem:[#allocation3 + $0x1f8] sm:$0xff] %vm103, 0.0
  %168 = vst.msk [vmem:[#allocation3 + $0x200] sm:$0xff] %vm103, 0.0
  %169 = vst.msk [vmem:[#allocation3 + $0x208] sm:$0xff] %vm103, 0.0
  %170 = vst.msk [vmem:[#allocation3 + $0x210] sm:$0xff] %vm103, 0.0
  %171 = vst.msk [vmem:[#allocation3 + $0x218] sm:$0xff] %vm103, 0.0
  %172 = vst.msk [vmem:[#allocation3 + $0x220] sm:$0xff] %vm103, 0.0
  %173 = vst.msk [vmem:[#allocation3 + $0x228] sm:$0xff] %vm103, 0.0
  %174 = vst.msk [vmem:[#allocation3 + $0x230] sm:$0xff] %vm103, 0.0
  %175 = vst.msk [vmem:[#allocation3 + $0x238] sm:$0xff] %vm103, 0.0
  %176 = vst.msk [vmem:[#allocation3 + $0x240] sm:$0xff] %vm103, 0.0
  %177 = vst.msk [vmem:[#allocation3 + $0x248] sm:$0xff] %vm103, 0.0
  %178 = vst.msk [vmem:[#allocation3 + $0x250] sm:$0xff] %vm103, 0.0
  %179 = vst.msk [vmem:[#allocation3 + $0x258] sm:$0xff] %vm103, 0.0
  %v180 = vld [vmem:[%s0] sm:$0xff]
  %v181 = vld [vmem:[%s0 + $0x8] sm:$0xff]
  %v182 = vld [vmem:[%s0 + $0x10] sm:$0xff]
  %v183 = vld [vmem:[%s0 + $0x18] sm:$0xff]
  %v184 = vld [vmem:[%s0 + $0x20] sm:$0xff]
  %v185 = vld [vmem:[%s0 + $0x28] sm:$0xff]
  %v186 = vld [vmem:[%s0 + $0x30] sm:$0xff]
  %v187 = vld [vmem:[%s0 + $0x38] sm:$0xff]
  %v188 = vld [vmem:[%s0 + $0x40] sm:$0xff]
  %v189 = vld [vmem:[%s0 + $0x48] sm:$0xff]
  %v190 = vld [vmem:[%s0 + $0x50] sm:$0xff]
  %v191 = vld [vmem:[%s0 + $0x58] sm:$0xff]
  %v192 = vld [vmem:[%s0 + $0x60] sm:$0xff]
  %v193 = vld [vmem:[%s0 + $0x68] sm:$0xff]
  %v194 = vld [vmem:[%s0 + $0x70] sm:$0xff]
  %v195 = vld [vmem:[%s0 + $0x78] sm:$0xff]
  %v196 = vld [vmem:[%s0 + $0x80] sm:$0xff]
  %v197 = vld [vmem:[%s0 + $0x88] sm:$0xff]
  %v198 = vld [vmem:[%s0 + $0x90] sm:$0xff]
  %v199 = vld [vmem:[%s0 + $0x98] sm:$0xff]
  %v200 = vld [vmem:[%s0 + $0xa0] sm:$0xff]
  %v201 = vld [vmem:[%s0 + $0xa8] sm:$0xff]
  %v202 = vld [vmem:[%s0 + $0xb0] sm:$0xff]
  %v203 = vld [vmem:[%s0 + $0xb8] sm:$0xff]
  %v204 = vld [vmem:[%s0 + $0xc0] sm:$0xff]
  %v205 = vld [vmem:[%s0 + $0xc8] sm:$0xff]
  %v206 = vld [vmem:[%s0 + $0xd0] sm:$0xff]
  %v207 = vld [vmem:[%s0 + $0xd8] sm:$0xff]
  %v208 = vld [vmem:[%s0 + $0xe0] sm:$0xff]
  %v209 = vld [vmem:[%s0 + $0xe8] sm:$0xff]
  %v210 = vld [vmem:[%s0 + $0xf0] sm:$0xff]
  %v211 = vld [vmem:[%s0 + $0xf8] sm:$0xff]
  %212 = vst.msk [vmem:[#allocation2 + $0x18] sm:$0xff] %vm26, %v180
  %213 = vst.msk [vmem:[#allocation2 + $0x20] sm:$0xff] %vm26, %v181
  %214 = vst.msk [vmem:[#allocation2 + $0x28] sm:$0xff] %vm26, %v182
  %215 = vst.msk [vmem:[#allocation2 + $0x30] sm:$0xff] %vm26, %v183
  %216 = vst.msk [vmem:[#allocation2 + $0x38] sm:$0xff] %vm26, %v184
  %217 = vst.msk [vmem:[#allocation2 + $0x40] sm:$0xff] %vm26, %v185
  %218 = vst.msk [vmem:[#allocation2 + $0x48] sm:$0xff] %vm26, %v186
  %219 = vst.msk [vmem:[#allocation2 + $0x50] sm:$0xff] %vm26, %v187
  %220 = vst.msk [vmem:[#allocation2 + $0x58] sm:$0xff] %vm26, %v188
  %221 = vst.msk [vmem:[#allocation2 + $0x60] sm:$0xff] %vm26, %v189
  %222 = vst.msk [vmem:[#allocation2 + $0x68] sm:$0xff] %vm26, %v190
  %223 = vst.msk [vmem:[#allocation2 + $0x70] sm:$0xff] %vm26, %v191
  %224 = vst.msk [vmem:[#allocation2 + $0x78] sm:$0xff] %vm26, %v192
  %225 = vst.msk [vmem:[#allocation2 + $0x80] sm:$0xff] %vm26, %v193
  %226 = vst.msk [vmem:[#allocation2 + $0x88] sm:$0xff] %vm26, %v194
  %227 = vst.msk [vmem:[#allocation2 + $0x90] sm:$0xff] %vm26, %v195
  %228 = vst.msk [vmem:[#allocation2 + $0x98] sm:$0xff] %vm26, %v196
  %229 = vst.msk [vmem:[#allocation2 + $0xa0] sm:$0xff] %vm26, %v197
  %230 = vst.msk [vmem:[#allocation2 + $0xa8] sm:$0xff] %vm26, %v198
  %231 = vst.msk [vmem:[#allocation2 + $0xb0] sm:$0xff] %vm26, %v199
  %232 = vst.msk [vmem:[#allocation2 + $0xb8] sm:$0xff] %vm26, %v200
  %233 = vst.msk [vmem:[#allocation2 + $0xc0] sm:$0xff] %vm26, %v201
  %234 = vst.msk [vmem:[#allocation2 + $0xc8] sm:$0xff] %vm26, %v202
  %235 = vst.msk [vmem:[#allocation2 + $0xd0] sm:$0xff] %vm26, %v203
  %236 = vst.msk [vmem:[#allocation2 + $0xd8] sm:$0xff] %vm26, %v204
  %237 = vst.msk [vmem:[#allocation2 + $0xe0] sm:$0xff] %vm26, %v205
  %238 = vst.msk [vmem:[#allocation2 + $0xe8] sm:$0xff] %vm26, %v206
  %239 = vst.msk [vmem:[#allocation2 + $0xf0] sm:$0xff] %vm26, %v207
  %240 = vst.msk [vmem:[#allocation2 + $0xf8] sm:$0xff] %vm26, %v208
  %241 = vst.msk [vmem:[#allocation2 + $0x100] sm:$0xff] %vm26, %v209
  %242 = vst.msk [vmem:[#allocation2 + $0x108] sm:$0xff] %vm26, %v210
  %243 = vst.msk [vmem:[#allocation2 + $0x110] sm:$0xff] %vm26, %v211
  %s244 = scalar_lea.vmem %s0, 256
  %v245 = vld [vmem:[%s244] sm:$0xff]
  %v246 = vld [vmem:[%s244 + $0x8] sm:$0xff]
  %v247 = vld [vmem:[%s244 + $0x10] sm:$0xff]
  %v248 = vld [vmem:[%s244 + $0x18] sm:$0xff]
  %v249 = vld [vmem:[%s244 + $0x20] sm:$0xff]
  %v250 = vld [vmem:[%s244 + $0x28] sm:$0xff]
  %v251 = vld [vmem:[%s244 + $0x30] sm:$0xff]
  %v252 = vld [vmem:[%s244 + $0x38] sm:$0xff]
  %v253 = vld [vmem:[%s244 + $0x40] sm:$0xff]
  %v254 = vld [vmem:[%s244 + $0x48] sm:$0xff]
  %v255 = vld [vmem:[%s244 + $0x50] sm:$0xff]
  %v256 = vld [vmem:[%s244 + $0x58] sm:$0xff]
  %v257 = vld [vmem:[%s244 + $0x60] sm:$0xff]
  %v258 = vld [vmem:[%s244 + $0x68] sm:$0xff]
  %v259 = vld [vmem:[%s244 + $0x70] sm:$0xff]
  %v260 = vld [vmem:[%s244 + $0x78] sm:$0xff]
  %v261 = vld [vmem:[%s244 + $0x80] sm:$0xff]
  %v262 = vld [vmem:[%s244 + $0x88] sm:$0xff]
  %v263 = vld [vmem:[%s244 + $0x90] sm:$0xff]
  %v264 = vld [vmem:[%s244 + $0x98] sm:$0xff]
  %v265 = vld [vmem:[%s244 + $0xa0] sm:$0xff]
  %v266 = vld [vmem:[%s244 + $0xa8] sm:$0xff]
  %v267 = vld [vmem:[%s244 + $0xb0] sm:$0xff]
  %v268 = vld [vmem:[%s244 + $0xb8] sm:$0xff]
  %v269 = vld [vmem:[%s244 + $0xc0] sm:$0xff]
  %v270 = vld [vmem:[%s244 + $0xc8] sm:$0xff]
  %v271 = vld [vmem:[%s244 + $0xd0] sm:$0xff]
  %v272 = vld [vmem:[%s244 + $0xd8] sm:$0xff]
  %v273 = vld [vmem:[%s244 + $0xe0] sm:$0xff]
  %v274 = vld [vmem:[%s244 + $0xe8] sm:$0xff]
  %v275 = vld [vmem:[%s244 + $0xf0] sm:$0xff]
  %v276 = vld [vmem:[%s244 + $0xf8] sm:$0xff]
  %277 = vst.msk [vmem:[#allocation2 + $0x148] sm:$0xff] %vm26, %v245
  %278 = vst.msk [vmem:[#allocation2 + $0x150] sm:$0xff] %vm26, %v246
  %279 = vst.msk [vmem:[#allocation2 + $0x158] sm:$0xff] %vm26, %v247
  %280 = vst.msk [vmem:[#allocation2 + $0x160] sm:$0xff] %vm26, %v248
  %281 = vst.msk [vmem:[#allocation2 + $0x168] sm:$0xff] %vm26, %v249
  %282 = vst.msk [vmem:[#allocation2 + $0x170] sm:$0xff] %vm26, %v250
  %283 = vst.msk [vmem:[#allocation2 + $0x178] sm:$0xff] %vm26, %v251
  %284 = vst.msk [vmem:[#allocation2 + $0x180] sm:$0xff] %vm26, %v252
  %285 = vst.msk [vmem:[#allocation2 + $0x188] sm:$0xff] %vm26, %v253
  %286 = vst.msk [vmem:[#allocation2 + $0x190] sm:$0xff] %vm26, %v254
  %287 = vst.msk [vmem:[#allocation2 + $0x198] sm:$0xff] %vm26, %v255
  %288 = vst.msk [vmem:[#allocation2 + $0x1a0] sm:$0xff] %vm26, %v256
  %289 = vst.msk [vmem:[#allocation2 + $0x1a8] sm:$0xff] %vm26, %v257
  %290 = vst.msk [vmem:[#allocation2 + $0x1b0] sm:$0xff] %vm26, %v258
  %291 = vst.msk [vmem:[#allocation2 + $0x1b8] sm:$0xff] %vm26, %v259
  %292 = vst.msk [vmem:[#allocation2 + $0x1c0] sm:$0xff] %vm26, %v260
  %293 = vst.msk [vmem:[#allocation2 + $0x1c8] sm:$0xff] %vm26, %v261
  %294 = vst.msk [vmem:[#allocation2 + $0x1d0] sm:$0xff] %vm26, %v262
  %295 = vst.msk [vmem:[#allocation2 + $0x1d8] sm:$0xff] %vm26, %v263
  %296 = vst.msk [vmem:[#allocation2 + $0x1e0] sm:$0xff] %vm26, %v264
  %297 = vst.msk [vmem:[#allocation2 + $0x1e8] sm:$0xff] %vm26, %v265
  %298 = vst.msk [vmem:[#allocation2 + $0x1f0] sm:$0xff] %vm26, %v266
  %299 = vst.msk [vmem:[#allocation2 + $0x1f8] sm:$0xff] %vm26, %v267
  %300 = vst.msk [vmem:[#allocation2 + $0x200] sm:$0xff] %vm26, %v268
  %301 = vst.msk [vmem:[#allocation2 + $0x208] sm:$0xff] %vm26, %v269
  %302 = vst.msk [vmem:[#allocation2 + $0x210] sm:$0xff] %vm26, %v270
  %303 = vst.msk [vmem:[#allocation2 + $0x218] sm:$0xff] %vm26, %v271
  %304 = vst.msk [vmem:[#allocation2 + $0x220] sm:$0xff] %vm26, %v272
  %305 = vst.msk [vmem:[#allocation2 + $0x228] sm:$0xff] %vm26, %v273
  %306 = vst.msk [vmem:[#allocation2 + $0x230] sm:$0xff] %vm26, %v274
  %307 = vst.msk [vmem:[#allocation2 + $0x238] sm:$0xff] %vm26, %v275
  %308 = vst.msk [vmem:[#allocation2 + $0x240] sm:$0xff] %vm26, %v276
  %v309 = vlaneseq
  %v310 = vshrl.u32 %v309, 7
  %v311 = vadd.s32 %v310, 8
  %v312 = vadd.s32 %v310, 16
  %v313 = vadd.s32 %v310, 24
  %v314 = vadd.s32 %v310, 32
  %v315 = vadd.s32 %v310, 40
  %v316 = vadd.s32 %v310, 48
  %v317 = vadd.s32 %v310, 56
  %v318 = vadd.s32 %v310, 64
  %v319 = vadd.s32 %v310, 72
  %v320 = vadd.s32 %v310, 80
  %v321 = vadd.s32 %v310, 88
  %v322 = vadd.s32 %v310, 96
  %v323 = vadd.s32 %v310, 104
  %v324 = vadd.s32 %v310, 112
  %v325 = vadd.s32 %v310, 120
  %v326 = vadd.s32 %v310, 128
  %v327 = vadd.s32 %v310, 136
  %v328 = vadd.s32 %v310, 144
  %v329 = vadd.s32 %v310, 152
  %v330 = vadd.s32 %v310, 160
  %v331 = vadd.s32 %v310, 168
  %v332 = vadd.s32 %v310, 176
  %v333 = vadd.s32 %v310, 184
  %v334 = vadd.s32 %v310, 192
  %v335 = vadd.s32 %v310, 200
  %v336 = vadd.s32 %v310, 208
  %v337 = vadd.s32 %v310, 216
  %v338 = vadd.s32 %v310, 224
  %v339 = vadd.s32 %v310, 232
  %v340 = vadd.s32 %v310, 240
  %v341 = vadd.s32 %v310, 248
  %v342 = vadd.s32 %v310, 256
  %v343 = vadd.s32 %v310, 264
  %v344 = vadd.s32 %v310, 272
  %v345 = vadd.s32 %v310, 280
  %v346 = vadd.s32 %v310, 288
  %v347 = vadd.s32 %v310, 296
  %v348 = vadd.s32 %v310, 304
  %v349 = vadd.s32 %v310, 312
  %v350 = vadd.s32 %v310, 320
  %v351 = vadd.s32 %v310, 328
  %v352 = vadd.s32 %v310, 336
  %v353 = vadd.s32 %v310, 344
  %v354 = vadd.s32 %v310, 352
  %v355 = vadd.s32 %v310, 360
  %v356 = vadd.s32 %v310, 368
  %v357 = vadd.s32 %v310, 376
  %v358 = vadd.s32 %v310, 384
  %v359 = vadd.s32 %v310, 392
  %v360 = vadd.s32 %v310, 400
  %v361 = vadd.s32 %v310, 408
  %v362 = vadd.s32 %v310, 416
  %v363 = vadd.s32 %v310, 424
  %v364 = vadd.s32 %v310, 432
  %v365 = vadd.s32 %v310, 440
  %v366 = vadd.s32 %v310, 448
  %v367 = vadd.s32 %v310, 456
  %v368 = vadd.s32 %v310, 464
  %v369 = vadd.s32 %v310, 472
  %v370 = vadd.s32 %v310, 480
  %v371 = vadd.s32 %v310, 488
  %v372 = vadd.s32 %v310, 496
  %v373 = vadd.s32 %v310, 504
  %v374 = vadd.s32 %v310, 512
  %v375 = vadd.s32 %v310, 520
  %v376 = vadd.s32 %v310, 528
  %v377 = vadd.s32 %v310, 536
  %v378 = vadd.s32 %v310, 544
  %v379 = vadd.s32 %v310, 552
  %v380 = vadd.s32 %v310, 560
  %v381 = vadd.s32 %v310, 568
  %v382 = vadd.s32 %v310, 576
  %v383 = vadd.s32 %v310, 584
  %v384 = vadd.s32 %v310, 592
  %v385 = vadd.s32 %v310, 600
  %vm386 = vcmp.lt.s32.totalorder %v310, 0
  %v387 = vsub.s32 0, %v310
  %v388 = vsel %vm386, %v387, %v310
  %v389 = vmul.u32.u64.compose %v388, 3616814565
  %v390 = vextract.low.u32 %v389
  %v391 = vextract.high.u32 %v389
  %vm392 = vc.u32 %v390, 3616814565
  %v393 = vsel %vm392, 1, 0
  %v394 = vadd.s32 %v391, %v393
  %v395 = vshrl.u32 %v394, 8
  %v396 = vmul.u32 %v395, 304
  %v397 = vsub.s32 %v388, %v396
  %v398 = vsub.s32 0, %v397
  %v399 = vsel %vm386, %v398, %v397
  %vm400 = vcmp.lt.s32.totalorder %v311, 0
  %v401 = vsub.s32 0, %v311
  %v402 = vsel %vm400, %v401, %v311
  %v403 = vmul.u32.u64.compose %v402, 3616814565
  %v404 = vextract.low.u32 %v403
  %v405 = vextract.high.u32 %v403
  %vm406 = vc.u32 %v404, 3616814565
  %v407 = vsel %vm406, 1, 0
  %v408 = vadd.s32 %v405, %v407
  %v409 = vshrl.u32 %v408, 8
  %v410 = vmul.u32 %v409, 304
  %v411 = vsub.s32 %v402, %v410
  %v412 = vsub.s32 0, %v411
  %v413 = vsel %vm400, %v412, %v411
  %vm414 = vcmp.lt.s32.totalorder %v312, 0
  %v415 = vsub.s32 0, %v312
  %v416 = vsel %vm414, %v415, %v312
  %v417 = vmul.u32.u64.compose %v416, 3616814565
  %v418 = vextract.low.u32 %v417
  %v419 = vextract.high.u32 %v417
  %vm420 = vc.u32 %v418, 3616814565
  %v421 = vsel %vm420, 1, 0
  %v422 = vadd.s32 %v419, %v421
  %v423 = vshrl.u32 %v422, 8
  %v424 = vmul.u32 %v423, 304
  %v425 = vsub.s32 %v416, %v424
  %v426 = vsub.s32 0, %v425
  %v427 = vsel %vm414, %v426, %v425
  %vm428 = vcmp.lt.s32.totalorder %v313, 0
  %v429 = vsub.s32 0, %v313
  %v430 = vsel %vm428, %v429, %v313
  %v431 = vmul.u32.u64.compose %v430, 3616814565
  %v432 = vextract.low.u32 %v431
  %v433 = vextract.high.u32 %v431
  %vm434 = vc.u32 %v432, 3616814565
  %v435 = vsel %vm434, 1, 0
  %v436 = vadd.s32 %v433, %v435
  %v437 = vshrl.u32 %v436, 8
  %v438 = vmul.u32 %v437, 304
  %v439 = vsub.s32 %v430, %v438
  %v440 = vsub.s32 0, %v439
  %v441 = vsel %vm428, %v440, %v439
  %vm442 = vcmp.lt.s32.totalorder %v314, 0
  %v443 = vsub.s32 0, %v314
  %v444 = vsel %vm442, %v443, %v314
  %v445 = vmul.u32.u64.compose %v444, 3616814565
  %v446 = vextract.low.u32 %v445
  %v447 = vextract.high.u32 %v445
  %vm448 = vc.u32 %v446, 3616814565
  %v449 = vsel %vm448, 1, 0
  %v450 = vadd.s32 %v447, %v449
  %v451 = vshrl.u32 %v450, 8
  %v452 = vmul.u32 %v451, 304
  %v453 = vsub.s32 %v444, %v452
  %v454 = vsub.s32 0, %v453
  %v455 = vsel %vm442, %v454, %v453
  %vm456 = vcmp.lt.s32.totalorder %v315, 0
  %v457 = vsub.s32 0, %v315
  %v458 = vsel %vm456, %v457, %v315
  %v459 = vmul.u32.u64.compose %v458, 3616814565
  %v460 = vextract.low.u32 %v459
  %v461 = vextract.high.u32 %v459
  %vm462 = vc.u32 %v460, 3616814565
  %v463 = vsel %vm462, 1, 0
  %v464 = vadd.s32 %v461, %v463
  %v465 = vshrl.u32 %v464, 8
  %v466 = vmul.u32 %v465, 304
  %v467 = vsub.s32 %v458, %v466
  %v468 = vsub.s32 0, %v467
  %v469 = vsel %vm456, %v468, %v467
  %vm470 = vcmp.lt.s32.totalorder %v316, 0
  %v471 = vsub.s32 0, %v316
  %v472 = vsel %vm470, %v471, %v316
  %v473 = vmul.u32.u64.compose %v472, 3616814565
  %v474 = vextract.low.u32 %v473
  %v475 = vextract.high.u32 %v473
  %vm476 = vc.u32 %v474, 3616814565
  %v477 = vsel %vm476, 1, 0
  %v478 = vadd.s32 %v475, %v477
  %v479 = vshrl.u32 %v478, 8
  %v480 = vmul.u32 %v479, 304
  %v481 = vsub.s32 %v472, %v480
  %v482 = vsub.s32 0, %v481
  %v483 = vsel %vm470, %v482, %v481
  %vm484 = vcmp.lt.s32.totalorder %v317, 0
  %v485 = vsub.s32 0, %v317
  %v486 = vsel %vm484, %v485, %v317
  %v487 = vmul.u32.u64.compose %v486, 3616814565
  %v488 = vextract.low.u32 %v487
  %v489 = vextract.high.u32 %v487
  %vm490 = vc.u32 %v488, 3616814565
  %v491 = vsel %vm490, 1, 0
  %v492 = vadd.s32 %v489, %v491
  %v493 = vshrl.u32 %v492, 8
  %v494 = vmul.u32 %v493, 304
  %v495 = vsub.s32 %v486, %v494
  %v496 = vsub.s32 0, %v495
  %v497 = vsel %vm484, %v496, %v495
  %vm498 = vcmp.lt.s32.totalorder %v318, 0
  %v499 = vsub.s32 0, %v318
  %v500 = vsel %vm498, %v499, %v318
  %v501 = vmul.u32.u64.compose %v500, 3616814565
  %v502 = vextract.low.u32 %v501
  %v503 = vextract.high.u32 %v501
  %vm504 = vc.u32 %v502, 3616814565
  %v505 = vsel %vm504, 1, 0
  %v506 = vadd.s32 %v503, %v505
  %v507 = vshrl.u32 %v506, 8
  %v508 = vmul.u32 %v507, 304
  %v509 = vsub.s32 %v500, %v508
  %v510 = vsub.s32 0, %v509
  %v511 = vsel %vm498, %v510, %v509
  %vm512 = vcmp.lt.s32.totalorder %v319, 0
  %v513 = vsub.s32 0, %v319
  %v514 = vsel %vm512, %v513, %v319
  %v515 = vmul.u32.u64.compose %v514, 3616814565
  %v516 = vextract.low.u32 %v515
  %v517 = vextract.high.u32 %v515
  %vm518 = vc.u32 %v516, 3616814565
  %v519 = vsel %vm518, 1, 0
  %v520 = vadd.s32 %v517, %v519
  %v521 = vshrl.u32 %v520, 8
  %v522 = vmul.u32 %v521, 304
  %v523 = vsub.s32 %v514, %v522
  %v524 = vsub.s32 0, %v523
  %v525 = vsel %vm512, %v524, %v523
  %vm526 = vcmp.lt.s32.totalorder %v320, 0
  %v527 = vsub.s32 0, %v320
  %v528 = vsel %vm526, %v527, %v320
  %v529 = vmul.u32.u64.compose %v528, 3616814565
  %v530 = vextract.low.u32 %v529
  %v531 = vextract.high.u32 %v529
  %vm532 = vc.u32 %v530, 3616814565
  %v533 = vsel %vm532, 1, 0
  %v534 = vadd.s32 %v531, %v533
  %v535 = vshrl.u32 %v534, 8
  %v536 = vmul.u32 %v535, 304
  %v537 = vsub.s32 %v528, %v536
  %v538 = vsub.s32 0, %v537
  %v539 = vsel %vm526, %v538, %v537
  %vm540 = vcmp.lt.s32.totalorder %v321, 0
  %v541 = vsub.s32 0, %v321
  %v542 = vsel %vm540, %v541, %v321
  %v543 = vmul.u32.u64.compose %v542, 3616814565
  %v544 = vextract.low.u32 %v543
  %v545 = vextract.high.u32 %v543
  %vm546 = vc.u32 %v544, 3616814565
  %v547 = vsel %vm546, 1, 0
  %v548 = vadd.s32 %v545, %v547
  %v549 = vshrl.u32 %v548, 8
  %v550 = vmul.u32 %v549, 304
  %v551 = vsub.s32 %v542, %v550
  %v552 = vsub.s32 0, %v551
  %v553 = vsel %vm540, %v552, %v551
  %vm554 = vcmp.lt.s32.totalorder %v322, 0
  %v555 = vsub.s32 0, %v322
  %v556 = vsel %vm554, %v555, %v322
  %v557 = vmul.u32.u64.compose %v556, 3616814565
  %v558 = vextract.low.u32 %v557
  %v559 = vextract.high.u32 %v557
  %vm560 = vc.u32 %v558, 3616814565
  %v561 = vsel %vm560, 1, 0
  %v562 = vadd.s32 %v559, %v561
  %v563 = vshrl.u32 %v562, 8
  %v564 = vmul.u32 %v563, 304
  %v565 = vsub.s32 %v556, %v564
  %v566 = vsub.s32 0, %v565
  %v567 = vsel %vm554, %v566, %v565
  %vm568 = vcmp.lt.s32.totalorder %v323, 0
  %v569 = vsub.s32 0, %v323
  %v570 = vsel %vm568, %v569, %v323
  %v571 = vmul.u32.u64.compose %v570, 3616814565
  %v572 = vextract.low.u32 %v571
  %v573 = vextract.high.u32 %v571
  %vm574 = vc.u32 %v572, 3616814565
  %v575 = vsel %vm574, 1, 0
  %v576 = vadd.s32 %v573, %v575
  %v577 = vshrl.u32 %v576, 8
  %v578 = vmul.u32 %v577, 304
  %v579 = vsub.s32 %v570, %v578
  %v580 = vsub.s32 0, %v579
  %v581 = vsel %vm568, %v580, %v579
  %vm582 = vcmp.lt.s32.totalorder %v324, 0
  %v583 = vsub.s32 0, %v324
  %v584 = vsel %vm582, %v583, %v324
  %v585 = vmul.u32.u64.compose %v584, 3616814565
  %v586 = vextract.low.u32 %v585
  %v587 = vextract.high.u32 %v585
  %vm588 = vc.u32 %v586, 3616814565
  %v589 = vsel %vm588, 1, 0
  %v590 = vadd.s32 %v587, %v589
  %v591 = vshrl.u32 %v590, 8
  %v592 = vmul.u32 %v591, 304
  %v593 = vsub.s32 %v584, %v592
  %v594 = vsub.s32 0, %v593
  %v595 = vsel %vm582, %v594, %v593
  %vm596 = vcmp.lt.s32.totalorder %v325, 0
  %v597 = vsub.s32 0, %v325
  %v598 = vsel %vm596, %v597, %v325
  %v599 = vmul.u32.u64.compose %v598, 3616814565
  %v600 = vextract.low.u32 %v599
  %v601 = vextract.high.u32 %v599
  %vm602 = vc.u32 %v600, 3616814565
  %v603 = vsel %vm602, 1, 0
  %v604 = vadd.s32 %v601, %v603
  %v605 = vshrl.u32 %v604, 8
  %v606 = vmul.u32 %v605, 304
  %v607 = vsub.s32 %v598, %v606
  %v608 = vsub.s32 0, %v607
  %v609 = vsel %vm596, %v608, %v607
  %vm610 = vcmp.lt.s32.totalorder %v326, 0
  %v611 = vsub.s32 0, %v326
  %v612 = vsel %vm610, %v611, %v326
  %v613 = vmul.u32.u64.compose %v612, 3616814565
  %v614 = vextract.low.u32 %v613
  %v615 = vextract.high.u32 %v613
  %vm616 = vc.u32 %v614, 3616814565
  %v617 = vsel %vm616, 1, 0
  %v618 = vadd.s32 %v615, %v617
  %v619 = vshrl.u32 %v618, 8
  %v620 = vmul.u32 %v619, 304
  %v621 = vsub.s32 %v612, %v620
  %v622 = vsub.s32 0, %v621
  %v623 = vsel %vm610, %v622, %v621
  %vm624 = vcmp.lt.s32.totalorder %v327, 0
  %v625 = vsub.s32 0, %v327
  %v626 = vsel %vm624, %v625, %v327
  %v627 = vmul.u32.u64.compose %v626, 3616814565
  %v628 = vextract.low.u32 %v627
  %v629 = vextract.high.u32 %v627
  %vm630 = vc.u32 %v628, 3616814565
  %v631 = vsel %vm630, 1, 0
  %v632 = vadd.s32 %v629, %v631
  %v633 = vshrl.u32 %v632, 8
  %v634 = vmul.u32 %v633, 304
  %v635 = vsub.s32 %v626, %v634
  %v636 = vsub.s32 0, %v635
  %v637 = vsel %vm624, %v636, %v635
  %vm638 = vcmp.lt.s32.totalorder %v328, 0
  %v639 = vsub.s32 0, %v328
  %v640 = vsel %vm638, %v639, %v328
  %v641 = vmul.u32.u64.compose %v640, 3616814565
  %v642 = vextract.low.u32 %v641
  %v643 = vextract.high.u32 %v641
  %vm644 = vc.u32 %v642, 3616814565
  %v645 = vsel %vm644, 1, 0
  %v646 = vadd.s32 %v643, %v645
  %v647 = vshrl.u32 %v646, 8
  %v648 = vmul.u32 %v647, 304
  %v649 = vsub.s32 %v640, %v648
  %v650 = vsub.s32 0, %v649
  %v651 = vsel %vm638, %v650, %v649
  %vm652 = vcmp.lt.s32.totalorder %v329, 0
  %v653 = vsub.s32 0, %v329
  %v654 = vsel %vm652, %v653, %v329
  %v655 = vmul.u32.u64.compose %v654, 3616814565
  %v656 = vextract.low.u32 %v655
  %v657 = vextract.high.u32 %v655
  %vm658 = vc.u32 %v656, 3616814565
  %v659 = vsel %vm658, 1, 0
  %v660 = vadd.s32 %v657, %v659
  %v661 = vshrl.u32 %v660, 8
  %v662 = vmul.u32 %v661, 304
  %v663 = vsub.s32 %v654, %v662
  %v664 = vsub.s32 0, %v663
  %v665 = vsel %vm652, %v664, %v663
  %vm666 = vcmp.lt.s32.totalorder %v330, 0
  %v667 = vsub.s32 0, %v330
  %v668 = vsel %vm666, %v667, %v330
  %v669 = vmul.u32.u64.compose %v668, 3616814565
  %v670 = vextract.low.u32 %v669
  %v671 = vextract.high.u32 %v669
  %vm672 = vc.u32 %v670, 3616814565
  %v673 = vsel %vm672, 1, 0
  %v674 = vadd.s32 %v671, %v673
  %v675 = vshrl.u32 %v674, 8
  %v676 = vmul.u32 %v675, 304
  %v677 = vsub.s32 %v668, %v676
  %v678 = vsub.s32 0, %v677
  %v679 = vsel %vm666, %v678, %v677
  %vm680 = vcmp.lt.s32.totalorder %v331, 0
  %v681 = vsub.s32 0, %v331
  %v682 = vsel %vm680, %v681, %v331
  %v683 = vmul.u32.u64.compose %v682, 3616814565
  %v684 = vextract.low.u32 %v683
  %v685 = vextract.high.u32 %v683
  %vm686 = vc.u32 %v684, 3616814565
  %v687 = vsel %vm686, 1, 0
  %v688 = vadd.s32 %v685, %v687
  %v689 = vshrl.u32 %v688, 8
  %v690 = vmul.u32 %v689, 304
  %v691 = vsub.s32 %v682, %v690
  %v692 = vsub.s32 0, %v691
  %v693 = vsel %vm680, %v692, %v691
  %vm694 = vcmp.lt.s32.totalorder %v332, 0
  %v695 = vsub.s32 0, %v332
  %v696 = vsel %vm694, %v695, %v332
  %v697 = vmul.u32.u64.compose %v696, 3616814565
  %v698 = vextract.low.u32 %v697
  %v699 = vextract.high.u32 %v697
  %vm700 = vc.u32 %v698, 3616814565
  %v701 = vsel %vm700, 1, 0
  %v702 = vadd.s32 %v699, %v701
  %v703 = vshrl.u32 %v702, 8
  %v704 = vmul.u32 %v703, 304
  %v705 = vsub.s32 %v696, %v704
  %v706 = vsub.s32 0, %v705
  %v707 = vsel %vm694, %v706, %v705
  %vm708 = vcmp.lt.s32.totalorder %v333, 0
  %v709 = vsub.s32 0, %v333
  %v710 = vsel %vm708, %v709, %v333
  %v711 = vmul.u32.u64.compose %v710, 3616814565
  %v712 = vextract.low.u32 %v711
  %v713 = vextract.high.u32 %v711
  %vm714 = vc.u32 %v712, 3616814565
  %v715 = vsel %vm714, 1, 0
  %v716 = vadd.s32 %v713, %v715
  %v717 = vshrl.u32 %v716, 8
  %v718 = vmul.u32 %v717, 304
  %v719 = vsub.s32 %v710, %v718
  %v720 = vsub.s32 0, %v719
  %v721 = vsel %vm708, %v720, %v719
  %vm722 = vcmp.lt.s32.totalorder %v334, 0
  %v723 = vsub.s32 0, %v334
  %v724 = vsel %vm722, %v723, %v334
  %v725 = vmul.u32.u64.compose %v724, 3616814565
  %v726 = vextract.low.u32 %v725
  %v727 = vextract.high.u32 %v725
  %vm728 = vc.u32 %v726, 3616814565
  %v729 = vsel %vm728, 1, 0
  %v730 = vadd.s32 %v727, %v729
  %v731 = vshrl.u32 %v730, 8
  %v732 = vmul.u32 %v731, 304
  %v733 = vsub.s32 %v724, %v732
  %v734 = vsub.s32 0, %v733
  %v735 = vsel %vm722, %v734, %v733
  %vm736 = vcmp.lt.s32.totalorder %v335, 0
  %v737 = vsub.s32 0, %v335
  %v738 = vsel %vm736, %v737, %v335
  %v739 = vmul.u32.u64.compose %v738, 3616814565
  %v740 = vextract.low.u32 %v739
  %v741 = vextract.high.u32 %v739
  %vm742 = vc.u32 %v740, 3616814565
  %v743 = vsel %vm742, 1, 0
  %v744 = vadd.s32 %v741, %v743
  %v745 = vshrl.u32 %v744, 8
  %v746 = vmul.u32 %v745, 304
  %v747 = vsub.s32 %v738, %v746
  %v748 = vsub.s32 0, %v747
  %v749 = vsel %vm736, %v748, %v747
  %vm750 = vcmp.lt.s32.totalorder %v336, 0
  %v751 = vsub.s32 0, %v336
  %v752 = vsel %vm750, %v751, %v336
  %v753 = vmul.u32.u64.compose %v752, 3616814565
  %v754 = vextract.low.u32 %v753
  %v755 = vextract.high.u32 %v753
  %vm756 = vc.u32 %v754, 3616814565
  %v757 = vsel %vm756, 1, 0
  %v758 = vadd.s32 %v755, %v757
  %v759 = vshrl.u32 %v758, 8
  %v760 = vmul.u32 %v759, 304
  %v761 = vsub.s32 %v752, %v760
  %v762 = vsub.s32 0, %v761
  %v763 = vsel %vm750, %v762, %v761
  %vm764 = vcmp.lt.s32.totalorder %v337, 0
  %v765 = vsub.s32 0, %v337
  %v766 = vsel %vm764, %v765, %v337
  %v767 = vmul.u32.u64.compose %v766, 3616814565
  %v768 = vextract.low.u32 %v767
  %v769 = vextract.high.u32 %v767
  %vm770 = vc.u32 %v768, 3616814565
  %v771 = vsel %vm770, 1, 0
  %v772 = vadd.s32 %v769, %v771
  %v773 = vshrl.u32 %v772, 8
  %v774 = vmul.u32 %v773, 304
  %v775 = vsub.s32 %v766, %v774
  %v776 = vsub.s32 0, %v775
  %v777 = vsel %vm764, %v776, %v775
  %vm778 = vcmp.lt.s32.totalorder %v338, 0
  %v779 = vsub.s32 0, %v338
  %v780 = vsel %vm778, %v779, %v338
  %v781 = vmul.u32.u64.compose %v780, 3616814565
  %v782 = vextract.low.u32 %v781
  %v783 = vextract.high.u32 %v781
  %vm784 = vc.u32 %v782, 3616814565
  %v785 = vsel %vm784, 1, 0
  %v786 = vadd.s32 %v783, %v785
  %v787 = vshrl.u32 %v786, 8
  %v788 = vmul.u32 %v787, 304
  %v789 = vsub.s32 %v780, %v788
  %v790 = vsub.s32 0, %v789
  %v791 = vsel %vm778, %v790, %v789
  %vm792 = vcmp.lt.s32.totalorder %v339, 0
  %v793 = vsub.s32 0, %v339
  %v794 = vsel %vm792, %v793, %v339
  %v795 = vmul.u32.u64.compose %v794, 3616814565
  %v796 = vextract.low.u32 %v795
  %v797 = vextract.high.u32 %v795
  %vm798 = vc.u32 %v796, 3616814565
  %v799 = vsel %vm798, 1, 0
  %v800 = vadd.s32 %v797, %v799
  %v801 = vshrl.u32 %v800, 8
  %v802 = vmul.u32 %v801, 304
  %v803 = vsub.s32 %v794, %v802
  %v804 = vsub.s32 0, %v803
  %v805 = vsel %vm792, %v804, %v803
  %vm806 = vcmp.lt.s32.totalorder %v340, 0
  %v807 = vsub.s32 0, %v340
  %v808 = vsel %vm806, %v807, %v340
  %v809 = vmul.u32.u64.compose %v808, 3616814565
  %v810 = vextract.low.u32 %v809
  %v811 = vextract.high.u32 %v809
  %vm812 = vc.u32 %v810, 3616814565
  %v813 = vsel %vm812, 1, 0
  %v814 = vadd.s32 %v811, %v813
  %v815 = vshrl.u32 %v814, 8
  %v816 = vmul.u32 %v815, 304
  %v817 = vsub.s32 %v808, %v816
  %v818 = vsub.s32 0, %v817
  %v819 = vsel %vm806, %v818, %v817
  %vm820 = vcmp.lt.s32.totalorder %v341, 0
  %v821 = vsub.s32 0, %v341
  %v822 = vsel %vm820, %v821, %v341
  %v823 = vmul.u32.u64.compose %v822, 3616814565
  %v824 = vextract.low.u32 %v823
  %v825 = vextract.high.u32 %v823
  %vm826 = vc.u32 %v824, 3616814565
  %v827 = vsel %vm826, 1, 0
  %v828 = vadd.s32 %v825, %v827
  %v829 = vshrl.u32 %v828, 8
  %v830 = vmul.u32 %v829, 304
  %v831 = vsub.s32 %v822, %v830
  %v832 = vsub.s32 0, %v831
  %v833 = vsel %vm820, %v832, %v831
  %vm834 = vcmp.lt.s32.totalorder %v342, 0
  %v835 = vsub.s32 0, %v342
  %v836 = vsel %vm834, %v835, %v342
  %v837 = vmul.u32.u64.compose %v836, 3616814565
  %v838 = vextract.low.u32 %v837
  %v839 = vextract.high.u32 %v837
  %vm840 = vc.u32 %v838, 3616814565
  %v841 = vsel %vm840, 1, 0
  %v842 = vadd.s32 %v839, %v841
  %v843 = vshrl.u32 %v842, 8
  %v844 = vmul.u32 %v843, 304
  %v845 = vsub.s32 %v836, %v844
  %v846 = vsub.s32 0, %v845
  %v847 = vsel %vm834, %v846, %v845
  %vm848 = vcmp.lt.s32.totalorder %v343, 0
  %v849 = vsub.s32 0, %v343
  %v850 = vsel %vm848, %v849, %v343
  %v851 = vmul.u32.u64.compose %v850, 3616814565
  %v852 = vextract.low.u32 %v851
  %v853 = vextract.high.u32 %v851
  %vm854 = vc.u32 %v852, 3616814565
  %v855 = vsel %vm854, 1, 0
  %v856 = vadd.s32 %v853, %v855
  %v857 = vshrl.u32 %v856, 8
  %v858 = vmul.u32 %v857, 304
  %v859 = vsub.s32 %v850, %v858
  %v860 = vsub.s32 0, %v859
  %v861 = vsel %vm848, %v860, %v859
  %vm862 = vcmp.lt.s32.totalorder %v344, 0
  %v863 = vsub.s32 0, %v344
  %v864 = vsel %vm862, %v863, %v344
  %v865 = vmul.u32.u64.compose %v864, 3616814565
  %v866 = vextract.low.u32 %v865
  %v867 = vextract.high.u32 %v865
  %vm868 = vc.u32 %v866, 3616814565
  %v869 = vsel %vm868, 1, 0
  %v870 = vadd.s32 %v867, %v869
  %v871 = vshrl.u32 %v870, 8
  %v872 = vmul.u32 %v871, 304
  %v873 = vsub.s32 %v864, %v872
  %v874 = vsub.s32 0, %v873
  %v875 = vsel %vm862, %v874, %v873
  %vm876 = vcmp.lt.s32.totalorder %v345, 0
  %v877 = vsub.s32 0, %v345
  %v878 = vsel %vm876, %v877, %v345
  %v879 = vmul.u32.u64.compose %v878, 3616814565
  %v880 = vextract.low.u32 %v879
  %v881 = vextract.high.u32 %v879
  %vm882 = vc.u32 %v880, 3616814565
  %v883 = vsel %vm882, 1, 0
  %v884 = vadd.s32 %v881, %v883
  %v885 = vshrl.u32 %v884, 8
  %v886 = vmul.u32 %v885, 304
  %v887 = vsub.s32 %v878, %v886
  %v888 = vsub.s32 0, %v887
  %v889 = vsel %vm876, %v888, %v887
  %vm890 = vcmp.lt.s32.totalorder %v346, 0
  %v891 = vsub.s32 0, %v346
  %v892 = vsel %vm890, %v891, %v346
  %v893 = vmul.u32.u64.compose %v892, 3616814565
  %v894 = vextract.low.u32 %v893
  %v895 = vextract.high.u32 %v893
  %vm896 = vc.u32 %v894, 3616814565
  %v897 = vsel %vm896, 1, 0
  %v898 = vadd.s32 %v895, %v897
  %v899 = vshrl.u32 %v898, 8
  %v900 = vmul.u32 %v899, 304
  %v901 = vsub.s32 %v892, %v900
  %v902 = vsub.s32 0, %v901
  %v903 = vsel %vm890, %v902, %v901
  %vm904 = vcmp.lt.s32.totalorder %v347, 0
  %v905 = vsub.s32 0, %v347
  %v906 = vsel %vm904, %v905, %v347
  %v907 = vmul.u32.u64.compose %v906, 3616814565
  %v908 = vextract.low.u32 %v907
  %v909 = vextract.high.u32 %v907
  %vm910 = vc.u32 %v908, 3616814565
  %v911 = vsel %vm910, 1, 0
  %v912 = vadd.s32 %v909, %v911
  %v913 = vshrl.u32 %v912, 8
  %v914 = vmul.u32 %v913, 304
  %v915 = vsub.s32 %v906, %v914
  %v916 = vsub.s32 0, %v915
  %v917 = vsel %vm904, %v916, %v915
  %vm918 = vcmp.lt.s32.totalorder %v348, 0
  %v919 = vsub.s32 0, %v348
  %v920 = vsel %vm918, %v919, %v348
  %v921 = vmul.u32.u64.compose %v920, 3616814565
  %v922 = vextract.low.u32 %v921
  %v923 = vextract.high.u32 %v921
  %vm924 = vc.u32 %v922, 3616814565
  %v925 = vsel %vm924, 1, 0
  %v926 = vadd.s32 %v923, %v925
  %v927 = vshrl.u32 %v926, 8
  %v928 = vmul.u32 %v927, 304
  %v929 = vsub.s32 %v920, %v928
  %v930 = vsub.s32 0, %v929
  %v931 = vsel %vm918, %v930, %v929
  %vm932 = vcmp.lt.s32.totalorder %v349, 0
  %v933 = vsub.s32 0, %v349
  %v934 = vsel %vm932, %v933, %v349
  %v935 = vmul.u32.u64.compose %v934, 3616814565
  %v936 = vextract.low.u32 %v935
  %v937 = vextract.high.u32 %v935
  %vm938 = vc.u32 %v936, 3616814565
  %v939 = vsel %vm938, 1, 0
  %v940 = vadd.s32 %v937, %v939
  %v941 = vshrl.u32 %v940, 8
  %v942 = vmul.u32 %v941, 304
  %v943 = vsub.s32 %v934, %v942
  %v944 = vsub.s32 0, %v943
  %v945 = vsel %vm932, %v944, %v943
  %vm946 = vcmp.lt.s32.totalorder %v350, 0
  %v947 = vsub.s32 0, %v350
  %v948 = vsel %vm946, %v947, %v350
  %v949 = vmul.u32.u64.compose %v948, 3616814565
  %v950 = vextract.low.u32 %v949
  %v951 = vextract.high.u32 %v949
  %vm952 = vc.u32 %v950, 3616814565
  %v953 = vsel %vm952, 1, 0
  %v954 = vadd.s32 %v951, %v953
  %v955 = vshrl.u32 %v954, 8
  %v956 = vmul.u32 %v955, 304
  %v957 = vsub.s32 %v948, %v956
  %v958 = vsub.s32 0, %v957
  %v959 = vsel %vm946, %v958, %v957
  %vm960 = vcmp.lt.s32.totalorder %v351, 0
  %v961 = vsub.s32 0, %v351
  %v962 = vsel %vm960, %v961, %v351
  %v963 = vmul.u32.u64.compose %v962, 3616814565
  %v964 = vextract.low.u32 %v963
  %v965 = vextract.high.u32 %v963
  %vm966 = vc.u32 %v964, 3616814565
  %v967 = vsel %vm966, 1, 0
  %v968 = vadd.s32 %v965, %v967
  %v969 = vshrl.u32 %v968, 8
  %v970 = vmul.u32 %v969, 304
  %v971 = vsub.s32 %v962, %v970
  %v972 = vsub.s32 0, %v971
  %v973 = vsel %vm960, %v972, %v971
  %vm974 = vcmp.lt.s32.totalorder %v352, 0
  %v975 = vsub.s32 0, %v352
  %v976 = vsel %vm974, %v975, %v352
  %v977 = vmul.u32.u64.compose %v976, 3616814565
  %v978 = vextract.low.u32 %v977
  %v979 = vextract.high.u32 %v977
  %vm980 = vc.u32 %v978, 3616814565
  %v981 = vsel %vm980, 1, 0
  %v982 = vadd.s32 %v979, %v981
  %v983 = vshrl.u32 %v982, 8
  %v984 = vmul.u32 %v983, 304
  %v985 = vsub.s32 %v976, %v984
  %v986 = vsub.s32 0, %v985
  %v987 = vsel %vm974, %v986, %v985
  %vm988 = vcmp.lt.s32.totalorder %v353, 0
  %v989 = vsub.s32 0, %v353
  %v990 = vsel %vm988, %v989, %v353
  %v991 = vmul.u32.u64.compose %v990, 3616814565
  %v992 = vextract.low.u32 %v991
  %v993 = vextract.high.u32 %v991
  %vm994 = vc.u32 %v992, 3616814565
  %v995 = vsel %vm994, 1, 0
  %v996 = vadd.s32 %v993, %v995
  %v997 = vshrl.u32 %v996, 8
  %v998 = vmul.u32 %v997, 304
  %v999 = vsub.s32 %v990, %v998
  %v1000 = vsub.s32 0, %v999
  %v1001 = vsel %vm988, %v1000, %v999
  %vm1002 = vcmp.lt.s32.totalorder %v354, 0
  %v1003 = vsub.s32 0, %v354
  %v1004 = vsel %vm1002, %v1003, %v354
  %v1005 = vmul.u32.u64.compose %v1004, 3616814565
  %v1006 = vextract.low.u32 %v1005
  %v1007 = vextract.high.u32 %v1005
  %vm1008 = vc.u32 %v1006, 3616814565
  %v1009 = vsel %vm1008, 1, 0
  %v1010 = vadd.s32 %v1007, %v1009
  %v1011 = vshrl.u32 %v1010, 8
  %v1012 = vmul.u32 %v1011, 304
  %v1013 = vsub.s32 %v1004, %v1012
  %v1014 = vsub.s32 0, %v1013
  %v1015 = vsel %vm1002, %v1014, %v1013
  %vm1016 = vcmp.lt.s32.totalorder %v355, 0
  %v1017 = vsub.s32 0, %v355
  %v1018 = vsel %vm1016, %v1017, %v355
  %v1019 = vmul.u32.u64.compose %v1018, 3616814565
  %v1020 = vextract.low.u32 %v1019
  %v1021 = vextract.high.u32 %v1019
  %vm1022 = vc.u32 %v1020, 3616814565
  %v1023 = vsel %vm1022, 1, 0
  %v1024 = vadd.s32 %v1021, %v1023
  %v1025 = vshrl.u32 %v1024, 8
  %v1026 = vmul.u32 %v1025, 304
  %v1027 = vsub.s32 %v1018, %v1026
  %v1028 = vsub.s32 0, %v1027
  %v1029 = vsel %vm1016, %v1028, %v1027
  %vm1030 = vcmp.lt.s32.totalorder %v356, 0
  %v1031 = vsub.s32 0, %v356
  %v1032 = vsel %vm1030, %v1031, %v356
  %v1033 = vmul.u32.u64.compose %v1032, 3616814565
  %v1034 = vextract.low.u32 %v1033
  %v1035 = vextract.high.u32 %v1033
  %vm1036 = vc.u32 %v1034, 3616814565
  %v1037 = vsel %vm1036, 1, 0
  %v1038 = vadd.s32 %v1035, %v1037
  %v1039 = vshrl.u32 %v1038, 8
  %v1040 = vmul.u32 %v1039, 304
  %v1041 = vsub.s32 %v1032, %v1040
  %v1042 = vsub.s32 0, %v1041
  %v1043 = vsel %vm1030, %v1042, %v1041
  %vm1044 = vcmp.lt.s32.totalorder %v357, 0
  %v1045 = vsub.s32 0, %v357
  %v1046 = vsel %vm1044, %v1045, %v357
  %v1047 = vmul.u32.u64.compose %v1046, 3616814565
  %v1048 = vextract.low.u32 %v1047
  %v1049 = vextract.high.u32 %v1047
  %vm1050 = vc.u32 %v1048, 3616814565
  %v1051 = vsel %vm1050, 1, 0
  %v1052 = vadd.s32 %v1049, %v1051
  %v1053 = vshrl.u32 %v1052, 8
  %v1054 = vmul.u32 %v1053, 304
  %v1055 = vsub.s32 %v1046, %v1054
  %v1056 = vsub.s32 0, %v1055
  %v1057 = vsel %vm1044, %v1056, %v1055
  %vm1058 = vcmp.lt.s32.totalorder %v358, 0
  %v1059 = vsub.s32 0, %v358
  %v1060 = vsel %vm1058, %v1059, %v358
  %v1061 = vmul.u32.u64.compose %v1060, 3616814565
  %v1062 = vextract.low.u32 %v1061
  %v1063 = vextract.high.u32 %v1061
  %vm1064 = vc.u32 %v1062, 3616814565
  %v1065 = vsel %vm1064, 1, 0
  %v1066 = vadd.s32 %v1063, %v1065
  %v1067 = vshrl.u32 %v1066, 8
  %v1068 = vmul.u32 %v1067, 304
  %v1069 = vsub.s32 %v1060, %v1068
  %v1070 = vsub.s32 0, %v1069
  %v1071 = vsel %vm1058, %v1070, %v1069
  %vm1072 = vcmp.lt.s32.totalorder %v359, 0
  %v1073 = vsub.s32 0, %v359
  %v1074 = vsel %vm1072, %v1073, %v359
  %v1075 = vmul.u32.u64.compose %v1074, 3616814565
  %v1076 = vextract.low.u32 %v1075
  %v1077 = vextract.high.u32 %v1075
  %vm1078 = vc.u32 %v1076, 3616814565
  %v1079 = vsel %vm1078, 1, 0
  %v1080 = vadd.s32 %v1077, %v1079
  %v1081 = vshrl.u32 %v1080, 8
  %v1082 = vmul.u32 %v1081, 304
  %v1083 = vsub.s32 %v1074, %v1082
  %v1084 = vsub.s32 0, %v1083
  %v1085 = vsel %vm1072, %v1084, %v1083
  %vm1086 = vcmp.lt.s32.totalorder %v360, 0
  %v1087 = vsub.s32 0, %v360
  %v1088 = vsel %vm1086, %v1087, %v360
  %v1089 = vmul.u32.u64.compose %v1088, 3616814565
  %v1090 = vextract.low.u32 %v1089
  %v1091 = vextract.high.u32 %v1089
  %vm1092 = vc.u32 %v1090, 3616814565
  %v1093 = vsel %vm1092, 1, 0
  %v1094 = vadd.s32 %v1091, %v1093
  %v1095 = vshrl.u32 %v1094, 8
  %v1096 = vmul.u32 %v1095, 304
  %v1097 = vsub.s32 %v1088, %v1096
  %v1098 = vsub.s32 0, %v1097
  %v1099 = vsel %vm1086, %v1098, %v1097
  %vm1100 = vcmp.lt.s32.totalorder %v361, 0
  %v1101 = vsub.s32 0, %v361
  %v1102 = vsel %vm1100, %v1101, %v361
  %v1103 = vmul.u32.u64.compose %v1102, 3616814565
  %v1104 = vextract.low.u32 %v1103
  %v1105 = vextract.high.u32 %v1103
  %vm1106 = vc.u32 %v1104, 3616814565
  %v1107 = vsel %vm1106, 1, 0
  %v1108 = vadd.s32 %v1105, %v1107
  %v1109 = vshrl.u32 %v1108, 8
  %v1110 = vmul.u32 %v1109, 304
  %v1111 = vsub.s32 %v1102, %v1110
  %v1112 = vsub.s32 0, %v1111
  %v1113 = vsel %vm1100, %v1112, %v1111
  %vm1114 = vcmp.lt.s32.totalorder %v362, 0
  %v1115 = vsub.s32 0, %v362
  %v1116 = vsel %vm1114, %v1115, %v362
  %v1117 = vmul.u32.u64.compose %v1116, 3616814565
  %v1118 = vextract.low.u32 %v1117
  %v1119 = vextract.high.u32 %v1117
  %vm1120 = vc.u32 %v1118, 3616814565
  %v1121 = vsel %vm1120, 1, 0
  %v1122 = vadd.s32 %v1119, %v1121
  %v1123 = vshrl.u32 %v1122, 8
  %v1124 = vmul.u32 %v1123, 304
  %v1125 = vsub.s32 %v1116, %v1124
  %v1126 = vsub.s32 0, %v1125
  %v1127 = vsel %vm1114, %v1126, %v1125
  %vm1128 = vcmp.lt.s32.totalorder %v363, 0
  %v1129 = vsub.s32 0, %v363
  %v1130 = vsel %vm1128, %v1129, %v363
  %v1131 = vmul.u32.u64.compose %v1130, 3616814565
  %v1132 = vextract.low.u32 %v1131
  %v1133 = vextract.high.u32 %v1131
  %vm1134 = vc.u32 %v1132, 3616814565
  %v1135 = vsel %vm1134, 1, 0
  %v1136 = vadd.s32 %v1133, %v1135
  %v1137 = vshrl.u32 %v1136, 8
  %v1138 = vmul.u32 %v1137, 304
  %v1139 = vsub.s32 %v1130, %v1138
  %v1140 = vsub.s32 0, %v1139
  %v1141 = vsel %vm1128, %v1140, %v1139
  %vm1142 = vcmp.lt.s32.totalorder %v364, 0
  %v1143 = vsub.s32 0, %v364
  %v1144 = vsel %vm1142, %v1143, %v364
  %v1145 = vmul.u32.u64.compose %v1144, 3616814565
  %v1146 = vextract.low.u32 %v1145
  %v1147 = vextract.high.u32 %v1145
  %vm1148 = vc.u32 %v1146, 3616814565
  %v1149 = vsel %vm1148, 1, 0
  %v1150 = vadd.s32 %v1147, %v1149
  %v1151 = vshrl.u32 %v1150, 8
  %v1152 = vmul.u32 %v1151, 304
  %v1153 = vsub.s32 %v1144, %v1152
  %v1154 = vsub.s32 0, %v1153
  %v1155 = vsel %vm1142, %v1154, %v1153
  %vm1156 = vcmp.lt.s32.totalorder %v365, 0
  %v1157 = vsub.s32 0, %v365
  %v1158 = vsel %vm1156, %v1157, %v365
  %v1159 = vmul.u32.u64.compose %v1158, 3616814565
  %v1160 = vextract.low.u32 %v1159
  %v1161 = vextract.high.u32 %v1159
  %vm1162 = vc.u32 %v1160, 3616814565
  %v1163 = vsel %vm1162, 1, 0
  %v1164 = vadd.s32 %v1161, %v1163
  %v1165 = vshrl.u32 %v1164, 8
  %v1166 = vmul.u32 %v1165, 304
  %v1167 = vsub.s32 %v1158, %v1166
  %v1168 = vsub.s32 0, %v1167
  %v1169 = vsel %vm1156, %v1168, %v1167
  %vm1170 = vcmp.lt.s32.totalorder %v366, 0
  %v1171 = vsub.s32 0, %v366
  %v1172 = vsel %vm1170, %v1171, %v366
  %v1173 = vmul.u32.u64.compose %v1172, 3616814565
  %v1174 = vextract.low.u32 %v1173
  %v1175 = vextract.high.u32 %v1173
  %vm1176 = vc.u32 %v1174, 3616814565
  %v1177 = vsel %vm1176, 1, 0
  %v1178 = vadd.s32 %v1175, %v1177
  %v1179 = vshrl.u32 %v1178, 8
  %v1180 = vmul.u32 %v1179, 304
  %v1181 = vsub.s32 %v1172, %v1180
  %v1182 = vsub.s32 0, %v1181
  %v1183 = vsel %vm1170, %v1182, %v1181
  %vm1184 = vcmp.lt.s32.totalorder %v367, 0
  %v1185 = vsub.s32 0, %v367
  %v1186 = vsel %vm1184, %v1185, %v367
  %v1187 = vmul.u32.u64.compose %v1186, 3616814565
  %v1188 = vextract.low.u32 %v1187
  %v1189 = vextract.high.u32 %v1187
  %vm1190 = vc.u32 %v1188, 3616814565
  %v1191 = vsel %vm1190, 1, 0
  %v1192 = vadd.s32 %v1189, %v1191
  %v1193 = vshrl.u32 %v1192, 8
  %v1194 = vmul.u32 %v1193, 304
  %v1195 = vsub.s32 %v1186, %v1194
  %v1196 = vsub.s32 0, %v1195
  %v1197 = vsel %vm1184, %v1196, %v1195
  %vm1198 = vcmp.lt.s32.totalorder %v368, 0
  %v1199 = vsub.s32 0, %v368
  %v1200 = vsel %vm1198, %v1199, %v368
  %v1201 = vmul.u32.u64.compose %v1200, 3616814565
  %v1202 = vextract.low.u32 %v1201
  %v1203 = vextract.high.u32 %v1201
  %vm1204 = vc.u32 %v1202, 3616814565
  %v1205 = vsel %vm1204, 1, 0
  %v1206 = vadd.s32 %v1203, %v1205
  %v1207 = vshrl.u32 %v1206, 8
  %v1208 = vmul.u32 %v1207, 304
  %v1209 = vsub.s32 %v1200, %v1208
  %v1210 = vsub.s32 0, %v1209
  %v1211 = vsel %vm1198, %v1210, %v1209
  %vm1212 = vcmp.lt.s32.totalorder %v369, 0
  %v1213 = vsub.s32 0, %v369
  %v1214 = vsel %vm1212, %v1213, %v369
  %v1215 = vmul.u32.u64.compose %v1214, 3616814565
  %v1216 = vextract.low.u32 %v1215
  %v1217 = vextract.high.u32 %v1215
  %vm1218 = vc.u32 %v1216, 3616814565
  %v1219 = vsel %vm1218, 1, 0
  %v1220 = vadd.s32 %v1217, %v1219
  %v1221 = vshrl.u32 %v1220, 8
  %v1222 = vmul.u32 %v1221, 304
  %v1223 = vsub.s32 %v1214, %v1222
  %v1224 = vsub.s32 0, %v1223
  %v1225 = vsel %vm1212, %v1224, %v1223
  %vm1226 = vcmp.lt.s32.totalorder %v370, 0
  %v1227 = vsub.s32 0, %v370
  %v1228 = vsel %vm1226, %v1227, %v370
  %v1229 = vmul.u32.u64.compose %v1228, 3616814565
  %v1230 = vextract.low.u32 %v1229
  %v1231 = vextract.high.u32 %v1229
  %vm1232 = vc.u32 %v1230, 3616814565
  %v1233 = vsel %vm1232, 1, 0
  %v1234 = vadd.s32 %v1231, %v1233
  %v1235 = vshrl.u32 %v1234, 8
  %v1236 = vmul.u32 %v1235, 304
  %v1237 = vsub.s32 %v1228, %v1236
  %v1238 = vsub.s32 0, %v1237
  %v1239 = vsel %vm1226, %v1238, %v1237
  %vm1240 = vcmp.lt.s32.totalorder %v371, 0
  %v1241 = vsub.s32 0, %v371
  %v1242 = vsel %vm1240, %v1241, %v371
  %v1243 = vmul.u32.u64.compose %v1242, 3616814565
  %v1244 = vextract.low.u32 %v1243
  %v1245 = vextract.high.u32 %v1243
  %vm1246 = vc.u32 %v1244, 3616814565
  %v1247 = vsel %vm1246, 1, 0
  %v1248 = vadd.s32 %v1245, %v1247
  %v1249 = vshrl.u32 %v1248, 8
  %v1250 = vmul.u32 %v1249, 304
  %v1251 = vsub.s32 %v1242, %v1250
  %v1252 = vsub.s32 0, %v1251
  %v1253 = vsel %vm1240, %v1252, %v1251
  %vm1254 = vcmp.lt.s32.totalorder %v372, 0
  %v1255 = vsub.s32 0, %v372
  %v1256 = vsel %vm1254, %v1255, %v372
  %v1257 = vmul.u32.u64.compose %v1256, 3616814565
  %v1258 = vextract.low.u32 %v1257
  %v1259 = vextract.high.u32 %v1257
  %vm1260 = vc.u32 %v1258, 3616814565
  %v1261 = vsel %vm1260, 1, 0
  %v1262 = vadd.s32 %v1259, %v1261
  %v1263 = vshrl.u32 %v1262, 8
  %v1264 = vmul.u32 %v1263, 304
  %v1265 = vsub.s32 %v1256, %v1264
  %v1266 = vsub.s32 0, %v1265
  %v1267 = vsel %vm1254, %v1266, %v1265
  %vm1268 = vcmp.lt.s32.totalorder %v373, 0
  %v1269 = vsub.s32 0, %v373
  %v1270 = vsel %vm1268, %v1269, %v373
  %v1271 = vmul.u32.u64.compose %v1270, 3616814565
  %v1272 = vextract.low.u32 %v1271
  %v1273 = vextract.high.u32 %v1271
  %vm1274 = vc.u32 %v1272, 3616814565
  %v1275 = vsel %vm1274, 1, 0
  %v1276 = vadd.s32 %v1273, %v1275
  %v1277 = vshrl.u32 %v1276, 8
  %v1278 = vmul.u32 %v1277, 304
  %v1279 = vsub.s32 %v1270, %v1278
  %v1280 = vsub.s32 0, %v1279
  %v1281 = vsel %vm1268, %v1280, %v1279
  %vm1282 = vcmp.lt.s32.totalorder %v374, 0
  %v1283 = vsub.s32 0, %v374
  %v1284 = vsel %vm1282, %v1283, %v374
  %v1285 = vmul.u32.u64.compose %v1284, 3616814565
  %v1286 = vextract.low.u32 %v1285
  %v1287 = vextract.high.u32 %v1285
  %vm1288 = vc.u32 %v1286, 3616814565
  %v1289 = vsel %vm1288, 1, 0
  %v1290 = vadd.s32 %v1287, %v1289
  %v1291 = vshrl.u32 %v1290, 8
  %v1292 = vmul.u32 %v1291, 304
  %v1293 = vsub.s32 %v1284, %v1292
  %v1294 = vsub.s32 0, %v1293
  %v1295 = vsel %vm1282, %v1294, %v1293
  %vm1296 = vcmp.lt.s32.totalorder %v375, 0
  %v1297 = vsub.s32 0, %v375
  %v1298 = vsel %vm1296, %v1297, %v375
  %v1299 = vmul.u32.u64.compose %v1298, 3616814565
  %v1300 = vextract.low.u32 %v1299
  %v1301 = vextract.high.u32 %v1299
  %vm1302 = vc.u32 %v1300, 3616814565
  %v1303 = vsel %vm1302, 1, 0
  %v1304 = vadd.s32 %v1301, %v1303
  %v1305 = vshrl.u32 %v1304, 8
  %v1306 = vmul.u32 %v1305, 304
  %v1307 = vsub.s32 %v1298, %v1306
  %v1308 = vsub.s32 0, %v1307
  %v1309 = vsel %vm1296, %v1308, %v1307
  %vm1310 = vcmp.lt.s32.totalorder %v376, 0
  %v1311 = vsub.s32 0, %v376
  %v1312 = vsel %vm1310, %v1311, %v376
  %v1313 = vmul.u32.u64.compose %v1312, 3616814565
  %v1314 = vextract.low.u32 %v1313
  %v1315 = vextract.high.u32 %v1313
  %vm1316 = vc.u32 %v1314, 3616814565
  %v1317 = vsel %vm1316, 1, 0
  %v1318 = vadd.s32 %v1315, %v1317
  %v1319 = vshrl.u32 %v1318, 8
  %v1320 = vmul.u32 %v1319, 304
  %v1321 = vsub.s32 %v1312, %v1320
  %v1322 = vsub.s32 0, %v1321
  %v1323 = vsel %vm1310, %v1322, %v1321
  %vm1324 = vcmp.lt.s32.totalorder %v377, 0
  %v1325 = vsub.s32 0, %v377
  %v1326 = vsel %vm1324, %v1325, %v377
  %v1327 = vmul.u32.u64.compose %v1326, 3616814565
  %v1328 = vextract.low.u32 %v1327
  %v1329 = vextract.high.u32 %v1327
  %vm1330 = vc.u32 %v1328, 3616814565
  %v1331 = vsel %vm1330, 1, 0
  %v1332 = vadd.s32 %v1329, %v1331
  %v1333 = vshrl.u32 %v1332, 8
  %v1334 = vmul.u32 %v1333, 304
  %v1335 = vsub.s32 %v1326, %v1334
  %v1336 = vsub.s32 0, %v1335
  %v1337 = vsel %vm1324, %v1336, %v1335
  %vm1338 = vcmp.lt.s32.totalorder %v378, 0
  %v1339 = vsub.s32 0, %v378
  %v1340 = vsel %vm1338, %v1339, %v378
  %v1341 = vmul.u32.u64.compose %v1340, 3616814565
  %v1342 = vextract.low.u32 %v1341
  %v1343 = vextract.high.u32 %v1341
  %vm1344 = vc.u32 %v1342, 3616814565
  %v1345 = vsel %vm1344, 1, 0
  %v1346 = vadd.s32 %v1343, %v1345
  %v1347 = vshrl.u32 %v1346, 8
  %v1348 = vmul.u32 %v1347, 304
  %v1349 = vsub.s32 %v1340, %v1348
  %v1350 = vsub.s32 0, %v1349
  %v1351 = vsel %vm1338, %v1350, %v1349
  %vm1352 = vcmp.lt.s32.totalorder %v379, 0
  %v1353 = vsub.s32 0, %v379
  %v1354 = vsel %vm1352, %v1353, %v379
  %v1355 = vmul.u32.u64.compose %v1354, 3616814565
  %v1356 = vextract.low.u32 %v1355
  %v1357 = vextract.high.u32 %v1355
  %vm1358 = vc.u32 %v1356, 3616814565
  %v1359 = vsel %vm1358, 1, 0
  %v1360 = vadd.s32 %v1357, %v1359
  %v1361 = vshrl.u32 %v1360, 8
  %v1362 = vmul.u32 %v1361, 304
  %v1363 = vsub.s32 %v1354, %v1362
  %v1364 = vsub.s32 0, %v1363
  %v1365 = vsel %vm1352, %v1364, %v1363
  %vm1366 = vcmp.lt.s32.totalorder %v380, 0
  %v1367 = vsub.s32 0, %v380
  %v1368 = vsel %vm1366, %v1367, %v380
  %v1369 = vmul.u32.u64.compose %v1368, 3616814565
  %v1370 = vextract.low.u32 %v1369
  %v1371 = vextract.high.u32 %v1369
  %vm1372 = vc.u32 %v1370, 3616814565
  %v1373 = vsel %vm1372, 1, 0
  %v1374 = vadd.s32 %v1371, %v1373
  %v1375 = vshrl.u32 %v1374, 8
  %v1376 = vmul.u32 %v1375, 304
  %v1377 = vsub.s32 %v1368, %v1376
  %v1378 = vsub.s32 0, %v1377
  %v1379 = vsel %vm1366, %v1378, %v1377
  %vm1380 = vcmp.lt.s32.totalorder %v381, 0
  %v1381 = vsub.s32 0, %v381
  %v1382 = vsel %vm1380, %v1381, %v381
  %v1383 = vmul.u32.u64.compose %v1382, 3616814565
  %v1384 = vextract.low.u32 %v1383
  %v1385 = vextract.high.u32 %v1383
  %vm1386 = vc.u32 %v1384, 3616814565
  %v1387 = vsel %vm1386, 1, 0
  %v1388 = vadd.s32 %v1385, %v1387
  %v1389 = vshrl.u32 %v1388, 8
  %v1390 = vmul.u32 %v1389, 304
  %v1391 = vsub.s32 %v1382, %v1390
  %v1392 = vsub.s32 0, %v1391
  %v1393 = vsel %vm1380, %v1392, %v1391
  %vm1394 = vcmp.lt.s32.totalorder %v382, 0
  %v1395 = vsub.s32 0, %v382
  %v1396 = vsel %vm1394, %v1395, %v382
  %v1397 = vmul.u32.u64.compose %v1396, 3616814565
  %v1398 = vextract.low.u32 %v1397
  %v1399 = vextract.high.u32 %v1397
  %vm1400 = vc.u32 %v1398, 3616814565
  %v1401 = vsel %vm1400, 1, 0
  %v1402 = vadd.s32 %v1399, %v1401
  %v1403 = vshrl.u32 %v1402, 8
  %v1404 = vmul.u32 %v1403, 304
  %v1405 = vsub.s32 %v1396, %v1404
  %v1406 = vsub.s32 0, %v1405
  %v1407 = vsel %vm1394, %v1406, %v1405
  %vm1408 = vcmp.lt.s32.totalorder %v383, 0
  %v1409 = vsub.s32 0, %v383
  %v1410 = vsel %vm1408, %v1409, %v383
  %v1411 = vmul.u32.u64.compose %v1410, 3616814565
  %v1412 = vextract.low.u32 %v1411
  %v1413 = vextract.high.u32 %v1411
  %vm1414 = vc.u32 %v1412, 3616814565
  %v1415 = vsel %vm1414, 1, 0
  %v1416 = vadd.s32 %v1413, %v1415
  %v1417 = vshrl.u32 %v1416, 8
  %v1418 = vmul.u32 %v1417, 304
  %v1419 = vsub.s32 %v1410, %v1418
  %v1420 = vsub.s32 0, %v1419
  %v1421 = vsel %vm1408, %v1420, %v1419
  %vm1422 = vcmp.lt.s32.totalorder %v384, 0
  %v1423 = vsub.s32 0, %v384
  %v1424 = vsel %vm1422, %v1423, %v384
  %v1425 = vmul.u32.u64.compose %v1424, 3616814565
  %v1426 = vextract.low.u32 %v1425
  %v1427 = vextract.high.u32 %v1425
  %vm1428 = vc.u32 %v1426, 3616814565
  %v1429 = vsel %vm1428, 1, 0
  %v1430 = vadd.s32 %v1427, %v1429
  %v1431 = vshrl.u32 %v1430, 8
  %v1432 = vmul.u32 %v1431, 304
  %v1433 = vsub.s32 %v1424, %v1432
  %v1434 = vsub.s32 0, %v1433
  %v1435 = vsel %vm1422, %v1434, %v1433
  %vm1436 = vcmp.lt.s32.totalorder %v385, 0
  %v1437 = vsub.s32 0, %v385
  %v1438 = vsel %vm1436, %v1437, %v385
  %v1439 = vmul.u32.u64.compose %v1438, 3616814565
  %v1440 = vextract.low.u32 %v1439
  %v1441 = vextract.high.u32 %v1439
  %vm1442 = vc.u32 %v1440, 3616814565
  %v1443 = vsel %vm1442, 1, 0
  %v1444 = vadd.s32 %v1441, %v1443
  %v1445 = vshrl.u32 %v1444, 8
  %v1446 = vmul.u32 %v1445, 304
  %v1447 = vsub.s32 %v1438, %v1446
  %v1448 = vsub.s32 0, %v1447
  %v1449 = vsel %vm1436, %v1448, %v1447
  %vm1450 = vcmp.ne.s32.totalorder %v399, 0
  %vm1451 = vcmp.ne.s32.totalorder %v413, 0
  %vm1452 = vcmp.ne.s32.totalorder %v427, 0
  %vm1453 = vcmp.ne.s32.totalorder %v441, 0
  %vm1454 = vcmp.ne.s32.totalorder %v455, 0
  %vm1455 = vcmp.ne.s32.totalorder %v469, 0
  %vm1456 = vcmp.ne.s32.totalorder %v483, 0
  %vm1457 = vcmp.ne.s32.totalorder %v497, 0
  %vm1458 = vcmp.ne.s32.totalorder %v511, 0
  %vm1459 = vcmp.ne.s32.totalorder %v525, 0
  %vm1460 = vcmp.ne.s32.totalorder %v539, 0
  %vm1461 = vcmp.ne.s32.totalorder %v553, 0
  %vm1462 = vcmp.ne.s32.totalorder %v567, 0
  %vm1463 = vcmp.ne.s32.totalorder %v581, 0
  %vm1464 = vcmp.ne.s32.totalorder %v595, 0
  %vm1465 = vcmp.ne.s32.totalorder %v609, 0
  %vm1466 = vcmp.ne.s32.totalorder %v623, 0
  %vm1467 = vcmp.ne.s32.totalorder %v637, 0
  %vm1468 = vcmp.ne.s32.totalorder %v651, 0
  %vm1469 = vcmp.ne.s32.totalorder %v665, 0
  %vm1470 = vcmp.ne.s32.totalorder %v679, 0
  %vm1471 = vcmp.ne.s32.totalorder %v693, 0
  %vm1472 = vcmp.ne.s32.totalorder %v707, 0
  %vm1473 = vcmp.ne.s32.totalorder %v721, 0
  %vm1474 = vcmp.ne.s32.totalorder %v735, 0
  %vm1475 = vcmp.ne.s32.totalorder %v749, 0
  %vm1476 = vcmp.ne.s32.totalorder %v763, 0
  %vm1477 = vcmp.ne.s32.totalorder %v777, 0
  %vm1478 = vcmp.ne.s32.totalorder %v791, 0
  %vm1479 = vcmp.ne.s32.totalorder %v805, 0
  %vm1480 = vcmp.ne.s32.totalorder %v819, 0
  %vm1481 = vcmp.ne.s32.totalorder %v833, 0
  %vm1482 = vcmp.ne.s32.totalorder %v847, 0
  %vm1483 = vcmp.ne.s32.totalorder %v861, 0
  %vm1484 = vcmp.ne.s32.totalorder %v875, 0
  %vm1485 = vcmp.ne.s32.totalorder %v889, 0
  %vm1486 = vcmp.ne.s32.totalorder %v903, 0
  %vm1487 = vcmp.ne.s32.totalorder %v917, 0
  %vm1488 = vcmp.ne.s32.totalorder %v931, 0
  %vm1489 = vcmp.ne.s32.totalorder %v945, 0
  %vm1490 = vcmp.ne.s32.totalorder %v959, 0
  %vm1491 = vcmp.ne.s32.totalorder %v973, 0
  %vm1492 = vcmp.ne.s32.totalorder %v987, 0
  %vm1493 = vcmp.ne.s32.totalorder %v1001, 0
  %vm1494 = vcmp.ne.s32.totalorder %v1015, 0
  %vm1495 = vcmp.ne.s32.totalorder %v1029, 0
  %vm1496 = vcmp.ne.s32.totalorder %v1043, 0
  %vm1497 = vcmp.ne.s32.totalorder %v1057, 0
  %vm1498 = vcmp.ne.s32.totalorder %v1071, 0
  %vm1499 = vcmp.ne.s32.totalorder %v1085, 0
  %vm1500 = vcmp.ne.s32.totalorder %v1099, 0
  %vm1501 = vcmp.ne.s32.totalorder %v1113, 0
  %vm1502 = vcmp.ne.s32.totalorder %v1127, 0
  %vm1503 = vcmp.ne.s32.totalorder %v1141, 0
  %vm1504 = vcmp.ne.s32.totalorder %v1155, 0
  %vm1505 = vcmp.ne.s32.totalorder %v1169, 0
  %vm1506 = vcmp.ne.s32.totalorder %v1183, 0
  %vm1507 = vcmp.ne.s32.totalorder %v1197, 0
  %vm1508 = vcmp.ne.s32.totalorder %v1211, 0
  %vm1509 = vcmp.ne.s32.totalorder %v1225, 0
  %vm1510 = vcmp.ne.s32.totalorder %v1239, 0
  %vm1511 = vcmp.ne.s32.totalorder %v1253, 0
  %vm1512 = vcmp.ne.s32.totalorder %v1267, 0
  %vm1513 = vcmp.ne.s32.totalorder %v1281, 0
  %vm1514 = vcmp.ne.s32.totalorder %v1295, 0
  %vm1515 = vcmp.ne.s32.totalorder %v1309, 0
  %vm1516 = vcmp.ne.s32.totalorder %v1323, 0
  %vm1517 = vcmp.ne.s32.totalorder %v1337, 0
  %vm1518 = vcmp.ne.s32.totalorder %v1351, 0
  %vm1519 = vcmp.ne.s32.totalorder %v1365, 0
  %vm1520 = vcmp.ne.s32.totalorder %v1379, 0
  %vm1521 = vcmp.ne.s32.totalorder %v1393, 0
  %vm1522 = vcmp.ne.s32.totalorder %v1407, 0
  %vm1523 = vcmp.ne.s32.totalorder %v1421, 0
  %vm1524 = vcmp.ne.s32.totalorder %v1435, 0
  %vm1525 = vcmp.ne.s32.totalorder %v1449, 0
  %vm1526 = vcmp.lt.s32.totalorder %v399, 0
  %vm1527 = vcmp.lt.s32.totalorder %v413, 0
  %vm1528 = vcmp.lt.s32.totalorder %v427, 0
  %vm1529 = vcmp.lt.s32.totalorder %v441, 0
  %vm1530 = vcmp.lt.s32.totalorder %v455, 0
  %vm1531 = vcmp.lt.s32.totalorder %v469, 0
  %vm1532 = vcmp.lt.s32.totalorder %v483, 0
  %vm1533 = vcmp.lt.s32.totalorder %v497, 0
  %vm1534 = vcmp.lt.s32.totalorder %v511, 0
  %vm1535 = vcmp.lt.s32.totalorder %v525, 0
  %vm1536 = vcmp.lt.s32.totalorder %v539, 0
  %vm1537 = vcmp.lt.s32.totalorder %v553, 0
  %vm1538 = vcmp.lt.s32.totalorder %v567, 0
  %vm1539 = vcmp.lt.s32.totalorder %v581, 0
  %vm1540 = vcmp.lt.s32.totalorder %v595, 0
  %vm1541 = vcmp.lt.s32.totalorder %v609, 0
  %vm1542 = vcmp.lt.s32.totalorder %v623, 0
  %vm1543 = vcmp.lt.s32.totalorder %v637, 0
  %vm1544 = vcmp.lt.s32.totalorder %v651, 0
  %vm1545 = vcmp.lt.s32.totalorder %v665, 0
  %vm1546 = vcmp.lt.s32.totalorder %v679, 0
  %vm1547 = vcmp.lt.s32.totalorder %v693, 0
  %vm1548 = vcmp.lt.s32.totalorder %v707, 0
  %vm1549 = vcmp.lt.s32.totalorder %v721, 0
  %vm1550 = vcmp.lt.s32.totalorder %v735, 0
  %vm1551 = vcmp.lt.s32.totalorder %v749, 0
  %vm1552 = vcmp.lt.s32.totalorder %v763, 0
  %vm1553 = vcmp.lt.s32.totalorder %v777, 0
  %vm1554 = vcmp.lt.s32.totalorder %v791, 0
  %vm1555 = vcmp.lt.s32.totalorder %v805, 0
  %vm1556 = vcmp.lt.s32.totalorder %v819, 0
  %vm1557 = vcmp.lt.s32.totalorder %v833, 0
  %vm1558 = vcmp.lt.s32.totalorder %v847, 0
  %vm1559 = vcmp.lt.s32.totalorder %v861, 0
  %vm1560 = vcmp.lt.s32.totalorder %v875, 0
  %vm1561 = vcmp.lt.s32.totalorder %v889, 0
  %vm1562 = vcmp.lt.s32.totalorder %v903, 0
  %vm1563 = vcmp.lt.s32.totalorder %v917, 0
  %vm1564 = vcmp.lt.s32.totalorder %v931, 0
  %vm1565 = vcmp.lt.s32.totalorder %v945, 0
  %vm1566 = vcmp.lt.s32.totalorder %v959, 0
  %vm1567 = vcmp.lt.s32.totalorder %v973, 0
  %vm1568 = vcmp.lt.s32.totalorder %v987, 0
  %vm1569 = vcmp.lt.s32.totalorder %v1001, 0
  %vm1570 = vcmp.lt.s32.totalorder %v1015, 0
  %vm1571 = vcmp.lt.s32.totalorder %v1029, 0
  %vm1572 = vcmp.lt.s32.totalorder %v1043, 0
  %vm1573 = vcmp.lt.s32.totalorder %v1057, 0
  %vm1574 = vcmp.lt.s32.totalorder %v1071, 0
  %vm1575 = vcmp.lt.s32.totalorder %v1085, 0
  %vm1576 = vcmp.lt.s32.totalorder %v1099, 0
  %vm1577 = vcmp.lt.s32.totalorder %v1113, 0
  %vm1578 = vcmp.lt.s32.totalorder %v1127, 0
  %vm1579 = vcmp.lt.s32.totalorder %v1141, 0
  %vm1580 = vcmp.lt.s32.totalorder %v1155, 0
  %vm1581 = vcmp.lt.s32.totalorder %v1169, 0
  %vm1582 = vcmp.lt.s32.totalorder %v1183, 0
  %vm1583 = vcmp.lt.s32.totalorder %v1197, 0
  %vm1584 = vcmp.lt.s32.totalorder %v1211, 0
  %vm1585 = vcmp.lt.s32.totalorder %v1225, 0
  %vm1586 = vcmp.lt.s32.totalorder %v1239, 0
  %vm1587 = vcmp.lt.s32.totalorder %v1253, 0
  %vm1588 = vcmp.lt.s32.totalorder %v1267, 0
  %vm1589 = vcmp.lt.s32.totalorder %v1281, 0
  %vm1590 = vcmp.lt.s32.totalorder %v1295, 0
  %vm1591 = vcmp.lt.s32.totalorder %v1309, 0
  %vm1592 = vcmp.lt.s32.totalorder %v1323, 0
  %vm1593 = vcmp.lt.s32.totalorder %v1337, 0
  %vm1594 = vcmp.lt.s32.totalorder %v1351, 0
  %vm1595 = vcmp.lt.s32.totalorder %v1365, 0
  %vm1596 = vcmp.lt.s32.totalorder %v1379, 0
  %vm1597 = vcmp.lt.s32.totalorder %v1393, 0
  %vm1598 = vcmp.lt.s32.totalorder %v1407, 0
  %vm1599 = vcmp.lt.s32.totalorder %v1421, 0
  %vm1600 = vcmp.lt.s32.totalorder %v1435, 0
  %vm1601 = vcmp.lt.s32.totalorder %v1449, 0
  %vm1602 = vmand %vm1526, %vm1450
  %vm1603 = vmand %vm1527, %vm1451
  %vm1604 = vmand %vm1528, %vm1452
  %vm1605 = vmand %vm1529, %vm1453
  %vm1606 = vmand %vm1530, %vm1454
  %vm1607 = vmand %vm1531, %vm1455
  %vm1608 = vmand %vm1532, %vm1456
  %vm1609 = vmand %vm1533, %vm1457
  %vm1610 = vmand %vm1534, %vm1458
  %vm1611 = vmand %vm1535, %vm1459
  %vm1612 = vmand %vm1536, %vm1460
  %vm1613 = vmand %vm1537, %vm1461
  %vm1614 = vmand %vm1538, %vm1462
  %vm1615 = vmand %vm1539, %vm1463
  %vm1616 = vmand %vm1540, %vm1464
  %vm1617 = vmand %vm1541, %vm1465
  %vm1618 = vmand %vm1542, %vm1466
  %vm1619 = vmand %vm1543, %vm1467
  %vm1620 = vmand %vm1544, %vm1468
  %vm1621 = vmand %vm1545, %vm1469
  %vm1622 = vmand %vm1546, %vm1470
  %vm1623 = vmand %vm1547, %vm1471
  %vm1624 = vmand %vm1548, %vm1472
  %vm1625 = vmand %vm1549, %vm1473
  %vm1626 = vmand %vm1550, %vm1474
  %vm1627 = vmand %vm1551, %vm1475
  %vm1628 = vmand %vm1552, %vm1476
  %vm1629 = vmand %vm1553, %vm1477
  %vm1630 = vmand %vm1554, %vm1478
  %vm1631 = vmand %vm1555, %vm1479
  %vm1632 = vmand %vm1556, %vm1480
  %vm1633 = vmand %vm1557, %vm1481
  %vm1634 = vmand %vm1558, %vm1482
  %vm1635 = vmand %vm1559, %vm1483
  %vm1636 = vmand %vm1560, %vm1484
  %vm1637 = vmand %vm1561, %vm1485
  %vm1638 = vmand %vm1562, %vm1486
  %vm1639 = vmand %vm1563, %vm1487
  %vm1640 = vmand %vm1564, %vm1488
  %vm1641 = vmand %vm1565, %vm1489
  %vm1642 = vmand %vm1566, %vm1490
  %vm1643 = vmand %vm1567, %vm1491
  %vm1644 = vmand %vm1568, %vm1492
  %vm1645 = vmand %vm1569, %vm1493
  %vm1646 = vmand %vm1570, %vm1494
  %vm1647 = vmand %vm1571, %vm1495
  %vm1648 = vmand %vm1572, %vm1496
  %vm1649 = vmand %vm1573, %vm1497
  %vm1650 = vmand %vm1574, %vm1498
  %vm1651 = vmand %vm1575, %vm1499
  %vm1652 = vmand %vm1576, %vm1500
  %vm1653 = vmand %vm1577, %vm1501
  %vm1654 = vmand %vm1578, %vm1502
  %vm1655 = vmand %vm1579, %vm1503
  %vm1656 = vmand %vm1580, %vm1504
  %vm1657 = vmand %vm1581, %vm1505
  %vm1658 = vmand %vm1582, %vm1506
  %vm1659 = vmand %vm1583, %vm1507
  %vm1660 = vmand %vm1584, %vm1508
  %vm1661 = vmand %vm1585, %vm1509
  %vm1662 = vmand %vm1586, %vm1510
  %vm1663 = vmand %vm1587, %vm1511
  %vm1664 = vmand %vm1588, %vm1512
  %vm1665 = vmand %vm1589, %vm1513
  %vm1666 = vmand %vm1590, %vm1514
  %vm1667 = vmand %vm1591, %vm1515
  %vm1668 = vmand %vm1592, %vm1516
  %vm1669 = vmand %vm1593, %vm1517
  %vm1670 = vmand %vm1594, %vm1518
  %vm1671 = vmand %vm1595, %vm1519
  %vm1672 = vmand %vm1596, %vm1520
  %vm1673 = vmand %vm1597, %vm1521
  %vm1674 = vmand %vm1598, %vm1522
  %vm1675 = vmand %vm1599, %vm1523
  %vm1676 = vmand %vm1600, %vm1524
  %vm1677 = vmand %vm1601, %vm1525
  %v1678 = vadd.s32 %v399, 304
  %v1679 = vadd.s32 %v413, 304
  %v1680 = vadd.s32 %v427, 304
  %v1681 = vadd.s32 %v441, 304
  %v1682 = vadd.s32 %v455, 304
  %v1683 = vadd.s32 %v469, 304
  %v1684 = vadd.s32 %v483, 304
  %v1685 = vadd.s32 %v497, 304
  %v1686 = vadd.s32 %v511, 304
  %v1687 = vadd.s32 %v525, 304
  %v1688 = vadd.s32 %v539, 304
  %v1689 = vadd.s32 %v553, 304
  %v1690 = vadd.s32 %v567, 304
  %v1691 = vadd.s32 %v581, 304
  %v1692 = vadd.s32 %v595, 304
  %v1693 = vadd.s32 %v609, 304
  %v1694 = vadd.s32 %v623, 304
  %v1695 = vadd.s32 %v637, 304
  %v1696 = vadd.s32 %v651, 304
  %v1697 = vadd.s32 %v665, 304
  %v1698 = vadd.s32 %v679, 304
  %v1699 = vadd.s32 %v693, 304
  %v1700 = vadd.s32 %v707, 304
  %v1701 = vadd.s32 %v721, 304
  %v1702 = vadd.s32 %v735, 304
  %v1703 = vadd.s32 %v749, 304
  %v1704 = vadd.s32 %v763, 304
  %v1705 = vadd.s32 %v777, 304
  %v1706 = vadd.s32 %v791, 304
  %v1707 = vadd.s32 %v805, 304
  %v1708 = vadd.s32 %v819, 304
  %v1709 = vadd.s32 %v833, 304
  %v1710 = vadd.s32 %v847, 304
  %v1711 = vadd.s32 %v861, 304
  %v1712 = vadd.s32 %v875, 304
  %v1713 = vadd.s32 %v889, 304
  %v1714 = vadd.s32 %v903, 304
  %v1715 = vadd.s32 %v917, 304
  %v1716 = vadd.s32 %v931, 304
  %v1717 = vadd.s32 %v945, 304
  %v1718 = vadd.s32 %v959, 304
  %v1719 = vadd.s32 %v973, 304
  %v1720 = vadd.s32 %v987, 304
  %v1721 = vadd.s32 %v1001, 304
  %v1722 = vadd.s32 %v1015, 304
  %v1723 = vadd.s32 %v1029, 304
  %v1724 = vadd.s32 %v1043, 304
  %v1725 = vadd.s32 %v1057, 304
  %v1726 = vadd.s32 %v1071, 304
  %v1727 = vadd.s32 %v1085, 304
  %v1728 = vadd.s32 %v1099, 304
  %v1729 = vadd.s32 %v1113, 304
  %v1730 = vadd.s32 %v1127, 304
  %v1731 = vadd.s32 %v1141, 304
  %v1732 = vadd.s32 %v1155, 304
  %v1733 = vadd.s32 %v1169, 304
  %v1734 = vadd.s32 %v1183, 304
  %v1735 = vadd.s32 %v1197, 304
  %v1736 = vadd.s32 %v1211, 304
  %v1737 = vadd.s32 %v1225, 304
  %v1738 = vadd.s32 %v1239, 304
  %v1739 = vadd.s32 %v1253, 304
  %v1740 = vadd.s32 %v1267, 304
  %v1741 = vadd.s32 %v1281, 304
  %v1742 = vadd.s32 %v1295, 304
  %v1743 = vadd.s32 %v1309, 304
  %v1744 = vadd.s32 %v1323, 304
  %v1745 = vadd.s32 %v1337, 304
  %v1746 = vadd.s32 %v1351, 304
  %v1747 = vadd.s32 %v1365, 304
  %v1748 = vadd.s32 %v1379, 304
  %v1749 = vadd.s32 %v1393, 304
  %v1750 = vadd.s32 %v1407, 304
  %v1751 = vadd.s32 %v1421, 304
  %v1752 = vadd.s32 %v1435, 304
  %v1753 = vadd.s32 %v1449, 304
  %v1754 = vsel %vm1602, %v1678, %v399
  %v1755 = vsel %vm1603, %v1679, %v413
  %v1756 = vsel %vm1604, %v1680, %v427
  %v1757 = vsel %vm1605, %v1681, %v441
  %v1758 = vsel %vm1606, %v1682, %v455
  %v1759 = vsel %vm1607, %v1683, %v469
  %v1760 = vsel %vm1608, %v1684, %v483
  %v1761 = vsel %vm1609, %v1685, %v497
  %v1762 = vsel %vm1610, %v1686, %v511
  %v1763 = vsel %vm1611, %v1687, %v525
  %v1764 = vsel %vm1612, %v1688, %v539
  %v1765 = vsel %vm1613, %v1689, %v553
  %v1766 = vsel %vm1614, %v1690, %v567
  %v1767 = vsel %vm1615, %v1691, %v581
  %v1768 = vsel %vm1616, %v1692, %v595
  %v1769 = vsel %vm1617, %v1693, %v609
  %v1770 = vsel %vm1618, %v1694, %v623
  %v1771 = vsel %vm1619, %v1695, %v637
  %v1772 = vsel %vm1620, %v1696, %v651
  %v1773 = vsel %vm1621, %v1697, %v665
  %v1774 = vsel %vm1622, %v1698, %v679
  %v1775 = vsel %vm1623, %v1699, %v693
  %v1776 = vsel %vm1624, %v1700, %v707
  %v1777 = vsel %vm1625, %v1701, %v721
  %v1778 = vsel %vm1626, %v1702, %v735
  %v1779 = vsel %vm1627, %v1703, %v749
  %v1780 = vsel %vm1628, %v1704, %v763
  %v1781 = vsel %vm1629, %v1705, %v777
  %v1782 = vsel %vm1630, %v1706, %v791
  %v1783 = vsel %vm1631, %v1707, %v805
  %v1784 = vsel %vm1632, %v1708, %v819
  %v1785 = vsel %vm1633, %v1709, %v833
  %v1786 = vsel %vm1634, %v1710, %v847
  %v1787 = vsel %vm1635, %v1711, %v861
  %v1788 = vsel %vm1636, %v1712, %v875
  %v1789 = vsel %vm1637, %v1713, %v889
  %v1790 = vsel %vm1638, %v1714, %v903
  %v1791 = vsel %vm1639, %v1715, %v917
  %v1792 = vsel %vm1640, %v1716, %v931
  %v1793 = vsel %vm1641, %v1717, %v945
  %v1794 = vsel %vm1642, %v1718, %v959
  %v1795 = vsel %vm1643, %v1719, %v973
  %v1796 = vsel %vm1644, %v1720, %v987
  %v1797 = vsel %vm1645, %v1721, %v1001
  %v1798 = vsel %vm1646, %v1722, %v1015
  %v1799 = vsel %vm1647, %v1723, %v1029
  %v1800 = vsel %vm1648, %v1724, %v1043
  %v1801 = vsel %vm1649, %v1725, %v1057
  %v1802 = vsel %vm1650, %v1726, %v1071
  %v1803 = vsel %vm1651, %v1727, %v1085
  %v1804 = vsel %vm1652, %v1728, %v1099
  %v1805 = vsel %vm1653, %v1729, %v1113
  %v1806 = vsel %vm1654, %v1730, %v1127
  %v1807 = vsel %vm1655, %v1731, %v1141
  %v1808 = vsel %vm1656, %v1732, %v1155
  %v1809 = vsel %vm1657, %v1733, %v1169
  %v1810 = vsel %vm1658, %v1734, %v1183
  %v1811 = vsel %vm1659, %v1735, %v1197
  %v1812 = vsel %vm1660, %v1736, %v1211
  %v1813 = vsel %vm1661, %v1737, %v1225
  %v1814 = vsel %vm1662, %v1738, %v1239
  %v1815 = vsel %vm1663, %v1739, %v1253
  %v1816 = vsel %vm1664, %v1740, %v1267
  %v1817 = vsel %vm1665, %v1741, %v1281
  %v1818 = vsel %vm1666, %v1742, %v1295
  %v1819 = vsel %vm1667, %v1743, %v1309
  %v1820 = vsel %vm1668, %v1744, %v1323
  %v1821 = vsel %vm1669, %v1745, %v1337
  %v1822 = vsel %vm1670, %v1746, %v1351
  %v1823 = vsel %vm1671, %v1747, %v1365
  %v1824 = vsel %vm1672, %v1748, %v1379
  %v1825 = vsel %vm1673, %v1749, %v1393
  %v1826 = vsel %vm1674, %v1750, %v1407
  %v1827 = vsel %vm1675, %v1751, %v1421
  %v1828 = vsel %vm1676, %v1752, %v1435
  %v1829 = vsel %vm1677, %v1753, %v1449
  %v1830 = vadd.s32 %v1754, 8
  %v1831 = vadd.s32 %v1755, 8
  %v1832 = vadd.s32 %v1756, 8
  %v1833 = vadd.s32 %v1757, 8
  %v1834 = vadd.s32 %v1758, 8
  %v1835 = vadd.s32 %v1759, 8
  %v1836 = vadd.s32 %v1760, 8
  %v1837 = vadd.s32 %v1761, 8
  %v1838 = vadd.s32 %v1762, 8
  %v1839 = vadd.s32 %v1763, 8
  %v1840 = vadd.s32 %v1764, 8
  %v1841 = vadd.s32 %v1765, 8
  %v1842 = vadd.s32 %v1766, 8
  %v1843 = vadd.s32 %v1767, 8
  %v1844 = vadd.s32 %v1768, 8
  %v1845 = vadd.s32 %v1769, 8
  %v1846 = vadd.s32 %v1770, 8
  %v1847 = vadd.s32 %v1771, 8
  %v1848 = vadd.s32 %v1772, 8
  %v1849 = vadd.s32 %v1773, 8
  %v1850 = vadd.s32 %v1774, 8
  %v1851 = vadd.s32 %v1775, 8
  %v1852 = vadd.s32 %v1776, 8
  %v1853 = vadd.s32 %v1777, 8
  %v1854 = vadd.s32 %v1778, 8
  %v1855 = vadd.s32 %v1779, 8
  %v1856 = vadd.s32 %v1780, 8
  %v1857 = vadd.s32 %v1781, 8
  %v1858 = vadd.s32 %v1782, 8
  %v1859 = vadd.s32 %v1783, 8
  %v1860 = vadd.s32 %v1784, 8
  %v1861 = vadd.s32 %v1785, 8
  %v1862 = vadd.s32 %v1786, 8
  %v1863 = vadd.s32 %v1787, 8
  %v1864 = vadd.s32 %v1788, 8
  %v1865 = vadd.s32 %v1789, 8
  %v1866 = vadd.s32 %v1790, 8
  %v1867 = vadd.s32 %v1791, 8
  %v1868 = vadd.s32 %v1792, 8
  %v1869 = vadd.s32 %v1793, 8
  %v1870 = vadd.s32 %v1794, 8
  %v1871 = vadd.s32 %v1795, 8
  %v1872 = vadd.s32 %v1796, 8
  %v1873 = vadd.s32 %v1797, 8
  %v1874 = vadd.s32 %v1798, 8
  %v1875 = vadd.s32 %v1799, 8
  %v1876 = vadd.s32 %v1800, 8
  %v1877 = vadd.s32 %v1801, 8
  %v1878 = vadd.s32 %v1802, 8
  %v1879 = vadd.s32 %v1803, 8
  %v1880 = vadd.s32 %v1804, 8
  %v1881 = vadd.s32 %v1805, 8
  %v1882 = vadd.s32 %v1806, 8
  %v1883 = vadd.s32 %v1807, 8
  %v1884 = vadd.s32 %v1808, 8
  %v1885 = vadd.s32 %v1809, 8
  %v1886 = vadd.s32 %v1810, 8
  %v1887 = vadd.s32 %v1811, 8
  %v1888 = vadd.s32 %v1812, 8
  %v1889 = vadd.s32 %v1813, 8
  %v1890 = vadd.s32 %v1814, 8
  %v1891 = vadd.s32 %v1815, 8
  %v1892 = vadd.s32 %v1816, 8
  %v1893 = vadd.s32 %v1817, 8
  %v1894 = vadd.s32 %v1818, 8
  %v1895 = vadd.s32 %v1819, 8
  %v1896 = vadd.s32 %v1820, 8
  %v1897 = vadd.s32 %v1821, 8
  %v1898 = vadd.s32 %v1822, 8
  %v1899 = vadd.s32 %v1823, 8
  %v1900 = vadd.s32 %v1824, 8
  %v1901 = vadd.s32 %v1825, 8
  %v1902 = vadd.s32 %v1826, 8
  %v1903 = vadd.s32 %v1827, 8
  %v1904 = vadd.s32 %v1828, 8
  %v1905 = vadd.s32 %v1829, 8
  %vm1906 = vcmp.lt.s32.totalorder %v1830, 0
  %v1907 = vsub.s32 0, %v1830
  %v1908 = vsel %vm1906, %v1907, %v1830
  %v1909 = vshrl.u32 %v1908, 4
  %v1910 = vand.u32 %v1908, 15
  %v1911 = vsub.s32 0, %v1910
  %v1912 = vsel %vm1906, %v1911, %v1910
  %vm1913 = vcmp.lt.s32.totalorder %v1831, 0
  %v1914 = vsub.s32 0, %v1831
  %v1915 = vsel %vm1913, %v1914, %v1831
  %v1916 = vshrl.u32 %v1915, 4
  %v1917 = vand.u32 %v1915, 15
  %v1918 = vsub.s32 0, %v1917
  %v1919 = vsel %vm1913, %v1918, %v1917
  %vm1920 = vcmp.lt.s32.totalorder %v1832, 0
  %v1921 = vsub.s32 0, %v1832
  %v1922 = vsel %vm1920, %v1921, %v1832
  %v1923 = vshrl.u32 %v1922, 4
  %v1924 = vand.u32 %v1922, 15
  %v1925 = vsub.s32 0, %v1924
  %v1926 = vsel %vm1920, %v1925, %v1924
  %vm1927 = vcmp.lt.s32.totalorder %v1833, 0
  %v1928 = vsub.s32 0, %v1833
  %v1929 = vsel %vm1927, %v1928, %v1833
  %v1930 = vshrl.u32 %v1929, 4
  %v1931 = vand.u32 %v1929, 15
  %v1932 = vsub.s32 0, %v1931
  %v1933 = vsel %vm1927, %v1932, %v1931
  %vm1934 = vcmp.lt.s32.totalorder %v1834, 0
  %v1935 = vsub.s32 0, %v1834
  %v1936 = vsel %vm1934, %v1935, %v1834
  %v1937 = vshrl.u32 %v1936, 4
  %v1938 = vand.u32 %v1936, 15
  %v1939 = vsub.s32 0, %v1938
  %v1940 = vsel %vm1934, %v1939, %v1938
  %vm1941 = vcmp.lt.s32.totalorder %v1835, 0
  %v1942 = vsub.s32 0, %v1835
  %v1943 = vsel %vm1941, %v1942, %v1835
  %v1944 = vshrl.u32 %v1943, 4
  %v1945 = vand.u32 %v1943, 15
  %v1946 = vsub.s32 0, %v1945
  %v1947 = vsel %vm1941, %v1946, %v1945
  %vm1948 = vcmp.lt.s32.totalorder %v1836, 0
  %v1949 = vsub.s32 0, %v1836
  %v1950 = vsel %vm1948, %v1949, %v1836
  %v1951 = vshrl.u32 %v1950, 4
  %v1952 = vand.u32 %v1950, 15
  %v1953 = vsub.s32 0, %v1952
  %v1954 = vsel %vm1948, %v1953, %v1952
  %vm1955 = vcmp.lt.s32.totalorder %v1837, 0
  %v1956 = vsub.s32 0, %v1837
  %v1957 = vsel %vm1955, %v1956, %v1837
  %v1958 = vshrl.u32 %v1957, 4
  %v1959 = vand.u32 %v1957, 15
  %v1960 = vsub.s32 0, %v1959
  %v1961 = vsel %vm1955, %v1960, %v1959
  %vm1962 = vcmp.lt.s32.totalorder %v1838, 0
  %v1963 = vsub.s32 0, %v1838
  %v1964 = vsel %vm1962, %v1963, %v1838
  %v1965 = vshrl.u32 %v1964, 4
  %v1966 = vand.u32 %v1964, 15
  %v1967 = vsub.s32 0, %v1966
  %v1968 = vsel %vm1962, %v1967, %v1966
  %vm1969 = vcmp.lt.s32.totalorder %v1839, 0
  %v1970 = vsub.s32 0, %v1839
  %v1971 = vsel %vm1969, %v1970, %v1839
  %v1972 = vshrl.u32 %v1971, 4
  %v1973 = vand.u32 %v1971, 15
  %v1974 = vsub.s32 0, %v1973
  %v1975 = vsel %vm1969, %v1974, %v1973
  %vm1976 = vcmp.lt.s32.totalorder %v1840, 0
  %v1977 = vsub.s32 0, %v1840
  %v1978 = vsel %vm1976, %v1977, %v1840
  %v1979 = vshrl.u32 %v1978, 4
  %v1980 = vand.u32 %v1978, 15
  %v1981 = vsub.s32 0, %v1980
  %v1982 = vsel %vm1976, %v1981, %v1980
  %vm1983 = vcmp.lt.s32.totalorder %v1841, 0
  %v1984 = vsub.s32 0, %v1841
  %v1985 = vsel %vm1983, %v1984, %v1841
  %v1986 = vshrl.u32 %v1985, 4
  %v1987 = vand.u32 %v1985, 15
  %v1988 = vsub.s32 0, %v1987
  %v1989 = vsel %vm1983, %v1988, %v1987
  %vm1990 = vcmp.lt.s32.totalorder %v1842, 0
  %v1991 = vsub.s32 0, %v1842
  %v1992 = vsel %vm1990, %v1991, %v1842
  %v1993 = vshrl.u32 %v1992, 4
  %v1994 = vand.u32 %v1992, 15
  %v1995 = vsub.s32 0, %v1994
  %v1996 = vsel %vm1990, %v1995, %v1994
  %vm1997 = vcmp.lt.s32.totalorder %v1843, 0
  %v1998 = vsub.s32 0, %v1843
  %v1999 = vsel %vm1997, %v1998, %v1843
  %v2000 = vshrl.u32 %v1999, 4
  %v2001 = vand.u32 %v1999, 15
  %v2002 = vsub.s32 0, %v2001
  %v2003 = vsel %vm1997, %v2002, %v2001
  %vm2004 = vcmp.lt.s32.totalorder %v1844, 0
  %v2005 = vsub.s32 0, %v1844
  %v2006 = vsel %vm2004, %v2005, %v1844
  %v2007 = vshrl.u32 %v2006, 4
  %v2008 = vand.u32 %v2006, 15
  %v2009 = vsub.s32 0, %v2008
  %v2010 = vsel %vm2004, %v2009, %v2008
  %vm2011 = vcmp.lt.s32.totalorder %v1845, 0
  %v2012 = vsub.s32 0, %v1845
  %v2013 = vsel %vm2011, %v2012, %v1845
  %v2014 = vshrl.u32 %v2013, 4
  %v2015 = vand.u32 %v2013, 15
  %v2016 = vsub.s32 0, %v2015
  %v2017 = vsel %vm2011, %v2016, %v2015
  %vm2018 = vcmp.lt.s32.totalorder %v1846, 0
  %v2019 = vsub.s32 0, %v1846
  %v2020 = vsel %vm2018, %v2019, %v1846
  %v2021 = vshrl.u32 %v2020, 4
  %v2022 = vand.u32 %v2020, 15
  %v2023 = vsub.s32 0, %v2022
  %v2024 = vsel %vm2018, %v2023, %v2022
  %vm2025 = vcmp.lt.s32.totalorder %v1847, 0
  %v2026 = vsub.s32 0, %v1847
  %v2027 = vsel %vm2025, %v2026, %v1847
  %v2028 = vshrl.u32 %v2027, 4
  %v2029 = vand.u32 %v2027, 15
  %v2030 = vsub.s32 0, %v2029
  %v2031 = vsel %vm2025, %v2030, %v2029
  %vm2032 = vcmp.lt.s32.totalorder %v1848, 0
  %v2033 = vsub.s32 0, %v1848
  %v2034 = vsel %vm2032, %v2033, %v1848
  %v2035 = vshrl.u32 %v2034, 4
  %v2036 = vand.u32 %v2034, 15
  %v2037 = vsub.s32 0, %v2036
  %v2038 = vsel %vm2032, %v2037, %v2036
  %vm2039 = vcmp.lt.s32.totalorder %v1849, 0
  %v2040 = vsub.s32 0, %v1849
  %v2041 = vsel %vm2039, %v2040, %v1849
  %v2042 = vshrl.u32 %v2041, 4
  %v2043 = vand.u32 %v2041, 15
  %v2044 = vsub.s32 0, %v2043
  %v2045 = vsel %vm2039, %v2044, %v2043
  %vm2046 = vcmp.lt.s32.totalorder %v1850, 0
  %v2047 = vsub.s32 0, %v1850
  %v2048 = vsel %vm2046, %v2047, %v1850
  %v2049 = vshrl.u32 %v2048, 4
  %v2050 = vand.u32 %v2048, 15
  %v2051 = vsub.s32 0, %v2050
  %v2052 = vsel %vm2046, %v2051, %v2050
  %vm2053 = vcmp.lt.s32.totalorder %v1851, 0
  %v2054 = vsub.s32 0, %v1851
  %v2055 = vsel %vm2053, %v2054, %v1851
  %v2056 = vshrl.u32 %v2055, 4
  %v2057 = vand.u32 %v2055, 15
  %v2058 = vsub.s32 0, %v2057
  %v2059 = vsel %vm2053, %v2058, %v2057
  %vm2060 = vcmp.lt.s32.totalorder %v1852, 0
  %v2061 = vsub.s32 0, %v1852
  %v2062 = vsel %vm2060, %v2061, %v1852
  %v2063 = vshrl.u32 %v2062, 4
  %v2064 = vand.u32 %v2062, 15
  %v2065 = vsub.s32 0, %v2064
  %v2066 = vsel %vm2060, %v2065, %v2064
  %vm2067 = vcmp.lt.s32.totalorder %v1853, 0
  %v2068 = vsub.s32 0, %v1853
  %v2069 = vsel %vm2067, %v2068, %v1853
  %v2070 = vshrl.u32 %v2069, 4
  %v2071 = vand.u32 %v2069, 15
  %v2072 = vsub.s32 0, %v2071
  %v2073 = vsel %vm2067, %v2072, %v2071
  %vm2074 = vcmp.lt.s32.totalorder %v1854, 0
  %v2075 = vsub.s32 0, %v1854
  %v2076 = vsel %vm2074, %v2075, %v1854
  %v2077 = vshrl.u32 %v2076, 4
  %v2078 = vand.u32 %v2076, 15
  %v2079 = vsub.s32 0, %v2078
  %v2080 = vsel %vm2074, %v2079, %v2078
  %vm2081 = vcmp.lt.s32.totalorder %v1855, 0
  %v2082 = vsub.s32 0, %v1855
  %v2083 = vsel %vm2081, %v2082, %v1855
  %v2084 = vshrl.u32 %v2083, 4
  %v2085 = vand.u32 %v2083, 15
  %v2086 = vsub.s32 0, %v2085
  %v2087 = vsel %vm2081, %v2086, %v2085
  %vm2088 = vcmp.lt.s32.totalorder %v1856, 0
  %v2089 = vsub.s32 0, %v1856
  %v2090 = vsel %vm2088, %v2089, %v1856
  %v2091 = vshrl.u32 %v2090, 4
  %v2092 = vand.u32 %v2090, 15
  %v2093 = vsub.s32 0, %v2092
  %v2094 = vsel %vm2088, %v2093, %v2092
  %vm2095 = vcmp.lt.s32.totalorder %v1857, 0
  %v2096 = vsub.s32 0, %v1857
  %v2097 = vsel %vm2095, %v2096, %v1857
  %v2098 = vshrl.u32 %v2097, 4
  %v2099 = vand.u32 %v2097, 15
  %v2100 = vsub.s32 0, %v2099
  %v2101 = vsel %vm2095, %v2100, %v2099
  %vm2102 = vcmp.lt.s32.totalorder %v1858, 0
  %v2103 = vsub.s32 0, %v1858
  %v2104 = vsel %vm2102, %v2103, %v1858
  %v2105 = vshrl.u32 %v2104, 4
  %v2106 = vand.u32 %v2104, 15
  %v2107 = vsub.s32 0, %v2106
  %v2108 = vsel %vm2102, %v2107, %v2106
  %vm2109 = vcmp.lt.s32.totalorder %v1859, 0
  %v2110 = vsub.s32 0, %v1859
  %v2111 = vsel %vm2109, %v2110, %v1859
  %v2112 = vshrl.u32 %v2111, 4
  %v2113 = vand.u32 %v2111, 15
  %v2114 = vsub.s32 0, %v2113
  %v2115 = vsel %vm2109, %v2114, %v2113
  %vm2116 = vcmp.lt.s32.totalorder %v1860, 0
  %v2117 = vsub.s32 0, %v1860
  %v2118 = vsel %vm2116, %v2117, %v1860
  %v2119 = vshrl.u32 %v2118, 4
  %v2120 = vand.u32 %v2118, 15
  %v2121 = vsub.s32 0, %v2120
  %v2122 = vsel %vm2116, %v2121, %v2120
  %vm2123 = vcmp.lt.s32.totalorder %v1861, 0
  %v2124 = vsub.s32 0, %v1861
  %v2125 = vsel %vm2123, %v2124, %v1861
  %v2126 = vshrl.u32 %v2125, 4
  %v2127 = vand.u32 %v2125, 15
  %v2128 = vsub.s32 0, %v2127
  %v2129 = vsel %vm2123, %v2128, %v2127
  %vm2130 = vcmp.lt.s32.totalorder %v1862, 0
  %v2131 = vsub.s32 0, %v1862
  %v2132 = vsel %vm2130, %v2131, %v1862
  %v2133 = vshrl.u32 %v2132, 4
  %v2134 = vand.u32 %v2132, 15
  %v2135 = vsub.s32 0, %v2134
  %v2136 = vsel %vm2130, %v2135, %v2134
  %vm2137 = vcmp.lt.s32.totalorder %v1863, 0
  %v2138 = vsub.s32 0, %v1863
  %v2139 = vsel %vm2137, %v2138, %v1863
  %v2140 = vshrl.u32 %v2139, 4
  %v2141 = vand.u32 %v2139, 15
  %v2142 = vsub.s32 0, %v2141
  %v2143 = vsel %vm2137, %v2142, %v2141
  %vm2144 = vcmp.lt.s32.totalorder %v1864, 0
  %v2145 = vsub.s32 0, %v1864
  %v2146 = vsel %vm2144, %v2145, %v1864
  %v2147 = vshrl.u32 %v2146, 4
  %v2148 = vand.u32 %v2146, 15
  %v2149 = vsub.s32 0, %v2148
  %v2150 = vsel %vm2144, %v2149, %v2148
  %vm2151 = vcmp.lt.s32.totalorder %v1865, 0
  %v2152 = vsub.s32 0, %v1865
  %v2153 = vsel %vm2151, %v2152, %v1865
  %v2154 = vshrl.u32 %v2153, 4
  %v2155 = vand.u32 %v2153, 15
  %v2156 = vsub.s32 0, %v2155
  %v2157 = vsel %vm2151, %v2156, %v2155
  %vm2158 = vcmp.lt.s32.totalorder %v1866, 0
  %v2159 = vsub.s32 0, %v1866
  %v2160 = vsel %vm2158, %v2159, %v1866
  %v2161 = vshrl.u32 %v2160, 4
  %v2162 = vand.u32 %v2160, 15
  %v2163 = vsub.s32 0, %v2162
  %v2164 = vsel %vm2158, %v2163, %v2162
  %vm2165 = vcmp.lt.s32.totalorder %v1867, 0
  %v2166 = vsub.s32 0, %v1867
  %v2167 = vsel %vm2165, %v2166, %v1867
  %v2168 = vshrl.u32 %v2167, 4
  %v2169 = vand.u32 %v2167, 15
  %v2170 = vsub.s32 0, %v2169
  %v2171 = vsel %vm2165, %v2170, %v2169
  %vm2172 = vcmp.lt.s32.totalorder %v1868, 0
  %v2173 = vsub.s32 0, %v1868
  %v2174 = vsel %vm2172, %v2173, %v1868
  %v2175 = vshrl.u32 %v2174, 4
  %v2176 = vand.u32 %v2174, 15
  %v2177 = vsub.s32 0, %v2176
  %v2178 = vsel %vm2172, %v2177, %v2176
  %vm2179 = vcmp.lt.s32.totalorder %v1869, 0
  %v2180 = vsub.s32 0, %v1869
  %v2181 = vsel %vm2179, %v2180, %v1869
  %v2182 = vshrl.u32 %v2181, 4
  %v2183 = vand.u32 %v2181, 15
  %v2184 = vsub.s32 0, %v2183
  %v2185 = vsel %vm2179, %v2184, %v2183
  %vm2186 = vcmp.lt.s32.totalorder %v1870, 0
  %v2187 = vsub.s32 0, %v1870
  %v2188 = vsel %vm2186, %v2187, %v1870
  %v2189 = vshrl.u32 %v2188, 4
  %v2190 = vand.u32 %v2188, 15
  %v2191 = vsub.s32 0, %v2190
  %v2192 = vsel %vm2186, %v2191, %v2190
  %vm2193 = vcmp.lt.s32.totalorder %v1871, 0
  %v2194 = vsub.s32 0, %v1871
  %v2195 = vsel %vm2193, %v2194, %v1871
  %v2196 = vshrl.u32 %v2195, 4
  %v2197 = vand.u32 %v2195, 15
  %v2198 = vsub.s32 0, %v2197
  %v2199 = vsel %vm2193, %v2198, %v2197
  %vm2200 = vcmp.lt.s32.totalorder %v1872, 0
  %v2201 = vsub.s32 0, %v1872
  %v2202 = vsel %vm2200, %v2201, %v1872
  %v2203 = vshrl.u32 %v2202, 4
  %v2204 = vand.u32 %v2202, 15
  %v2205 = vsub.s32 0, %v2204
  %v2206 = vsel %vm2200, %v2205, %v2204
  %vm2207 = vcmp.lt.s32.totalorder %v1873, 0
  %v2208 = vsub.s32 0, %v1873
  %v2209 = vsel %vm2207, %v2208, %v1873
  %v2210 = vshrl.u32 %v2209, 4
  %v2211 = vand.u32 %v2209, 15
  %v2212 = vsub.s32 0, %v2211
  %v2213 = vsel %vm2207, %v2212, %v2211
  %vm2214 = vcmp.lt.s32.totalorder %v1874, 0
  %v2215 = vsub.s32 0, %v1874
  %v2216 = vsel %vm2214, %v2215, %v1874
  %v2217 = vshrl.u32 %v2216, 4
  %v2218 = vand.u32 %v2216, 15
  %v2219 = vsub.s32 0, %v2218
  %v2220 = vsel %vm2214, %v2219, %v2218
  %vm2221 = vcmp.lt.s32.totalorder %v1875, 0
  %v2222 = vsub.s32 0, %v1875
  %v2223 = vsel %vm2221, %v2222, %v1875
  %v2224 = vshrl.u32 %v2223, 4
  %v2225 = vand.u32 %v2223, 15
  %v2226 = vsub.s32 0, %v2225
  %v2227 = vsel %vm2221, %v2226, %v2225
  %vm2228 = vcmp.lt.s32.totalorder %v1876, 0
  %v2229 = vsub.s32 0, %v1876
  %v2230 = vsel %vm2228, %v2229, %v1876
  %v2231 = vshrl.u32 %v2230, 4
  %v2232 = vand.u32 %v2230, 15
  %v2233 = vsub.s32 0, %v2232
  %v2234 = vsel %vm2228, %v2233, %v2232
  %vm2235 = vcmp.lt.s32.totalorder %v1877, 0
  %v2236 = vsub.s32 0, %v1877
  %v2237 = vsel %vm2235, %v2236, %v1877
  %v2238 = vshrl.u32 %v2237, 4
  %v2239 = vand.u32 %v2237, 15
  %v2240 = vsub.s32 0, %v2239
  %v2241 = vsel %vm2235, %v2240, %v2239
  %vm2242 = vcmp.lt.s32.totalorder %v1878, 0
  %v2243 = vsub.s32 0, %v1878
  %v2244 = vsel %vm2242, %v2243, %v1878
  %v2245 = vshrl.u32 %v2244, 4
  %v2246 = vand.u32 %v2244, 15
  %v2247 = vsub.s32 0, %v2246
  %v2248 = vsel %vm2242, %v2247, %v2246
  %vm2249 = vcmp.lt.s32.totalorder %v1879, 0
  %v2250 = vsub.s32 0, %v1879
  %v2251 = vsel %vm2249, %v2250, %v1879
  %v2252 = vshrl.u32 %v2251, 4
  %v2253 = vand.u32 %v2251, 15
  %v2254 = vsub.s32 0, %v2253
  %v2255 = vsel %vm2249, %v2254, %v2253
  %vm2256 = vcmp.lt.s32.totalorder %v1880, 0
  %v2257 = vsub.s32 0, %v1880
  %v2258 = vsel %vm2256, %v2257, %v1880
  %v2259 = vshrl.u32 %v2258, 4
  %v2260 = vand.u32 %v2258, 15
  %v2261 = vsub.s32 0, %v2260
  %v2262 = vsel %vm2256, %v2261, %v2260
  %vm2263 = vcmp.lt.s32.totalorder %v1881, 0
  %v2264 = vsub.s32 0, %v1881
  %v2265 = vsel %vm2263, %v2264, %v1881
  %v2266 = vshrl.u32 %v2265, 4
  %v2267 = vand.u32 %v2265, 15
  %v2268 = vsub.s32 0, %v2267
  %v2269 = vsel %vm2263, %v2268, %v2267
  %vm2270 = vcmp.lt.s32.totalorder %v1882, 0
  %v2271 = vsub.s32 0, %v1882
  %v2272 = vsel %vm2270, %v2271, %v1882
  %v2273 = vshrl.u32 %v2272, 4
  %v2274 = vand.u32 %v2272, 15
  %v2275 = vsub.s32 0, %v2274
  %v2276 = vsel %vm2270, %v2275, %v2274
  %vm2277 = vcmp.lt.s32.totalorder %v1883, 0
  %v2278 = vsub.s32 0, %v1883
  %v2279 = vsel %vm2277, %v2278, %v1883
  %v2280 = vshrl.u32 %v2279, 4
  %v2281 = vand.u32 %v2279, 15
  %v2282 = vsub.s32 0, %v2281
  %v2283 = vsel %vm2277, %v2282, %v2281
  %vm2284 = vcmp.lt.s32.totalorder %v1884, 0
  %v2285 = vsub.s32 0, %v1884
  %v2286 = vsel %vm2284, %v2285, %v1884
  %v2287 = vshrl.u32 %v2286, 4
  %v2288 = vand.u32 %v2286, 15
  %v2289 = vsub.s32 0, %v2288
  %v2290 = vsel %vm2284, %v2289, %v2288
  %vm2291 = vcmp.lt.s32.totalorder %v1885, 0
  %v2292 = vsub.s32 0, %v1885
  %v2293 = vsel %vm2291, %v2292, %v1885
  %v2294 = vshrl.u32 %v2293, 4
  %v2295 = vand.u32 %v2293, 15
  %v2296 = vsub.s32 0, %v2295
  %v2297 = vsel %vm2291, %v2296, %v2295
  %vm2298 = vcmp.lt.s32.totalorder %v1886, 0
  %v2299 = vsub.s32 0, %v1886
  %v2300 = vsel %vm2298, %v2299, %v1886
  %v2301 = vshrl.u32 %v2300, 4
  %v2302 = vand.u32 %v2300, 15
  %v2303 = vsub.s32 0, %v2302
  %v2304 = vsel %vm2298, %v2303, %v2302
  %vm2305 = vcmp.lt.s32.totalorder %v1887, 0
  %v2306 = vsub.s32 0, %v1887
  %v2307 = vsel %vm2305, %v2306, %v1887
  %v2308 = vshrl.u32 %v2307, 4
  %v2309 = vand.u32 %v2307, 15
  %v2310 = vsub.s32 0, %v2309
  %v2311 = vsel %vm2305, %v2310, %v2309
  %vm2312 = vcmp.lt.s32.totalorder %v1888, 0
  %v2313 = vsub.s32 0, %v1888
  %v2314 = vsel %vm2312, %v2313, %v1888
  %v2315 = vshrl.u32 %v2314, 4
  %v2316 = vand.u32 %v2314, 15
  %v2317 = vsub.s32 0, %v2316
  %v2318 = vsel %vm2312, %v2317, %v2316
  %vm2319 = vcmp.lt.s32.totalorder %v1889, 0
  %v2320 = vsub.s32 0, %v1889
  %v2321 = vsel %vm2319, %v2320, %v1889
  %v2322 = vshrl.u32 %v2321, 4
  %v2323 = vand.u32 %v2321, 15
  %v2324 = vsub.s32 0, %v2323
  %v2325 = vsel %vm2319, %v2324, %v2323
  %vm2326 = vcmp.lt.s32.totalorder %v1890, 0
  %v2327 = vsub.s32 0, %v1890
  %v2328 = vsel %vm2326, %v2327, %v1890
  %v2329 = vshrl.u32 %v2328, 4
  %v2330 = vand.u32 %v2328, 15
  %v2331 = vsub.s32 0, %v2330
  %v2332 = vsel %vm2326, %v2331, %v2330
  %vm2333 = vcmp.lt.s32.totalorder %v1891, 0
  %v2334 = vsub.s32 0, %v1891
  %v2335 = vsel %vm2333, %v2334, %v1891
  %v2336 = vshrl.u32 %v2335, 4
  %v2337 = vand.u32 %v2335, 15
  %v2338 = vsub.s32 0, %v2337
  %v2339 = vsel %vm2333, %v2338, %v2337
  %vm2340 = vcmp.lt.s32.totalorder %v1892, 0
  %v2341 = vsub.s32 0, %v1892
  %v2342 = vsel %vm2340, %v2341, %v1892
  %v2343 = vshrl.u32 %v2342, 4
  %v2344 = vand.u32 %v2342, 15
  %v2345 = vsub.s32 0, %v2344
  %v2346 = vsel %vm2340, %v2345, %v2344
  %vm2347 = vcmp.lt.s32.totalorder %v1893, 0
  %v2348 = vsub.s32 0, %v1893
  %v2349 = vsel %vm2347, %v2348, %v1893
  %v2350 = vshrl.u32 %v2349, 4
  %v2351 = vand.u32 %v2349, 15
  %v2352 = vsub.s32 0, %v2351
  %v2353 = vsel %vm2347, %v2352, %v2351
  %vm2354 = vcmp.lt.s32.totalorder %v1894, 0
  %v2355 = vsub.s32 0, %v1894
  %v2356 = vsel %vm2354, %v2355, %v1894
  %v2357 = vshrl.u32 %v2356, 4
  %v2358 = vand.u32 %v2356, 15
  %v2359 = vsub.s32 0, %v2358
  %v2360 = vsel %vm2354, %v2359, %v2358
  %vm2361 = vcmp.lt.s32.totalorder %v1895, 0
  %v2362 = vsub.s32 0, %v1895
  %v2363 = vsel %vm2361, %v2362, %v1895
  %v2364 = vshrl.u32 %v2363, 4
  %v2365 = vand.u32 %v2363, 15
  %v2366 = vsub.s32 0, %v2365
  %v2367 = vsel %vm2361, %v2366, %v2365
  %vm2368 = vcmp.lt.s32.totalorder %v1896, 0
  %v2369 = vsub.s32 0, %v1896
  %v2370 = vsel %vm2368, %v2369, %v1896
  %v2371 = vshrl.u32 %v2370, 4
  %v2372 = vand.u32 %v2370, 15
  %v2373 = vsub.s32 0, %v2372
  %v2374 = vsel %vm2368, %v2373, %v2372
  %vm2375 = vcmp.lt.s32.totalorder %v1897, 0
  %v2376 = vsub.s32 0, %v1897
  %v2377 = vsel %vm2375, %v2376, %v1897
  %v2378 = vshrl.u32 %v2377, 4
  %v2379 = vand.u32 %v2377, 15
  %v2380 = vsub.s32 0, %v2379
  %v2381 = vsel %vm2375, %v2380, %v2379
  %vm2382 = vcmp.lt.s32.totalorder %v1898, 0
  %v2383 = vsub.s32 0, %v1898
  %v2384 = vsel %vm2382, %v2383, %v1898
  %v2385 = vshrl.u32 %v2384, 4
  %v2386 = vand.u32 %v2384, 15
  %v2387 = vsub.s32 0, %v2386
  %v2388 = vsel %vm2382, %v2387, %v2386
  %vm2389 = vcmp.lt.s32.totalorder %v1899, 0
  %v2390 = vsub.s32 0, %v1899
  %v2391 = vsel %vm2389, %v2390, %v1899
  %v2392 = vshrl.u32 %v2391, 4
  %v2393 = vand.u32 %v2391, 15
  %v2394 = vsub.s32 0, %v2393
  %v2395 = vsel %vm2389, %v2394, %v2393
  %vm2396 = vcmp.lt.s32.totalorder %v1900, 0
  %v2397 = vsub.s32 0, %v1900
  %v2398 = vsel %vm2396, %v2397, %v1900
  %v2399 = vshrl.u32 %v2398, 4
  %v2400 = vand.u32 %v2398, 15
  %v2401 = vsub.s32 0, %v2400
  %v2402 = vsel %vm2396, %v2401, %v2400
  %vm2403 = vcmp.lt.s32.totalorder %v1901, 0
  %v2404 = vsub.s32 0, %v1901
  %v2405 = vsel %vm2403, %v2404, %v1901
  %v2406 = vshrl.u32 %v2405, 4
  %v2407 = vand.u32 %v2405, 15
  %v2408 = vsub.s32 0, %v2407
  %v2409 = vsel %vm2403, %v2408, %v2407
  %vm2410 = vcmp.lt.s32.totalorder %v1902, 0
  %v2411 = vsub.s32 0, %v1902
  %v2412 = vsel %vm2410, %v2411, %v1902
  %v2413 = vshrl.u32 %v2412, 4
  %v2414 = vand.u32 %v2412, 15
  %v2415 = vsub.s32 0, %v2414
  %v2416 = vsel %vm2410, %v2415, %v2414
  %vm2417 = vcmp.lt.s32.totalorder %v1903, 0
  %v2418 = vsub.s32 0, %v1903
  %v2419 = vsel %vm2417, %v2418, %v1903
  %v2420 = vshrl.u32 %v2419, 4
  %v2421 = vand.u32 %v2419, 15
  %v2422 = vsub.s32 0, %v2421
  %v2423 = vsel %vm2417, %v2422, %v2421
  %vm2424 = vcmp.lt.s32.totalorder %v1904, 0
  %v2425 = vsub.s32 0, %v1904
  %v2426 = vsel %vm2424, %v2425, %v1904
  %v2427 = vshrl.u32 %v2426, 4
  %v2428 = vand.u32 %v2426, 15
  %v2429 = vsub.s32 0, %v2428
  %v2430 = vsel %vm2424, %v2429, %v2428
  %vm2431 = vcmp.lt.s32.totalorder %v1905, 0
  %v2432 = vsub.s32 0, %v1905
  %v2433 = vsel %vm2431, %v2432, %v1905
  %v2434 = vshrl.u32 %v2433, 4
  %v2435 = vand.u32 %v2433, 15
  %v2436 = vsub.s32 0, %v2435
  %v2437 = vsel %vm2431, %v2436, %v2435
  %vm2438 = vcmp.ne.s32.totalorder %v1912, 0
  %vm2439 = vcmp.ne.s32.totalorder %v1919, 0
  %vm2440 = vcmp.ne.s32.totalorder %v1926, 0
  %vm2441 = vcmp.ne.s32.totalorder %v1933, 0
  %vm2442 = vcmp.ne.s32.totalorder %v1940, 0
  %vm2443 = vcmp.ne.s32.totalorder %v1947, 0
  %vm2444 = vcmp.ne.s32.totalorder %v1954, 0
  %vm2445 = vcmp.ne.s32.totalorder %v1961, 0
  %vm2446 = vcmp.ne.s32.totalorder %v1968, 0
  %vm2447 = vcmp.ne.s32.totalorder %v1975, 0
  %vm2448 = vcmp.ne.s32.totalorder %v1982, 0
  %vm2449 = vcmp.ne.s32.totalorder %v1989, 0
  %vm2450 = vcmp.ne.s32.totalorder %v1996, 0
  %vm2451 = vcmp.ne.s32.totalorder %v2003, 0
  %vm2452 = vcmp.ne.s32.totalorder %v2010, 0
  %vm2453 = vcmp.ne.s32.totalorder %v2017, 0
  %vm2454 = vcmp.ne.s32.totalorder %v2024, 0
  %vm2455 = vcmp.ne.s32.totalorder %v2031, 0
  %vm2456 = vcmp.ne.s32.totalorder %v2038, 0
  %vm2457 = vcmp.ne.s32.totalorder %v2045, 0
  %vm2458 = vcmp.ne.s32.totalorder %v2052, 0
  %vm2459 = vcmp.ne.s32.totalorder %v2059, 0
  %vm2460 = vcmp.ne.s32.totalorder %v2066, 0
  %vm2461 = vcmp.ne.s32.totalorder %v2073, 0
  %vm2462 = vcmp.ne.s32.totalorder %v2080, 0
  %vm2463 = vcmp.ne.s32.totalorder %v2087, 0
  %vm2464 = vcmp.ne.s32.totalorder %v2094, 0
  %vm2465 = vcmp.ne.s32.totalorder %v2101, 0
  %vm2466 = vcmp.ne.s32.totalorder %v2108, 0
  %vm2467 = vcmp.ne.s32.totalorder %v2115, 0
  %vm2468 = vcmp.ne.s32.totalorder %v2122, 0
  %vm2469 = vcmp.ne.s32.totalorder %v2129, 0
  %vm2470 = vcmp.ne.s32.totalorder %v2136, 0
  %vm2471 = vcmp.ne.s32.totalorder %v2143, 0
  %vm2472 = vcmp.ne.s32.totalorder %v2150, 0
  %vm2473 = vcmp.ne.s32.totalorder %v2157, 0
  %vm2474 = vcmp.ne.s32.totalorder %v2164, 0
  %vm2475 = vcmp.ne.s32.totalorder %v2171, 0
  %vm2476 = vcmp.ne.s32.totalorder %v2178, 0
  %vm2477 = vcmp.ne.s32.totalorder %v2185, 0
  %vm2478 = vcmp.ne.s32.totalorder %v2192, 0
  %vm2479 = vcmp.ne.s32.totalorder %v2199, 0
  %vm2480 = vcmp.ne.s32.totalorder %v2206, 0
  %vm2481 = vcmp.ne.s32.totalorder %v2213, 0
  %vm2482 = vcmp.ne.s32.totalorder %v2220, 0
  %vm2483 = vcmp.ne.s32.totalorder %v2227, 0
  %vm2484 = vcmp.ne.s32.totalorder %v2234, 0
  %vm2485 = vcmp.ne.s32.totalorder %v2241, 0
  %vm2486 = vcmp.ne.s32.totalorder %v2248, 0
  %vm2487 = vcmp.ne.s32.totalorder %v2255, 0
  %vm2488 = vcmp.ne.s32.totalorder %v2262, 0
  %vm2489 = vcmp.ne.s32.totalorder %v2269, 0
  %vm2490 = vcmp.ne.s32.totalorder %v2276, 0
  %vm2491 = vcmp.ne.s32.totalorder %v2283, 0
  %vm2492 = vcmp.ne.s32.totalorder %v2290, 0
  %vm2493 = vcmp.ne.s32.totalorder %v2297, 0
  %vm2494 = vcmp.ne.s32.totalorder %v2304, 0
  %vm2495 = vcmp.ne.s32.totalorder %v2311, 0
  %vm2496 = vcmp.ne.s32.totalorder %v2318, 0
  %vm2497 = vcmp.ne.s32.totalorder %v2325, 0
  %vm2498 = vcmp.ne.s32.totalorder %v2332, 0
  %vm2499 = vcmp.ne.s32.totalorder %v2339, 0
  %vm2500 = vcmp.ne.s32.totalorder %v2346, 0
  %vm2501 = vcmp.ne.s32.totalorder %v2353, 0
  %vm2502 = vcmp.ne.s32.totalorder %v2360, 0
  %vm2503 = vcmp.ne.s32.totalorder %v2367, 0
  %vm2504 = vcmp.ne.s32.totalorder %v2374, 0
  %vm2505 = vcmp.ne.s32.totalorder %v2381, 0
  %vm2506 = vcmp.ne.s32.totalorder %v2388, 0
  %vm2507 = vcmp.ne.s32.totalorder %v2395, 0
  %vm2508 = vcmp.ne.s32.totalorder %v2402, 0
  %vm2509 = vcmp.ne.s32.totalorder %v2409, 0
  %vm2510 = vcmp.ne.s32.totalorder %v2416, 0
  %vm2511 = vcmp.ne.s32.totalorder %v2423, 0
  %vm2512 = vcmp.ne.s32.totalorder %v2430, 0
  %vm2513 = vcmp.ne.s32.totalorder %v2437, 0
  %vm2514 = vcmp.lt.s32.totalorder %v1912, 0
  %vm2515 = vcmp.lt.s32.totalorder %v1919, 0
  %vm2516 = vcmp.lt.s32.totalorder %v1926, 0
  %vm2517 = vcmp.lt.s32.totalorder %v1933, 0
  %vm2518 = vcmp.lt.s32.totalorder %v1940, 0
  %vm2519 = vcmp.lt.s32.totalorder %v1947, 0
  %vm2520 = vcmp.lt.s32.totalorder %v1954, 0
  %vm2521 = vcmp.lt.s32.totalorder %v1961, 0
  %vm2522 = vcmp.lt.s32.totalorder %v1968, 0
  %vm2523 = vcmp.lt.s32.totalorder %v1975, 0
  %vm2524 = vcmp.lt.s32.totalorder %v1982, 0
  %vm2525 = vcmp.lt.s32.totalorder %v1989, 0
  %vm2526 = vcmp.lt.s32.totalorder %v1996, 0
  %vm2527 = vcmp.lt.s32.totalorder %v2003, 0
  %vm2528 = vcmp.lt.s32.totalorder %v2010, 0
  %vm2529 = vcmp.lt.s32.totalorder %v2017, 0
  %vm2530 = vcmp.lt.s32.totalorder %v2024, 0
  %vm2531 = vcmp.lt.s32.totalorder %v2031, 0
  %vm2532 = vcmp.lt.s32.totalorder %v2038, 0
  %vm2533 = vcmp.lt.s32.totalorder %v2045, 0
  %vm2534 = vcmp.lt.s32.totalorder %v2052, 0
  %vm2535 = vcmp.lt.s32.totalorder %v2059, 0
  %vm2536 = vcmp.lt.s32.totalorder %v2066, 0
  %vm2537 = vcmp.lt.s32.totalorder %v2073, 0
  %vm2538 = vcmp.lt.s32.totalorder %v2080, 0
  %vm2539 = vcmp.lt.s32.totalorder %v2087, 0
  %vm2540 = vcmp.lt.s32.totalorder %v2094, 0
  %vm2541 = vcmp.lt.s32.totalorder %v2101, 0
  %vm2542 = vcmp.lt.s32.totalorder %v2108, 0
  %vm2543 = vcmp.lt.s32.totalorder %v2115, 0
  %vm2544 = vcmp.lt.s32.totalorder %v2122, 0
  %vm2545 = vcmp.lt.s32.totalorder %v2129, 0
  %vm2546 = vcmp.lt.s32.totalorder %v2136, 0
  %vm2547 = vcmp.lt.s32.totalorder %v2143, 0
  %vm2548 = vcmp.lt.s32.totalorder %v2150, 0
  %vm2549 = vcmp.lt.s32.totalorder %v2157, 0
  %vm2550 = vcmp.lt.s32.totalorder %v2164, 0
  %vm2551 = vcmp.lt.s32.totalorder %v2171, 0
  %vm2552 = vcmp.lt.s32.totalorder %v2178, 0
  %vm2553 = vcmp.lt.s32.totalorder %v2185, 0
  %vm2554 = vcmp.lt.s32.totalorder %v2192, 0
  %vm2555 = vcmp.lt.s32.totalorder %v2199, 0
  %vm2556 = vcmp.lt.s32.totalorder %v2206, 0
  %vm2557 = vcmp.lt.s32.totalorder %v2213, 0
  %vm2558 = vcmp.lt.s32.totalorder %v2220, 0
  %vm2559 = vcmp.lt.s32.totalorder %v2227, 0
  %vm2560 = vcmp.lt.s32.totalorder %v2234, 0
  %vm2561 = vcmp.lt.s32.totalorder %v2241, 0
  %vm2562 = vcmp.lt.s32.totalorder %v2248, 0
  %vm2563 = vcmp.lt.s32.totalorder %v2255, 0
  %vm2564 = vcmp.lt.s32.totalorder %v2262, 0
  %vm2565 = vcmp.lt.s32.totalorder %v2269, 0
  %vm2566 = vcmp.lt.s32.totalorder %v2276, 0
  %vm2567 = vcmp.lt.s32.totalorder %v2283, 0
  %vm2568 = vcmp.lt.s32.totalorder %v2290, 0
  %vm2569 = vcmp.lt.s32.totalorder %v2297, 0
  %vm2570 = vcmp.lt.s32.totalorder %v2304, 0
  %vm2571 = vcmp.lt.s32.totalorder %v2311, 0
  %vm2572 = vcmp.lt.s32.totalorder %v2318, 0
  %vm2573 = vcmp.lt.s32.totalorder %v2325, 0
  %vm2574 = vcmp.lt.s32.totalorder %v2332, 0
  %vm2575 = vcmp.lt.s32.totalorder %v2339, 0
  %vm2576 = vcmp.lt.s32.totalorder %v2346, 0
  %vm2577 = vcmp.lt.s32.totalorder %v2353, 0
  %vm2578 = vcmp.lt.s32.totalorder %v2360, 0
  %vm2579 = vcmp.lt.s32.totalorder %v2367, 0
  %vm2580 = vcmp.lt.s32.totalorder %v2374, 0
  %vm2581 = vcmp.lt.s32.totalorder %v2381, 0
  %vm2582 = vcmp.lt.s32.totalorder %v2388, 0
  %vm2583 = vcmp.lt.s32.totalorder %v2395, 0
  %vm2584 = vcmp.lt.s32.totalorder %v2402, 0
  %vm2585 = vcmp.lt.s32.totalorder %v2409, 0
  %vm2586 = vcmp.lt.s32.totalorder %v2416, 0
  %vm2587 = vcmp.lt.s32.totalorder %v2423, 0
  %vm2588 = vcmp.lt.s32.totalorder %v2430, 0
  %vm2589 = vcmp.lt.s32.totalorder %v2437, 0
  %vm2590 = vmand %vm2514, %vm2438
  %vm2591 = vmand %vm2515, %vm2439
  %vm2592 = vmand %vm2516, %vm2440
  %vm2593 = vmand %vm2517, %vm2441
  %vm2594 = vmand %vm2518, %vm2442
  %vm2595 = vmand %vm2519, %vm2443
  %vm2596 = vmand %vm2520, %vm2444
  %vm2597 = vmand %vm2521, %vm2445
  %vm2598 = vmand %vm2522, %vm2446
  %vm2599 = vmand %vm2523, %vm2447
  %vm2600 = vmand %vm2524, %vm2448
  %vm2601 = vmand %vm2525, %vm2449
  %vm2602 = vmand %vm2526, %vm2450
  %vm2603 = vmand %vm2527, %vm2451
  %vm2604 = vmand %vm2528, %vm2452
  %vm2605 = vmand %vm2529, %vm2453
  %vm2606 = vmand %vm2530, %vm2454
  %vm2607 = vmand %vm2531, %vm2455
  %vm2608 = vmand %vm2532, %vm2456
  %vm2609 = vmand %vm2533, %vm2457
  %vm2610 = vmand %vm2534, %vm2458
  %vm2611 = vmand %vm2535, %vm2459
  %vm2612 = vmand %vm2536, %vm2460
  %vm2613 = vmand %vm2537, %vm2461
  %vm2614 = vmand %vm2538, %vm2462
  %vm2615 = vmand %vm2539, %vm2463
  %vm2616 = vmand %vm2540, %vm2464
  %vm2617 = vmand %vm2541, %vm2465
  %vm2618 = vmand %vm2542, %vm2466
  %vm2619 = vmand %vm2543, %vm2467
  %vm2620 = vmand %vm2544, %vm2468
  %vm2621 = vmand %vm2545, %vm2469
  %vm2622 = vmand %vm2546, %vm2470
  %vm2623 = vmand %vm2547, %vm2471
  %vm2624 = vmand %vm2548, %vm2472
  %vm2625 = vmand %vm2549, %vm2473
  %vm2626 = vmand %vm2550, %vm2474
  %vm2627 = vmand %vm2551, %vm2475
  %vm2628 = vmand %vm2552, %vm2476
  %vm2629 = vmand %vm2553, %vm2477
  %vm2630 = vmand %vm2554, %vm2478
  %vm2631 = vmand %vm2555, %vm2479
  %vm2632 = vmand %vm2556, %vm2480
  %vm2633 = vmand %vm2557, %vm2481
  %vm2634 = vmand %vm2558, %vm2482
  %vm2635 = vmand %vm2559, %vm2483
  %vm2636 = vmand %vm2560, %vm2484
  %vm2637 = vmand %vm2561, %vm2485
  %vm2638 = vmand %vm2562, %vm2486
  %vm2639 = vmand %vm2563, %vm2487
  %vm2640 = vmand %vm2564, %vm2488
  %vm2641 = vmand %vm2565, %vm2489
  %vm2642 = vmand %vm2566, %vm2490
  %vm2643 = vmand %vm2567, %vm2491
  %vm2644 = vmand %vm2568, %vm2492
  %vm2645 = vmand %vm2569, %vm2493
  %vm2646 = vmand %vm2570, %vm2494
  %vm2647 = vmand %vm2571, %vm2495
  %vm2648 = vmand %vm2572, %vm2496
  %vm2649 = vmand %vm2573, %vm2497
  %vm2650 = vmand %vm2574, %vm2498
  %vm2651 = vmand %vm2575, %vm2499
  %vm2652 = vmand %vm2576, %vm2500
  %vm2653 = vmand %vm2577, %vm2501
  %vm2654 = vmand %vm2578, %vm2502
  %vm2655 = vmand %vm2579, %vm2503
  %vm2656 = vmand %vm2580, %vm2504
  %vm2657 = vmand %vm2581, %vm2505
  %vm2658 = vmand %vm2582, %vm2506
  %vm2659 = vmand %vm2583, %vm2507
  %vm2660 = vmand %vm2584, %vm2508
  %vm2661 = vmand %vm2585, %vm2509
  %vm2662 = vmand %vm2586, %vm2510
  %vm2663 = vmand %vm2587, %vm2511
  %vm2664 = vmand %vm2588, %vm2512
  %vm2665 = vmand %vm2589, %vm2513
  %v2666 = vadd.s32 %v1912, 16
  %v2667 = vadd.s32 %v1919, 16
  %v2668 = vadd.s32 %v1926, 16
  %v2669 = vadd.s32 %v1933, 16
  %v2670 = vadd.s32 %v1940, 16
  %v2671 = vadd.s32 %v1947, 16
  %v2672 = vadd.s32 %v1954, 16
  %v2673 = vadd.s32 %v1961, 16
  %v2674 = vadd.s32 %v1968, 16
  %v2675 = vadd.s32 %v1975, 16
  %v2676 = vadd.s32 %v1982, 16
  %v2677 = vadd.s32 %v1989, 16
  %v2678 = vadd.s32 %v1996, 16
  %v2679 = vadd.s32 %v2003, 16
  %v2680 = vadd.s32 %v2010, 16
  %v2681 = vadd.s32 %v2017, 16
  %v2682 = vadd.s32 %v2024, 16
  %v2683 = vadd.s32 %v2031, 16
  %v2684 = vadd.s32 %v2038, 16
  %v2685 = vadd.s32 %v2045, 16
  %v2686 = vadd.s32 %v2052, 16
  %v2687 = vadd.s32 %v2059, 16
  %v2688 = vadd.s32 %v2066, 16
  %v2689 = vadd.s32 %v2073, 16
  %v2690 = vadd.s32 %v2080, 16
  %v2691 = vadd.s32 %v2087, 16
  %v2692 = vadd.s32 %v2094, 16
  %v2693 = vadd.s32 %v2101, 16
  %v2694 = vadd.s32 %v2108, 16
  %v2695 = vadd.s32 %v2115, 16
  %v2696 = vadd.s32 %v2122, 16
  %v2697 = vadd.s32 %v2129, 16
  %v2698 = vadd.s32 %v2136, 16
  %v2699 = vadd.s32 %v2143, 16
  %v2700 = vadd.s32 %v2150, 16
  %v2701 = vadd.s32 %v2157, 16
  %v2702 = vadd.s32 %v2164, 16
  %v2703 = vadd.s32 %v2171, 16
  %v2704 = vadd.s32 %v2178, 16
  %v2705 = vadd.s32 %v2185, 16
  %v2706 = vadd.s32 %v2192, 16
  %v2707 = vadd.s32 %v2199, 16
  %v2708 = vadd.s32 %v2206, 16
  %v2709 = vadd.s32 %v2213, 16
  %v2710 = vadd.s32 %v2220, 16
  %v2711 = vadd.s32 %v2227, 16
  %v2712 = vadd.s32 %v2234, 16
  %v2713 = vadd.s32 %v2241, 16
  %v2714 = vadd.s32 %v2248, 16
  %v2715 = vadd.s32 %v2255, 16
  %v2716 = vadd.s32 %v2262, 16
  %v2717 = vadd.s32 %v2269, 16
  %v2718 = vadd.s32 %v2276, 16
  %v2719 = vadd.s32 %v2283, 16
  %v2720 = vadd.s32 %v2290, 16
  %v2721 = vadd.s32 %v2297, 16
  %v2722 = vadd.s32 %v2304, 16
  %v2723 = vadd.s32 %v2311, 16
  %v2724 = vadd.s32 %v2318, 16
  %v2725 = vadd.s32 %v2325, 16
  %v2726 = vadd.s32 %v2332, 16
  %v2727 = vadd.s32 %v2339, 16
  %v2728 = vadd.s32 %v2346, 16
  %v2729 = vadd.s32 %v2353, 16
  %v2730 = vadd.s32 %v2360, 16
  %v2731 = vadd.s32 %v2367, 16
  %v2732 = vadd.s32 %v2374, 16
  %v2733 = vadd.s32 %v2381, 16
  %v2734 = vadd.s32 %v2388, 16
  %v2735 = vadd.s32 %v2395, 16
  %v2736 = vadd.s32 %v2402, 16
  %v2737 = vadd.s32 %v2409, 16
  %v2738 = vadd.s32 %v2416, 16
  %v2739 = vadd.s32 %v2423, 16
  %v2740 = vadd.s32 %v2430, 16
  %v2741 = vadd.s32 %v2437, 16
  %v2742 = vsel %vm2590, %v2666, %v1912
  %v2743 = vsel %vm2591, %v2667, %v1919
  %v2744 = vsel %vm2592, %v2668, %v1926
  %v2745 = vsel %vm2593, %v2669, %v1933
  %v2746 = vsel %vm2594, %v2670, %v1940
  %v2747 = vsel %vm2595, %v2671, %v1947
  %v2748 = vsel %vm2596, %v2672, %v1954
  %v2749 = vsel %vm2597, %v2673, %v1961
  %v2750 = vsel %vm2598, %v2674, %v1968
  %v2751 = vsel %vm2599, %v2675, %v1975
  %v2752 = vsel %vm2600, %v2676, %v1982
  %v2753 = vsel %vm2601, %v2677, %v1989
  %v2754 = vsel %vm2602, %v2678, %v1996
  %v2755 = vsel %vm2603, %v2679, %v2003
  %v2756 = vsel %vm2604, %v2680, %v2010
  %v2757 = vsel %vm2605, %v2681, %v2017
  %v2758 = vsel %vm2606, %v2682, %v2024
  %v2759 = vsel %vm2607, %v2683, %v2031
  %v2760 = vsel %vm2608, %v2684, %v2038
  %v2761 = vsel %vm2609, %v2685, %v2045
  %v2762 = vsel %vm2610, %v2686, %v2052
  %v2763 = vsel %vm2611, %v2687, %v2059
  %v2764 = vsel %vm2612, %v2688, %v2066
  %v2765 = vsel %vm2613, %v2689, %v2073
  %v2766 = vsel %vm2614, %v2690, %v2080
  %v2767 = vsel %vm2615, %v2691, %v2087
  %v2768 = vsel %vm2616, %v2692, %v2094
  %v2769 = vsel %vm2617, %v2693, %v2101
  %v2770 = vsel %vm2618, %v2694, %v2108
  %v2771 = vsel %vm2619, %v2695, %v2115
  %v2772 = vsel %vm2620, %v2696, %v2122
  %v2773 = vsel %vm2621, %v2697, %v2129
  %v2774 = vsel %vm2622, %v2698, %v2136
  %v2775 = vsel %vm2623, %v2699, %v2143
  %v2776 = vsel %vm2624, %v2700, %v2150
  %v2777 = vsel %vm2625, %v2701, %v2157
  %v2778 = vsel %vm2626, %v2702, %v2164
  %v2779 = vsel %vm2627, %v2703, %v2171
  %v2780 = vsel %vm2628, %v2704, %v2178
  %v2781 = vsel %vm2629, %v2705, %v2185
  %v2782 = vsel %vm2630, %v2706, %v2192
  %v2783 = vsel %vm2631, %v2707, %v2199
  %v2784 = vsel %vm2632, %v2708, %v2206
  %v2785 = vsel %vm2633, %v2709, %v2213
  %v2786 = vsel %vm2634, %v2710, %v2220
  %v2787 = vsel %vm2635, %v2711, %v2227
  %v2788 = vsel %vm2636, %v2712, %v2234
  %v2789 = vsel %vm2637, %v2713, %v2241
  %v2790 = vsel %vm2638, %v2714, %v2248
  %v2791 = vsel %vm2639, %v2715, %v2255
  %v2792 = vsel %vm2640, %v2716, %v2262
  %v2793 = vsel %vm2641, %v2717, %v2269
  %v2794 = vsel %vm2642, %v2718, %v2276
  %v2795 = vsel %vm2643, %v2719, %v2283
  %v2796 = vsel %vm2644, %v2720, %v2290
  %v2797 = vsel %vm2645, %v2721, %v2297
  %v2798 = vsel %vm2646, %v2722, %v2304
  %v2799 = vsel %vm2647, %v2723, %v2311
  %v2800 = vsel %vm2648, %v2724, %v2318
  %v2801 = vsel %vm2649, %v2725, %v2325
  %v2802 = vsel %vm2650, %v2726, %v2332
  %v2803 = vsel %vm2651, %v2727, %v2339
  %v2804 = vsel %vm2652, %v2728, %v2346
  %v2805 = vsel %vm2653, %v2729, %v2353
  %v2806 = vsel %vm2654, %v2730, %v2360
  %v2807 = vsel %vm2655, %v2731, %v2367
  %v2808 = vsel %vm2656, %v2732, %v2374
  %v2809 = vsel %vm2657, %v2733, %v2381
  %v2810 = vsel %vm2658, %v2734, %v2388
  %v2811 = vsel %vm2659, %v2735, %v2395
  %v2812 = vsel %vm2660, %v2736, %v2402
  %v2813 = vsel %vm2661, %v2737, %v2409
  %v2814 = vsel %vm2662, %v2738, %v2416
  %v2815 = vsel %vm2663, %v2739, %v2423
  %v2816 = vsel %vm2664, %v2740, %v2430
  %v2817 = vsel %vm2665, %v2741, %v2437
  %v2818 = vld [vmem:[#allocation2] sm:$0xff]
  %v2819 = vld [vmem:[#allocation2 + $0x8] sm:$0xff]
  %v2820 = vld [vmem:[#allocation2 + $0x10] sm:$0xff]
  %v2821 = vld [vmem:[#allocation2 + $0x18] sm:$0xff]
  %v2822 = vld [vmem:[#allocation2 + $0x20] sm:$0xff]
  %v2823 = vld [vmem:[#allocation2 + $0x28] sm:$0xff]
  %v2824 = vld [vmem:[#allocation2 + $0x30] sm:$0xff]
  %v2825 = vld [vmem:[#allocation2 + $0x38] sm:$0xff]
  %v2826 = vld [vmem:[#allocation2 + $0x40] sm:$0xff]
  %v2827 = vld [vmem:[#allocation2 + $0x48] sm:$0xff]
  %v2828 = vld [vmem:[#allocation2 + $0x50] sm:$0xff]
  %v2829 = vld [vmem:[#allocation2 + $0x58] sm:$0xff]
  %v2830 = vld [vmem:[#allocation2 + $0x60] sm:$0xff]
  %v2831 = vld [vmem:[#allocation2 + $0x68] sm:$0xff]
  %v2832 = vld [vmem:[#allocation2 + $0x70] sm:$0xff]
  %v2833 = vld [vmem:[#allocation2 + $0x78] sm:$0xff]
  %v2834 = vld [vmem:[#allocation2 + $0x80] sm:$0xff]
  %v2835 = vld [vmem:[#allocation2 + $0x88] sm:$0xff]
  %v2836 = vld [vmem:[#allocation2 + $0x90] sm:$0xff]
  %v2837 = vld [vmem:[#allocation2 + $0x98] sm:$0xff]
  %v2838 = vld [vmem:[#allocation2 + $0xa0] sm:$0xff]
  %v2839 = vld [vmem:[#allocation2 + $0xa8] sm:$0xff]
  %v2840 = vld [vmem:[#allocation2 + $0xb0] sm:$0xff]
  %v2841 = vld [vmem:[#allocation2 + $0xb8] sm:$0xff]
  %v2842 = vld [vmem:[#allocation2 + $0xc0] sm:$0xff]
  %v2843 = vld [vmem:[#allocation2 + $0xc8] sm:$0xff]
  %v2844 = vld [vmem:[#allocation2 + $0xd0] sm:$0xff]
  %v2845 = vld [vmem:[#allocation2 + $0xd8] sm:$0xff]
  %v2846 = vld [vmem:[#allocation2 + $0xe0] sm:$0xff]
  %v2847 = vld [vmem:[#allocation2 + $0xe8] sm:$0xff]
  %v2848 = vld [vmem:[#allocation2 + $0xf0] sm:$0xff]
  %v2849 = vld [vmem:[#allocation2 + $0xf8] sm:$0xff]
  %v2850 = vld [vmem:[#allocation2 + $0x100] sm:$0xff]
  %v2851 = vld [vmem:[#allocation2 + $0x108] sm:$0xff]
  %v2852 = vld [vmem:[#allocation2 + $0x110] sm:$0xff]
  %v2853 = vld [vmem:[#allocation2 + $0x118] sm:$0xff]
  %v2854 = vld [vmem:[#allocation2 + $0x120] sm:$0xff]
  %v2855 = vld [vmem:[#allocation2 + $0x128] sm:$0xff]
  %v2856 = vld [vmem:[#allocation2 + $0x130] sm:$0xff]
  %v2857 = vld [vmem:[#allocation2 + $0x138] sm:$0xff]
  %v2858 = vld [vmem:[#allocation2 + $0x140] sm:$0xff]
  %v2859 = vld [vmem:[#allocation2 + $0x148] sm:$0xff]
  %v2860 = vld [vmem:[#allocation2 + $0x150] sm:$0xff]
  %v2861 = vld [vmem:[#allocation2 + $0x158] sm:$0xff]
  %v2862 = vld [vmem:[#allocation2 + $0x160] sm:$0xff]
  %v2863 = vld [vmem:[#allocation2 + $0x168] sm:$0xff]
  %v2864 = vld [vmem:[#allocation2 + $0x170] sm:$0xff]
  %v2865 = vld [vmem:[#allocation2 + $0x178] sm:$0xff]
  %v2866 = vld [vmem:[#allocation2 + $0x180] sm:$0xff]
  %v2867 = vld [vmem:[#allocation2 + $0x188] sm:$0xff]
  %v2868 = vld [vmem:[#allocation2 + $0x190] sm:$0xff]
  %v2869 = vld [vmem:[#allocation2 + $0x198] sm:$0xff]
  %v2870 = vld [vmem:[#allocation2 + $0x1a0] sm:$0xff]
  %v2871 = vld [vmem:[#allocation2 + $0x1a8] sm:$0xff]
  %v2872 = vld [vmem:[#allocation2 + $0x1b0] sm:$0xff]
  %v2873 = vld [vmem:[#allocation2 + $0x1b8] sm:$0xff]
  %v2874 = vld [vmem:[#allocation2 + $0x1c0] sm:$0xff]
  %v2875 = vld [vmem:[#allocation2 + $0x1c8] sm:$0xff]
  %v2876 = vld [vmem:[#allocation2 + $0x1d0] sm:$0xff]
  %v2877 = vld [vmem:[#allocation2 + $0x1d8] sm:$0xff]
  %v2878 = vld [vmem:[#allocation2 + $0x1e0] sm:$0xff]
  %v2879 = vld [vmem:[#allocation2 + $0x1e8] sm:$0xff]
  %v2880 = vld [vmem:[#allocation2 + $0x1f0] sm:$0xff]
  %v2881 = vld [vmem:[#allocation2 + $0x1f8] sm:$0xff]
  %v2882 = vld [vmem:[#allocation2 + $0x200] sm:$0xff]
  %v2883 = vld [vmem:[#allocation2 + $0x208] sm:$0xff]
  %v2884 = vld [vmem:[#allocation2 + $0x210] sm:$0xff]
  %v2885 = vld [vmem:[#allocation2 + $0x218] sm:$0xff]
  %v2886 = vld [vmem:[#allocation2 + $0x220] sm:$0xff]
  %v2887 = vld [vmem:[#allocation2 + $0x228] sm:$0xff]
  %v2888 = vld [vmem:[#allocation2 + $0x230] sm:$0xff]
  %v2889 = vld [vmem:[#allocation2 + $0x238] sm:$0xff]
  %v2890 = vld [vmem:[#allocation2 + $0x240] sm:$0xff]
  %v2891 = vld [vmem:[#allocation2 + $0x248] sm:$0xff]
  %v2892 = vld [vmem:[#allocation2 + $0x250] sm:$0xff]
  %v2893 = vld [vmem:[#allocation2 + $0x258] sm:$0xff]
  %vm2894 = vcmp.eq.s32.totalorder %v2742, 15
  %vm2895 = vcmp.eq.s32.totalorder %v2743, 15
  %vm2896 = vcmp.eq.s32.totalorder %v2744, 15
  %vm2897 = vcmp.eq.s32.totalorder %v2745, 15
  %vm2898 = vcmp.eq.s32.totalorder %v2746, 15
  %vm2899 = vcmp.eq.s32.totalorder %v2747, 15
  %vm2900 = vcmp.eq.s32.totalorder %v2748, 15
  %vm2901 = vcmp.eq.s32.totalorder %v2749, 15
  %vm2902 = vcmp.eq.s32.totalorder %v2750, 15
  %vm2903 = vcmp.eq.s32.totalorder %v2751, 15
  %vm2904 = vcmp.eq.s32.totalorder %v2752, 15
  %vm2905 = vcmp.eq.s32.totalorder %v2753, 15
  %vm2906 = vcmp.eq.s32.totalorder %v2754, 15
  %vm2907 = vcmp.eq.s32.totalorder %v2755, 15
  %vm2908 = vcmp.eq.s32.totalorder %v2756, 15
  %vm2909 = vcmp.eq.s32.totalorder %v2757, 15
  %vm2910 = vcmp.eq.s32.totalorder %v2758, 15
  %vm2911 = vcmp.eq.s32.totalorder %v2759, 15
  %vm2912 = vcmp.eq.s32.totalorder %v2760, 15
  %vm2913 = vcmp.eq.s32.totalorder %v2761, 15
  %vm2914 = vcmp.eq.s32.totalorder %v2762, 15
  %vm2915 = vcmp.eq.s32.totalorder %v2763, 15
  %vm2916 = vcmp.eq.s32.totalorder %v2764, 15
  %vm2917 = vcmp.eq.s32.totalorder %v2765, 15
  %vm2918 = vcmp.eq.s32.totalorder %v2766, 15
  %vm2919 = vcmp.eq.s32.totalorder %v2767, 15
  %vm2920 = vcmp.eq.s32.totalorder %v2768, 15
  %vm2921 = vcmp.eq.s32.totalorder %v2769, 15
  %vm2922 = vcmp.eq.s32.totalorder %v2770, 15
  %vm2923 = vcmp.eq.s32.totalorder %v2771, 15
  %vm2924 = vcmp.eq.s32.totalorder %v2772, 15
  %vm2925 = vcmp.eq.s32.totalorder %v2773, 15
  %vm2926 = vcmp.eq.s32.totalorder %v2774, 15
  %vm2927 = vcmp.eq.s32.totalorder %v2775, 15
  %vm2928 = vcmp.eq.s32.totalorder %v2776, 15
  %vm2929 = vcmp.eq.s32.totalorder %v2777, 15
  %vm2930 = vcmp.eq.s32.totalorder %v2778, 15
  %vm2931 = vcmp.eq.s32.totalorder %v2779, 15
  %vm2932 = vcmp.eq.s32.totalorder %v2780, 15
  %vm2933 = vcmp.eq.s32.totalorder %v2781, 15
  %vm2934 = vcmp.eq.s32.totalorder %v2782, 15
  %vm2935 = vcmp.eq.s32.totalorder %v2783, 15
  %vm2936 = vcmp.eq.s32.totalorder %v2784, 15
  %vm2937 = vcmp.eq.s32.totalorder %v2785, 15
  %vm2938 = vcmp.eq.s32.totalorder %v2786, 15
  %vm2939 = vcmp.eq.s32.totalorder %v2787, 15
  %vm2940 = vcmp.eq.s32.totalorder %v2788, 15
  %vm2941 = vcmp.eq.s32.totalorder %v2789, 15
  %vm2942 = vcmp.eq.s32.totalorder %v2790, 15
  %vm2943 = vcmp.eq.s32.totalorder %v2791, 15
  %vm2944 = vcmp.eq.s32.totalorder %v2792, 15
  %vm2945 = vcmp.eq.s32.totalorder %v2793, 15
  %vm2946 = vcmp.eq.s32.totalorder %v2794, 15
  %vm2947 = vcmp.eq.s32.totalorder %v2795, 15
  %vm2948 = vcmp.eq.s32.totalorder %v2796, 15
  %vm2949 = vcmp.eq.s32.totalorder %v2797, 15
  %vm2950 = vcmp.eq.s32.totalorder %v2798, 15
  %vm2951 = vcmp.eq.s32.totalorder %v2799, 15
  %vm2952 = vcmp.eq.s32.totalorder %v2800, 15
  %vm2953 = vcmp.eq.s32.totalorder %v2801, 15
  %vm2954 = vcmp.eq.s32.totalorder %v2802, 15
  %vm2955 = vcmp.eq.s32.totalorder %v2803, 15
  %vm2956 = vcmp.eq.s32.totalorder %v2804, 15
  %vm2957 = vcmp.eq.s32.totalorder %v2805, 15
  %vm2958 = vcmp.eq.s32.totalorder %v2806, 15
  %vm2959 = vcmp.eq.s32.totalorder %v2807, 15
  %vm2960 = vcmp.eq.s32.totalorder %v2808, 15
  %vm2961 = vcmp.eq.s32.totalorder %v2809, 15
  %vm2962 = vcmp.eq.s32.totalorder %v2810, 15
  %vm2963 = vcmp.eq.s32.totalorder %v2811, 15
  %vm2964 = vcmp.eq.s32.totalorder %v2812, 15
  %vm2965 = vcmp.eq.s32.totalorder %v2813, 15
  %vm2966 = vcmp.eq.s32.totalorder %v2814, 15
  %vm2967 = vcmp.eq.s32.totalorder %v2815, 15
  %vm2968 = vcmp.eq.s32.totalorder %v2816, 15
  %v2969 = vsel %vm2894, 1, 0
  %v2970 = vsel %vm2895, 1, 0
  %v2971 = vsel %vm2896, 1, 0
  %v2972 = vsel %vm2897, 1, 0
  %v2973 = vsel %vm2898, 1, 0
  %v2974 = vsel %vm2899, 1, 0
  %v2975 = vsel %vm2900, 1, 0
  %v2976 = vsel %vm2901, 1, 0
  %v2977 = vsel %vm2902, 1, 0
  %v2978 = vsel %vm2903, 1, 0
  %v2979 = vsel %vm2904, 1, 0
  %v2980 = vsel %vm2905, 1, 0
  %v2981 = vsel %vm2906, 1, 0
  %v2982 = vsel %vm2907, 1, 0
  %v2983 = vsel %vm2908, 1, 0
  %v2984 = vsel %vm2909, 1, 0
  %v2985 = vsel %vm2910, 1, 0
  %v2986 = vsel %vm2911, 1, 0
  %v2987 = vsel %vm2912, 1, 0
  %v2988 = vsel %vm2913, 1, 0
  %v2989 = vsel %vm2914, 1, 0
  %v2990 = vsel %vm2915, 1, 0
  %v2991 = vsel %vm2916, 1, 0
  %v2992 = vsel %vm2917, 1, 0
  %v2993 = vsel %vm2918, 1, 0
  %v2994 = vsel %vm2919, 1, 0
  %v2995 = vsel %vm2920, 1, 0
  %v2996 = vsel %vm2921, 1, 0
  %v2997 = vsel %vm2922, 1, 0
  %v2998 = vsel %vm2923, 1, 0
  %v2999 = vsel %vm2924, 1, 0
  %v3000 = vsel %vm2925, 1, 0
  %v3001 = vsel %vm2926, 1, 0
  %v3002 = vsel %vm2927, 1, 0
  %v3003 = vsel %vm2928, 1, 0
  %v3004 = vsel %vm2929, 1, 0
  %v3005 = vsel %vm2930, 1, 0
  %v3006 = vsel %vm2931, 1, 0
  %v3007 = vsel %vm2932, 1, 0
  %v3008 = vsel %vm2933, 1, 0
  %v3009 = vsel %vm2934, 1, 0
  %v3010 = vsel %vm2935, 1, 0
  %v3011 = vsel %vm2936, 1, 0
  %v3012 = vsel %vm2937, 1, 0
  %v3013 = vsel %vm2938, 1, 0
  %v3014 = vsel %vm2939, 1, 0
  %v3015 = vsel %vm2940, 1, 0
  %v3016 = vsel %vm2941, 1, 0
  %v3017 = vsel %vm2942, 1, 0
  %v3018 = vsel %vm2943, 1, 0
  %v3019 = vsel %vm2944, 1, 0
  %v3020 = vsel %vm2945, 1, 0
  %v3021 = vsel %vm2946, 1, 0
  %v3022 = vsel %vm2947, 1, 0
  %v3023 = vsel %vm2948, 1, 0
  %v3024 = vsel %vm2949, 1, 0
  %v3025 = vsel %vm2950, 1, 0
  %v3026 = vsel %vm2951, 1, 0
  %v3027 = vsel %vm2952, 1, 0
  %v3028 = vsel %vm2953, 1, 0
  %v3029 = vsel %vm2954, 1, 0
  %v3030 = vsel %vm2955, 1, 0
  %v3031 = vsel %vm2956, 1, 0
  %v3032 = vsel %vm2957, 1, 0
  %v3033 = vsel %vm2958, 1, 0
  %v3034 = vsel %vm2959, 1, 0
  %v3035 = vsel %vm2960, 1, 0
  %v3036 = vsel %vm2961, 1, 0
  %v3037 = vsel %vm2962, 1, 0
  %v3038 = vsel %vm2963, 1, 0
  %v3039 = vsel %vm2964, 1, 0
  %v3040 = vsel %vm2965, 1, 0
  %v3041 = vsel %vm2966, 1, 0
  %v3042 = vsel %vm2967, 1, 0
  %v3043 = vsel %vm2968, 1, 0
  %vm3044 = vcmp.eq.s32.totalorder %v2969, 1
  %vm3045 = vcmp.eq.s32.totalorder %v2970, 1
  %vm3046 = vcmp.eq.s32.totalorder %v2971, 1
  %vm3047 = vcmp.eq.s32.totalorder %v2972, 1
  %vm3048 = vcmp.eq.s32.totalorder %v2973, 1
  %vm3049 = vcmp.eq.s32.totalorder %v2974, 1
  %vm3050 = vcmp.eq.s32.totalorder %v2975, 1
  %vm3051 = vcmp.eq.s32.totalorder %v2976, 1
  %vm3052 = vcmp.eq.s32.totalorder %v2977, 1
  %vm3053 = vcmp.eq.s32.totalorder %v2978, 1
  %vm3054 = vcmp.eq.s32.totalorder %v2979, 1
  %vm3055 = vcmp.eq.s32.totalorder %v2980, 1
  %vm3056 = vcmp.eq.s32.totalorder %v2981, 1
  %vm3057 = vcmp.eq.s32.totalorder %v2982, 1
  %vm3058 = vcmp.eq.s32.totalorder %v2983, 1
  %vm3059 = vcmp.eq.s32.totalorder %v2984, 1
  %vm3060 = vcmp.eq.s32.totalorder %v2985, 1
  %vm3061 = vcmp.eq.s32.totalorder %v2986, 1
  %vm3062 = vcmp.eq.s32.totalorder %v2987, 1
  %vm3063 = vcmp.eq.s32.totalorder %v2988, 1
  %vm3064 = vcmp.eq.s32.totalorder %v2989, 1
  %vm3065 = vcmp.eq.s32.totalorder %v2990, 1
  %vm3066 = vcmp.eq.s32.totalorder %v2991, 1
  %vm3067 = vcmp.eq.s32.totalorder %v2992, 1
  %vm3068 = vcmp.eq.s32.totalorder %v2993, 1
  %vm3069 = vcmp.eq.s32.totalorder %v2994, 1
  %vm3070 = vcmp.eq.s32.totalorder %v2995, 1
  %vm3071 = vcmp.eq.s32.totalorder %v2996, 1
  %vm3072 = vcmp.eq.s32.totalorder %v2997, 1
  %vm3073 = vcmp.eq.s32.totalorder %v2998, 1
  %vm3074 = vcmp.eq.s32.totalorder %v2999, 1
  %vm3075 = vcmp.eq.s32.totalorder %v3000, 1
  %vm3076 = vcmp.eq.s32.totalorder %v3001, 1
  %vm3077 = vcmp.eq.s32.totalorder %v3002, 1
  %vm3078 = vcmp.eq.s32.totalorder %v3003, 1
  %vm3079 = vcmp.eq.s32.totalorder %v3004, 1
  %vm3080 = vcmp.eq.s32.totalorder %v3005, 1
  %vm3081 = vcmp.eq.s32.totalorder %v3006, 1
  %vm3082 = vcmp.eq.s32.totalorder %v3007, 1
  %vm3083 = vcmp.eq.s32.totalorder %v3008, 1
  %vm3084 = vcmp.eq.s32.totalorder %v3009, 1
  %vm3085 = vcmp.eq.s32.totalorder %v3010, 1
  %vm3086 = vcmp.eq.s32.totalorder %v3011, 1
  %vm3087 = vcmp.eq.s32.totalorder %v3012, 1
  %vm3088 = vcmp.eq.s32.totalorder %v3013, 1
  %vm3089 = vcmp.eq.s32.totalorder %v3014, 1
  %vm3090 = vcmp.eq.s32.totalorder %v3015, 1
  %vm3091 = vcmp.eq.s32.totalorder %v3016, 1
  %vm3092 = vcmp.eq.s32.totalorder %v3017, 1
  %vm3093 = vcmp.eq.s32.totalorder %v3018, 1
  %vm3094 = vcmp.eq.s32.totalorder %v3019, 1
  %vm3095 = vcmp.eq.s32.totalorder %v3020, 1
  %vm3096 = vcmp.eq.s32.totalorder %v3021, 1
  %vm3097 = vcmp.eq.s32.totalorder %v3022, 1
  %vm3098 = vcmp.eq.s32.totalorder %v3023, 1
  %vm3099 = vcmp.eq.s32.totalorder %v3024, 1
  %vm3100 = vcmp.eq.s32.totalorder %v3025, 1
  %vm3101 = vcmp.eq.s32.totalorder %v3026, 1
  %vm3102 = vcmp.eq.s32.totalorder %v3027, 1
  %vm3103 = vcmp.eq.s32.totalorder %v3028, 1
  %vm3104 = vcmp.eq.s32.totalorder %v3029, 1
  %vm3105 = vcmp.eq.s32.totalorder %v3030, 1
  %vm3106 = vcmp.eq.s32.totalorder %v3031, 1
  %vm3107 = vcmp.eq.s32.totalorder %v3032, 1
  %vm3108 = vcmp.eq.s32.totalorder %v3033, 1
  %vm3109 = vcmp.eq.s32.totalorder %v3034, 1
  %vm3110 = vcmp.eq.s32.totalorder %v3035, 1
  %vm3111 = vcmp.eq.s32.totalorder %v3036, 1
  %vm3112 = vcmp.eq.s32.totalorder %v3037, 1
  %vm3113 = vcmp.eq.s32.totalorder %v3038, 1
  %vm3114 = vcmp.eq.s32.totalorder %v3039, 1
  %vm3115 = vcmp.eq.s32.totalorder %v3040, 1
  %vm3116 = vcmp.eq.s32.totalorder %v3041, 1
  %vm3117 = vcmp.eq.s32.totalorder %v3042, 1
  %vm3118 = vcmp.eq.s32.totalorder %v3043, 1
  %v3119 = vsel %vm3044, 0.0, %v2818
  %v3120 = vsel %vm3045, 0.0, %v2819
  %v3121 = vsel %vm3046, 0.0, %v2820
  %v3122 = vsel %vm3047, 0.0, %v2821
  %v3123 = vsel %vm3048, 0.0, %v2822
  %v3124 = vsel %vm3049, 0.0, %v2823
  %v3125 = vsel %vm3050, 0.0, %v2824
  %v3126 = vsel %vm3051, 0.0, %v2825
  %v3127 = vsel %vm3052, 0.0, %v2826
  %v3128 = vsel %vm3053, 0.0, %v2827
  %v3129 = vsel %vm3054, 0.0, %v2828
  %v3130 = vsel %vm3055, 0.0, %v2829
  %v3131 = vsel %vm3056, 0.0, %v2830
  %v3132 = vsel %vm3057, 0.0, %v2831
  %v3133 = vsel %vm3058, 0.0, %v2832
  %v3134 = vsel %vm3059, 0.0, %v2833
  %v3135 = vsel %vm3060, 0.0, %v2834
  %v3136 = vsel %vm3061, 0.0, %v2835
  %v3137 = vsel %vm3062, 0.0, %v2836
  %v3138 = vsel %vm3063, 0.0, %v2837
  %v3139 = vsel %vm3064, 0.0, %v2838
  %v3140 = vsel %vm3065, 0.0, %v2839
  %v3141 = vsel %vm3066, 0.0, %v2840
  %v3142 = vsel %vm3067, 0.0, %v2841
  %v3143 = vsel %vm3068, 0.0, %v2842
  %v3144 = vsel %vm3069, 0.0, %v2843
  %v3145 = vsel %vm3070, 0.0, %v2844
  %v3146 = vsel %vm3071, 0.0, %v2845
  %v3147 = vsel %vm3072, 0.0, %v2846
  %v3148 = vsel %vm3073, 0.0, %v2847
  %v3149 = vsel %vm3074, 0.0, %v2848
  %v3150 = vsel %vm3075, 0.0, %v2849
  %v3151 = vsel %vm3076, 0.0, %v2850
  %v3152 = vsel %vm3077, 0.0, %v2851
  %v3153 = vsel %vm3078, 0.0, %v2852
  %v3154 = vsel %vm3079, 0.0, %v2853
  %v3155 = vsel %vm3080, 0.0, %v2854
  %v3156 = vsel %vm3081, 0.0, %v2855
  %v3157 = vsel %vm3082, 0.0, %v2856
  %v3158 = vsel %vm3083, 0.0, %v2857
  %v3159 = vsel %vm3084, 0.0, %v2858
  %v3160 = vsel %vm3085, 0.0, %v2859
  %v3161 = vsel %vm3086, 0.0, %v2860
  %v3162 = vsel %vm3087, 0.0, %v2861
  %v3163 = vsel %vm3088, 0.0, %v2862
  %v3164 = vsel %vm3089, 0.0, %v2863
  %v3165 = vsel %vm3090, 0.0, %v2864
  %v3166 = vsel %vm3091, 0.0, %v2865
  %v3167 = vsel %vm3092, 0.0, %v2866
  %v3168 = vsel %vm3093, 0.0, %v2867
  %v3169 = vsel %vm3094, 0.0, %v2868
  %v3170 = vsel %vm3095, 0.0, %v2869
  %v3171 = vsel %vm3096, 0.0, %v2870
  %v3172 = vsel %vm3097, 0.0, %v2871
  %v3173 = vsel %vm3098, 0.0, %v2872
  %v3174 = vsel %vm3099, 0.0, %v2873
  %v3175 = vsel %vm3100, 0.0, %v2874
  %v3176 = vsel %vm3101, 0.0, %v2875
  %v3177 = vsel %vm3102, 0.0, %v2876
  %v3178 = vsel %vm3103, 0.0, %v2877
  %v3179 = vsel %vm3104, 0.0, %v2878
  %v3180 = vsel %vm3105, 0.0, %v2879
  %v3181 = vsel %vm3106, 0.0, %v2880
  %v3182 = vsel %vm3107, 0.0, %v2881
  %v3183 = vsel %vm3108, 0.0, %v2882
  %v3184 = vsel %vm3109, 0.0, %v2883
  %v3185 = vsel %vm3110, 0.0, %v2884
  %v3186 = vsel %vm3111, 0.0, %v2885
  %v3187 = vsel %vm3112, 0.0, %v2886
  %v3188 = vsel %vm3113, 0.0, %v2887
  %v3189 = vsel %vm3114, 0.0, %v2888
  %v3190 = vsel %vm3115, 0.0, %v2889
  %v3191 = vsel %vm3116, 0.0, %v2890
  %v3192 = vsel %vm3117, 0.0, %v2891
  %v3193 = vsel %vm3118, 0.0, %v2892
  %vm3194 = vcmp.eq.s32.totalorder %v2743, 0
  %vm3195 = vcmp.eq.s32.totalorder %v2744, 0
  %vm3196 = vcmp.eq.s32.totalorder %v2745, 0
  %vm3197 = vcmp.eq.s32.totalorder %v2746, 0
  %vm3198 = vcmp.eq.s32.totalorder %v2747, 0
  %vm3199 = vcmp.eq.s32.totalorder %v2748, 0
  %vm3200 = vcmp.eq.s32.totalorder %v2749, 0
  %vm3201 = vcmp.eq.s32.totalorder %v2750, 0
  %vm3202 = vcmp.eq.s32.totalorder %v2751, 0
  %vm3203 = vcmp.eq.s32.totalorder %v2752, 0
  %vm3204 = vcmp.eq.s32.totalorder %v2753, 0
  %vm3205 = vcmp.eq.s32.totalorder %v2754, 0
  %vm3206 = vcmp.eq.s32.totalorder %v2755, 0
  %vm3207 = vcmp.eq.s32.totalorder %v2756, 0
  %vm3208 = vcmp.eq.s32.totalorder %v2757, 0
  %vm3209 = vcmp.eq.s32.totalorder %v2758, 0
  %vm3210 = vcmp.eq.s32.totalorder %v2759, 0
  %vm3211 = vcmp.eq.s32.totalorder %v2760, 0
  %vm3212 = vcmp.eq.s32.totalorder %v2761, 0
  %vm3213 = vcmp.eq.s32.totalorder %v2762, 0
  %vm3214 = vcmp.eq.s32.totalorder %v2763, 0
  %vm3215 = vcmp.eq.s32.totalorder %v2764, 0
  %vm3216 = vcmp.eq.s32.totalorder %v2765, 0
  %vm3217 = vcmp.eq.s32.totalorder %v2766, 0
  %vm3218 = vcmp.eq.s32.totalorder %v2767, 0
  %vm3219 = vcmp.eq.s32.totalorder %v2768, 0
  %vm3220 = vcmp.eq.s32.totalorder %v2769, 0
  %vm3221 = vcmp.eq.s32.totalorder %v2770, 0
  %vm3222 = vcmp.eq.s32.totalorder %v2771, 0
  %vm3223 = vcmp.eq.s32.totalorder %v2772, 0
  %vm3224 = vcmp.eq.s32.totalorder %v2773, 0
  %vm3225 = vcmp.eq.s32.totalorder %v2774, 0
  %vm3226 = vcmp.eq.s32.totalorder %v2775, 0
  %vm3227 = vcmp.eq.s32.totalorder %v2776, 0
  %vm3228 = vcmp.eq.s32.totalorder %v2777, 0
  %vm3229 = vcmp.eq.s32.totalorder %v2778, 0
  %vm3230 = vcmp.eq.s32.totalorder %v2779, 0
  %vm3231 = vcmp.eq.s32.totalorder %v2780, 0
  %vm3232 = vcmp.eq.s32.totalorder %v2781, 0
  %vm3233 = vcmp.eq.s32.totalorder %v2782, 0
  %vm3234 = vcmp.eq.s32.totalorder %v2783, 0
  %vm3235 = vcmp.eq.s32.totalorder %v2784, 0
  %vm3236 = vcmp.eq.s32.totalorder %v2785, 0
  %vm3237 = vcmp.eq.s32.totalorder %v2786, 0
  %vm3238 = vcmp.eq.s32.totalorder %v2787, 0
  %vm3239 = vcmp.eq.s32.totalorder %v2788, 0
  %vm3240 = vcmp.eq.s32.totalorder %v2789, 0
  %vm3241 = vcmp.eq.s32.totalorder %v2790, 0
  %vm3242 = vcmp.eq.s32.totalorder %v2791, 0
  %vm3243 = vcmp.eq.s32.totalorder %v2792, 0
  %vm3244 = vcmp.eq.s32.totalorder %v2793, 0
  %vm3245 = vcmp.eq.s32.totalorder %v2794, 0
  %vm3246 = vcmp.eq.s32.totalorder %v2795, 0
  %vm3247 = vcmp.eq.s32.totalorder %v2796, 0
  %vm3248 = vcmp.eq.s32.totalorder %v2797, 0
  %vm3249 = vcmp.eq.s32.totalorder %v2798, 0
  %vm3250 = vcmp.eq.s32.totalorder %v2799, 0
  %vm3251 = vcmp.eq.s32.totalorder %v2800, 0
  %vm3252 = vcmp.eq.s32.totalorder %v2801, 0
  %vm3253 = vcmp.eq.s32.totalorder %v2802, 0
  %vm3254 = vcmp.eq.s32.totalorder %v2803, 0
  %vm3255 = vcmp.eq.s32.totalorder %v2804, 0
  %vm3256 = vcmp.eq.s32.totalorder %v2805, 0
  %vm3257 = vcmp.eq.s32.totalorder %v2806, 0
  %vm3258 = vcmp.eq.s32.totalorder %v2807, 0
  %vm3259 = vcmp.eq.s32.totalorder %v2808, 0
  %vm3260 = vcmp.eq.s32.totalorder %v2809, 0
  %vm3261 = vcmp.eq.s32.totalorder %v2810, 0
  %vm3262 = vcmp.eq.s32.totalorder %v2811, 0
  %vm3263 = vcmp.eq.s32.totalorder %v2812, 0
  %vm3264 = vcmp.eq.s32.totalorder %v2813, 0
  %vm3265 = vcmp.eq.s32.totalorder %v2814, 0
  %vm3266 = vcmp.eq.s32.totalorder %v2815, 0
  %vm3267 = vcmp.eq.s32.totalorder %v2816, 0
  %vm3268 = vcmp.eq.s32.totalorder %v2817, 0
  %v3269 = vsel %vm3194, 1, 0
  %v3270 = vsel %vm3195, 1, 0
  %v3271 = vsel %vm3196, 1, 0
  %v3272 = vsel %vm3197, 1, 0
  %v3273 = vsel %vm3198, 1, 0
  %v3274 = vsel %vm3199, 1, 0
  %v3275 = vsel %vm3200, 1, 0
  %v3276 = vsel %vm3201, 1, 0
  %v3277 = vsel %vm3202, 1, 0
  %v3278 = vsel %vm3203, 1, 0
  %v3279 = vsel %vm3204, 1, 0
  %v3280 = vsel %vm3205, 1, 0
  %v3281 = vsel %vm3206, 1, 0
  %v3282 = vsel %vm3207, 1, 0
  %v3283 = vsel %vm3208, 1, 0
  %v3284 = vsel %vm3209, 1, 0
  %v3285 = vsel %vm3210, 1, 0
  %v3286 = vsel %vm3211, 1, 0
  %v3287 = vsel %vm3212, 1, 0
  %v3288 = vsel %vm3213, 1, 0
  %v3289 = vsel %vm3214, 1, 0
  %v3290 = vsel %vm3215, 1, 0
  %v3291 = vsel %vm3216, 1, 0
  %v3292 = vsel %vm3217, 1, 0
  %v3293 = vsel %vm3218, 1, 0
  %v3294 = vsel %vm3219, 1, 0
  %v3295 = vsel %vm3220, 1, 0
  %v3296 = vsel %vm3221, 1, 0
  %v3297 = vsel %vm3222, 1, 0
  %v3298 = vsel %vm3223, 1, 0
  %v3299 = vsel %vm3224, 1, 0
  %v3300 = vsel %vm3225, 1, 0
  %v3301 = vsel %vm3226, 1, 0
  %v3302 = vsel %vm3227, 1, 0
  %v3303 = vsel %vm3228, 1, 0
  %v3304 = vsel %vm3229, 1, 0
  %v3305 = vsel %vm3230, 1, 0
  %v3306 = vsel %vm3231, 1, 0
  %v3307 = vsel %vm3232, 1, 0
  %v3308 = vsel %vm3233, 1, 0
  %v3309 = vsel %vm3234, 1, 0
  %v3310 = vsel %vm3235, 1, 0
  %v3311 = vsel %vm3236, 1, 0
  %v3312 = vsel %vm3237, 1, 0
  %v3313 = vsel %vm3238, 1, 0
  %v3314 = vsel %vm3239, 1, 0
  %v3315 = vsel %vm3240, 1, 0
  %v3316 = vsel %vm3241, 1, 0
  %v3317 = vsel %vm3242, 1, 0
  %v3318 = vsel %vm3243, 1, 0
  %v3319 = vsel %vm3244, 1, 0
  %v3320 = vsel %vm3245, 1, 0
  %v3321 = vsel %vm3246, 1, 0
  %v3322 = vsel %vm3247, 1, 0
  %v3323 = vsel %vm3248, 1, 0
  %v3324 = vsel %vm3249, 1, 0
  %v3325 = vsel %vm3250, 1, 0
  %v3326 = vsel %vm3251, 1, 0
  %v3327 = vsel %vm3252, 1, 0
  %v3328 = vsel %vm3253, 1, 0
  %v3329 = vsel %vm3254, 1, 0
  %v3330 = vsel %vm3255, 1, 0
  %v3331 = vsel %vm3256, 1, 0
  %v3332 = vsel %vm3257, 1, 0
  %v3333 = vsel %vm3258, 1, 0
  %v3334 = vsel %vm3259, 1, 0
  %v3335 = vsel %vm3260, 1, 0
  %v3336 = vsel %vm3261, 1, 0
  %v3337 = vsel %vm3262, 1, 0
  %v3338 = vsel %vm3263, 1, 0
  %v3339 = vsel %vm3264, 1, 0
  %v3340 = vsel %vm3265, 1, 0
  %v3341 = vsel %vm3266, 1, 0
  %v3342 = vsel %vm3267, 1, 0
  %v3343 = vsel %vm3268, 1, 0
  %vm3344 = vcmp.eq.s32.totalorder %v3269, 1
  %vm3345 = vcmp.eq.s32.totalorder %v3270, 1
  %vm3346 = vcmp.eq.s32.totalorder %v3271, 1
  %vm3347 = vcmp.eq.s32.totalorder %v3272, 1
  %vm3348 = vcmp.eq.s32.totalorder %v3273, 1
  %vm3349 = vcmp.eq.s32.totalorder %v3274, 1
  %vm3350 = vcmp.eq.s32.totalorder %v3275, 1
  %vm3351 = vcmp.eq.s32.totalorder %v3276, 1
  %vm3352 = vcmp.eq.s32.totalorder %v3277, 1
  %vm3353 = vcmp.eq.s32.totalorder %v3278, 1
  %vm3354 = vcmp.eq.s32.totalorder %v3279, 1
  %vm3355 = vcmp.eq.s32.totalorder %v3280, 1
  %vm3356 = vcmp.eq.s32.totalorder %v3281, 1
  %vm3357 = vcmp.eq.s32.totalorder %v3282, 1
  %vm3358 = vcmp.eq.s32.totalorder %v3283, 1
  %vm3359 = vcmp.eq.s32.totalorder %v3284, 1
  %vm3360 = vcmp.eq.s32.totalorder %v3285, 1
  %vm3361 = vcmp.eq.s32.totalorder %v3286, 1
  %vm3362 = vcmp.eq.s32.totalorder %v3287, 1
  %vm3363 = vcmp.eq.s32.totalorder %v3288, 1
  %vm3364 = vcmp.eq.s32.totalorder %v3289, 1
  %vm3365 = vcmp.eq.s32.totalorder %v3290, 1
  %vm3366 = vcmp.eq.s32.totalorder %v3291, 1
  %vm3367 = vcmp.eq.s32.totalorder %v3292, 1
  %vm3368 = vcmp.eq.s32.totalorder %v3293, 1
  %vm3369 = vcmp.eq.s32.totalorder %v3294, 1
  %vm3370 = vcmp.eq.s32.totalorder %v3295, 1
  %vm3371 = vcmp.eq.s32.totalorder %v3296, 1
  %vm3372 = vcmp.eq.s32.totalorder %v3297, 1
  %vm3373 = vcmp.eq.s32.totalorder %v3298, 1
  %vm3374 = vcmp.eq.s32.totalorder %v3299, 1
  %vm3375 = vcmp.eq.s32.totalorder %v3300, 1
  %vm3376 = vcmp.eq.s32.totalorder %v3301, 1
  %vm3377 = vcmp.eq.s32.totalorder %v3302, 1
  %vm3378 = vcmp.eq.s32.totalorder %v3303, 1
  %vm3379 = vcmp.eq.s32.totalorder %v3304, 1
  %vm3380 = vcmp.eq.s32.totalorder %v3305, 1
  %vm3381 = vcmp.eq.s32.totalorder %v3306, 1
  %vm3382 = vcmp.eq.s32.totalorder %v3307, 1
  %vm3383 = vcmp.eq.s32.totalorder %v3308, 1
  %vm3384 = vcmp.eq.s32.totalorder %v3309, 1
  %vm3385 = vcmp.eq.s32.totalorder %v3310, 1
  %vm3386 = vcmp.eq.s32.totalorder %v3311, 1
  %vm3387 = vcmp.eq.s32.totalorder %v3312, 1
  %vm3388 = vcmp.eq.s32.totalorder %v3313, 1
  %vm3389 = vcmp.eq.s32.totalorder %v3314, 1
  %vm3390 = vcmp.eq.s32.totalorder %v3315, 1
  %vm3391 = vcmp.eq.s32.totalorder %v3316, 1
  %vm3392 = vcmp.eq.s32.totalorder %v3317, 1
  %vm3393 = vcmp.eq.s32.totalorder %v3318, 1
  %vm3394 = vcmp.eq.s32.totalorder %v3319, 1
  %vm3395 = vcmp.eq.s32.totalorder %v3320, 1
  %vm3396 = vcmp.eq.s32.totalorder %v3321, 1
  %vm3397 = vcmp.eq.s32.totalorder %v3322, 1
  %vm3398 = vcmp.eq.s32.totalorder %v3323, 1
  %vm3399 = vcmp.eq.s32.totalorder %v3324, 1
  %vm3400 = vcmp.eq.s32.totalorder %v3325, 1
  %vm3401 = vcmp.eq.s32.totalorder %v3326, 1
  %vm3402 = vcmp.eq.s32.totalorder %v3327, 1
  %vm3403 = vcmp.eq.s32.totalorder %v3328, 1
  %vm3404 = vcmp.eq.s32.totalorder %v3329, 1
  %vm3405 = vcmp.eq.s32.totalorder %v3330, 1
  %vm3406 = vcmp.eq.s32.totalorder %v3331, 1
  %vm3407 = vcmp.eq.s32.totalorder %v3332, 1
  %vm3408 = vcmp.eq.s32.totalorder %v3333, 1
  %vm3409 = vcmp.eq.s32.totalorder %v3334, 1
  %vm3410 = vcmp.eq.s32.totalorder %v3335, 1
  %vm3411 = vcmp.eq.s32.totalorder %v3336, 1
  %vm3412 = vcmp.eq.s32.totalorder %v3337, 1
  %vm3413 = vcmp.eq.s32.totalorder %v3338, 1
  %vm3414 = vcmp.eq.s32.totalorder %v3339, 1
  %vm3415 = vcmp.eq.s32.totalorder %v3340, 1
  %vm3416 = vcmp.eq.s32.totalorder %v3341, 1
  %vm3417 = vcmp.eq.s32.totalorder %v3342, 1
  %vm3418 = vcmp.eq.s32.totalorder %v3343, 1
  %v3419 = vsel %vm3344, 0.0, %v2819
  %v3420 = vsel %vm3345, 0.0, %v2820
  %v3421 = vsel %vm3346, 0.0, %v2821
  %v3422 = vsel %vm3347, 0.0, %v2822
  %v3423 = vsel %vm3348, 0.0, %v2823
  %v3424 = vsel %vm3349, 0.0, %v2824
  %v3425 = vsel %vm3350, 0.0, %v2825
  %v3426 = vsel %vm3351, 0.0, %v2826
  %v3427 = vsel %vm3352, 0.0, %v2827
  %v3428 = vsel %vm3353, 0.0, %v2828
  %v3429 = vsel %vm3354, 0.0, %v2829
  %v3430 = vsel %vm3355, 0.0, %v2830
  %v3431 = vsel %vm3356, 0.0, %v2831
  %v3432 = vsel %vm3357, 0.0, %v2832
  %v3433 = vsel %vm3358, 0.0, %v2833
  %v3434 = vsel %vm3359, 0.0, %v2834
  %v3435 = vsel %vm3360, 0.0, %v2835
  %v3436 = vsel %vm3361, 0.0, %v2836
  %v3437 = vsel %vm3362, 0.0, %v2837
  %v3438 = vsel %vm3363, 0.0, %v2838
  %v3439 = vsel %vm3364, 0.0, %v2839
  %v3440 = vsel %vm3365, 0.0, %v2840
  %v3441 = vsel %vm3366, 0.0, %v2841
  %v3442 = vsel %vm3367, 0.0, %v2842
  %v3443 = vsel %vm3368, 0.0, %v2843
  %v3444 = vsel %vm3369, 0.0, %v2844
  %v3445 = vsel %vm3370, 0.0, %v2845
  %v3446 = vsel %vm3371, 0.0, %v2846
  %v3447 = vsel %vm3372, 0.0, %v2847
  %v3448 = vsel %vm3373, 0.0, %v2848
  %v3449 = vsel %vm3374, 0.0, %v2849
  %v3450 = vsel %vm3375, 0.0, %v2850
  %v3451 = vsel %vm3376, 0.0, %v2851
  %v3452 = vsel %vm3377, 0.0, %v2852
  %v3453 = vsel %vm3378, 0.0, %v2853
  %v3454 = vsel %vm3379, 0.0, %v2854
  %v3455 = vsel %vm3380, 0.0, %v2855
  %v3456 = vsel %vm3381, 0.0, %v2856
  %v3457 = vsel %vm3382, 0.0, %v2857
  %v3458 = vsel %vm3383, 0.0, %v2858
  %v3459 = vsel %vm3384, 0.0, %v2859
  %v3460 = vsel %vm3385, 0.0, %v2860
  %v3461 = vsel %vm3386, 0.0, %v2861
  %v3462 = vsel %vm3387, 0.0, %v2862
  %v3463 = vsel %vm3388, 0.0, %v2863
  %v3464 = vsel %vm3389, 0.0, %v2864
  %v3465 = vsel %vm3390, 0.0, %v2865
  %v3466 = vsel %vm3391, 0.0, %v2866
  %v3467 = vsel %vm3392, 0.0, %v2867
  %v3468 = vsel %vm3393, 0.0, %v2868
  %v3469 = vsel %vm3394, 0.0, %v2869
  %v3470 = vsel %vm3395, 0.0, %v2870
  %v3471 = vsel %vm3396, 0.0, %v2871
  %v3472 = vsel %vm3397, 0.0, %v2872
  %v3473 = vsel %vm3398, 0.0, %v2873
  %v3474 = vsel %vm3399, 0.0, %v2874
  %v3475 = vsel %vm3400, 0.0, %v2875
  %v3476 = vsel %vm3401, 0.0, %v2876
  %v3477 = vsel %vm3402, 0.0, %v2877
  %v3478 = vsel %vm3403, 0.0, %v2878
  %v3479 = vsel %vm3404, 0.0, %v2879
  %v3480 = vsel %vm3405, 0.0, %v2880
  %v3481 = vsel %vm3406, 0.0, %v2881
  %v3482 = vsel %vm3407, 0.0, %v2882
  %v3483 = vsel %vm3408, 0.0, %v2883
  %v3484 = vsel %vm3409, 0.0, %v2884
  %v3485 = vsel %vm3410, 0.0, %v2885
  %v3486 = vsel %vm3411, 0.0, %v2886
  %v3487 = vsel %vm3412, 0.0, %v2887
  %v3488 = vsel %vm3413, 0.0, %v2888
  %v3489 = vsel %vm3414, 0.0, %v2889
  %v3490 = vsel %vm3415, 0.0, %v2890
  %v3491 = vsel %vm3416, 0.0, %v2891
  %v3492 = vsel %vm3417, 0.0, %v2892
  %v3493 = vsel %vm3418, 0.0, %v2893
  %vm3564 = vcmask 1046528
  %v3565 = vrot.slane %v2819, 1
  %v3566 = vrot.slane %v2820, 1
  %v3567 = vsel %vm3564, %v3565, %v3566
  %v3568 = vrot.slane %v2821, 1
  %v3569 = vsel %vm3564, %v3566, %v3568
  %v3570 = vrot.slane %v2822, 1
  %v3571 = vsel %vm3564, %v3568, %v3570
  %v3572 = vrot.slane %v2823, 1
  %v3573 = vsel %vm3564, %v3570, %v3572
  %v3574 = vrot.slane %v2824, 1
  %v3575 = vsel %vm3564, %v3572, %v3574
  %v3576 = vrot.slane %v2825, 1
  %v3577 = vsel %vm3564, %v3574, %v3576
  %v3578 = vrot.slane %v2826, 1
  %v3579 = vsel %vm3564, %v3576, %v3578
  %v3580 = vrot.slane %v2827, 1
  %v3581 = vsel %vm3564, %v3578, %v3580
  %v3582 = vrot.slane %v2828, 1
  %v3583 = vsel %vm3564, %v3580, %v3582
  %v3584 = vrot.slane %v2829, 1
  %v3585 = vsel %vm3564, %v3582, %v3584
  %v3586 = vrot.slane %v2830, 1
  %v3587 = vsel %vm3564, %v3584, %v3586
  %v3588 = vrot.slane %v2831, 1
  %v3589 = vsel %vm3564, %v3586, %v3588
  %v3590 = vrot.slane %v2832, 1
  %v3591 = vsel %vm3564, %v3588, %v3590
  %v3592 = vrot.slane %v2833, 1
  %v3593 = vsel %vm3564, %v3590, %v3592
  %v3594 = vrot.slane %v2834, 1
  %v3595 = vsel %vm3564, %v3592, %v3594
  %v3596 = vrot.slane %v2835, 1
  %v3597 = vsel %vm3564, %v3594, %v3596
  %v3598 = vrot.slane %v2836, 1
  %v3599 = vsel %vm3564, %v3596, %v3598
  %v3600 = vrot.slane %v2837, 1
  %v3601 = vsel %vm3564, %v3598, %v3600
  %v3602 = vrot.slane %v2838, 1
  %v3603 = vsel %vm3564, %v3600, %v3602
  %v3604 = vrot.slane %v2839, 1
  %v3605 = vsel %vm3564, %v3602, %v3604
  %v3606 = vrot.slane %v2840, 1
  %v3607 = vsel %vm3564, %v3604, %v3606
  %v3608 = vrot.slane %v2841, 1
  %v3609 = vsel %vm3564, %v3606, %v3608
  %v3610 = vrot.slane %v2842, 1
  %v3611 = vsel %vm3564, %v3608, %v3610
  %v3612 = vrot.slane %v2843, 1
  %v3613 = vsel %vm3564, %v3610, %v3612
  %v3614 = vrot.slane %v2844, 1
  %v3615 = vsel %vm3564, %v3612, %v3614
  %v3616 = vrot.slane %v2845, 1
  %v3617 = vsel %vm3564, %v3614, %v3616
  %v3618 = vrot.slane %v2846, 1
  %v3619 = vsel %vm3564, %v3616, %v3618
  %v3620 = vrot.slane %v2847, 1
  %v3621 = vsel %vm3564, %v3618, %v3620
  %v3622 = vrot.slane %v2848, 1
  %v3623 = vsel %vm3564, %v3620, %v3622
  %v3624 = vrot.slane %v2849, 1
  %v3625 = vsel %vm3564, %v3622, %v3624
  %v3626 = vrot.slane %v2850, 1
  %v3627 = vsel %vm3564, %v3624, %v3626
  %v3628 = vrot.slane %v2851, 1
  %v3629 = vsel %vm3564, %v3626, %v3628
  %v3630 = vrot.slane %v2852, 1
  %v3631 = vsel %vm3564, %v3628, %v3630
  %v3632 = vrot.slane %v2853, 1
  %v3633 = vsel %vm3564, %v3630, %v3632
  %v3634 = vrot.slane %v2854, 1
  %v3635 = vsel %vm3564, %v3632, %v3634
  %v3636 = vrot.slane %v2855, 1
  %v3637 = vsel %vm3564, %v3634, %v3636
  %v3638 = vrot.slane %v2856, 1
  %v3639 = vsel %vm3564, %v3636, %v3638
  %v3640 = vrot.slane %v2857, 1
  %v3641 = vsel %vm3564, %v3638, %v3640
  %v3642 = vrot.slane %v2858, 1
  %v3643 = vsel %vm3564, %v3640, %v3642
  %v3644 = vrot.slane %v2859, 1
  %v3645 = vsel %vm3564, %v3642, %v3644
  %v3646 = vrot.slane %v2860, 1
  %v3647 = vsel %vm3564, %v3644, %v3646
  %v3648 = vrot.slane %v2861, 1
  %v3649 = vsel %vm3564, %v3646, %v3648
  %v3650 = vrot.slane %v2862, 1
  %v3651 = vsel %vm3564, %v3648, %v3650
  %v3652 = vrot.slane %v2863, 1
  %v3653 = vsel %vm3564, %v3650, %v3652
  %v3654 = vrot.slane %v2864, 1
  %v3655 = vsel %vm3564, %v3652, %v3654
  %v3656 = vrot.slane %v2865, 1
  %v3657 = vsel %vm3564, %v3654, %v3656
  %v3658 = vrot.slane %v2866, 1
  %v3659 = vsel %vm3564, %v3656, %v3658
  %v3660 = vrot.slane %v2867, 1
  %v3661 = vsel %vm3564, %v3658, %v3660
  %v3662 = vrot.slane %v2868, 1
  %v3663 = vsel %vm3564, %v3660, %v3662
  %v3664 = vrot.slane %v2869, 1
  %v3665 = vsel %vm3564, %v3662, %v3664
  %v3666 = vrot.slane %v2870, 1
  %v3667 = vsel %vm3564, %v3664, %v3666
  %v3668 = vrot.slane %v2871, 1
  %v3669 = vsel %vm3564, %v3666, %v3668
  %v3670 = vrot.slane %v2872, 1
  %v3671 = vsel %vm3564, %v3668, %v3670
  %v3672 = vrot.slane %v2873, 1
  %v3673 = vsel %vm3564, %v3670, %v3672
  %v3674 = vrot.slane %v2874, 1
  %v3675 = vsel %vm3564, %v3672, %v3674
  %v3676 = vrot.slane %v2875, 1
  %v3677 = vsel %vm3564, %v3674, %v3676
  %v3678 = vrot.slane %v2876, 1
  %v3679 = vsel %vm3564, %v3676, %v3678
  %v3680 = vrot.slane %v2877, 1
  %v3681 = vsel %vm3564, %v3678, %v3680
  %v3682 = vrot.slane %v2878, 1
  %v3683 = vsel %vm3564, %v3680, %v3682
  %v3684 = vrot.slane %v2879, 1
  %v3685 = vsel %vm3564, %v3682, %v3684
  %v3686 = vrot.slane %v2880, 1
  %v3687 = vsel %vm3564, %v3684, %v3686
  %v3688 = vrot.slane %v2881, 1
  %v3689 = vsel %vm3564, %v3686, %v3688
  %v3690 = vrot.slane %v2882, 1
  %v3691 = vsel %vm3564, %v3688, %v3690
  %v3692 = vrot.slane %v2883, 1
  %v3693 = vsel %vm3564, %v3690, %v3692
  %v3694 = vrot.slane %v2884, 1
  %v3695 = vsel %vm3564, %v3692, %v3694
  %v3696 = vrot.slane %v2885, 1
  %v3697 = vsel %vm3564, %v3694, %v3696
  %v3698 = vrot.slane %v2886, 1
  %v3699 = vsel %vm3564, %v3696, %v3698
  %v3700 = vrot.slane %v2887, 1
  %v3701 = vsel %vm3564, %v3698, %v3700
  %v3702 = vrot.slane %v2888, 1
  %v3703 = vsel %vm3564, %v3700, %v3702
  %3704 = vrot.lane.b32.xlu0 %v3565, 4
  %v3705 = vpop.permute.xlu0 %3704
  %3706 = vrot.lane.b32.xlu0 %v3567, 4
  %v3707 = vpop.permute.xlu0 %3706
  %3708 = vrot.lane.b32.xlu0 %v3569, 4
  %v3709 = vpop.permute.xlu0 %3708
  %3710 = vrot.lane.b32.xlu0 %v3571, 4
  %v3711 = vpop.permute.xlu0 %3710
  %3712 = vrot.lane.b32.xlu0 %v3573, 4
  %v3713 = vpop.permute.xlu0 %3712
  %3714 = vrot.lane.b32.xlu0 %v3575, 4
  %v3715 = vpop.permute.xlu0 %3714
  %3716 = vrot.lane.b32.xlu0 %v3577, 4
  %v3717 = vpop.permute.xlu0 %3716
  %3718 = vrot.lane.b32.xlu0 %v3579, 4
  %v3719 = vpop.permute.xlu0 %3718
  %3720 = vrot.lane.b32.xlu0 %v3581, 4
  %v3721 = vpop.permute.xlu0 %3720
  %3722 = vrot.lane.b32.xlu0 %v3583, 4
  %v3723 = vpop.permute.xlu0 %3722
  %3724 = vrot.lane.b32.xlu0 %v3585, 4
  %v3725 = vpop.permute.xlu0 %3724
  %3726 = vrot.lane.b32.xlu0 %v3587, 4
  %v3727 = vpop.permute.xlu0 %3726
  %3728 = vrot.lane.b32.xlu0 %v3589, 4
  %v3729 = vpop.permute.xlu0 %3728
  %3730 = vrot.lane.b32.xlu0 %v3591, 4
  %v3731 = vpop.permute.xlu0 %3730
  %3732 = vrot.lane.b32.xlu0 %v3593, 4
  %v3733 = vpop.permute.xlu0 %3732
  %3734 = vrot.lane.b32.xlu0 %v3595, 4
  %v3735 = vpop.permute.xlu0 %3734
  %3736 = vrot.lane.b32.xlu0 %v3597, 4
  %v3737 = vpop.permute.xlu0 %3736
  %3738 = vrot.lane.b32.xlu0 %v3599, 4
  %v3739 = vpop.permute.xlu0 %3738
  %3740 = vrot.lane.b32.xlu0 %v3601, 4
  %v3741 = vpop.permute.xlu0 %3740
  %3742 = vrot.lane.b32.xlu0 %v3603, 4
  %v3743 = vpop.permute.xlu0 %3742
  %3744 = vrot.lane.b32.xlu0 %v3605, 4
  %v3745 = vpop.permute.xlu0 %3744
  %3746 = vrot.lane.b32.xlu0 %v3607, 4
  %v3747 = vpop.permute.xlu0 %3746
  %3748 = vrot.lane.b32.xlu0 %v3609, 4
  %v3749 = vpop.permute.xlu0 %3748
  %3750 = vrot.lane.b32.xlu0 %v3611, 4
  %v3751 = vpop.permute.xlu0 %3750
  %3752 = vrot.lane.b32.xlu0 %v3613, 4
  %v3753 = vpop.permute.xlu0 %3752
  %3754 = vrot.lane.b32.xlu0 %v3615, 4
  %v3755 = vpop.permute.xlu0 %3754
  %3756 = vrot.lane.b32.xlu0 %v3617, 4
  %v3757 = vpop.permute.xlu0 %3756
  %3758 = vrot.lane.b32.xlu0 %v3619, 4
  %v3759 = vpop.permute.xlu0 %3758
  %3760 = vrot.lane.b32.xlu0 %v3621, 4
  %v3761 = vpop.permute.xlu0 %3760
  %3762 = vrot.lane.b32.xlu0 %v3623, 4
  %v3763 = vpop.permute.xlu0 %3762
  %3764 = vrot.lane.b32.xlu0 %v3625, 4
  %v3765 = vpop.permute.xlu0 %3764
  %3766 = vrot.lane.b32.xlu0 %v3627, 4
  %v3767 = vpop.permute.xlu0 %3766
  %3768 = vrot.lane.b32.xlu0 %v3629, 4
  %v3769 = vpop.permute.xlu0 %3768
  %3770 = vrot.lane.b32.xlu0 %v3631, 4
  %v3771 = vpop.permute.xlu0 %3770
  %3772 = vrot.lane.b32.xlu0 %v3633, 4
  %v3773 = vpop.permute.xlu0 %3772
  %3774 = vrot.lane.b32.xlu0 %v3635, 4
  %v3775 = vpop.permute.xlu0 %3774
  %3776 = vrot.lane.b32.xlu0 %v3637, 4
  %v3777 = vpop.permute.xlu0 %3776
  %3778 = vrot.lane.b32.xlu0 %v3639, 4
  %v3779 = vpop.permute.xlu0 %3778
  %3780 = vrot.lane.b32.xlu0 %v3641, 4
  %v3781 = vpop.permute.xlu0 %3780
  %3782 = vrot.lane.b32.xlu0 %v3643, 4
  %v3783 = vpop.permute.xlu0 %3782
  %3784 = vrot.lane.b32.xlu0 %v3645, 4
  %v3785 = vpop.permute.xlu0 %3784
  %3786 = vrot.lane.b32.xlu0 %v3647, 4
  %v3787 = vpop.permute.xlu0 %3786
  %3788 = vrot.lane.b32.xlu0 %v3649, 4
  %v3789 = vpop.permute.xlu0 %3788
  %3790 = vrot.lane.b32.xlu0 %v3651, 4
  %v3791 = vpop.permute.xlu0 %3790
  %3792 = vrot.lane.b32.xlu0 %v3653, 4
  %v3793 = vpop.permute.xlu0 %3792
  %3794 = vrot.lane.b32.xlu0 %v3655, 4
  %v3795 = vpop.permute.xlu0 %3794
  %3796 = vrot.lane.b32.xlu0 %v3657, 4
  %v3797 = vpop.permute.xlu0 %3796
  %3798 = vrot.lane.b32.xlu0 %v3659, 4
  %v3799 = vpop.permute.xlu0 %3798
  %3800 = vrot.lane.b32.xlu0 %v3661, 4
  %v3801 = vpop.permute.xlu0 %3800
  %3802 = vrot.lane.b32.xlu0 %v3663, 4
  %v3803 = vpop.permute.xlu0 %3802
  %3804 = vrot.lane.b32.xlu0 %v3665, 4
  %v3805 = vpop.permute.xlu0 %3804
  %3806 = vrot.lane.b32.xlu0 %v3667, 4
  %v3807 = vpop.permute.xlu0 %3806
  %3808 = vrot.lane.b32.xlu0 %v3669, 4
  %v3809 = vpop.permute.xlu0 %3808
  %3810 = vrot.lane.b32.xlu0 %v3671, 4
  %v3811 = vpop.permute.xlu0 %3810
  %3812 = vrot.lane.b32.xlu0 %v3673, 4
  %v3813 = vpop.permute.xlu0 %3812
  %3814 = vrot.lane.b32.xlu0 %v3675, 4
  %v3815 = vpop.permute.xlu0 %3814
  %3816 = vrot.lane.b32.xlu0 %v3677, 4
  %v3817 = vpop.permute.xlu0 %3816
  %3818 = vrot.lane.b32.xlu0 %v3679, 4
  %v3819 = vpop.permute.xlu0 %3818
  %3820 = vrot.lane.b32.xlu0 %v3681, 4
  %v3821 = vpop.permute.xlu0 %3820
  %3822 = vrot.lane.b32.xlu0 %v3683, 4
  %v3823 = vpop.permute.xlu0 %3822
  %3824 = vrot.lane.b32.xlu0 %v3685, 4
  %v3825 = vpop.permute.xlu0 %3824
  %3826 = vrot.lane.b32.xlu0 %v3687, 4
  %v3827 = vpop.permute.xlu0 %3826
  %3828 = vrot.lane.b32.xlu0 %v3689, 4
  %v3829 = vpop.permute.xlu0 %3828
  %3830 = vrot.lane.b32.xlu0 %v3691, 4
  %v3831 = vpop.permute.xlu0 %3830
  %3832 = vrot.lane.b32.xlu0 %v3693, 4
  %v3833 = vpop.permute.xlu0 %3832
  %3834 = vrot.lane.b32.xlu0 %v3695, 4
  %v3835 = vpop.permute.xlu0 %3834
  %3836 = vrot.lane.b32.xlu0 %v3697, 4
  %v3837 = vpop.permute.xlu0 %3836
  %3838 = vrot.lane.b32.xlu0 %v3699, 4
  %v3839 = vpop.permute.xlu0 %3838
  %3840 = vrot.lane.b32.xlu0 %v3701, 4
  %v3841 = vpop.permute.xlu0 %3840
  %3842 = vrot.lane.b32.xlu0 %v3703, 4
  %v3843 = vpop.permute.xlu0 %3842
  %3844 = vrot.lane.b32.xlu0 %v3702, 4
  %v3845 = vpop.permute.xlu0 %3844
  %vm3988 = vcmask 1045504
  %v3989 = vrot.slane %v3419, 2
  %v3990 = vrot.slane %v3420, 2
  %v3991 = vsel %vm3988, %v3989, %v3990
  %v3992 = vrot.slane %v3421, 2
  %v3993 = vsel %vm3988, %v3990, %v3992
  %v3994 = vrot.slane %v3422, 2
  %v3995 = vsel %vm3988, %v3992, %v3994
  %v3996 = vrot.slane %v3423, 2
  %v3997 = vsel %vm3988, %v3994, %v3996
  %v3998 = vrot.slane %v3424, 2
  %v3999 = vsel %vm3988, %v3996, %v3998
  %v4000 = vrot.slane %v3425, 2
  %v4001 = vsel %vm3988, %v3998, %v4000
  %v4002 = vrot.slane %v3426, 2
  %v4003 = vsel %vm3988, %v4000, %v4002
  %v4004 = vrot.slane %v3427, 2
  %v4005 = vsel %vm3988, %v4002, %v4004
  %v4006 = vrot.slane %v3428, 2
  %v4007 = vsel %vm3988, %v4004, %v4006
  %v4008 = vrot.slane %v3429, 2
  %v4009 = vsel %vm3988, %v4006, %v4008
  %v4010 = vrot.slane %v3430, 2
  %v4011 = vsel %vm3988, %v4008, %v4010
  %v4012 = vrot.slane %v3431, 2
  %v4013 = vsel %vm3988, %v4010, %v4012
  %v4014 = vrot.slane %v3432, 2
  %v4015 = vsel %vm3988, %v4012, %v4014
  %v4016 = vrot.slane %v3433, 2
  %v4017 = vsel %vm3988, %v4014, %v4016
  %v4018 = vrot.slane %v3434, 2
  %v4019 = vsel %vm3988, %v4016, %v4018
  %v4020 = vrot.slane %v3435, 2
  %v4021 = vsel %vm3988, %v4018, %v4020
  %v4022 = vrot.slane %v3436, 2
  %v4023 = vsel %vm3988, %v4020, %v4022
  %v4024 = vrot.slane %v3437, 2
  %v4025 = vsel %vm3988, %v4022, %v4024
  %v4026 = vrot.slane %v3438, 2
  %v4027 = vsel %vm3988, %v4024, %v4026
  %v4028 = vrot.slane %v3439, 2
  %v4029 = vsel %vm3988, %v4026, %v4028
  %v4030 = vrot.slane %v3440, 2
  %v4031 = vsel %vm3988, %v4028, %v4030
  %v4032 = vrot.slane %v3441, 2
  %v4033 = vsel %vm3988, %v4030, %v4032
  %v4034 = vrot.slane %v3442, 2
  %v4035 = vsel %vm3988, %v4032, %v4034
  %v4036 = vrot.slane %v3443, 2
  %v4037 = vsel %vm3988, %v4034, %v4036
  %v4038 = vrot.slane %v3444, 2
  %v4039 = vsel %vm3988, %v4036, %v4038
  %v4040 = vrot.slane %v3445, 2
  %v4041 = vsel %vm3988, %v4038, %v4040
  %v4042 = vrot.slane %v3446, 2
  %v4043 = vsel %vm3988, %v4040, %v4042
  %v4044 = vrot.slane %v3447, 2
  %v4045 = vsel %vm3988, %v4042, %v4044
  %v4046 = vrot.slane %v3448, 2
  %v4047 = vsel %vm3988, %v4044, %v4046
  %v4048 = vrot.slane %v3449, 2
  %v4049 = vsel %vm3988, %v4046, %v4048
  %v4050 = vrot.slane %v3450, 2
  %v4051 = vsel %vm3988, %v4048, %v4050
  %v4052 = vrot.slane %v3451, 2
  %v4053 = vsel %vm3988, %v4050, %v4052
  %v4054 = vrot.slane %v3452, 2
  %v4055 = vsel %vm3988, %v4052, %v4054
  %v4056 = vrot.slane %v3453, 2
  %v4057 = vsel %vm3988, %v4054, %v4056
  %v4058 = vrot.slane %v3454, 2
  %v4059 = vsel %vm3988, %v4056, %v4058
  %v4060 = vrot.slane %v3455, 2
  %v4061 = vsel %vm3988, %v4058, %v4060
  %v4062 = vrot.slane %v3456, 2
  %v4063 = vsel %vm3988, %v4060, %v4062
  %v4064 = vrot.slane %v3457, 2
  %v4065 = vsel %vm3988, %v4062, %v4064
  %v4066 = vrot.slane %v3458, 2
  %v4067 = vsel %vm3988, %v4064, %v4066
  %v4068 = vrot.slane %v3459, 2
  %v4069 = vsel %vm3988, %v4066, %v4068
  %v4070 = vrot.slane %v3460, 2
  %v4071 = vsel %vm3988, %v4068, %v4070
  %v4072 = vrot.slane %v3461, 2
  %v4073 = vsel %vm3988, %v4070, %v4072
  %v4074 = vrot.slane %v3462, 2
  %v4075 = vsel %vm3988, %v4072, %v4074
  %v4076 = vrot.slane %v3463, 2
  %v4077 = vsel %vm3988, %v4074, %v4076
  %v4078 = vrot.slane %v3464, 2
  %v4079 = vsel %vm3988, %v4076, %v4078
  %v4080 = vrot.slane %v3465, 2
  %v4081 = vsel %vm3988, %v4078, %v4080
  %v4082 = vrot.slane %v3466, 2
  %v4083 = vsel %vm3988, %v4080, %v4082
  %v4084 = vrot.slane %v3467, 2
  %v4085 = vsel %vm3988, %v4082, %v4084
  %v4086 = vrot.slane %v3468, 2
  %v4087 = vsel %vm3988, %v4084, %v4086
  %v4088 = vrot.slane %v3469, 2
  %v4089 = vsel %vm3988, %v4086, %v4088
  %v4090 = vrot.slane %v3470, 2
  %v4091 = vsel %vm3988, %v4088, %v4090
  %v4092 = vrot.slane %v3471, 2
  %v4093 = vsel %vm3988, %v4090, %v4092
  %v4094 = vrot.slane %v3472, 2
  %v4095 = vsel %vm3988, %v4092, %v4094
  %v4096 = vrot.slane %v3473, 2
  %v4097 = vsel %vm3988, %v4094, %v4096
  %v4098 = vrot.slane %v3474, 2
  %v4099 = vsel %vm3988, %v4096, %v4098
  %v4100 = vrot.slane %v3475, 2
  %v4101 = vsel %vm3988, %v4098, %v4100
  %v4102 = vrot.slane %v3476, 2
  %v4103 = vsel %vm3988, %v4100, %v4102
  %v4104 = vrot.slane %v3477, 2
  %v4105 = vsel %vm3988, %v4102, %v4104
  %v4106 = vrot.slane %v3478, 2
  %v4107 = vsel %vm3988, %v4104, %v4106
  %v4108 = vrot.slane %v3479, 2
  %v4109 = vsel %vm3988, %v4106, %v4108
  %v4110 = vrot.slane %v3480, 2
  %v4111 = vsel %vm3988, %v4108, %v4110
  %v4112 = vrot.slane %v3481, 2
  %v4113 = vsel %vm3988, %v4110, %v4112
  %v4114 = vrot.slane %v3482, 2
  %v4115 = vsel %vm3988, %v4112, %v4114
  %v4116 = vrot.slane %v3483, 2
  %v4117 = vsel %vm3988, %v4114, %v4116
  %v4118 = vrot.slane %v3484, 2
  %v4119 = vsel %vm3988, %v4116, %v4118
  %v4120 = vrot.slane %v3485, 2
  %v4121 = vsel %vm3988, %v4118, %v4120
  %v4122 = vrot.slane %v3486, 2
  %v4123 = vsel %vm3988, %v4120, %v4122
  %v4124 = vrot.slane %v3487, 2
  %v4125 = vsel %vm3988, %v4122, %v4124
  %v4126 = vrot.slane %v3488, 2
  %v4127 = vsel %vm3988, %v4124, %v4126
  %v4128 = vrot.slane %v3489, 2
  %v4129 = vsel %vm3988, %v4126, %v4128
  %4130 = vrot.lane.b32.xlu0 %v3989, 8
  %v4131 = vpop.permute.xlu0 %4130
  %4132 = vrot.lane.b32.xlu0 %v3991, 8
  %v4133 = vpop.permute.xlu0 %4132
  %4134 = vrot.lane.b32.xlu0 %v3993, 8
  %v4135 = vpop.permute.xlu0 %4134
  %4136 = vrot.lane.b32.xlu0 %v3995, 8
  %v4137 = vpop.permute.xlu0 %4136
  %4138 = vrot.lane.b32.xlu0 %v3997, 8
  %v4139 = vpop.permute.xlu0 %4138
  %4140 = vrot.lane.b32.xlu0 %v3999, 8
  %v4141 = vpop.permute.xlu0 %4140
  %4142 = vrot.lane.b32.xlu0 %v4001, 8
  %v4143 = vpop.permute.xlu0 %4142
  %4144 = vrot.lane.b32.xlu0 %v4003, 8
  %v4145 = vpop.permute.xlu0 %4144
  %4146 = vrot.lane.b32.xlu0 %v4005, 8
  %v4147 = vpop.permute.xlu0 %4146
  %4148 = vrot.lane.b32.xlu0 %v4007, 8
  %v4149 = vpop.permute.xlu0 %4148
  %4150 = vrot.lane.b32.xlu0 %v4009, 8
  %v4151 = vpop.permute.xlu0 %4150
  %4152 = vrot.lane.b32.xlu0 %v4011, 8
  %v4153 = vpop.permute.xlu0 %4152
  %4154 = vrot.lane.b32.xlu0 %v4013, 8
  %v4155 = vpop.permute.xlu0 %4154
  %4156 = vrot.lane.b32.xlu0 %v4015, 8
  %v4157 = vpop.permute.xlu0 %4156
  %4158 = vrot.lane.b32.xlu0 %v4017, 8
  %v4159 = vpop.permute.xlu0 %4158
  %4160 = vrot.lane.b32.xlu0 %v4019, 8
  %v4161 = vpop.permute.xlu0 %4160
  %4162 = vrot.lane.b32.xlu0 %v4021, 8
  %v4163 = vpop.permute.xlu0 %4162
  %4164 = vrot.lane.b32.xlu0 %v4023, 8
  %v4165 = vpop.permute.xlu0 %4164
  %4166 = vrot.lane.b32.xlu0 %v4025, 8
  %v4167 = vpop.permute.xlu0 %4166
  %4168 = vrot.lane.b32.xlu0 %v4027, 8
  %v4169 = vpop.permute.xlu0 %4168
  %4170 = vrot.lane.b32.xlu0 %v4029, 8
  %v4171 = vpop.permute.xlu0 %4170
  %4172 = vrot.lane.b32.xlu0 %v4031, 8
  %v4173 = vpop.permute.xlu0 %4172
  %4174 = vrot.lane.b32.xlu0 %v4033, 8
  %v4175 = vpop.permute.xlu0 %4174
  %4176 = vrot.lane.b32.xlu0 %v4035, 8
  %v4177 = vpop.permute.xlu0 %4176
  %4178 = vrot.lane.b32.xlu0 %v4037, 8
  %v4179 = vpop.permute.xlu0 %4178
  %4180 = vrot.lane.b32.xlu0 %v4039, 8
  %v4181 = vpop.permute.xlu0 %4180
  %4182 = vrot.lane.b32.xlu0 %v4041, 8
  %v4183 = vpop.permute.xlu0 %4182
  %4184 = vrot.lane.b32.xlu0 %v4043, 8
  %v4185 = vpop.permute.xlu0 %4184
  %4186 = vrot.lane.b32.xlu0 %v4045, 8
  %v4187 = vpop.permute.xlu0 %4186
  %4188 = vrot.lane.b32.xlu0 %v4047, 8
  %v4189 = vpop.permute.xlu0 %4188
  %4190 = vrot.lane.b32.xlu0 %v4049, 8
  %v4191 = vpop.permute.xlu0 %4190
  %4192 = vrot.lane.b32.xlu0 %v4051, 8
  %v4193 = vpop.permute.xlu0 %4192
  %4194 = vrot.lane.b32.xlu0 %v4053, 8
  %v4195 = vpop.permute.xlu0 %4194
  %4196 = vrot.lane.b32.xlu0 %v4055, 8
  %v4197 = vpop.permute.xlu0 %4196
  %4198 = vrot.lane.b32.xlu0 %v4057, 8
  %v4199 = vpop.permute.xlu0 %4198
  %4200 = vrot.lane.b32.xlu0 %v4059, 8
  %v4201 = vpop.permute.xlu0 %4200
  %4202 = vrot.lane.b32.xlu0 %v4061, 8
  %v4203 = vpop.permute.xlu0 %4202
  %4204 = vrot.lane.b32.xlu0 %v4063, 8
  %v4205 = vpop.permute.xlu0 %4204
  %4206 = vrot.lane.b32.xlu0 %v4065, 8
  %v4207 = vpop.permute.xlu0 %4206
  %4208 = vrot.lane.b32.xlu0 %v4067, 8
  %v4209 = vpop.permute.xlu0 %4208
  %4210 = vrot.lane.b32.xlu0 %v4069, 8
  %v4211 = vpop.permute.xlu0 %4210
  %4212 = vrot.lane.b32.xlu0 %v4071, 8
  %v4213 = vpop.permute.xlu0 %4212
  %4214 = vrot.lane.b32.xlu0 %v4073, 8
  %v4215 = vpop.permute.xlu0 %4214
  %4216 = vrot.lane.b32.xlu0 %v4075, 8
  %v4217 = vpop.permute.xlu0 %4216
  %4218 = vrot.lane.b32.xlu0 %v4077, 8
  %v4219 = vpop.permute.xlu0 %4218
  %4220 = vrot.lane.b32.xlu0 %v4079, 8
  %v4221 = vpop.permute.xlu0 %4220
  %4222 = vrot.lane.b32.xlu0 %v4081, 8
  %v4223 = vpop.permute.xlu0 %4222
  %4224 = vrot.lane.b32.xlu0 %v4083, 8
  %v4225 = vpop.permute.xlu0 %4224
  %4226 = vrot.lane.b32.xlu0 %v4085, 8
  %v4227 = vpop.permute.xlu0 %4226
  %4228 = vrot.lane.b32.xlu0 %v4087, 8
  %v4229 = vpop.permute.xlu0 %4228
  %4230 = vrot.lane.b32.xlu0 %v4089, 8
  %v4231 = vpop.permute.xlu0 %4230
  %4232 = vrot.lane.b32.xlu0 %v4091, 8
  %v4233 = vpop.permute.xlu0 %4232
  %4234 = vrot.lane.b32.xlu0 %v4093, 8
  %v4235 = vpop.permute.xlu0 %4234
  %4236 = vrot.lane.b32.xlu0 %v4095, 8
  %v4237 = vpop.permute.xlu0 %4236
  %4238 = vrot.lane.b32.xlu0 %v4097, 8
  %v4239 = vpop.permute.xlu0 %4238
  %4240 = vrot.lane.b32.xlu0 %v4099, 8
  %v4241 = vpop.permute.xlu0 %4240
  %4242 = vrot.lane.b32.xlu0 %v4101, 8
  %v4243 = vpop.permute.xlu0 %4242
  %4244 = vrot.lane.b32.xlu0 %v4103, 8
  %v4245 = vpop.permute.xlu0 %4244
  %4246 = vrot.lane.b32.xlu0 %v4105, 8
  %v4247 = vpop.permute.xlu0 %4246
  %4248 = vrot.lane.b32.xlu0 %v4107, 8
  %v4249 = vpop.permute.xlu0 %4248
  %4250 = vrot.lane.b32.xlu0 %v4109, 8
  %v4251 = vpop.permute.xlu0 %4250
  %4252 = vrot.lane.b32.xlu0 %v4111, 8
  %v4253 = vpop.permute.xlu0 %4252
  %4254 = vrot.lane.b32.xlu0 %v4113, 8
  %v4255 = vpop.permute.xlu0 %4254
  %4256 = vrot.lane.b32.xlu0 %v4115, 8
  %v4257 = vpop.permute.xlu0 %4256
  %4258 = vrot.lane.b32.xlu0 %v4117, 8
  %v4259 = vpop.permute.xlu0 %4258
  %4260 = vrot.lane.b32.xlu0 %v4119, 8
  %v4261 = vpop.permute.xlu0 %4260
  %4262 = vrot.lane.b32.xlu0 %v4121, 8
  %v4263 = vpop.permute.xlu0 %4262
  %4264 = vrot.lane.b32.xlu0 %v4123, 8
  %v4265 = vpop.permute.xlu0 %4264
  %4266 = vrot.lane.b32.xlu0 %v4125, 8
  %v4267 = vpop.permute.xlu0 %4266
  %4268 = vrot.lane.b32.xlu0 %v4127, 8
  %v4269 = vpop.permute.xlu0 %4268
  %4270 = vrot.lane.b32.xlu0 %v4129, 8
  %v4271 = vpop.permute.xlu0 %4270
  %4414 = vrot.lane.b32.xlu0 %v3121, 12
  %v4415 = vpop.permute.xlu0 %4414
  %4416 = vrot.lane.b32.xlu0 %v3122, 12
  %v4417 = vpop.permute.xlu0 %4416
  %4418 = vrot.lane.b32.xlu0 %v3123, 12
  %v4419 = vpop.permute.xlu0 %4418
  %4420 = vrot.lane.b32.xlu0 %v3124, 12
  %v4421 = vpop.permute.xlu0 %4420
  %4422 = vrot.lane.b32.xlu0 %v3125, 12
  %v4423 = vpop.permute.xlu0 %4422
  %4424 = vrot.lane.b32.xlu0 %v3126, 12
  %v4425 = vpop.permute.xlu0 %4424
  %4426 = vrot.lane.b32.xlu0 %v3127, 12
  %v4427 = vpop.permute.xlu0 %4426
  %4428 = vrot.lane.b32.xlu0 %v3128, 12
  %v4429 = vpop.permute.xlu0 %4428
  %4430 = vrot.lane.b32.xlu0 %v3129, 12
  %v4431 = vpop.permute.xlu0 %4430
  %4432 = vrot.lane.b32.xlu0 %v3130, 12
  %v4433 = vpop.permute.xlu0 %4432
  %4434 = vrot.lane.b32.xlu0 %v3131, 12
  %v4435 = vpop.permute.xlu0 %4434
  %4436 = vrot.lane.b32.xlu0 %v3132, 12
  %v4437 = vpop.permute.xlu0 %4436
  %4438 = vrot.lane.b32.xlu0 %v3133, 12
  %v4439 = vpop.permute.xlu0 %4438
  %4440 = vrot.lane.b32.xlu0 %v3134, 12
  %v4441 = vpop.permute.xlu0 %4440
  %4442 = vrot.lane.b32.xlu0 %v3135, 12
  %v4443 = vpop.permute.xlu0 %4442
  %4444 = vrot.lane.b32.xlu0 %v3136, 12
  %v4445 = vpop.permute.xlu0 %4444
  %4446 = vrot.lane.b32.xlu0 %v3137, 12
  %v4447 = vpop.permute.xlu0 %4446
  %4448 = vrot.lane.b32.xlu0 %v3138, 12
  %v4449 = vpop.permute.xlu0 %4448
  %4450 = vrot.lane.b32.xlu0 %v3139, 12
  %v4451 = vpop.permute.xlu0 %4450
  %4452 = vrot.lane.b32.xlu0 %v3140, 12
  %v4453 = vpop.permute.xlu0 %4452
  %4454 = vrot.lane.b32.xlu0 %v3141, 12
  %v4455 = vpop.permute.xlu0 %4454
  %4456 = vrot.lane.b32.xlu0 %v3142, 12
  %v4457 = vpop.permute.xlu0 %4456
  %4458 = vrot.lane.b32.xlu0 %v3143, 12
  %v4459 = vpop.permute.xlu0 %4458
  %4460 = vrot.lane.b32.xlu0 %v3144, 12
  %v4461 = vpop.permute.xlu0 %4460
  %4462 = vrot.lane.b32.xlu0 %v3145, 12
  %v4463 = vpop.permute.xlu0 %4462
  %4464 = vrot.lane.b32.xlu0 %v3146, 12
  %v4465 = vpop.permute.xlu0 %4464
  %4466 = vrot.lane.b32.xlu0 %v3147, 12
  %v4467 = vpop.permute.xlu0 %4466
  %4468 = vrot.lane.b32.xlu0 %v3148, 12
  %v4469 = vpop.permute.xlu0 %4468
  %4470 = vrot.lane.b32.xlu0 %v3149, 12
  %v4471 = vpop.permute.xlu0 %4470
  %4472 = vrot.lane.b32.xlu0 %v3150, 12
  %v4473 = vpop.permute.xlu0 %4472
  %4474 = vrot.lane.b32.xlu0 %v3151, 12
  %v4475 = vpop.permute.xlu0 %4474
  %4476 = vrot.lane.b32.xlu0 %v3152, 12
  %v4477 = vpop.permute.xlu0 %4476
  %4478 = vrot.lane.b32.xlu0 %v3153, 12
  %v4479 = vpop.permute.xlu0 %4478
  %4480 = vrot.lane.b32.xlu0 %v3154, 12
  %v4481 = vpop.permute.xlu0 %4480
  %4482 = vrot.lane.b32.xlu0 %v3155, 12
  %v4483 = vpop.permute.xlu0 %4482
  %4484 = vrot.lane.b32.xlu0 %v3156, 12
  %v4485 = vpop.permute.xlu0 %4484
  %4486 = vrot.lane.b32.xlu0 %v3157, 12
  %v4487 = vpop.permute.xlu0 %4486
  %4488 = vrot.lane.b32.xlu0 %v3158, 12
  %v4489 = vpop.permute.xlu0 %4488
  %4490 = vrot.lane.b32.xlu0 %v3159, 12
  %v4491 = vpop.permute.xlu0 %4490
  %4492 = vrot.lane.b32.xlu0 %v3160, 12
  %v4493 = vpop.permute.xlu0 %4492
  %4494 = vrot.lane.b32.xlu0 %v3161, 12
  %v4495 = vpop.permute.xlu0 %4494
  %4496 = vrot.lane.b32.xlu0 %v3162, 12
  %v4497 = vpop.permute.xlu0 %4496
  %4498 = vrot.lane.b32.xlu0 %v3163, 12
  %v4499 = vpop.permute.xlu0 %4498
  %4500 = vrot.lane.b32.xlu0 %v3164, 12
  %v4501 = vpop.permute.xlu0 %4500
  %4502 = vrot.lane.b32.xlu0 %v3165, 12
  %v4503 = vpop.permute.xlu0 %4502
  %4504 = vrot.lane.b32.xlu0 %v3166, 12
  %v4505 = vpop.permute.xlu0 %4504
  %4506 = vrot.lane.b32.xlu0 %v3167, 12
  %v4507 = vpop.permute.xlu0 %4506
  %4508 = vrot.lane.b32.xlu0 %v3168, 12
  %v4509 = vpop.permute.xlu0 %4508
  %4510 = vrot.lane.b32.xlu0 %v3169, 12
  %v4511 = vpop.permute.xlu0 %4510
  %4512 = vrot.lane.b32.xlu0 %v3170, 12
  %v4513 = vpop.permute.xlu0 %4512
  %4514 = vrot.lane.b32.xlu0 %v3171, 12
  %v4515 = vpop.permute.xlu0 %4514
  %4516 = vrot.lane.b32.xlu0 %v3172, 12
  %v4517 = vpop.permute.xlu0 %4516
  %4518 = vrot.lane.b32.xlu0 %v3173, 12
  %v4519 = vpop.permute.xlu0 %4518
  %4520 = vrot.lane.b32.xlu0 %v3174, 12
  %v4521 = vpop.permute.xlu0 %4520
  %4522 = vrot.lane.b32.xlu0 %v3175, 12
  %v4523 = vpop.permute.xlu0 %4522
  %4524 = vrot.lane.b32.xlu0 %v3176, 12
  %v4525 = vpop.permute.xlu0 %4524
  %4526 = vrot.lane.b32.xlu0 %v3177, 12
  %v4527 = vpop.permute.xlu0 %4526
  %4528 = vrot.lane.b32.xlu0 %v3178, 12
  %v4529 = vpop.permute.xlu0 %4528
  %4530 = vrot.lane.b32.xlu0 %v3179, 12
  %v4531 = vpop.permute.xlu0 %4530
  %4532 = vrot.lane.b32.xlu0 %v3180, 12
  %v4533 = vpop.permute.xlu0 %4532
  %4534 = vrot.lane.b32.xlu0 %v3181, 12
  %v4535 = vpop.permute.xlu0 %4534
  %4536 = vrot.lane.b32.xlu0 %v3182, 12
  %v4537 = vpop.permute.xlu0 %4536
  %4538 = vrot.lane.b32.xlu0 %v3183, 12
  %v4539 = vpop.permute.xlu0 %4538
  %4540 = vrot.lane.b32.xlu0 %v3184, 12
  %v4541 = vpop.permute.xlu0 %4540
  %4542 = vrot.lane.b32.xlu0 %v3185, 12
  %v4543 = vpop.permute.xlu0 %4542
  %4544 = vrot.lane.b32.xlu0 %v3186, 12
  %v4545 = vpop.permute.xlu0 %4544
  %4546 = vrot.lane.b32.xlu0 %v3187, 12
  %v4547 = vpop.permute.xlu0 %4546
  %4548 = vrot.lane.b32.xlu0 %v3188, 12
  %v4549 = vpop.permute.xlu0 %4548
  %4550 = vrot.lane.b32.xlu0 %v3189, 12
  %v4551 = vpop.permute.xlu0 %4550
  %4552 = vrot.lane.b32.xlu0 %v3190, 12
  %v4553 = vpop.permute.xlu0 %4552
  %4554 = vrot.lane.b32.xlu0 %v3191, 12
  %v4555 = vpop.permute.xlu0 %4554
  %v4629 = vrot.slane %v2889, 1
  %v4630 = vsel %vm3564, %v3702, %v4629
  %v4631 = vrot.slane %v2890, 1
  %v4632 = vsel %vm3564, %v4629, %v4631
  %4633 = vrot.lane.b32.xlu0 %v3568, 16
  %v4634 = vpop.permute.xlu0 %4633
  %4635 = vrot.lane.b32.xlu0 %v3571, 16
  %v4636 = vpop.permute.xlu0 %4635
  %4637 = vrot.lane.b32.xlu0 %v3573, 16
  %v4638 = vpop.permute.xlu0 %4637
  %4639 = vrot.lane.b32.xlu0 %v3575, 16
  %v4640 = vpop.permute.xlu0 %4639
  %4641 = vrot.lane.b32.xlu0 %v3577, 16
  %v4642 = vpop.permute.xlu0 %4641
  %4643 = vrot.lane.b32.xlu0 %v3579, 16
  %v4644 = vpop.permute.xlu0 %4643
  %4645 = vrot.lane.b32.xlu0 %v3581, 16
  %v4646 = vpop.permute.xlu0 %4645
  %4647 = vrot.lane.b32.xlu0 %v3583, 16
  %v4648 = vpop.permute.xlu0 %4647
  %4649 = vrot.lane.b32.xlu0 %v3585, 16
  %v4650 = vpop.permute.xlu0 %4649
  %4651 = vrot.lane.b32.xlu0 %v3587, 16
  %v4652 = vpop.permute.xlu0 %4651
  %4653 = vrot.lane.b32.xlu0 %v3589, 16
  %v4654 = vpop.permute.xlu0 %4653
  %4655 = vrot.lane.b32.xlu0 %v3591, 16
  %v4656 = vpop.permute.xlu0 %4655
  %4657 = vrot.lane.b32.xlu0 %v3593, 16
  %v4658 = vpop.permute.xlu0 %4657
  %4659 = vrot.lane.b32.xlu0 %v3595, 16
  %v4660 = vpop.permute.xlu0 %4659
  %4661 = vrot.lane.b32.xlu0 %v3597, 16
  %v4662 = vpop.permute.xlu0 %4661
  %4663 = vrot.lane.b32.xlu0 %v3599, 16
  %v4664 = vpop.permute.xlu0 %4663
  %4665 = vrot.lane.b32.xlu0 %v3601, 16
  %v4666 = vpop.permute.xlu0 %4665
  %4667 = vrot.lane.b32.xlu0 %v3603, 16
  %v4668 = vpop.permute.xlu0 %4667
  %4669 = vrot.lane.b32.xlu0 %v3605, 16
  %v4670 = vpop.permute.xlu0 %4669
  %4671 = vrot.lane.b32.xlu0 %v3607, 16
  %v4672 = vpop.permute.xlu0 %4671
  %4673 = vrot.lane.b32.xlu0 %v3609, 16
  %v4674 = vpop.permute.xlu0 %4673
  %4675 = vrot.lane.b32.xlu0 %v3611, 16
  %v4676 = vpop.permute.xlu0 %4675
  %4677 = vrot.lane.b32.xlu0 %v3613, 16
  %v4678 = vpop.permute.xlu0 %4677
  %4679 = vrot.lane.b32.xlu0 %v3615, 16
  %v4680 = vpop.permute.xlu0 %4679
  %4681 = vrot.lane.b32.xlu0 %v3617, 16
  %v4682 = vpop.permute.xlu0 %4681
  %4683 = vrot.lane.b32.xlu0 %v3619, 16
  %v4684 = vpop.permute.xlu0 %4683
  %4685 = vrot.lane.b32.xlu0 %v3621, 16
  %v4686 = vpop.permute.xlu0 %4685
  %4687 = vrot.lane.b32.xlu0 %v3623, 16
  %v4688 = vpop.permute.xlu0 %4687
  %4689 = vrot.lane.b32.xlu0 %v3625, 16
  %v4690 = vpop.permute.xlu0 %4689
  %4691 = vrot.lane.b32.xlu0 %v3627, 16
  %v4692 = vpop.permute.xlu0 %4691
  %4693 = vrot.lane.b32.xlu0 %v3629, 16
  %v4694 = vpop.permute.xlu0 %4693
  %4695 = vrot.lane.b32.xlu0 %v3631, 16
  %v4696 = vpop.permute.xlu0 %4695
  %4697 = vrot.lane.b32.xlu0 %v3633, 16
  %v4698 = vpop.permute.xlu0 %4697
  %4699 = vrot.lane.b32.xlu0 %v3635, 16
  %v4700 = vpop.permute.xlu0 %4699
  %4701 = vrot.lane.b32.xlu0 %v3637, 16
  %v4702 = vpop.permute.xlu0 %4701
  %4703 = vrot.lane.b32.xlu0 %v3639, 16
  %v4704 = vpop.permute.xlu0 %4703
  %4705 = vrot.lane.b32.xlu0 %v3641, 16
  %v4706 = vpop.permute.xlu0 %4705
  %4707 = vrot.lane.b32.xlu0 %v3643, 16
  %v4708 = vpop.permute.xlu0 %4707
  %4709 = vrot.lane.b32.xlu0 %v3645, 16
  %v4710 = vpop.permute.xlu0 %4709
  %4711 = vrot.lane.b32.xlu0 %v3647, 16
  %v4712 = vpop.permute.xlu0 %4711
  %4713 = vrot.lane.b32.xlu0 %v3649, 16
  %v4714 = vpop.permute.xlu0 %4713
  %4715 = vrot.lane.b32.xlu0 %v3651, 16
  %v4716 = vpop.permute.xlu0 %4715
  %4717 = vrot.lane.b32.xlu0 %v3653, 16
  %v4718 = vpop.permute.xlu0 %4717
  %4719 = vrot.lane.b32.xlu0 %v3655, 16
  %v4720 = vpop.permute.xlu0 %4719
  %4721 = vrot.lane.b32.xlu0 %v3657, 16
  %v4722 = vpop.permute.xlu0 %4721
  %4723 = vrot.lane.b32.xlu0 %v3659, 16
  %v4724 = vpop.permute.xlu0 %4723
  %4725 = vrot.lane.b32.xlu0 %v3661, 16
  %v4726 = vpop.permute.xlu0 %4725
  %4727 = vrot.lane.b32.xlu0 %v3663, 16
  %v4728 = vpop.permute.xlu0 %4727
  %4729 = vrot.lane.b32.xlu0 %v3665, 16
  %v4730 = vpop.permute.xlu0 %4729
  %4731 = vrot.lane.b32.xlu0 %v3667, 16
  %v4732 = vpop.permute.xlu0 %4731
  %4733 = vrot.lane.b32.xlu0 %v3669, 16
  %v4734 = vpop.permute.xlu0 %4733
  %4735 = vrot.lane.b32.xlu0 %v3671, 16
  %v4736 = vpop.permute.xlu0 %4735
  %4737 = vrot.lane.b32.xlu0 %v3673, 16
  %v4738 = vpop.permute.xlu0 %4737
  %4739 = vrot.lane.b32.xlu0 %v3675, 16
  %v4740 = vpop.permute.xlu0 %4739
  %4741 = vrot.lane.b32.xlu0 %v3677, 16
  %v4742 = vpop.permute.xlu0 %4741
  %4743 = vrot.lane.b32.xlu0 %v3679, 16
  %v4744 = vpop.permute.xlu0 %4743
  %4745 = vrot.lane.b32.xlu0 %v3681, 16
  %v4746 = vpop.permute.xlu0 %4745
  %4747 = vrot.lane.b32.xlu0 %v3683, 16
  %v4748 = vpop.permute.xlu0 %4747
  %4749 = vrot.lane.b32.xlu0 %v3685, 16
  %v4750 = vpop.permute.xlu0 %4749
  %4751 = vrot.lane.b32.xlu0 %v3687, 16
  %v4752 = vpop.permute.xlu0 %4751
  %4753 = vrot.lane.b32.xlu0 %v3689, 16
  %v4754 = vpop.permute.xlu0 %4753
  %4755 = vrot.lane.b32.xlu0 %v3691, 16
  %v4756 = vpop.permute.xlu0 %4755
  %4757 = vrot.lane.b32.xlu0 %v3693, 16
  %v4758 = vpop.permute.xlu0 %4757
  %4759 = vrot.lane.b32.xlu0 %v3695, 16
  %v4760 = vpop.permute.xlu0 %4759
  %4761 = vrot.lane.b32.xlu0 %v3697, 16
  %v4762 = vpop.permute.xlu0 %4761
  %4763 = vrot.lane.b32.xlu0 %v3699, 16
  %v4764 = vpop.permute.xlu0 %4763
  %4765 = vrot.lane.b32.xlu0 %v3701, 16
  %v4766 = vpop.permute.xlu0 %4765
  %4767 = vrot.lane.b32.xlu0 %v3703, 16
  %v4768 = vpop.permute.xlu0 %4767
  %4769 = vrot.lane.b32.xlu0 %v4630, 16
  %v4770 = vpop.permute.xlu0 %4769
  %4771 = vrot.lane.b32.xlu0 %v4632, 16
  %v4772 = vpop.permute.xlu0 %4771
  %4773 = vrot.lane.b32.xlu0 %v4631, 16
  %v4774 = vpop.permute.xlu0 %4773
  %v4848 = vrot.slane %v3490, 2
  %v4849 = vsel %vm3988, %v4128, %v4848
  %v4850 = vrot.slane %v3491, 2
  %v4851 = vsel %vm3988, %v4848, %v4850
  %4852 = vrot.lane.b32.xlu0 %v3992, 20
  %v4853 = vpop.permute.xlu0 %4852
  %4854 = vrot.lane.b32.xlu0 %v3995, 20
  %v4855 = vpop.permute.xlu0 %4854
  %4856 = vrot.lane.b32.xlu0 %v3997, 20
  %v4857 = vpop.permute.xlu0 %4856
  %4858 = vrot.lane.b32.xlu0 %v3999, 20
  %v4859 = vpop.permute.xlu0 %4858
  %4860 = vrot.lane.b32.xlu0 %v4001, 20
  %v4861 = vpop.permute.xlu0 %4860
  %4862 = vrot.lane.b32.xlu0 %v4003, 20
  %v4863 = vpop.permute.xlu0 %4862
  %4864 = vrot.lane.b32.xlu0 %v4005, 20
  %v4865 = vpop.permute.xlu0 %4864
  %4866 = vrot.lane.b32.xlu0 %v4007, 20
  %v4867 = vpop.permute.xlu0 %4866
  %4868 = vrot.lane.b32.xlu0 %v4009, 20
  %v4869 = vpop.permute.xlu0 %4868
  %4870 = vrot.lane.b32.xlu0 %v4011, 20
  %v4871 = vpop.permute.xlu0 %4870
  %4872 = vrot.lane.b32.xlu0 %v4013, 20
  %v4873 = vpop.permute.xlu0 %4872
  %4874 = vrot.lane.b32.xlu0 %v4015, 20
  %v4875 = vpop.permute.xlu0 %4874
  %4876 = vrot.lane.b32.xlu0 %v4017, 20
  %v4877 = vpop.permute.xlu0 %4876
  %4878 = vrot.lane.b32.xlu0 %v4019, 20
  %v4879 = vpop.permute.xlu0 %4878
  %4880 = vrot.lane.b32.xlu0 %v4021, 20
  %v4881 = vpop.permute.xlu0 %4880
  %4882 = vrot.lane.b32.xlu0 %v4023, 20
  %v4883 = vpop.permute.xlu0 %4882
  %4884 = vrot.lane.b32.xlu0 %v4025, 20
  %v4885 = vpop.permute.xlu0 %4884
  %4886 = vrot.lane.b32.xlu0 %v4027, 20
  %v4887 = vpop.permute.xlu0 %4886
  %4888 = vrot.lane.b32.xlu0 %v4029, 20
  %v4889 = vpop.permute.xlu0 %4888
  %4890 = vrot.lane.b32.xlu0 %v4031, 20
  %v4891 = vpop.permute.xlu0 %4890
  %4892 = vrot.lane.b32.xlu0 %v4033, 20
  %v4893 = vpop.permute.xlu0 %4892
  %4894 = vrot.lane.b32.xlu0 %v4035, 20
  %v4895 = vpop.permute.xlu0 %4894
  %4896 = vrot.lane.b32.xlu0 %v4037, 20
  %v4897 = vpop.permute.xlu0 %4896
  %4898 = vrot.lane.b32.xlu0 %v4039, 20
  %v4899 = vpop.permute.xlu0 %4898
  %4900 = vrot.lane.b32.xlu0 %v4041, 20
  %v4901 = vpop.permute.xlu0 %4900
  %4902 = vrot.lane.b32.xlu0 %v4043, 20
  %v4903 = vpop.permute.xlu0 %4902
  %4904 = vrot.lane.b32.xlu0 %v4045, 20
  %v4905 = vpop.permute.xlu0 %4904
  %4906 = vrot.lane.b32.xlu0 %v4047, 20
  %v4907 = vpop.permute.xlu0 %4906
  %4908 = vrot.lane.b32.xlu0 %v4049, 20
  %v4909 = vpop.permute.xlu0 %4908
  %4910 = vrot.lane.b32.xlu0 %v4051, 20
  %v4911 = vpop.permute.xlu0 %4910
  %4912 = vrot.lane.b32.xlu0 %v4053, 20
  %v4913 = vpop.permute.xlu0 %4912
  %4914 = vrot.lane.b32.xlu0 %v4055, 20
  %v4915 = vpop.permute.xlu0 %4914
  %4916 = vrot.lane.b32.xlu0 %v4057, 20
  %v4917 = vpop.permute.xlu0 %4916
  %4918 = vrot.lane.b32.xlu0 %v4059, 20
  %v4919 = vpop.permute.xlu0 %4918
  %4920 = vrot.lane.b32.xlu0 %v4061, 20
  %v4921 = vpop.permute.xlu0 %4920
  %4922 = vrot.lane.b32.xlu0 %v4063, 20
  %v4923 = vpop.permute.xlu0 %4922
  %4924 = vrot.lane.b32.xlu0 %v4065, 20
  %v4925 = vpop.permute.xlu0 %4924
  %4926 = vrot.lane.b32.xlu0 %v4067, 20
  %v4927 = vpop.permute.xlu0 %4926
  %4928 = vrot.lane.b32.xlu0 %v4069, 20
  %v4929 = vpop.permute.xlu0 %4928
  %4930 = vrot.lane.b32.xlu0 %v4071, 20
  %v4931 = vpop.permute.xlu0 %4930
  %4932 = vrot.lane.b32.xlu0 %v4073, 20
  %v4933 = vpop.permute.xlu0 %4932
  %4934 = vrot.lane.b32.xlu0 %v4075, 20
  %v4935 = vpop.permute.xlu0 %4934
  %4936 = vrot.lane.b32.xlu0 %v4077, 20
  %v4937 = vpop.permute.xlu0 %4936
  %4938 = vrot.lane.b32.xlu0 %v4079, 20
  %v4939 = vpop.permute.xlu0 %4938
  %4940 = vrot.lane.b32.xlu0 %v4081, 20
  %v4941 = vpop.permute.xlu0 %4940
  %4942 = vrot.lane.b32.xlu0 %v4083, 20
  %v4943 = vpop.permute.xlu0 %4942
  %4944 = vrot.lane.b32.xlu0 %v4085, 20
  %v4945 = vpop.permute.xlu0 %4944
  %4946 = vrot.lane.b32.xlu0 %v4087, 20
  %v4947 = vpop.permute.xlu0 %4946
  %4948 = vrot.lane.b32.xlu0 %v4089, 20
  %v4949 = vpop.permute.xlu0 %4948
  %4950 = vrot.lane.b32.xlu0 %v4091, 20
  %v4951 = vpop.permute.xlu0 %4950
  %4952 = vrot.lane.b32.xlu0 %v4093, 20
  %v4953 = vpop.permute.xlu0 %4952
  %4954 = vrot.lane.b32.xlu0 %v4095, 20
  %v4955 = vpop.permute.xlu0 %4954
  %4956 = vrot.lane.b32.xlu0 %v4097, 20
  %v4957 = vpop.permute.xlu0 %4956
  %4958 = vrot.lane.b32.xlu0 %v4099, 20
  %v4959 = vpop.permute.xlu0 %4958
  %4960 = vrot.lane.b32.xlu0 %v4101, 20
  %v4961 = vpop.permute.xlu0 %4960
  %4962 = vrot.lane.b32.xlu0 %v4103, 20
  %v4963 = vpop.permute.xlu0 %4962
  %4964 = vrot.lane.b32.xlu0 %v4105, 20
  %v4965 = vpop.permute.xlu0 %4964
  %4966 = vrot.lane.b32.xlu0 %v4107, 20
  %v4967 = vpop.permute.xlu0 %4966
  %4968 = vrot.lane.b32.xlu0 %v4109, 20
  %v4969 = vpop.permute.xlu0 %4968
  %4970 = vrot.lane.b32.xlu0 %v4111, 20
  %v4971 = vpop.permute.xlu0 %4970
  %4972 = vrot.lane.b32.xlu0 %v4113, 20
  %v4973 = vpop.permute.xlu0 %4972
  %4974 = vrot.lane.b32.xlu0 %v4115, 20
  %v4975 = vpop.permute.xlu0 %4974
  %4976 = vrot.lane.b32.xlu0 %v4117, 20
  %v4977 = vpop.permute.xlu0 %4976
  %4978 = vrot.lane.b32.xlu0 %v4119, 20
  %v4979 = vpop.permute.xlu0 %4978
  %4980 = vrot.lane.b32.xlu0 %v4121, 20
  %v4981 = vpop.permute.xlu0 %4980
  %4982 = vrot.lane.b32.xlu0 %v4123, 20
  %v4983 = vpop.permute.xlu0 %4982
  %4984 = vrot.lane.b32.xlu0 %v4125, 20
  %v4985 = vpop.permute.xlu0 %4984
  %4986 = vrot.lane.b32.xlu0 %v4127, 20
  %v4987 = vpop.permute.xlu0 %4986
  %4988 = vrot.lane.b32.xlu0 %v4129, 20
  %v4989 = vpop.permute.xlu0 %4988
  %4990 = vrot.lane.b32.xlu0 %v4849, 20
  %v4991 = vpop.permute.xlu0 %4990
  %4992 = vrot.lane.b32.xlu0 %v4851, 20
  %v4993 = vpop.permute.xlu0 %4992
  %5067 = vrot.lane.b32.xlu0 %v3123, 24
  %v5068 = vpop.permute.xlu0 %5067
  %5069 = vrot.lane.b32.xlu0 %v3124, 24
  %v5070 = vpop.permute.xlu0 %5069
  %5071 = vrot.lane.b32.xlu0 %v3125, 24
  %v5072 = vpop.permute.xlu0 %5071
  %5073 = vrot.lane.b32.xlu0 %v3126, 24
  %v5074 = vpop.permute.xlu0 %5073
  %5075 = vrot.lane.b32.xlu0 %v3127, 24
  %v5076 = vpop.permute.xlu0 %5075
  %5077 = vrot.lane.b32.xlu0 %v3128, 24
  %v5078 = vpop.permute.xlu0 %5077
  %5079 = vrot.lane.b32.xlu0 %v3129, 24
  %v5080 = vpop.permute.xlu0 %5079
  %5081 = vrot.lane.b32.xlu0 %v3130, 24
  %v5082 = vpop.permute.xlu0 %5081
  %5083 = vrot.lane.b32.xlu0 %v3131, 24
  %v5084 = vpop.permute.xlu0 %5083
  %5085 = vrot.lane.b32.xlu0 %v3132, 24
  %v5086 = vpop.permute.xlu0 %5085
  %5087 = vrot.lane.b32.xlu0 %v3133, 24
  %v5088 = vpop.permute.xlu0 %5087
  %5089 = vrot.lane.b32.xlu0 %v3134, 24
  %v5090 = vpop.permute.xlu0 %5089
  %5091 = vrot.lane.b32.xlu0 %v3135, 24
  %v5092 = vpop.permute.xlu0 %5091
  %5093 = vrot.lane.b32.xlu0 %v3136, 24
  %v5094 = vpop.permute.xlu0 %5093
  %5095 = vrot.lane.b32.xlu0 %v3137, 24
  %v5096 = vpop.permute.xlu0 %5095
  %5097 = vrot.lane.b32.xlu0 %v3138, 24
  %v5098 = vpop.permute.xlu0 %5097
  %5099 = vrot.lane.b32.xlu0 %v3139, 24
  %v5100 = vpop.permute.xlu0 %5099
  %5101 = vrot.lane.b32.xlu0 %v3140, 24
  %v5102 = vpop.permute.xlu0 %5101
  %5103 = vrot.lane.b32.xlu0 %v3141, 24
  %v5104 = vpop.permute.xlu0 %5103
  %5105 = vrot.lane.b32.xlu0 %v3142, 24
  %v5106 = vpop.permute.xlu0 %5105
  %5107 = vrot.lane.b32.xlu0 %v3143, 24
  %v5108 = vpop.permute.xlu0 %5107
  %5109 = vrot.lane.b32.xlu0 %v3144, 24
  %v5110 = vpop.permute.xlu0 %5109
  %5111 = vrot.lane.b32.xlu0 %v3145, 24
  %v5112 = vpop.permute.xlu0 %5111
  %5113 = vrot.lane.b32.xlu0 %v3146, 24
  %v5114 = vpop.permute.xlu0 %5113
  %5115 = vrot.lane.b32.xlu0 %v3147, 24
  %v5116 = vpop.permute.xlu0 %5115
  %5117 = vrot.lane.b32.xlu0 %v3148, 24
  %v5118 = vpop.permute.xlu0 %5117
  %5119 = vrot.lane.b32.xlu0 %v3149, 24
  %v5120 = vpop.permute.xlu0 %5119
  %5121 = vrot.lane.b32.xlu0 %v3150, 24
  %v5122 = vpop.permute.xlu0 %5121
  %5123 = vrot.lane.b32.xlu0 %v3151, 24
  %v5124 = vpop.permute.xlu0 %5123
  %5125 = vrot.lane.b32.xlu0 %v3152, 24
  %v5126 = vpop.permute.xlu0 %5125
  %5127 = vrot.lane.b32.xlu0 %v3153, 24
  %v5128 = vpop.permute.xlu0 %5127
  %5129 = vrot.lane.b32.xlu0 %v3154, 24
  %v5130 = vpop.permute.xlu0 %5129
  %5131 = vrot.lane.b32.xlu0 %v3155, 24
  %v5132 = vpop.permute.xlu0 %5131
  %5133 = vrot.lane.b32.xlu0 %v3156, 24
  %v5134 = vpop.permute.xlu0 %5133
  %5135 = vrot.lane.b32.xlu0 %v3157, 24
  %v5136 = vpop.permute.xlu0 %5135
  %5137 = vrot.lane.b32.xlu0 %v3158, 24
  %v5138 = vpop.permute.xlu0 %5137
  %5139 = vrot.lane.b32.xlu0 %v3159, 24
  %v5140 = vpop.permute.xlu0 %5139
  %5141 = vrot.lane.b32.xlu0 %v3160, 24
  %v5142 = vpop.permute.xlu0 %5141
  %5143 = vrot.lane.b32.xlu0 %v3161, 24
  %v5144 = vpop.permute.xlu0 %5143
  %5145 = vrot.lane.b32.xlu0 %v3162, 24
  %v5146 = vpop.permute.xlu0 %5145
  %5147 = vrot.lane.b32.xlu0 %v3163, 24
  %v5148 = vpop.permute.xlu0 %5147
  %5149 = vrot.lane.b32.xlu0 %v3164, 24
  %v5150 = vpop.permute.xlu0 %5149
  %5151 = vrot.lane.b32.xlu0 %v3165, 24
  %v5152 = vpop.permute.xlu0 %5151
  %5153 = vrot.lane.b32.xlu0 %v3166, 24
  %v5154 = vpop.permute.xlu0 %5153
  %5155 = vrot.lane.b32.xlu0 %v3167, 24
  %v5156 = vpop.permute.xlu0 %5155
  %5157 = vrot.lane.b32.xlu0 %v3168, 24
  %v5158 = vpop.permute.xlu0 %5157
  %5159 = vrot.lane.b32.xlu0 %v3169, 24
  %v5160 = vpop.permute.xlu0 %5159
  %5161 = vrot.lane.b32.xlu0 %v3170, 24
  %v5162 = vpop.permute.xlu0 %5161
  %5163 = vrot.lane.b32.xlu0 %v3171, 24
  %v5164 = vpop.permute.xlu0 %5163
  %5165 = vrot.lane.b32.xlu0 %v3172, 24
  %v5166 = vpop.permute.xlu0 %5165
  %5167 = vrot.lane.b32.xlu0 %v3173, 24
  %v5168 = vpop.permute.xlu0 %5167
  %5169 = vrot.lane.b32.xlu0 %v3174, 24
  %v5170 = vpop.permute.xlu0 %5169
  %5171 = vrot.lane.b32.xlu0 %v3175, 24
  %v5172 = vpop.permute.xlu0 %5171
  %5173 = vrot.lane.b32.xlu0 %v3176, 24
  %v5174 = vpop.permute.xlu0 %5173
  %5175 = vrot.lane.b32.xlu0 %v3177, 24
  %v5176 = vpop.permute.xlu0 %5175
  %5177 = vrot.lane.b32.xlu0 %v3178, 24
  %v5178 = vpop.permute.xlu0 %5177
  %5179 = vrot.lane.b32.xlu0 %v3179, 24
  %v5180 = vpop.permute.xlu0 %5179
  %5181 = vrot.lane.b32.xlu0 %v3180, 24
  %v5182 = vpop.permute.xlu0 %5181
  %5183 = vrot.lane.b32.xlu0 %v3181, 24
  %v5184 = vpop.permute.xlu0 %5183
  %5185 = vrot.lane.b32.xlu0 %v3182, 24
  %v5186 = vpop.permute.xlu0 %5185
  %5187 = vrot.lane.b32.xlu0 %v3183, 24
  %v5188 = vpop.permute.xlu0 %5187
  %5189 = vrot.lane.b32.xlu0 %v3184, 24
  %v5190 = vpop.permute.xlu0 %5189
  %5191 = vrot.lane.b32.xlu0 %v3185, 24
  %v5192 = vpop.permute.xlu0 %5191
  %5193 = vrot.lane.b32.xlu0 %v3186, 24
  %v5194 = vpop.permute.xlu0 %5193
  %5195 = vrot.lane.b32.xlu0 %v3187, 24
  %v5196 = vpop.permute.xlu0 %5195
  %5197 = vrot.lane.b32.xlu0 %v3188, 24
  %v5198 = vpop.permute.xlu0 %5197
  %5199 = vrot.lane.b32.xlu0 %v3189, 24
  %v5200 = vpop.permute.xlu0 %5199
  %5201 = vrot.lane.b32.xlu0 %v3190, 24
  %v5202 = vpop.permute.xlu0 %5201
  %5203 = vrot.lane.b32.xlu0 %v3191, 24
  %v5204 = vpop.permute.xlu0 %5203
  %5205 = vrot.lane.b32.xlu0 %v3192, 24
  %v5206 = vpop.permute.xlu0 %5205
  %5207 = vrot.lane.b32.xlu0 %v3193, 24
  %v5208 = vpop.permute.xlu0 %5207
  %v5282 = vrot.slane %v2891, 1
  %v5283 = vsel %vm3564, %v4631, %v5282
  %v5284 = vrot.slane %v2892, 1
  %v5285 = vsel %vm3564, %v5282, %v5284
  %5286 = vrot.lane.b32.xlu0 %v3572, 28
  %v5287 = vpop.permute.xlu0 %5286
  %5288 = vrot.lane.b32.xlu0 %v3575, 28
  %v5289 = vpop.permute.xlu0 %5288
  %5290 = vrot.lane.b32.xlu0 %v3577, 28
  %v5291 = vpop.permute.xlu0 %5290
  %5292 = vrot.lane.b32.xlu0 %v3579, 28
  %v5293 = vpop.permute.xlu0 %5292
  %5294 = vrot.lane.b32.xlu0 %v3581, 28
  %v5295 = vpop.permute.xlu0 %5294
  %5296 = vrot.lane.b32.xlu0 %v3583, 28
  %v5297 = vpop.permute.xlu0 %5296
  %5298 = vrot.lane.b32.xlu0 %v3585, 28
  %v5299 = vpop.permute.xlu0 %5298
  %5300 = vrot.lane.b32.xlu0 %v3587, 28
  %v5301 = vpop.permute.xlu0 %5300
  %5302 = vrot.lane.b32.xlu0 %v3589, 28
  %v5303 = vpop.permute.xlu0 %5302
  %5304 = vrot.lane.b32.xlu0 %v3591, 28
  %v5305 = vpop.permute.xlu0 %5304
  %5306 = vrot.lane.b32.xlu0 %v3593, 28
  %v5307 = vpop.permute.xlu0 %5306
  %5308 = vrot.lane.b32.xlu0 %v3595, 28
  %v5309 = vpop.permute.xlu0 %5308
  %5310 = vrot.lane.b32.xlu0 %v3597, 28
  %v5311 = vpop.permute.xlu0 %5310
  %5312 = vrot.lane.b32.xlu0 %v3599, 28
  %v5313 = vpop.permute.xlu0 %5312
  %5314 = vrot.lane.b32.xlu0 %v3601, 28
  %v5315 = vpop.permute.xlu0 %5314
  %5316 = vrot.lane.b32.xlu0 %v3603, 28
  %v5317 = vpop.permute.xlu0 %5316
  %5318 = vrot.lane.b32.xlu0 %v3605, 28
  %v5319 = vpop.permute.xlu0 %5318
  %5320 = vrot.lane.b32.xlu0 %v3607, 28
  %v5321 = vpop.permute.xlu0 %5320
  %5322 = vrot.lane.b32.xlu0 %v3609, 28
  %v5323 = vpop.permute.xlu0 %5322
  %5324 = vrot.lane.b32.xlu0 %v3611, 28
  %v5325 = vpop.permute.xlu0 %5324
  %5326 = vrot.lane.b32.xlu0 %v3613, 28
  %v5327 = vpop.permute.xlu0 %5326
  %5328 = vrot.lane.b32.xlu0 %v3615, 28
  %v5329 = vpop.permute.xlu0 %5328
  %5330 = vrot.lane.b32.xlu0 %v3617, 28
  %v5331 = vpop.permute.xlu0 %5330
  %5332 = vrot.lane.b32.xlu0 %v3619, 28
  %v5333 = vpop.permute.xlu0 %5332
  %5334 = vrot.lane.b32.xlu0 %v3621, 28
  %v5335 = vpop.permute.xlu0 %5334
  %5336 = vrot.lane.b32.xlu0 %v3623, 28
  %v5337 = vpop.permute.xlu0 %5336
  %5338 = vrot.lane.b32.xlu0 %v3625, 28
  %v5339 = vpop.permute.xlu0 %5338
  %5340 = vrot.lane.b32.xlu0 %v3627, 28
  %v5341 = vpop.permute.xlu0 %5340
  %5342 = vrot.lane.b32.xlu0 %v3629, 28
  %v5343 = vpop.permute.xlu0 %5342
  %5344 = vrot.lane.b32.xlu0 %v3631, 28
  %v5345 = vpop.permute.xlu0 %5344
  %5346 = vrot.lane.b32.xlu0 %v3633, 28
  %v5347 = vpop.permute.xlu0 %5346
  %5348 = vrot.lane.b32.xlu0 %v3635, 28
  %v5349 = vpop.permute.xlu0 %5348
  %5350 = vrot.lane.b32.xlu0 %v3637, 28
  %v5351 = vpop.permute.xlu0 %5350
  %5352 = vrot.lane.b32.xlu0 %v3639, 28
  %v5353 = vpop.permute.xlu0 %5352
  %5354 = vrot.lane.b32.xlu0 %v3641, 28
  %v5355 = vpop.permute.xlu0 %5354
  %5356 = vrot.lane.b32.xlu0 %v3643, 28
  %v5357 = vpop.permute.xlu0 %5356
  %5358 = vrot.lane.b32.xlu0 %v3645, 28
  %v5359 = vpop.permute.xlu0 %5358
  %5360 = vrot.lane.b32.xlu0 %v3647, 28
  %v5361 = vpop.permute.xlu0 %5360
  %5362 = vrot.lane.b32.xlu0 %v3649, 28
  %v5363 = vpop.permute.xlu0 %5362
  %5364 = vrot.lane.b32.xlu0 %v3651, 28
  %v5365 = vpop.permute.xlu0 %5364
  %5366 = vrot.lane.b32.xlu0 %v3653, 28
  %v5367 = vpop.permute.xlu0 %5366
  %5368 = vrot.lane.b32.xlu0 %v3655, 28
  %v5369 = vpop.permute.xlu0 %5368
  %5370 = vrot.lane.b32.xlu0 %v3657, 28
  %v5371 = vpop.permute.xlu0 %5370
  %5372 = vrot.lane.b32.xlu0 %v3659, 28
  %v5373 = vpop.permute.xlu0 %5372
  %5374 = vrot.lane.b32.xlu0 %v3661, 28
  %v5375 = vpop.permute.xlu0 %5374
  %5376 = vrot.lane.b32.xlu0 %v3663, 28
  %v5377 = vpop.permute.xlu0 %5376
  %5378 = vrot.lane.b32.xlu0 %v3665, 28
  %v5379 = vpop.permute.xlu0 %5378
  %5380 = vrot.lane.b32.xlu0 %v3667, 28
  %v5381 = vpop.permute.xlu0 %5380
  %5382 = vrot.lane.b32.xlu0 %v3669, 28
  %v5383 = vpop.permute.xlu0 %5382
  %5384 = vrot.lane.b32.xlu0 %v3671, 28
  %v5385 = vpop.permute.xlu0 %5384
  %5386 = vrot.lane.b32.xlu0 %v3673, 28
  %v5387 = vpop.permute.xlu0 %5386
  %5388 = vrot.lane.b32.xlu0 %v3675, 28
  %v5389 = vpop.permute.xlu0 %5388
  %5390 = vrot.lane.b32.xlu0 %v3677, 28
  %v5391 = vpop.permute.xlu0 %5390
  %5392 = vrot.lane.b32.xlu0 %v3679, 28
  %v5393 = vpop.permute.xlu0 %5392
  %5394 = vrot.lane.b32.xlu0 %v3681, 28
  %v5395 = vpop.permute.xlu0 %5394
  %5396 = vrot.lane.b32.xlu0 %v3683, 28
  %v5397 = vpop.permute.xlu0 %5396
  %5398 = vrot.lane.b32.xlu0 %v3685, 28
  %v5399 = vpop.permute.xlu0 %5398
  %5400 = vrot.lane.b32.xlu0 %v3687, 28
  %v5401 = vpop.permute.xlu0 %5400
  %5402 = vrot.lane.b32.xlu0 %v3689, 28
  %v5403 = vpop.permute.xlu0 %5402
  %5404 = vrot.lane.b32.xlu0 %v3691, 28
  %v5405 = vpop.permute.xlu0 %5404
  %5406 = vrot.lane.b32.xlu0 %v3693, 28
  %v5407 = vpop.permute.xlu0 %5406
  %5408 = vrot.lane.b32.xlu0 %v3695, 28
  %v5409 = vpop.permute.xlu0 %5408
  %5410 = vrot.lane.b32.xlu0 %v3697, 28
  %v5411 = vpop.permute.xlu0 %5410
  %5412 = vrot.lane.b32.xlu0 %v3699, 28
  %v5413 = vpop.permute.xlu0 %5412
  %5414 = vrot.lane.b32.xlu0 %v3701, 28
  %v5415 = vpop.permute.xlu0 %5414
  %5416 = vrot.lane.b32.xlu0 %v3703, 28
  %v5417 = vpop.permute.xlu0 %5416
  %5418 = vrot.lane.b32.xlu0 %v4630, 28
  %v5419 = vpop.permute.xlu0 %5418
  %5420 = vrot.lane.b32.xlu0 %v4632, 28
  %v5421 = vpop.permute.xlu0 %5420
  %5422 = vrot.lane.b32.xlu0 %v5283, 28
  %v5423 = vpop.permute.xlu0 %5422
  %5424 = vrot.lane.b32.xlu0 %v5285, 28
  %v5425 = vpop.permute.xlu0 %5424
  %5426 = vrot.lane.b32.xlu0 %v5284, 28
  %v5427 = vpop.permute.xlu0 %5426
  %v5501 = vrot.slane %v3492, 2
  %v5502 = vsel %vm3988, %v4850, %v5501
  %v5503 = vrot.slane %v3493, 2
  %v5504 = vsel %vm3988, %v5501, %v5503
  %5505 = vrot.lane.b32.xlu0 %v3996, 32
  %v5506 = vpop.permute.xlu0 %5505
  %5507 = vrot.lane.b32.xlu0 %v3999, 32
  %v5508 = vpop.permute.xlu0 %5507
  %5509 = vrot.lane.b32.xlu0 %v4001, 32
  %v5510 = vpop.permute.xlu0 %5509
  %5511 = vrot.lane.b32.xlu0 %v4003, 32
  %v5512 = vpop.permute.xlu0 %5511
  %5513 = vrot.lane.b32.xlu0 %v4005, 32
  %v5514 = vpop.permute.xlu0 %5513
  %5515 = vrot.lane.b32.xlu0 %v4007, 32
  %v5516 = vpop.permute.xlu0 %5515
  %5517 = vrot.lane.b32.xlu0 %v4009, 32
  %v5518 = vpop.permute.xlu0 %5517
  %5519 = vrot.lane.b32.xlu0 %v4011, 32
  %v5520 = vpop.permute.xlu0 %5519
  %5521 = vrot.lane.b32.xlu0 %v4013, 32
  %v5522 = vpop.permute.xlu0 %5521
  %5523 = vrot.lane.b32.xlu0 %v4015, 32
  %v5524 = vpop.permute.xlu0 %5523
  %5525 = vrot.lane.b32.xlu0 %v4017, 32
  %v5526 = vpop.permute.xlu0 %5525
  %5527 = vrot.lane.b32.xlu0 %v4019, 32
  %v5528 = vpop.permute.xlu0 %5527
  %5529 = vrot.lane.b32.xlu0 %v4021, 32
  %v5530 = vpop.permute.xlu0 %5529
  %5531 = vrot.lane.b32.xlu0 %v4023, 32
  %v5532 = vpop.permute.xlu0 %5531
  %5533 = vrot.lane.b32.xlu0 %v4025, 32
  %v5534 = vpop.permute.xlu0 %5533
  %5535 = vrot.lane.b32.xlu0 %v4027, 32
  %v5536 = vpop.permute.xlu0 %5535
  %5537 = vrot.lane.b32.xlu0 %v4029, 32
  %v5538 = vpop.permute.xlu0 %5537
  %5539 = vrot.lane.b32.xlu0 %v4031, 32
  %v5540 = vpop.permute.xlu0 %5539
  %5541 = vrot.lane.b32.xlu0 %v4033, 32
  %v5542 = vpop.permute.xlu0 %5541
  %5543 = vrot.lane.b32.xlu0 %v4035, 32
  %v5544 = vpop.permute.xlu0 %5543
  %5545 = vrot.lane.b32.xlu0 %v4037, 32
  %v5546 = vpop.permute.xlu0 %5545
  %5547 = vrot.lane.b32.xlu0 %v4039, 32
  %v5548 = vpop.permute.xlu0 %5547
  %5549 = vrot.lane.b32.xlu0 %v4041, 32
  %v5550 = vpop.permute.xlu0 %5549
  %5551 = vrot.lane.b32.xlu0 %v4043, 32
  %v5552 = vpop.permute.xlu0 %5551
  %5553 = vrot.lane.b32.xlu0 %v4045, 32
  %v5554 = vpop.permute.xlu0 %5553
  %5555 = vrot.lane.b32.xlu0 %v4047, 32
  %v5556 = vpop.permute.xlu0 %5555
  %5557 = vrot.lane.b32.xlu0 %v4049, 32
  %v5558 = vpop.permute.xlu0 %5557
  %5559 = vrot.lane.b32.xlu0 %v4051, 32
  %v5560 = vpop.permute.xlu0 %5559
  %5561 = vrot.lane.b32.xlu0 %v4053, 32
  %v5562 = vpop.permute.xlu0 %5561
  %5563 = vrot.lane.b32.xlu0 %v4055, 32
  %v5564 = vpop.permute.xlu0 %5563
  %5565 = vrot.lane.b32.xlu0 %v4057, 32
  %v5566 = vpop.permute.xlu0 %5565
  %5567 = vrot.lane.b32.xlu0 %v4059, 32
  %v5568 = vpop.permute.xlu0 %5567
  %5569 = vrot.lane.b32.xlu0 %v4061, 32
  %v5570 = vpop.permute.xlu0 %5569
  %5571 = vrot.lane.b32.xlu0 %v4063, 32
  %v5572 = vpop.permute.xlu0 %5571
  %5573 = vrot.lane.b32.xlu0 %v4065, 32
  %v5574 = vpop.permute.xlu0 %5573
  %5575 = vrot.lane.b32.xlu0 %v4067, 32
  %v5576 = vpop.permute.xlu0 %5575
  %5577 = vrot.lane.b32.xlu0 %v4069, 32
  %v5578 = vpop.permute.xlu0 %5577
  %5579 = vrot.lane.b32.xlu0 %v4071, 32
  %v5580 = vpop.permute.xlu0 %5579
  %5581 = vrot.lane.b32.xlu0 %v4073, 32
  %v5582 = vpop.permute.xlu0 %5581
  %5583 = vrot.lane.b32.xlu0 %v4075, 32
  %v5584 = vpop.permute.xlu0 %5583
  %5585 = vrot.lane.b32.xlu0 %v4077, 32
  %v5586 = vpop.permute.xlu0 %5585
  %5587 = vrot.lane.b32.xlu0 %v4079, 32
  %v5588 = vpop.permute.xlu0 %5587
  %5589 = vrot.lane.b32.xlu0 %v4081, 32
  %v5590 = vpop.permute.xlu0 %5589
  %5591 = vrot.lane.b32.xlu0 %v4083, 32
  %v5592 = vpop.permute.xlu0 %5591
  %5593 = vrot.lane.b32.xlu0 %v4085, 32
  %v5594 = vpop.permute.xlu0 %5593
  %5595 = vrot.lane.b32.xlu0 %v4087, 32
  %v5596 = vpop.permute.xlu0 %5595
  %5597 = vrot.lane.b32.xlu0 %v4089, 32
  %v5598 = vpop.permute.xlu0 %5597
  %5599 = vrot.lane.b32.xlu0 %v4091, 32
  %v5600 = vpop.permute.xlu0 %5599
  %5601 = vrot.lane.b32.xlu0 %v4093, 32
  %v5602 = vpop.permute.xlu0 %5601
  %5603 = vrot.lane.b32.xlu0 %v4095, 32
  %v5604 = vpop.permute.xlu0 %5603
  %5605 = vrot.lane.b32.xlu0 %v4097, 32
  %v5606 = vpop.permute.xlu0 %5605
  %5607 = vrot.lane.b32.xlu0 %v4099, 32
  %v5608 = vpop.permute.xlu0 %5607
  %5609 = vrot.lane.b32.xlu0 %v4101, 32
  %v5610 = vpop.permute.xlu0 %5609
  %5611 = vrot.lane.b32.xlu0 %v4103, 32
  %v5612 = vpop.permute.xlu0 %5611
  %5613 = vrot.lane.b32.xlu0 %v4105, 32
  %v5614 = vpop.permute.xlu0 %5613
  %5615 = vrot.lane.b32.xlu0 %v4107, 32
  %v5616 = vpop.permute.xlu0 %5615
  %5617 = vrot.lane.b32.xlu0 %v4109, 32
  %v5618 = vpop.permute.xlu0 %5617
  %5619 = vrot.lane.b32.xlu0 %v4111, 32
  %v5620 = vpop.permute.xlu0 %5619
  %5621 = vrot.lane.b32.xlu0 %v4113, 32
  %v5622 = vpop.permute.xlu0 %5621
  %5623 = vrot.lane.b32.xlu0 %v4115, 32
  %v5624 = vpop.permute.xlu0 %5623
  %5625 = vrot.lane.b32.xlu0 %v4117, 32
  %v5626 = vpop.permute.xlu0 %5625
  %5627 = vrot.lane.b32.xlu0 %v4119, 32
  %v5628 = vpop.permute.xlu0 %5627
  %5629 = vrot.lane.b32.xlu0 %v4121, 32
  %v5630 = vpop.permute.xlu0 %5629
  %5631 = vrot.lane.b32.xlu0 %v4123, 32
  %v5632 = vpop.permute.xlu0 %5631
  %5633 = vrot.lane.b32.xlu0 %v4125, 32
  %v5634 = vpop.permute.xlu0 %5633
  %5635 = vrot.lane.b32.xlu0 %v4127, 32
  %v5636 = vpop.permute.xlu0 %5635
  %5637 = vrot.lane.b32.xlu0 %v4129, 32
  %v5638 = vpop.permute.xlu0 %5637
  %5639 = vrot.lane.b32.xlu0 %v4849, 32
  %v5640 = vpop.permute.xlu0 %5639
  %5641 = vrot.lane.b32.xlu0 %v4851, 32
  %v5642 = vpop.permute.xlu0 %5641
  %5643 = vrot.lane.b32.xlu0 %v5502, 32
  %v5644 = vpop.permute.xlu0 %5643
  %5645 = vrot.lane.b32.xlu0 %v5504, 32
  %v5646 = vpop.permute.xlu0 %5645
  %v5718 = vsel %vm26, %v3119, %v3705
  %v5719 = vsel %vm26, %v3120, %v3707
  %v5720 = vsel %vm26, %v3121, %v3709
  %v5721 = vsel %vm26, %v3122, %v3711
  %v5722 = vsel %vm26, %v3123, %v3713
  %v5723 = vsel %vm26, %v3124, %v3715
  %v5724 = vsel %vm26, %v3125, %v3717
  %v5725 = vsel %vm26, %v3126, %v3719
  %v5726 = vsel %vm26, %v3127, %v3721
  %v5727 = vsel %vm26, %v3128, %v3723
  %v5728 = vsel %vm26, %v3129, %v3725
  %v5729 = vsel %vm26, %v3130, %v3727
  %v5730 = vsel %vm26, %v3131, %v3729
  %v5731 = vsel %vm26, %v3132, %v3731
  %v5732 = vsel %vm26, %v3133, %v3733
  %v5733 = vsel %vm26, %v3134, %v3735
  %v5734 = vsel %vm26, %v3135, %v3737
  %v5735 = vsel %vm26, %v3136, %v3739
  %v5736 = vsel %vm26, %v3137, %v3741
  %v5737 = vsel %vm26, %v3138, %v3743
  %v5738 = vsel %vm26, %v3139, %v3745
  %v5739 = vsel %vm26, %v3140, %v3747
  %v5740 = vsel %vm26, %v3141, %v3749
  %v5741 = vsel %vm26, %v3142, %v3751
  %v5742 = vsel %vm26, %v3143, %v3753
  %v5743 = vsel %vm26, %v3144, %v3755
  %v5744 = vsel %vm26, %v3145, %v3757
  %v5745 = vsel %vm26, %v3146, %v3759
  %v5746 = vsel %vm26, %v3147, %v3761
  %v5747 = vsel %vm26, %v3148, %v3763
  %v5748 = vsel %vm26, %v3149, %v3765
  %v5749 = vsel %vm26, %v3150, %v3767
  %v5750 = vsel %vm26, %v3151, %v3769
  %v5751 = vsel %vm26, %v3152, %v3771
  %v5752 = vsel %vm26, %v3153, %v3773
  %v5753 = vsel %vm26, %v3154, %v3775
  %v5754 = vsel %vm26, %v3155, %v3777
  %v5755 = vsel %vm26, %v3156, %v3779
  %v5756 = vsel %vm26, %v3157, %v3781
  %v5757 = vsel %vm26, %v3158, %v3783
  %v5758 = vsel %vm26, %v3159, %v3785
  %v5759 = vsel %vm26, %v3160, %v3787
  %v5760 = vsel %vm26, %v3161, %v3789
  %v5761 = vsel %vm26, %v3162, %v3791
  %v5762 = vsel %vm26, %v3163, %v3793
  %v5763 = vsel %vm26, %v3164, %v3795
  %v5764 = vsel %vm26, %v3165, %v3797
  %v5765 = vsel %vm26, %v3166, %v3799
  %v5766 = vsel %vm26, %v3167, %v3801
  %v5767 = vsel %vm26, %v3168, %v3803
  %v5768 = vsel %vm26, %v3169, %v3805
  %v5769 = vsel %vm26, %v3170, %v3807
  %v5770 = vsel %vm26, %v3171, %v3809
  %v5771 = vsel %vm26, %v3172, %v3811
  %v5772 = vsel %vm26, %v3173, %v3813
  %v5773 = vsel %vm26, %v3174, %v3815
  %v5774 = vsel %vm26, %v3175, %v3817
  %v5775 = vsel %vm26, %v3176, %v3819
  %v5776 = vsel %vm26, %v3177, %v3821
  %v5777 = vsel %vm26, %v3178, %v3823
  %v5778 = vsel %vm26, %v3179, %v3825
  %v5779 = vsel %vm26, %v3180, %v3827
  %v5780 = vsel %vm26, %v3181, %v3829
  %v5781 = vsel %vm26, %v3182, %v3831
  %v5782 = vsel %vm26, %v3183, %v3833
  %v5783 = vsel %vm26, %v3184, %v3835
  %v5784 = vsel %vm26, %v3185, %v3837
  %v5785 = vsel %vm26, %v3186, %v3839
  %v5786 = vsel %vm26, %v3187, %v3841
  %v5787 = vsel %vm26, %v3188, %v3843
  %v5788 = vsel %vm26, %v3189, %v3845
  %v5789 = vsel %vm103, %v5718, %v4131
  %v5790 = vsel %vm103, %v5719, %v4133
  %v5791 = vsel %vm103, %v5720, %v4135
  %v5792 = vsel %vm103, %v5721, %v4137
  %v5793 = vsel %vm103, %v5722, %v4139
  %v5794 = vsel %vm103, %v5723, %v4141
  %v5795 = vsel %vm103, %v5724, %v4143
  %v5796 = vsel %vm103, %v5725, %v4145
  %v5797 = vsel %vm103, %v5726, %v4147
  %v5798 = vsel %vm103, %v5727, %v4149
  %v5799 = vsel %vm103, %v5728, %v4151
  %v5800 = vsel %vm103, %v5729, %v4153
  %v5801 = vsel %vm103, %v5730, %v4155
  %v5802 = vsel %vm103, %v5731, %v4157
  %v5803 = vsel %vm103, %v5732, %v4159
  %v5804 = vsel %vm103, %v5733, %v4161
  %v5805 = vsel %vm103, %v5734, %v4163
  %v5806 = vsel %vm103, %v5735, %v4165
  %v5807 = vsel %vm103, %v5736, %v4167
  %v5808 = vsel %vm103, %v5737, %v4169
  %v5809 = vsel %vm103, %v5738, %v4171
  %v5810 = vsel %vm103, %v5739, %v4173
  %v5811 = vsel %vm103, %v5740, %v4175
  %v5812 = vsel %vm103, %v5741, %v4177
  %v5813 = vsel %vm103, %v5742, %v4179
  %v5814 = vsel %vm103, %v5743, %v4181
  %v5815 = vsel %vm103, %v5744, %v4183
  %v5816 = vsel %vm103, %v5745, %v4185
  %v5817 = vsel %vm103, %v5746, %v4187
  %v5818 = vsel %vm103, %v5747, %v4189
  %v5819 = vsel %vm103, %v5748, %v4191
  %v5820 = vsel %vm103, %v5749, %v4193
  %v5821 = vsel %vm103, %v5750, %v4195
  %v5822 = vsel %vm103, %v5751, %v4197
  %v5823 = vsel %vm103, %v5752, %v4199
  %v5824 = vsel %vm103, %v5753, %v4201
  %v5825 = vsel %vm103, %v5754, %v4203
  %v5826 = vsel %vm103, %v5755, %v4205
  %v5827 = vsel %vm103, %v5756, %v4207
  %v5828 = vsel %vm103, %v5757, %v4209
  %v5829 = vsel %vm103, %v5758, %v4211
  %v5830 = vsel %vm103, %v5759, %v4213
  %v5831 = vsel %vm103, %v5760, %v4215
  %v5832 = vsel %vm103, %v5761, %v4217
  %v5833 = vsel %vm103, %v5762, %v4219
  %v5834 = vsel %vm103, %v5763, %v4221
  %v5835 = vsel %vm103, %v5764, %v4223
  %v5836 = vsel %vm103, %v5765, %v4225
  %v5837 = vsel %vm103, %v5766, %v4227
  %v5838 = vsel %vm103, %v5767, %v4229
  %v5839 = vsel %vm103, %v5768, %v4231
  %v5840 = vsel %vm103, %v5769, %v4233
  %v5841 = vsel %vm103, %v5770, %v4235
  %v5842 = vsel %vm103, %v5771, %v4237
  %v5843 = vsel %vm103, %v5772, %v4239
  %v5844 = vsel %vm103, %v5773, %v4241
  %v5845 = vsel %vm103, %v5774, %v4243
  %v5846 = vsel %vm103, %v5775, %v4245
  %v5847 = vsel %vm103, %v5776, %v4247
  %v5848 = vsel %vm103, %v5777, %v4249
  %v5849 = vsel %vm103, %v5778, %v4251
  %v5850 = vsel %vm103, %v5779, %v4253
  %v5851 = vsel %vm103, %v5780, %v4255
  %v5852 = vsel %vm103, %v5781, %v4257
  %v5853 = vsel %vm103, %v5782, %v4259
  %v5854 = vsel %vm103, %v5783, %v4261
  %v5855 = vsel %vm103, %v5784, %v4263
  %v5856 = vsel %vm103, %v5785, %v4265
  %v5857 = vsel %vm103, %v5786, %v4267
  %v5858 = vsel %vm103, %v5787, %v4269
  %v5859 = vsel %vm103, %v5788, %v4271
  %vm5860 = vcmask 97280
  %v5861 = vsel %vm5860, %v5789, %v4415
  %v5862 = vsel %vm5860, %v5790, %v4417
  %v5863 = vsel %vm5860, %v5791, %v4419
  %v5864 = vsel %vm5860, %v5792, %v4421
  %v5865 = vsel %vm5860, %v5793, %v4423
  %v5866 = vsel %vm5860, %v5794, %v4425
  %v5867 = vsel %vm5860, %v5795, %v4427
  %v5868 = vsel %vm5860, %v5796, %v4429
  %v5869 = vsel %vm5860, %v5797, %v4431
  %v5870 = vsel %vm5860, %v5798, %v4433
  %v5871 = vsel %vm5860, %v5799, %v4435
  %v5872 = vsel %vm5860, %v5800, %v4437
  %v5873 = vsel %vm5860, %v5801, %v4439
  %v5874 = vsel %vm5860, %v5802, %v4441
  %v5875 = vsel %vm5860, %v5803, %v4443
  %v5876 = vsel %vm5860, %v5804, %v4445
  %v5877 = vsel %vm5860, %v5805, %v4447
  %v5878 = vsel %vm5860, %v5806, %v4449
  %v5879 = vsel %vm5860, %v5807, %v4451
  %v5880 = vsel %vm5860, %v5808, %v4453
  %v5881 = vsel %vm5860, %v5809, %v4455
  %v5882 = vsel %vm5860, %v5810, %v4457
  %v5883 = vsel %vm5860, %v5811, %v4459
  %v5884 = vsel %vm5860, %v5812, %v4461
  %v5885 = vsel %vm5860, %v5813, %v4463
  %v5886 = vsel %vm5860, %v5814, %v4465
  %v5887 = vsel %vm5860, %v5815, %v4467
  %v5888 = vsel %vm5860, %v5816, %v4469
  %v5889 = vsel %vm5860, %v5817, %v4471
  %v5890 = vsel %vm5860, %v5818, %v4473
  %v5891 = vsel %vm5860, %v5819, %v4475
  %v5892 = vsel %vm5860, %v5820, %v4477
  %v5893 = vsel %vm5860, %v5821, %v4479
  %v5894 = vsel %vm5860, %v5822, %v4481
  %v5895 = vsel %vm5860, %v5823, %v4483
  %v5896 = vsel %vm5860, %v5824, %v4485
  %v5897 = vsel %vm5860, %v5825, %v4487
  %v5898 = vsel %vm5860, %v5826, %v4489
  %v5899 = vsel %vm5860, %v5827, %v4491
  %v5900 = vsel %vm5860, %v5828, %v4493
  %v5901 = vsel %vm5860, %v5829, %v4495
  %v5902 = vsel %vm5860, %v5830, %v4497
  %v5903 = vsel %vm5860, %v5831, %v4499
  %v5904 = vsel %vm5860, %v5832, %v4501
  %v5905 = vsel %vm5860, %v5833, %v4503
  %v5906 = vsel %vm5860, %v5834, %v4505
  %v5907 = vsel %vm5860, %v5835, %v4507
  %v5908 = vsel %vm5860, %v5836, %v4509
  %v5909 = vsel %vm5860, %v5837, %v4511
  %v5910 = vsel %vm5860, %v5838, %v4513
  %v5911 = vsel %vm5860, %v5839, %v4515
  %v5912 = vsel %vm5860, %v5840, %v4517
  %v5913 = vsel %vm5860, %v5841, %v4519
  %v5914 = vsel %vm5860, %v5842, %v4521
  %v5915 = vsel %vm5860, %v5843, %v4523
  %v5916 = vsel %vm5860, %v5844, %v4525
  %v5917 = vsel %vm5860, %v5845, %v4527
  %v5918 = vsel %vm5860, %v5846, %v4529
  %v5919 = vsel %vm5860, %v5847, %v4531
  %v5920 = vsel %vm5860, %v5848, %v4533
  %v5921 = vsel %vm5860, %v5849, %v4535
  %v5922 = vsel %vm5860, %v5850, %v4537
  %v5923 = vsel %vm5860, %v5851, %v4539
  %v5924 = vsel %vm5860, %v5852, %v4541
  %v5925 = vsel %vm5860, %v5853, %v4543
  %v5926 = vsel %vm5860, %v5854, %v4545
  %v5927 = vsel %vm5860, %v5855, %v4547
  %v5928 = vsel %vm5860, %v5856, %v4549
  %v5929 = vsel %vm5860, %v5857, %v4551
  %v5930 = vsel %vm5860, %v5858, %v4553
  %v5931 = vsel %vm5860, %v5859, %v4555
  %vm5932 = vcmask 130048
  %v5933 = vsel %vm5932, %v5861, %v4634
  %v5934 = vsel %vm5932, %v5862, %v4636
  %v5935 = vsel %vm5932, %v5863, %v4638
  %v5936 = vsel %vm5932, %v5864, %v4640
  %v5937 = vsel %vm5932, %v5865, %v4642
  %v5938 = vsel %vm5932, %v5866, %v4644
  %v5939 = vsel %vm5932, %v5867, %v4646
  %v5940 = vsel %vm5932, %v5868, %v4648
  %v5941 = vsel %vm5932, %v5869, %v4650
  %v5942 = vsel %vm5932, %v5870, %v4652
  %v5943 = vsel %vm5932, %v5871, %v4654
  %v5944 = vsel %vm5932, %v5872, %v4656
  %v5945 = vsel %vm5932, %v5873, %v4658
  %v5946 = vsel %vm5932, %v5874, %v4660
  %v5947 = vsel %vm5932, %v5875, %v4662
  %v5948 = vsel %vm5932, %v5876, %v4664
  %v5949 = vsel %vm5932, %v5877, %v4666
  %v5950 = vsel %vm5932, %v5878, %v4668
  %v5951 = vsel %vm5932, %v5879, %v4670
  %v5952 = vsel %vm5932, %v5880, %v4672
  %v5953 = vsel %vm5932, %v5881, %v4674
  %v5954 = vsel %vm5932, %v5882, %v4676
  %v5955 = vsel %vm5932, %v5883, %v4678
  %v5956 = vsel %vm5932, %v5884, %v4680
  %v5957 = vsel %vm5932, %v5885, %v4682
  %v5958 = vsel %vm5932, %v5886, %v4684
  %v5959 = vsel %vm5932, %v5887, %v4686
  %v5960 = vsel %vm5932, %v5888, %v4688
  %v5961 = vsel %vm5932, %v5889, %v4690
  %v5962 = vsel %vm5932, %v5890, %v4692
  %v5963 = vsel %vm5932, %v5891, %v4694
  %v5964 = vsel %vm5932, %v5892, %v4696
  %v5965 = vsel %vm5932, %v5893, %v4698
  %v5966 = vsel %vm5932, %v5894, %v4700
  %v5967 = vsel %vm5932, %v5895, %v4702
  %v5968 = vsel %vm5932, %v5896, %v4704
  %v5969 = vsel %vm5932, %v5897, %v4706
  %v5970 = vsel %vm5932, %v5898, %v4708
  %v5971 = vsel %vm5932, %v5899, %v4710
  %v5972 = vsel %vm5932, %v5900, %v4712
  %v5973 = vsel %vm5932, %v5901, %v4714
  %v5974 = vsel %vm5932, %v5902, %v4716
  %v5975 = vsel %vm5932, %v5903, %v4718
  %v5976 = vsel %vm5932, %v5904, %v4720
  %v5977 = vsel %vm5932, %v5905, %v4722
  %v5978 = vsel %vm5932, %v5906, %v4724
  %v5979 = vsel %vm5932, %v5907, %v4726
  %v5980 = vsel %vm5932, %v5908, %v4728
  %v5981 = vsel %vm5932, %v5909, %v4730
  %v5982 = vsel %vm5932, %v5910, %v4732
  %v5983 = vsel %vm5932, %v5911, %v4734
  %v5984 = vsel %vm5932, %v5912, %v4736
  %v5985 = vsel %vm5932, %v5913, %v4738
  %v5986 = vsel %vm5932, %v5914, %v4740
  %v5987 = vsel %vm5932, %v5915, %v4742
  %v5988 = vsel %vm5932, %v5916, %v4744
  %v5989 = vsel %vm5932, %v5917, %v4746
  %v5990 = vsel %vm5932, %v5918, %v4748
  %v5991 = vsel %vm5932, %v5919, %v4750
  %v5992 = vsel %vm5932, %v5920, %v4752
  %v5993 = vsel %vm5932, %v5921, %v4754
  %v5994 = vsel %vm5932, %v5922, %v4756
  %v5995 = vsel %vm5932, %v5923, %v4758
  %v5996 = vsel %vm5932, %v5924, %v4760
  %v5997 = vsel %vm5932, %v5925, %v4762
  %v5998 = vsel %vm5932, %v5926, %v4764
  %v5999 = vsel %vm5932, %v5927, %v4766
  %v6000 = vsel %vm5932, %v5928, %v4768
  %v6001 = vsel %vm5932, %v5929, %v4770
  %v6002 = vsel %vm5932, %v5930, %v4772
  %v6003 = vsel %vm5932, %v5931, %v4774
  %vm6004 = vcmask 162816
  %v6005 = vsel %vm6004, %v5933, %v4853
  %v6006 = vsel %vm6004, %v5934, %v4855
  %v6007 = vsel %vm6004, %v5935, %v4857
  %v6008 = vsel %vm6004, %v5936, %v4859
  %v6009 = vsel %vm6004, %v5937, %v4861
  %v6010 = vsel %vm6004, %v5938, %v4863
  %v6011 = vsel %vm6004, %v5939, %v4865
  %v6012 = vsel %vm6004, %v5940, %v4867
  %v6013 = vsel %vm6004, %v5941, %v4869
  %v6014 = vsel %vm6004, %v5942, %v4871
  %v6015 = vsel %vm6004, %v5943, %v4873
  %v6016 = vsel %vm6004, %v5944, %v4875
  %v6017 = vsel %vm6004, %v5945, %v4877
  %v6018 = vsel %vm6004, %v5946, %v4879
  %v6019 = vsel %vm6004, %v5947, %v4881
  %v6020 = vsel %vm6004, %v5948, %v4883
  %v6021 = vsel %vm6004, %v5949, %v4885
  %v6022 = vsel %vm6004, %v5950, %v4887
  %v6023 = vsel %vm6004, %v5951, %v4889
  %v6024 = vsel %vm6004, %v5952, %v4891
  %v6025 = vsel %vm6004, %v5953, %v4893
  %v6026 = vsel %vm6004, %v5954, %v4895
  %v6027 = vsel %vm6004, %v5955, %v4897
  %v6028 = vsel %vm6004, %v5956, %v4899
  %v6029 = vsel %vm6004, %v5957, %v4901
  %v6030 = vsel %vm6004, %v5958, %v4903
  %v6031 = vsel %vm6004, %v5959, %v4905
  %v6032 = vsel %vm6004, %v5960, %v4907
  %v6033 = vsel %vm6004, %v5961, %v4909
  %v6034 = vsel %vm6004, %v5962, %v4911
  %v6035 = vsel %vm6004, %v5963, %v4913
  %v6036 = vsel %vm6004, %v5964, %v4915
  %v6037 = vsel %vm6004, %v5965, %v4917
  %v6038 = vsel %vm6004, %v5966, %v4919
  %v6039 = vsel %vm6004, %v5967, %v4921
  %v6040 = vsel %vm6004, %v5968, %v4923
  %v6041 = vsel %vm6004, %v5969, %v4925
  %v6042 = vsel %vm6004, %v5970, %v4927
  %v6043 = vsel %vm6004, %v5971, %v4929
  %v6044 = vsel %vm6004, %v5972, %v4931
  %v6045 = vsel %vm6004, %v5973, %v4933
  %v6046 = vsel %vm6004, %v5974, %v4935
  %v6047 = vsel %vm6004, %v5975, %v4937
  %v6048 = vsel %vm6004, %v5976, %v4939
  %v6049 = vsel %vm6004, %v5977, %v4941
  %v6050 = vsel %vm6004, %v5978, %v4943
  %v6051 = vsel %vm6004, %v5979, %v4945
  %v6052 = vsel %vm6004, %v5980, %v4947
  %v6053 = vsel %vm6004, %v5981, %v4949
  %v6054 = vsel %vm6004, %v5982, %v4951
  %v6055 = vsel %vm6004, %v5983, %v4953
  %v6056 = vsel %vm6004, %v5984, %v4955
  %v6057 = vsel %vm6004, %v5985, %v4957
  %v6058 = vsel %vm6004, %v5986, %v4959
  %v6059 = vsel %vm6004, %v5987, %v4961
  %v6060 = vsel %vm6004, %v5988, %v4963
  %v6061 = vsel %vm6004, %v5989, %v4965
  %v6062 = vsel %vm6004, %v5990, %v4967
  %v6063 = vsel %vm6004, %v5991, %v4969
  %v6064 = vsel %vm6004, %v5992, %v4971
  %v6065 = vsel %vm6004, %v5993, %v4973
  %v6066 = vsel %vm6004, %v5994, %v4975
  %v6067 = vsel %vm6004, %v5995, %v4977
  %v6068 = vsel %vm6004, %v5996, %v4979
  %v6069 = vsel %vm6004, %v5997, %v4981
  %v6070 = vsel %vm6004, %v5998, %v4983
  %v6071 = vsel %vm6004, %v5999, %v4985
  %v6072 = vsel %vm6004, %v6000, %v4987
  %v6073 = vsel %vm6004, %v6001, %v4989
  %v6074 = vsel %vm6004, %v6002, %v4991
  %v6075 = vsel %vm6004, %v6003, %v4993
  %vm6076 = vcmask 195584
  %v6077 = vsel %vm6076, %v6005, %v5068
  %v6078 = vsel %vm6076, %v6006, %v5070
  %v6079 = vsel %vm6076, %v6007, %v5072
  %v6080 = vsel %vm6076, %v6008, %v5074
  %v6081 = vsel %vm6076, %v6009, %v5076
  %v6082 = vsel %vm6076, %v6010, %v5078
  %v6083 = vsel %vm6076, %v6011, %v5080
  %v6084 = vsel %vm6076, %v6012, %v5082
  %v6085 = vsel %vm6076, %v6013, %v5084
  %v6086 = vsel %vm6076, %v6014, %v5086
  %v6087 = vsel %vm6076, %v6015, %v5088
  %v6088 = vsel %vm6076, %v6016, %v5090
  %v6089 = vsel %vm6076, %v6017, %v5092
  %v6090 = vsel %vm6076, %v6018, %v5094
  %v6091 = vsel %vm6076, %v6019, %v5096
  %v6092 = vsel %vm6076, %v6020, %v5098
  %v6093 = vsel %vm6076, %v6021, %v5100
  %v6094 = vsel %vm6076, %v6022, %v5102
  %v6095 = vsel %vm6076, %v6023, %v5104
  %v6096 = vsel %vm6076, %v6024, %v5106
  %v6097 = vsel %vm6076, %v6025, %v5108
  %v6098 = vsel %vm6076, %v6026, %v5110
  %v6099 = vsel %vm6076, %v6027, %v5112
  %v6100 = vsel %vm6076, %v6028, %v5114
  %v6101 = vsel %vm6076, %v6029, %v5116
  %v6102 = vsel %vm6076, %v6030, %v5118
  %v6103 = vsel %vm6076, %v6031, %v5120
  %v6104 = vsel %vm6076, %v6032, %v5122
  %v6105 = vsel %vm6076, %v6033, %v5124
  %v6106 = vsel %vm6076, %v6034, %v5126
  %v6107 = vsel %vm6076, %v6035, %v5128
  %v6108 = vsel %vm6076, %v6036, %v5130
  %v6109 = vsel %vm6076, %v6037, %v5132
  %v6110 = vsel %vm6076, %v6038, %v5134
  %v6111 = vsel %vm6076, %v6039, %v5136
  %v6112 = vsel %vm6076, %v6040, %v5138
  %v6113 = vsel %vm6076, %v6041, %v5140
  %v6114 = vsel %vm6076, %v6042, %v5142
  %v6115 = vsel %vm6076, %v6043, %v5144
  %v6116 = vsel %vm6076, %v6044, %v5146
  %v6117 = vsel %vm6076, %v6045, %v5148
  %v6118 = vsel %vm6076, %v6046, %v5150
  %v6119 = vsel %vm6076, %v6047, %v5152
  %v6120 = vsel %vm6076, %v6048, %v5154
  %v6121 = vsel %vm6076, %v6049, %v5156
  %v6122 = vsel %vm6076, %v6050, %v5158
  %v6123 = vsel %vm6076, %v6051, %v5160
  %v6124 = vsel %vm6076, %v6052, %v5162
  %v6125 = vsel %vm6076, %v6053, %v5164
  %v6126 = vsel %vm6076, %v6054, %v5166
  %v6127 = vsel %vm6076, %v6055, %v5168
  %v6128 = vsel %vm6076, %v6056, %v5170
  %v6129 = vsel %vm6076, %v6057, %v5172
  %v6130 = vsel %vm6076, %v6058, %v5174
  %v6131 = vsel %vm6076, %v6059, %v5176
  %v6132 = vsel %vm6076, %v6060, %v5178
  %v6133 = vsel %vm6076, %v6061, %v5180
  %v6134 = vsel %vm6076, %v6062, %v5182
  %v6135 = vsel %vm6076, %v6063, %v5184
  %v6136 = vsel %vm6076, %v6064, %v5186
  %v6137 = vsel %vm6076, %v6065, %v5188
  %v6138 = vsel %vm6076, %v6066, %v5190
  %v6139 = vsel %vm6076, %v6067, %v5192
  %v6140 = vsel %vm6076, %v6068, %v5194
  %v6141 = vsel %vm6076, %v6069, %v5196
  %v6142 = vsel %vm6076, %v6070, %v5198
  %v6143 = vsel %vm6076, %v6071, %v5200
  %v6144 = vsel %vm6076, %v6072, %v5202
  %v6145 = vsel %vm6076, %v6073, %v5204
  %v6146 = vsel %vm6076, %v6074, %v5206
  %v6147 = vsel %vm6076, %v6075, %v5208
  %vm6148 = vcmask 228352
  %v6149 = vsel %vm6148, %v6077, %v5287
  %v6150 = vsel %vm6148, %v6078, %v5289
  %v6151 = vsel %vm6148, %v6079, %v5291
  %v6152 = vsel %vm6148, %v6080, %v5293
  %v6153 = vsel %vm6148, %v6081, %v5295
  %v6154 = vsel %vm6148, %v6082, %v5297
  %v6155 = vsel %vm6148, %v6083, %v5299
  %v6156 = vsel %vm6148, %v6084, %v5301
  %v6157 = vsel %vm6148, %v6085, %v5303
  %v6158 = vsel %vm6148, %v6086, %v5305
  %v6159 = vsel %vm6148, %v6087, %v5307
  %v6160 = vsel %vm6148, %v6088, %v5309
  %v6161 = vsel %vm6148, %v6089, %v5311
  %v6162 = vsel %vm6148, %v6090, %v5313
  %v6163 = vsel %vm6148, %v6091, %v5315
  %v6164 = vsel %vm6148, %v6092, %v5317
  %v6165 = vsel %vm6148, %v6093, %v5319
  %v6166 = vsel %vm6148, %v6094, %v5321
  %v6167 = vsel %vm6148, %v6095, %v5323
  %v6168 = vsel %vm6148, %v6096, %v5325
  %v6169 = vsel %vm6148, %v6097, %v5327
  %v6170 = vsel %vm6148, %v6098, %v5329
  %v6171 = vsel %vm6148, %v6099, %v5331
  %v6172 = vsel %vm6148, %v6100, %v5333
  %v6173 = vsel %vm6148, %v6101, %v5335
  %v6174 = vsel %vm6148, %v6102, %v5337
  %v6175 = vsel %vm6148, %v6103, %v5339
  %v6176 = vsel %vm6148, %v6104, %v5341
  %v6177 = vsel %vm6148, %v6105, %v5343
  %v6178 = vsel %vm6148, %v6106, %v5345
  %v6179 = vsel %vm6148, %v6107, %v5347
  %v6180 = vsel %vm6148, %v6108, %v5349
  %v6181 = vsel %vm6148, %v6109, %v5351
  %v6182 = vsel %vm6148, %v6110, %v5353
  %v6183 = vsel %vm6148, %v6111, %v5355
  %v6184 = vsel %vm6148, %v6112, %v5357
  %v6185 = vsel %vm6148, %v6113, %v5359
  %v6186 = vsel %vm6148, %v6114, %v5361
  %v6187 = vsel %vm6148, %v6115, %v5363
  %v6188 = vsel %vm6148, %v6116, %v5365
  %v6189 = vsel %vm6148, %v6117, %v5367
  %v6190 = vsel %vm6148, %v6118, %v5369
  %v6191 = vsel %vm6148, %v6119, %v5371
  %v6192 = vsel %vm6148, %v6120, %v5373
  %v6193 = vsel %vm6148, %v6121, %v5375
  %v6194 = vsel %vm6148, %v6122, %v5377
  %v6195 = vsel %vm6148, %v6123, %v5379
  %v6196 = vsel %vm6148, %v6124, %v5381
  %v6197 = vsel %vm6148, %v6125, %v5383
  %v6198 = vsel %vm6148, %v6126, %v5385
  %v6199 = vsel %vm6148, %v6127, %v5387
  %v6200 = vsel %vm6148, %v6128, %v5389
  %v6201 = vsel %vm6148, %v6129, %v5391
  %v6202 = vsel %vm6148, %v6130, %v5393
  %v6203 = vsel %vm6148, %v6131, %v5395
  %v6204 = vsel %vm6148, %v6132, %v5397
  %v6205 = vsel %vm6148, %v6133, %v5399
  %v6206 = vsel %vm6148, %v6134, %v5401
  %v6207 = vsel %vm6148, %v6135, %v5403
  %v6208 = vsel %vm6148, %v6136, %v5405
  %v6209 = vsel %vm6148, %v6137, %v5407
  %v6210 = vsel %vm6148, %v6138, %v5409
  %v6211 = vsel %vm6148, %v6139, %v5411
  %v6212 = vsel %vm6148, %v6140, %v5413
  %v6213 = vsel %vm6148, %v6141, %v5415
  %v6214 = vsel %vm6148, %v6142, %v5417
  %v6215 = vsel %vm6148, %v6143, %v5419
  %v6216 = vsel %vm6148, %v6144, %v5421
  %v6217 = vsel %vm6148, %v6145, %v5423
  %v6218 = vsel %vm6148, %v6146, %v5425
  %v6219 = vsel %vm6148, %v6147, %v5427
  %vm6220 = vcmask 261120
  %v6221 = vsel %vm6220, %v6149, %v5506
  %v6222 = vsel %vm6220, %v6150, %v5508
  %v6223 = vsel %vm6220, %v6151, %v5510
  %v6224 = vsel %vm6220, %v6152, %v5512
  %v6225 = vsel %vm6220, %v6153, %v5514
  %v6226 = vsel %vm6220, %v6154, %v5516
  %v6227 = vsel %vm6220, %v6155, %v5518
  %v6228 = vsel %vm6220, %v6156, %v5520
  %v6229 = vsel %vm6220, %v6157, %v5522
  %v6230 = vsel %vm6220, %v6158, %v5524
  %v6231 = vsel %vm6220, %v6159, %v5526
  %v6232 = vsel %vm6220, %v6160, %v5528
  %v6233 = vsel %vm6220, %v6161, %v5530
  %v6234 = vsel %vm6220, %v6162, %v5532
  %v6235 = vsel %vm6220, %v6163, %v5534
  %v6236 = vsel %vm6220, %v6164, %v5536
  %v6237 = vsel %vm6220, %v6165, %v5538
  %v6238 = vsel %vm6220, %v6166, %v5540
  %v6239 = vsel %vm6220, %v6167, %v5542
  %v6240 = vsel %vm6220, %v6168, %v5544
  %v6241 = vsel %vm6220, %v6169, %v5546
  %v6242 = vsel %vm6220, %v6170, %v5548
  %v6243 = vsel %vm6220, %v6171, %v5550
  %v6244 = vsel %vm6220, %v6172, %v5552
  %v6245 = vsel %vm6220, %v6173, %v5554
  %v6246 = vsel %vm6220, %v6174, %v5556
  %v6247 = vsel %vm6220, %v6175, %v5558
  %v6248 = vsel %vm6220, %v6176, %v5560
  %v6249 = vsel %vm6220, %v6177, %v5562
  %v6250 = vsel %vm6220, %v6178, %v5564
  %v6251 = vsel %vm6220, %v6179, %v5566
  %v6252 = vsel %vm6220, %v6180, %v5568
  %v6253 = vsel %vm6220, %v6181, %v5570
  %v6254 = vsel %vm6220, %v6182, %v5572
  %v6255 = vsel %vm6220, %v6183, %v5574
  %v6256 = vsel %vm6220, %v6184, %v5576
  %v6257 = vsel %vm6220, %v6185, %v5578
  %v6258 = vsel %vm6220, %v6186, %v5580
  %v6259 = vsel %vm6220, %v6187, %v5582
  %v6260 = vsel %vm6220, %v6188, %v5584
  %v6261 = vsel %vm6220, %v6189, %v5586
  %v6262 = vsel %vm6220, %v6190, %v5588
  %v6263 = vsel %vm6220, %v6191, %v5590
  %v6264 = vsel %vm6220, %v6192, %v5592
  %v6265 = vsel %vm6220, %v6193, %v5594
  %v6266 = vsel %vm6220, %v6194, %v5596
  %v6267 = vsel %vm6220, %v6195, %v5598
  %v6268 = vsel %vm6220, %v6196, %v5600
  %v6269 = vsel %vm6220, %v6197, %v5602
  %v6270 = vsel %vm6220, %v6198, %v5604
  %v6271 = vsel %vm6220, %v6199, %v5606
  %v6272 = vsel %vm6220, %v6200, %v5608
  %v6273 = vsel %vm6220, %v6201, %v5610
  %v6274 = vsel %vm6220, %v6202, %v5612
  %v6275 = vsel %vm6220, %v6203, %v5614
  %v6276 = vsel %vm6220, %v6204, %v5616
  %v6277 = vsel %vm6220, %v6205, %v5618
  %v6278 = vsel %vm6220, %v6206, %v5620
  %v6279 = vsel %vm6220, %v6207, %v5622
  %v6280 = vsel %vm6220, %v6208, %v5624
  %v6281 = vsel %vm6220, %v6209, %v5626
  %v6282 = vsel %vm6220, %v6210, %v5628
  %v6283 = vsel %vm6220, %v6211, %v5630
  %v6284 = vsel %vm6220, %v6212, %v5632
  %v6285 = vsel %vm6220, %v6213, %v5634
  %v6286 = vsel %vm6220, %v6214, %v5636
  %v6287 = vsel %vm6220, %v6215, %v5638
  %v6288 = vsel %vm6220, %v6216, %v5640
  %v6289 = vsel %vm6220, %v6217, %v5642
  %v6290 = vsel %vm6220, %v6218, %v5644
  %v6291 = vsel %vm6220, %v6219, %v5646
  %v6292 = vld [vmem:[%s1] sm:$0xff]
  %v6293 = vld [vmem:[%s1 + $0x8] sm:$0xff]
  %v6294 = vld [vmem:[%s1 + $0x10] sm:$0xff]
  %v6295 = vld [vmem:[%s1 + $0x18] sm:$0xff]
  %v6296 = vld [vmem:[%s1 + $0x20] sm:$0xf]
  %vm6368 = vcmask 1040384
  %v6369 = vrot.slane %v6221, 7
  %v6370 = vrot.slane %v6222, 7
  %v6371 = vsel %vm6368, %v6369, %v6370
  %v6372 = vrot.slane %v6223, 7
  %v6373 = vsel %vm6368, %v6370, %v6372
  %v6374 = vrot.slane %v6224, 7
  %v6375 = vsel %vm6368, %v6372, %v6374
  %v6376 = vrot.slane %v6225, 7
  %v6377 = vsel %vm6368, %v6374, %v6376
  %v6378 = vrot.slane %v6226, 7
  %v6379 = vsel %vm6368, %v6376, %v6378
  %v6380 = vrot.slane %v6227, 7
  %v6381 = vsel %vm6368, %v6378, %v6380
  %v6382 = vrot.slane %v6228, 7
  %v6383 = vsel %vm6368, %v6380, %v6382
  %v6384 = vrot.slane %v6229, 7
  %v6385 = vsel %vm6368, %v6382, %v6384
  %v6386 = vrot.slane %v6230, 7
  %v6387 = vsel %vm6368, %v6384, %v6386
  %v6388 = vrot.slane %v6231, 7
  %v6389 = vsel %vm6368, %v6386, %v6388
  %v6390 = vrot.slane %v6232, 7
  %v6391 = vsel %vm6368, %v6388, %v6390
  %v6392 = vrot.slane %v6233, 7
  %v6393 = vsel %vm6368, %v6390, %v6392
  %v6394 = vrot.slane %v6234, 7
  %v6395 = vsel %vm6368, %v6392, %v6394
  %v6396 = vrot.slane %v6235, 7
  %v6397 = vsel %vm6368, %v6394, %v6396
  %v6398 = vrot.slane %v6236, 7
  %v6399 = vsel %vm6368, %v6396, %v6398
  %v6400 = vrot.slane %v6237, 7
  %v6401 = vsel %vm6368, %v6398, %v6400
  %v6402 = vrot.slane %v6238, 7
  %v6403 = vsel %vm6368, %v6400, %v6402
  %v6404 = vrot.slane %v6239, 7
  %v6405 = vsel %vm6368, %v6402, %v6404
  %v6406 = vrot.slane %v6240, 7
  %v6407 = vsel %vm6368, %v6404, %v6406
  %v6408 = vrot.slane %v6241, 7
  %v6409 = vsel %vm6368, %v6406, %v6408
  %v6410 = vrot.slane %v6242, 7
  %v6411 = vsel %vm6368, %v6408, %v6410
  %v6412 = vrot.slane %v6243, 7
  %v6413 = vsel %vm6368, %v6410, %v6412
  %v6414 = vrot.slane %v6244, 7
  %v6415 = vsel %vm6368, %v6412, %v6414
  %v6416 = vrot.slane %v6245, 7
  %v6417 = vsel %vm6368, %v6414, %v6416
  %v6418 = vrot.slane %v6246, 7
  %v6419 = vsel %vm6368, %v6416, %v6418
  %v6420 = vrot.slane %v6247, 7
  %v6421 = vsel %vm6368, %v6418, %v6420
  %v6422 = vrot.slane %v6248, 7
  %v6423 = vsel %vm6368, %v6420, %v6422
  %v6424 = vrot.slane %v6249, 7
  %v6425 = vsel %vm6368, %v6422, %v6424
  %v6426 = vrot.slane %v6250, 7
  %v6427 = vsel %vm6368, %v6424, %v6426
  %v6428 = vrot.slane %v6251, 7
  %v6429 = vsel %vm6368, %v6426, %v6428
  %v6430 = vrot.slane %v6252, 7
  %v6431 = vsel %vm6368, %v6428, %v6430
  %v6432 = vrot.slane %v6253, 7
  %v6433 = vsel %vm6368, %v6430, %v6432
  %v6434 = vrot.slane %v6254, 7
  %v6435 = vsel %vm6368, %v6432, %v6434
  %v6436 = vrot.slane %v6255, 7
  %v6437 = vsel %vm6368, %v6434, %v6436
  %v6438 = vrot.slane %v6256, 7
  %v6439 = vsel %vm6368, %v6436, %v6438
  %v6440 = vrot.slane %v6257, 7
  %v6441 = vsel %vm6368, %v6438, %v6440
  %v6442 = vrot.slane %v6258, 7
  %v6443 = vsel %vm6368, %v6440, %v6442
  %v6444 = vrot.slane %v6259, 7
  %v6445 = vsel %vm6368, %v6442, %v6444
  %v6446 = vrot.slane %v6260, 7
  %v6447 = vsel %vm6368, %v6444, %v6446
  %v6448 = vrot.slane %v6261, 7
  %v6449 = vsel %vm6368, %v6446, %v6448
  %v6450 = vrot.slane %v6262, 7
  %v6451 = vsel %vm6368, %v6448, %v6450
  %v6452 = vrot.slane %v6263, 7
  %v6453 = vsel %vm6368, %v6450, %v6452
  %v6454 = vrot.slane %v6264, 7
  %v6455 = vsel %vm6368, %v6452, %v6454
  %v6456 = vrot.slane %v6265, 7
  %v6457 = vsel %vm6368, %v6454, %v6456
  %v6458 = vrot.slane %v6266, 7
  %v6459 = vsel %vm6368, %v6456, %v6458
  %v6460 = vrot.slane %v6267, 7
  %v6461 = vsel %vm6368, %v6458, %v6460
  %v6462 = vrot.slane %v6268, 7
  %v6463 = vsel %vm6368, %v6460, %v6462
  %v6464 = vrot.slane %v6269, 7
  %v6465 = vsel %vm6368, %v6462, %v6464
  %v6466 = vrot.slane %v6270, 7
  %v6467 = vsel %vm6368, %v6464, %v6466
  %v6468 = vrot.slane %v6271, 7
  %v6469 = vsel %vm6368, %v6466, %v6468
  %v6470 = vrot.slane %v6272, 7
  %v6471 = vsel %vm6368, %v6468, %v6470
  %v6472 = vrot.slane %v6273, 7
  %v6473 = vsel %vm6368, %v6470, %v6472
  %v6474 = vrot.slane %v6274, 7
  %v6475 = vsel %vm6368, %v6472, %v6474
  %v6476 = vrot.slane %v6275, 7
  %v6477 = vsel %vm6368, %v6474, %v6476
  %v6478 = vrot.slane %v6276, 7
  %v6479 = vsel %vm6368, %v6476, %v6478
  %v6480 = vrot.slane %v6277, 7
  %v6481 = vsel %vm6368, %v6478, %v6480
  %v6482 = vrot.slane %v6278, 7
  %v6483 = vsel %vm6368, %v6480, %v6482
  %v6484 = vrot.slane %v6279, 7
  %v6485 = vsel %vm6368, %v6482, %v6484
  %v6486 = vrot.slane %v6280, 7
  %v6487 = vsel %vm6368, %v6484, %v6486
  %v6488 = vrot.slane %v6281, 7
  %v6489 = vsel %vm6368, %v6486, %v6488
  %v6490 = vrot.slane %v6282, 7
  %v6491 = vsel %vm6368, %v6488, %v6490
  %v6492 = vrot.slane %v6283, 7
  %v6493 = vsel %vm6368, %v6490, %v6492
  %v6494 = vrot.slane %v6284, 7
  %v6495 = vsel %vm6368, %v6492, %v6494
  %v6496 = vrot.slane %v6285, 7
  %v6497 = vsel %vm6368, %v6494, %v6496
  %v6498 = vrot.slane %v6286, 7
  %v6499 = vsel %vm6368, %v6496, %v6498
  %v6500 = vrot.slane %v6287, 7
  %v6501 = vsel %vm6368, %v6498, %v6500
  %v6502 = vrot.slane %v6288, 7
  %v6503 = vsel %vm6368, %v6500, %v6502
  %v6504 = vrot.slane %v6289, 7
  %v6505 = vsel %vm6368, %v6502, %v6504
  %v6506 = vrot.slane %v6290, 7
  %v6507 = vsel %vm6368, %v6504, %v6506
  %v6508 = vrot.slane %v6291, 7
  %v6509 = vsel %vm6368, %v6506, %v6508
  %vm6510 = vcmask 293888
  %v6511 = vsel %vm6510, %v6371, 0
  %v6513 = vsel %vm6510, %v6373, 0
  %v6515 = vsel %vm6510, %v6375, 0
  %v6517 = vsel %vm6510, %v6377, 0
  %v6519 = vsel %vm6510, %v6379, 0
  %v6521 = vsel %vm6510, %v6381, 0
  %v6523 = vsel %vm6510, %v6383, 0
  %v6525 = vsel %vm6510, %v6385, 0
  %v6527 = vsel %vm6510, %v6387, 0
  %v6529 = vsel %vm6510, %v6389, 0
  %v6531 = vsel %vm6510, %v6391, 0
  %v6533 = vsel %vm6510, %v6393, 0
  %v6535 = vsel %vm6510, %v6395, 0
  %v6537 = vsel %vm6510, %v6397, 0
  %v6539 = vsel %vm6510, %v6399, 0
  %v6541 = vsel %vm6510, %v6401, 0
  %v6543 = vsel %vm6510, %v6403, 0
  %v6545 = vsel %vm6510, %v6405, 0
  %v6547 = vsel %vm6510, %v6407, 0
  %v6549 = vsel %vm6510, %v6409, 0
  %v6551 = vsel %vm6510, %v6411, 0
  %v6553 = vsel %vm6510, %v6413, 0
  %v6555 = vsel %vm6510, %v6415, 0
  %v6557 = vsel %vm6510, %v6417, 0
  %v6559 = vsel %vm6510, %v6419, 0
  %v6561 = vsel %vm6510, %v6421, 0
  %v6563 = vsel %vm6510, %v6423, 0
  %v6565 = vsel %vm6510, %v6425, 0
  %v6567 = vsel %vm6510, %v6427, 0
  %v6569 = vsel %vm6510, %v6429, 0
  %v6571 = vsel %vm6510, %v6431, 0
  %v6573 = vsel %vm6510, %v6433, 0
  %v6575 = vsel %vm6510, %v6435, 0
  %v6577 = vsel %vm6510, %v6437, 0
  %v6579 = vsel %vm6510, %v6439, 0
  %v6581 = vsel %vm6510, %v6441, 0
  %v6583 = vsel %vm6510, %v6443, 0
  %v6585 = vsel %vm6510, %v6445, 0
  %v6587 = vsel %vm6510, %v6447, 0
  %v6589 = vsel %vm6510, %v6449, 0
  %v6591 = vsel %vm6510, %v6451, 0
  %v6593 = vsel %vm6510, %v6453, 0
  %v6595 = vsel %vm6510, %v6455, 0
  %v6597 = vsel %vm6510, %v6457, 0
  %v6599 = vsel %vm6510, %v6459, 0
  %v6601 = vsel %vm6510, %v6461, 0
  %v6603 = vsel %vm6510, %v6463, 0
  %v6605 = vsel %vm6510, %v6465, 0
  %v6607 = vsel %vm6510, %v6467, 0
  %v6609 = vsel %vm6510, %v6469, 0
  %v6611 = vsel %vm6510, %v6471, 0
  %v6613 = vsel %vm6510, %v6473, 0
  %v6615 = vsel %vm6510, %v6475, 0
  %v6617 = vsel %vm6510, %v6477, 0
  %v6619 = vsel %vm6510, %v6479, 0
  %v6621 = vsel %vm6510, %v6481, 0
  %v6623 = vsel %vm6510, %v6483, 0
  %v6625 = vsel %vm6510, %v6485, 0
  %v6627 = vsel %vm6510, %v6487, 0
  %v6629 = vsel %vm6510, %v6489, 0
  %v6631 = vsel %vm6510, %v6491, 0
  %v6633 = vsel %vm6510, %v6493, 0
  %v6635 = vsel %vm6510, %v6495, 0
  %v6637 = vsel %vm6510, %v6497, 0
  %v6639 = vsel %vm6510, %v6499, 0
  %v6641 = vsel %vm6510, %v6501, 0
  %v6643 = vsel %vm6510, %v6503, 0
  %v6645 = vsel %vm6510, %v6505, 0
  %v6647 = vsel %vm6510, %v6507, 0
  %v6649 = vsel %vm6510, %v6509, 0
  %vm6651 = vcmask 1043456
  %v6653 = vsel %vm6651, %v6296, 0
  %6655 = vmatprep.subr.mxu0 0.0
  %6656 = vmatpush1.msra.mxu0 0.0
  %6657 = vmatprep.subr.mxu0 0.0
  %6658 = vmatpush1.msra.mxu0 0.0
  %6659 = vmatprep.subr.mxu0 0.0
  %6660 = vmatpush1.msra.mxu0 0.0
  %6661 = vmatprep.subr.mxu0 0.0
  %6662 = vmatpush1.msra.mxu0 0.0
  %6663 = vmatprep.subr.mxu0 0.0
  %6664 = vmatpush1.msra.mxu0 0.0
  %6665 = vmatprep.subr.mxu0 0.0
  %6666 = vmatpush1.msra.mxu0 0.0
  %6667 = vmatprep.subr.mxu0 0.0
  %6668 = vmatpush1.msra.mxu0 0.0
  %6669 = vmatprep.subr.mxu0 0.0
  %6670 = vmatpush1.msra.mxu0 0.0
  %6671 = vmatprep.subr.mxu0 0.0
  %6672 = vmatpush1.msra.mxu0 0.0
  %6673 = vmatprep.subr.mxu0 0.0
  %6674 = vmatpush1.msra.mxu0 0.0
  %6675 = vmatprep.subr.mxu0 0.0
  %6676 = vmatpush1.msra.mxu0 0.0
  %6677 = vmatprep.subr.mxu0 0.0
  %6678 = vmatpush1.msra.mxu0 %v6653
  %6679 = vmatprep.subr.mxu0 0.0
  %6680 = vmatpush1.msra.mxu0 %v6295
  %6681 = vmatprep.subr.mxu0 0.0
  %6682 = vmatpush1.msra.mxu0 %v6294
  %6683 = vmatprep.subr.mxu0 0.0
  %6684 = vmatpush1.msra.mxu0 %v6293
  %6685 = vmatprep.subr.mxu0 0.0
  %6686 = vmatpush1.msra.mxu0 %v6292
  %6687 = vmatprep.subr.mxu0 0.0
  %6688 = vmatpush2.msra.mxu0 0.0
  %6689 = vmatprep.subr.mxu0 0.0
  %6690 = vmatpush2.msra.mxu0 0.0
  %6691 = vmatprep.subr.mxu0 0.0
  %6692 = vmatpush2.msra.mxu0 0.0
  %6693 = vmatprep.subr.mxu0 0.0
  %6694 = vmatpush2.msra.mxu0 0.0
  %6695 = vmatprep.subr.mxu0 0.0
  %6696 = vmatpush2.msra.mxu0 0.0
  %6697 = vmatprep.subr.mxu0 0.0
  %6698 = vmatpush2.msra.mxu0 0.0
  %6699 = vmatprep.subr.mxu0 0.0
  %6700 = vmatpush2.msra.mxu0 0.0
  %6701 = vmatprep.subr.mxu0 0.0
  %6702 = vmatpush2.msra.mxu0 0.0
  %6703 = vmatprep.subr.mxu0 0.0
  %6704 = vmatpush2.msra.mxu0 0.0
  %6705 = vmatprep.subr.mxu0 0.0
  %6706 = vmatpush2.msra.mxu0 0.0
  %6707 = vmatprep.subr.mxu0 0.0
  %6708 = vmatpush2.msra.mxu0 0.0
  %6709 = vmatprep.subr.mxu0 0.0
  %6710 = vmatpush2.msra.mxu0 0.0
  %6711 = vmatprep.subr.mxu0 0.0
  %6712 = vmatpush2.msra.mxu0 0.0
  %6713 = vmatprep.subr.mxu0 0.0
  %6714 = vmatpush2.msra.mxu0 0.0
  %6715 = vmatprep.subr.mxu0 0.0
  %6716 = vmatpush2.msra.mxu0 0.0
  %6717 = vmatprep.subr.mxu0 0.0
  %6718 = vmatpush2.msra.mxu0 0.0
  %6719 = vmatprep.mubr.f32.mxu0 0.0
  %6720 = vmatmul.mubr.f32.gmra.mxu0 %v6511
  %v6721 = vpop.f32.mrf.mxu0
  %v6722 = vadd.f32 0.0, %v6721
  %v6723 = vpop.f32.mrf.mxu0
  %6724 = vmatprep.mubr.f32.mxu0 0.0
  %6725 = vmatmul.mubr.f32.gmra.mxu0 %v6513
  %v6726 = vpop.f32.mrf.mxu0
  %v6727 = vadd.f32 0.0, %v6726
  %v6728 = vpop.f32.mrf.mxu0
  %6729 = vmatprep.mubr.f32.mxu0 0.0
  %6730 = vmatmul.mubr.f32.gmra.mxu0 %v6515
  %v6731 = vpop.f32.mrf.mxu0
  %v6732 = vadd.f32 0.0, %v6731
  %v6733 = vpop.f32.mrf.mxu0
  %6734 = vmatprep.mubr.f32.mxu0 0.0
  %6735 = vmatmul.mubr.f32.gmra.mxu0 %v6517
  %v6736 = vpop.f32.mrf.mxu0
  %v6737 = vadd.f32 0.0, %v6736
  %v6738 = vpop.f32.mrf.mxu0
  %6739 = vmatprep.mubr.f32.mxu0 0.0
  %6740 = vmatmul.mubr.f32.gmra.mxu0 %v6519
  %v6741 = vpop.f32.mrf.mxu0
  %v6742 = vadd.f32 0.0, %v6741
  %v6743 = vpop.f32.mrf.mxu0
  %6744 = vmatprep.mubr.f32.mxu0 0.0
  %6745 = vmatmul.mubr.f32.gmra.mxu0 %v6521
  %v6746 = vpop.f32.mrf.mxu0
  %v6747 = vadd.f32 0.0, %v6746
  %v6748 = vpop.f32.mrf.mxu0
  %6749 = vmatprep.mubr.f32.mxu0 0.0
  %6750 = vmatmul.mubr.f32.gmra.mxu0 %v6523
  %v6751 = vpop.f32.mrf.mxu0
  %v6752 = vadd.f32 0.0, %v6751
  %v6753 = vpop.f32.mrf.mxu0
  %6754 = vmatprep.mubr.f32.mxu0 0.0
  %6755 = vmatmul.mubr.f32.gmra.mxu0 %v6525
  %v6756 = vpop.f32.mrf.mxu0
  %v6757 = vadd.f32 0.0, %v6756
  %v6758 = vpop.f32.mrf.mxu0
  %6759 = vmatprep.mubr.f32.mxu0 0.0
  %6760 = vmatmul.mubr.f32.gmra.mxu0 %v6527
  %v6761 = vpop.f32.mrf.mxu0
  %v6762 = vadd.f32 0.0, %v6761
  %v6763 = vpop.f32.mrf.mxu0
  %6764 = vmatprep.mubr.f32.mxu0 0.0
  %6765 = vmatmul.mubr.f32.gmra.mxu0 %v6529
  %v6766 = vpop.f32.mrf.mxu0
  %v6767 = vadd.f32 0.0, %v6766
  %v6768 = vpop.f32.mrf.mxu0
  %6769 = vmatprep.mubr.f32.mxu0 0.0
  %6770 = vmatmul.mubr.f32.gmra.mxu0 %v6531
  %v6771 = vpop.f32.mrf.mxu0
  %v6772 = vadd.f32 0.0, %v6771
  %v6773 = vpop.f32.mrf.mxu0
  %6774 = vmatprep.mubr.f32.mxu0 0.0
  %6775 = vmatmul.mubr.f32.gmra.mxu0 %v6533
  %v6776 = vpop.f32.mrf.mxu0
  %v6777 = vadd.f32 0.0, %v6776
  %v6778 = vpop.f32.mrf.mxu0
  %6779 = vmatprep.mubr.f32.mxu0 0.0
  %6780 = vmatmul.mubr.f32.gmra.mxu0 %v6535
  %v6781 = vpop.f32.mrf.mxu0
  %v6782 = vadd.f32 0.0, %v6781
  %v6783 = vpop.f32.mrf.mxu0
  %6784 = vmatprep.mubr.f32.mxu0 0.0
  %6785 = vmatmul.mubr.f32.gmra.mxu0 %v6537
  %v6786 = vpop.f32.mrf.mxu0
  %v6787 = vadd.f32 0.0, %v6786
  %v6788 = vpop.f32.mrf.mxu0
  %6789 = vmatprep.mubr.f32.mxu0 0.0
  %6790 = vmatmul.mubr.f32.gmra.mxu0 %v6539
  %v6791 = vpop.f32.mrf.mxu0
  %v6792 = vadd.f32 0.0, %v6791
  %v6793 = vpop.f32.mrf.mxu0
  %6794 = vmatprep.mubr.f32.mxu0 0.0
  %6795 = vmatmul.mubr.f32.gmra.mxu0 %v6541
  %v6796 = vpop.f32.mrf.mxu0
  %v6797 = vadd.f32 0.0, %v6796
  %v6798 = vpop.f32.mrf.mxu0
  %6799 = vmatprep.mubr.f32.mxu0 0.0
  %6800 = vmatmul.mubr.f32.gmra.mxu0 %v6543
  %v6801 = vpop.f32.mrf.mxu0
  %v6802 = vadd.f32 0.0, %v6801
  %v6803 = vpop.f32.mrf.mxu0
  %6804 = vmatprep.mubr.f32.mxu0 0.0
  %6805 = vmatmul.mubr.f32.gmra.mxu0 %v6545
  %v6806 = vpop.f32.mrf.mxu0
  %v6807 = vadd.f32 0.0, %v6806
  %v6808 = vpop.f32.mrf.mxu0
  %6809 = vmatprep.mubr.f32.mxu0 0.0
  %6810 = vmatmul.mubr.f32.gmra.mxu0 %v6547
  %v6811 = vpop.f32.mrf.mxu0
  %v6812 = vadd.f32 0.0, %v6811
  %v6813 = vpop.f32.mrf.mxu0
  %6814 = vmatprep.mubr.f32.mxu0 0.0
  %6815 = vmatmul.mubr.f32.gmra.mxu0 %v6549
  %v6816 = vpop.f32.mrf.mxu0
  %v6817 = vadd.f32 0.0, %v6816
  %v6818 = vpop.f32.mrf.mxu0
  %6819 = vmatprep.mubr.f32.mxu0 0.0
  %6820 = vmatmul.mubr.f32.gmra.mxu0 %v6551
  %v6821 = vpop.f32.mrf.mxu0
  %v6822 = vadd.f32 0.0, %v6821
  %v6823 = vpop.f32.mrf.mxu0
  %6824 = vmatprep.mubr.f32.mxu0 0.0
  %6825 = vmatmul.mubr.f32.gmra.mxu0 %v6553
  %v6826 = vpop.f32.mrf.mxu0
  %v6827 = vadd.f32 0.0, %v6826
  %v6828 = vpop.f32.mrf.mxu0
  %6829 = vmatprep.mubr.f32.mxu0 0.0
  %6830 = vmatmul.mubr.f32.gmra.mxu0 %v6555
  %v6831 = vpop.f32.mrf.mxu0
  %v6832 = vadd.f32 0.0, %v6831
  %v6833 = vpop.f32.mrf.mxu0
  %6834 = vmatprep.mubr.f32.mxu0 0.0
  %6835 = vmatmul.mubr.f32.gmra.mxu0 %v6557
  %v6836 = vpop.f32.mrf.mxu0
  %v6837 = vadd.f32 0.0, %v6836
  %v6838 = vpop.f32.mrf.mxu0
  %6839 = vmatprep.mubr.f32.mxu0 0.0
  %6840 = vmatmul.mubr.f32.gmra.mxu0 %v6559
  %v6841 = vpop.f32.mrf.mxu0
  %v6842 = vadd.f32 0.0, %v6841
  %v6843 = vpop.f32.mrf.mxu0
  %6844 = vmatprep.mubr.f32.mxu0 0.0
  %6845 = vmatmul.mubr.f32.gmra.mxu0 %v6561
  %v6846 = vpop.f32.mrf.mxu0
  %v6847 = vadd.f32 0.0, %v6846
  %v6848 = vpop.f32.mrf.mxu0
  %6849 = vmatprep.mubr.f32.mxu0 0.0
  %6850 = vmatmul.mubr.f32.gmra.mxu0 %v6563
  %v6851 = vpop.f32.mrf.mxu0
  %v6852 = vadd.f32 0.0, %v6851
  %v6853 = vpop.f32.mrf.mxu0
  %6854 = vmatprep.mubr.f32.mxu0 0.0
  %6855 = vmatmul.mubr.f32.gmra.mxu0 %v6565
  %v6856 = vpop.f32.mrf.mxu0
  %v6857 = vadd.f32 0.0, %v6856
  %v6858 = vpop.f32.mrf.mxu0
  %6859 = vmatprep.mubr.f32.mxu0 0.0
  %6860 = vmatmul.mubr.f32.gmra.mxu0 %v6567
  %v6861 = vpop.f32.mrf.mxu0
  %v6862 = vadd.f32 0.0, %v6861
  %v6863 = vpop.f32.mrf.mxu0
  %6864 = vmatprep.mubr.f32.mxu0 0.0
  %6865 = vmatmul.mubr.f32.gmra.mxu0 %v6569
  %v6866 = vpop.f32.mrf.mxu0
  %v6867 = vadd.f32 0.0, %v6866
  %v6868 = vpop.f32.mrf.mxu0
  %6869 = vmatprep.mubr.f32.mxu0 0.0
  %6870 = vmatmul.mubr.f32.gmra.mxu0 %v6571
  %v6871 = vpop.f32.mrf.mxu0
  %v6872 = vadd.f32 0.0, %v6871
  %v6873 = vpop.f32.mrf.mxu0
  %6874 = vmatprep.mubr.f32.mxu0 0.0
  %6875 = vmatmul.mubr.f32.gmra.mxu0 %v6573
  %v6876 = vpop.f32.mrf.mxu0
  %v6877 = vadd.f32 0.0, %v6876
  %v6878 = vpop.f32.mrf.mxu0
  %6879 = vmatprep.mubr.f32.mxu0 0.0
  %6880 = vmatmul.mubr.f32.gmra.mxu0 %v6575
  %v6881 = vpop.f32.mrf.mxu0
  %v6882 = vpop.f32.mrf.mxu0
  %6883 = vmatprep.mubr.f32.mxu0 0.0
  %6884 = vmatmul.mubr.f32.gmra.mxu0 %v6577
  %v6885 = vpop.f32.mrf.mxu0
  %v6886 = vpop.f32.mrf.mxu0
  %6887 = vmatprep.mubr.f32.mxu0 0.0
  %6888 = vmatmul.mubr.f32.gmra.mxu0 %v6579
  %v6889 = vpop.f32.mrf.mxu0
  %v6890 = vpop.f32.mrf.mxu0
  %6891 = vmatprep.mubr.f32.mxu0 0.0
  %6892 = vmatmul.mubr.f32.gmra.mxu0 %v6581
  %v6893 = vpop.f32.mrf.mxu0
  %v6894 = vpop.f32.mrf.mxu0
  %6895 = vmatprep.mubr.f32.mxu0 0.0
  %6896 = vmatmul.mubr.f32.gmra.mxu0 %v6583
  %v6897 = vpop.f32.mrf.mxu0
  %v6898 = vpop.f32.mrf.mxu0
  %6899 = vmatprep.mubr.f32.mxu0 0.0
  %6900 = vmatmul.mubr.f32.gmra.mxu0 %v6585
  %v6901 = vpop.f32.mrf.mxu0
  %v6902 = vpop.f32.mrf.mxu0
  %6903 = vmatprep.mubr.f32.mxu0 0.0
  %6904 = vmatmul.mubr.f32.gmra.mxu0 %v6587
  %v6905 = vpop.f32.mrf.mxu0
  %v6906 = vadd.f32 0.0, %v6905
  %v6907 = vpop.f32.mrf.mxu0
  %6908 = vmatprep.mubr.f32.mxu0 0.0
  %6909 = vmatmul.mubr.f32.gmra.mxu0 %v6589
  %v6910 = vpop.f32.mrf.mxu0
  %v6911 = vadd.f32 0.0, %v6910
  %v6912 = vpop.f32.mrf.mxu0
  %6913 = vmatprep.mubr.f32.mxu0 0.0
  %6914 = vmatmul.mubr.f32.gmra.mxu0 %v6591
  %v6915 = vpop.f32.mrf.mxu0
  %v6916 = vadd.f32 0.0, %v6915
  %v6917 = vpop.f32.mrf.mxu0
  %6918 = vmatprep.mubr.f32.mxu0 0.0
  %6919 = vmatmul.mubr.f32.gmra.mxu0 %v6593
  %v6920 = vpop.f32.mrf.mxu0
  %v6921 = vadd.f32 0.0, %v6920
  %v6922 = vpop.f32.mrf.mxu0
  %6923 = vmatprep.mubr.f32.mxu0 0.0
  %6924 = vmatmul.mubr.f32.gmra.mxu0 %v6595
  %v6925 = vpop.f32.mrf.mxu0
  %v6926 = vadd.f32 0.0, %v6925
  %v6927 = vpop.f32.mrf.mxu0
  %6928 = vmatprep.mubr.f32.mxu0 0.0
  %6929 = vmatmul.mubr.f32.gmra.mxu0 %v6597
  %v6930 = vpop.f32.mrf.mxu0
  %v6931 = vadd.f32 0.0, %v6930
  %v6932 = vpop.f32.mrf.mxu0
  %6933 = vmatprep.mubr.f32.mxu0 0.0
  %6934 = vmatmul.mubr.f32.gmra.mxu0 %v6599
  %v6935 = vpop.f32.mrf.mxu0
  %v6936 = vadd.f32 0.0, %v6935
  %v6937 = vpop.f32.mrf.mxu0
  %6938 = vmatprep.mubr.f32.mxu0 0.0
  %6939 = vmatmul.mubr.f32.gmra.mxu0 %v6601
  %v6940 = vpop.f32.mrf.mxu0
  %v6941 = vadd.f32 0.0, %v6940
  %v6942 = vpop.f32.mrf.mxu0
  %6943 = vmatprep.mubr.f32.mxu0 0.0
  %6944 = vmatmul.mubr.f32.gmra.mxu0 %v6603
  %v6945 = vpop.f32.mrf.mxu0
  %v6946 = vadd.f32 0.0, %v6945
  %v6947 = vpop.f32.mrf.mxu0
  %6948 = vmatprep.mubr.f32.mxu0 0.0
  %6949 = vmatmul.mubr.f32.gmra.mxu0 %v6605
  %v6950 = vpop.f32.mrf.mxu0
  %v6951 = vadd.f32 0.0, %v6950
  %v6952 = vpop.f32.mrf.mxu0
  %6953 = vmatprep.mubr.f32.mxu0 0.0
  %6954 = vmatmul.mubr.f32.gmra.mxu0 %v6607
  %v6955 = vpop.f32.mrf.mxu0
  %v6956 = vadd.f32 0.0, %v6955
  %v6957 = vpop.f32.mrf.mxu0
  %6958 = vmatprep.mubr.f32.mxu0 0.0
  %6959 = vmatmul.mubr.f32.gmra.mxu0 %v6609
  %v6960 = vpop.f32.mrf.mxu0
  %v6961 = vadd.f32 0.0, %v6960
  %v6962 = vpop.f32.mrf.mxu0
  %6963 = vmatprep.mubr.f32.mxu0 0.0
  %6964 = vmatmul.mubr.f32.gmra.mxu0 %v6611
  %v6965 = vpop.f32.mrf.mxu0
  %v6966 = vadd.f32 0.0, %v6965
  %v6967 = vpop.f32.mrf.mxu0
  %6968 = vmatprep.mubr.f32.mxu0 0.0
  %6969 = vmatmul.mubr.f32.gmra.mxu0 %v6613
  %v6970 = vpop.f32.mrf.mxu0
  %v6971 = vadd.f32 0.0, %v6970
  %v6972 = vpop.f32.mrf.mxu0
  %6973 = vmatprep.mubr.f32.mxu0 0.0
  %6974 = vmatmul.mubr.f32.gmra.mxu0 %v6615
  %v6975 = vpop.f32.mrf.mxu0
  %v6976 = vadd.f32 0.0, %v6975
  %v6977 = vpop.f32.mrf.mxu0
  %6978 = vmatprep.mubr.f32.mxu0 0.0
  %6979 = vmatmul.mubr.f32.gmra.mxu0 %v6617
  %v6980 = vpop.f32.mrf.mxu0
  %v6981 = vadd.f32 0.0, %v6980
  %v6982 = vpop.f32.mrf.mxu0
  %6983 = vmatprep.mubr.f32.mxu0 0.0
  %6984 = vmatmul.mubr.f32.gmra.mxu0 %v6619
  %v6985 = vpop.f32.mrf.mxu0
  %v6986 = vadd.f32 0.0, %v6985
  %v6987 = vpop.f32.mrf.mxu0
  %6988 = vmatprep.mubr.f32.mxu0 0.0
  %6989 = vmatmul.mubr.f32.gmra.mxu0 %v6621
  %v6990 = vpop.f32.mrf.mxu0
  %v6991 = vadd.f32 0.0, %v6990
  %v6992 = vpop.f32.mrf.mxu0
  %6993 = vmatprep.mubr.f32.mxu0 0.0
  %6994 = vmatmul.mubr.f32.gmra.mxu0 %v6623
  %v6995 = vpop.f32.mrf.mxu0
  %v6996 = vadd.f32 0.0, %v6995
  %v6997 = vpop.f32.mrf.mxu0
  %6998 = vmatprep.mubr.f32.mxu0 0.0
  %6999 = vmatmul.mubr.f32.gmra.mxu0 %v6625
  %v7000 = vpop.f32.mrf.mxu0
  %v7001 = vadd.f32 0.0, %v7000
  %v7002 = vpop.f32.mrf.mxu0
  %7003 = vmatprep.mubr.f32.mxu0 0.0
  %7004 = vmatmul.mubr.f32.gmra.mxu0 %v6627
  %v7005 = vpop.f32.mrf.mxu0
  %v7006 = vadd.f32 0.0, %v7005
  %v7007 = vpop.f32.mrf.mxu0
  %7008 = vmatprep.mubr.f32.mxu0 0.0
  %7009 = vmatmul.mubr.f32.gmra.mxu0 %v6629
  %v7010 = vpop.f32.mrf.mxu0
  %v7011 = vadd.f32 0.0, %v7010
  %v7012 = vpop.f32.mrf.mxu0
  %7013 = vmatprep.mubr.f32.mxu0 0.0
  %7014 = vmatmul.mubr.f32.gmra.mxu0 %v6631
  %v7015 = vpop.f32.mrf.mxu0
  %v7016 = vadd.f32 0.0, %v7015
  %v7017 = vpop.f32.mrf.mxu0
  %7018 = vmatprep.mubr.f32.mxu0 0.0
  %7019 = vmatmul.mubr.f32.gmra.mxu0 %v6633
  %v7020 = vpop.f32.mrf.mxu0
  %v7021 = vadd.f32 0.0, %v7020
  %v7022 = vpop.f32.mrf.mxu0
  %7023 = vmatprep.mubr.f32.mxu0 0.0
  %7024 = vmatmul.mubr.f32.gmra.mxu0 %v6635
  %v7025 = vpop.f32.mrf.mxu0
  %v7026 = vadd.f32 0.0, %v7025
  %v7027 = vpop.f32.mrf.mxu0
  %7028 = vmatprep.mubr.f32.mxu0 0.0
  %7029 = vmatmul.mubr.f32.gmra.mxu0 %v6637
  %v7030 = vpop.f32.mrf.mxu0
  %v7031 = vadd.f32 0.0, %v7030
  %v7032 = vpop.f32.mrf.mxu0
  %7033 = vmatprep.mubr.f32.mxu0 0.0
  %7034 = vmatmul.mubr.f32.gmra.mxu0 %v6639
  %v7035 = vpop.f32.mrf.mxu0
  %v7036 = vadd.f32 0.0, %v7035
  %v7037 = vpop.f32.mrf.mxu0
  %7038 = vmatprep.mubr.f32.mxu0 0.0
  %7039 = vmatmul.mubr.f32.gmra.mxu0 %v6641
  %v7040 = vpop.f32.mrf.mxu0
  %v7041 = vadd.f32 0.0, %v7040
  %v7042 = vpop.f32.mrf.mxu0
  %7043 = vmatprep.mubr.f32.mxu0 0.0
  %7044 = vmatmul.mubr.f32.gmra.mxu0 %v6643
  %v7045 = vpop.f32.mrf.mxu0
  %v7046 = vadd.f32 0.0, %v7045
  %v7047 = vpop.f32.mrf.mxu0
  %7048 = vmatprep.mubr.f32.mxu0 0.0
  %7049 = vmatmul.mubr.f32.gmra.mxu0 %v6645
  %v7050 = vpop.f32.mrf.mxu0
  %v7051 = vadd.f32 0.0, %v7050
  %v7052 = vpop.f32.mrf.mxu0
  %7053 = vmatprep.mubr.f32.mxu0 0.0
  %7054 = vmatmul.mubr.f32.gmra.mxu0 %v6647
  %v7055 = vpop.f32.mrf.mxu0
  %v7056 = vadd.f32 0.0, %v7055
  %v7057 = vpop.f32.mrf.mxu0
  %7058 = vmatprep.mubr.f32.mxu0 0.0
  %7059 = vmatmul.mubr.f32.gmra.mxu0 %v6649
  %v7060 = vpop.f32.mrf.mxu0
  %v7061 = vadd.f32 0.0, %v7060
  %v7062 = vpop.f32.mrf.mxu0
  %7063 = vdwg.mxu0
  %v7064 = vld [vmem:[%s3] sm:$0x1]
  %v7065 = vld [vmem:[%s4] sm:$0x1]
  %v7066 = vlaneseq
  %v7067 = vand.u32 %v7066, 127
  %vm7068 = vcmp.lt.s32.totalorder %v7067, 4
  %v7069 = vsel %vm103, %v6722, 0.0
  %v7070 = vsel %vm103, %v6727, 0.0
  %v7071 = vadd.f32 %v7069, %v7070
  %v7072 = vsel %vm103, %v6732, 0.0
  %v7073 = vadd.f32 %v7071, %v7072
  %v7074 = vsel %vm103, %v6737, 0.0
  %v7075 = vadd.f32 %v7073, %v7074
  %v7076 = vsel %vm103, %v6742, 0.0
  %v7077 = vadd.f32 %v7075, %v7076
  %v7078 = vsel %vm103, %v6747, 0.0
  %v7079 = vadd.f32 %v7077, %v7078
  %v7080 = vsel %vm103, %v6752, 0.0
  %v7081 = vadd.f32 %v7079, %v7080
  %v7082 = vsel %vm103, %v6757, 0.0
  %v7083 = vadd.f32 %v7081, %v7082
  %v7084 = vsel %vm103, %v6762, 0.0
  %v7085 = vadd.f32 %v7083, %v7084
  %v7086 = vsel %vm103, %v6767, 0.0
  %v7087 = vadd.f32 %v7085, %v7086
  %v7088 = vsel %vm103, %v6772, 0.0
  %v7089 = vadd.f32 %v7087, %v7088
  %v7090 = vsel %vm103, %v6777, 0.0
  %v7091 = vadd.f32 %v7089, %v7090
  %v7092 = vsel %vm103, %v6782, 0.0
  %v7093 = vadd.f32 %v7091, %v7092
  %v7094 = vsel %vm103, %v6787, 0.0
  %v7095 = vadd.f32 %v7093, %v7094
  %v7096 = vsel %vm103, %v6792, 0.0
  %v7097 = vadd.f32 %v7095, %v7096
  %v7098 = vsel %vm103, %v6797, 0.0
  %v7099 = vadd.f32 %v7097, %v7098
  %v7100 = vsel %vm103, %v6802, 0.0
  %v7101 = vadd.f32 %v7099, %v7100
  %v7102 = vsel %vm103, %v6807, 0.0
  %v7103 = vadd.f32 %v7101, %v7102
  %v7104 = vsel %vm103, %v6812, 0.0
  %v7105 = vadd.f32 %v7103, %v7104
  %v7106 = vsel %vm103, %v6817, 0.0
  %v7107 = vadd.f32 %v7105, %v7106
  %v7108 = vsel %vm103, %v6822, 0.0
  %v7109 = vadd.f32 %v7107, %v7108
  %v7110 = vsel %vm103, %v6827, 0.0
  %v7111 = vadd.f32 %v7109, %v7110
  %v7112 = vsel %vm103, %v6832, 0.0
  %v7113 = vadd.f32 %v7111, %v7112
  %v7114 = vsel %vm103, %v6837, 0.0
  %v7115 = vadd.f32 %v7113, %v7114
  %v7116 = vsel %vm103, %v6842, 0.0
  %v7117 = vadd.f32 %v7115, %v7116
  %v7118 = vsel %vm103, %v6847, 0.0
  %v7119 = vadd.f32 %v7117, %v7118
  %v7120 = vsel %vm103, %v6852, 0.0
  %v7121 = vadd.f32 %v7119, %v7120
  %v7122 = vsel %vm103, %v6857, 0.0
  %v7123 = vadd.f32 %v7121, %v7122
  %v7124 = vsel %vm103, %v6862, 0.0
  %v7125 = vadd.f32 %v7123, %v7124
  %v7126 = vsel %vm103, %v6867, 0.0
  %v7127 = vadd.f32 %v7125, %v7126
  %v7128 = vsel %vm103, %v6872, 0.0
  %v7129 = vadd.f32 %v7127, %v7128
  %v7130 = vsel %vm103, %v6877, 0.0
  %v7131 = vadd.f32 %v7129, %v7130
  %v7132 = vrot.slane %v7131, 4
  %v7133 = vadd.f32 %v7131, %v7132
  %v7134 = vrot.slane %v7133, 2
  %v7135 = vadd.f32 %v7133, %v7134
  %v7136 = vrot.slane %v7135, 1
  %v7137 = vadd.f32 %v7135, %v7136
  %v7138 = vsel %vm103, %v6906, 0.0
  %v7139 = vsel %vm103, %v6911, 0.0
  %v7140 = vadd.f32 %v7138, %v7139
  %v7141 = vsel %vm103, %v6916, 0.0
  %v7142 = vadd.f32 %v7140, %v7141
  %v7143 = vsel %vm103, %v6921, 0.0
  %v7144 = vadd.f32 %v7142, %v7143
  %v7145 = vsel %vm103, %v6926, 0.0
  %v7146 = vadd.f32 %v7144, %v7145
  %v7147 = vsel %vm103, %v6931, 0.0
  %v7148 = vadd.f32 %v7146, %v7147
  %v7149 = vsel %vm103, %v6936, 0.0
  %v7150 = vadd.f32 %v7148, %v7149
  %v7151 = vsel %vm103, %v6941, 0.0
  %v7152 = vadd.f32 %v7150, %v7151
  %v7153 = vsel %vm103, %v6946, 0.0
  %v7154 = vadd.f32 %v7152, %v7153
  %v7155 = vsel %vm103, %v6951, 0.0
  %v7156 = vadd.f32 %v7154, %v7155
  %v7157 = vsel %vm103, %v6956, 0.0
  %v7158 = vadd.f32 %v7156, %v7157
  %v7159 = vsel %vm103, %v6961, 0.0
  %v7160 = vadd.f32 %v7158, %v7159
  %v7161 = vsel %vm103, %v6966, 0.0
  %v7162 = vadd.f32 %v7160, %v7161
  %v7163 = vsel %vm103, %v6971, 0.0
  %v7164 = vadd.f32 %v7162, %v7163
  %v7165 = vsel %vm103, %v6976, 0.0
  %v7166 = vadd.f32 %v7164, %v7165
  %v7167 = vsel %vm103, %v6981, 0.0
  %v7168 = vadd.f32 %v7166, %v7167
  %v7169 = vsel %vm103, %v6986, 0.0
  %v7170 = vadd.f32 %v7168, %v7169
  %v7171 = vsel %vm103, %v6991, 0.0
  %v7172 = vadd.f32 %v7170, %v7171
  %v7173 = vsel %vm103, %v6996, 0.0
  %v7174 = vadd.f32 %v7172, %v7173
  %v7175 = vsel %vm103, %v7001, 0.0
  %v7176 = vadd.f32 %v7174, %v7175
  %v7177 = vsel %vm103, %v7006, 0.0
  %v7178 = vadd.f32 %v7176, %v7177
  %v7179 = vsel %vm103, %v7011, 0.0
  %v7180 = vadd.f32 %v7178, %v7179
  %v7181 = vsel %vm103, %v7016, 0.0
  %v7182 = vadd.f32 %v7180, %v7181
  %v7183 = vsel %vm103, %v7021, 0.0
  %v7184 = vadd.f32 %v7182, %v7183
  %v7185 = vsel %vm103, %v7026, 0.0
  %v7186 = vadd.f32 %v7184, %v7185
  %v7187 = vsel %vm103, %v7031, 0.0
  %v7188 = vadd.f32 %v7186, %v7187
  %v7189 = vsel %vm103, %v7036, 0.0
  %v7190 = vadd.f32 %v7188, %v7189
  %v7191 = vsel %vm103, %v7041, 0.0
  %v7192 = vadd.f32 %v7190, %v7191
  %v7193 = vsel %vm103, %v7046, 0.0
  %v7194 = vadd.f32 %v7192, %v7193
  %v7195 = vsel %vm103, %v7051, 0.0
  %v7196 = vadd.f32 %v7194, %v7195
  %v7197 = vsel %vm103, %v7056, 0.0
  %v7198 = vadd.f32 %v7196, %v7197
  %v7199 = vsel %vm103, %v7061, 0.0
  %v7200 = vadd.f32 %v7198, %v7199
  %v7201 = vrot.slane %v7200, 4
  %v7202 = vadd.f32 %v7200, %v7201
  %v7203 = vrot.slane %v7202, 2
  %v7204 = vadd.f32 %v7202, %v7203
  %v7205 = vrot.slane %v7204, 1
  %v7206 = vadd.f32 %v7204, %v7205
  %v7207 = vmul.f32 %v6722, %v6722
  %v7208 = vmul.f32 %v6727, %v6727
  %v7209 = vmul.f32 %v6732, %v6732
  %v7210 = vmul.f32 %v6737, %v6737
  %v7211 = vmul.f32 %v6742, %v6742
  %v7212 = vmul.f32 %v6747, %v6747
  %v7213 = vmul.f32 %v6752, %v6752
  %v7214 = vmul.f32 %v6757, %v6757
  %v7215 = vmul.f32 %v6762, %v6762
  %v7216 = vmul.f32 %v6767, %v6767
  %v7217 = vmul.f32 %v6772, %v6772
  %v7218 = vmul.f32 %v6777, %v6777
  %v7219 = vmul.f32 %v6782, %v6782
  %v7220 = vmul.f32 %v6787, %v6787
  %v7221 = vmul.f32 %v6792, %v6792
  %v7222 = vmul.f32 %v6797, %v6797
  %v7223 = vmul.f32 %v6802, %v6802
  %v7224 = vmul.f32 %v6807, %v6807
  %v7225 = vmul.f32 %v6812, %v6812
  %v7226 = vmul.f32 %v6817, %v6817
  %v7227 = vmul.f32 %v6822, %v6822
  %v7228 = vmul.f32 %v6827, %v6827
  %v7229 = vmul.f32 %v6832, %v6832
  %v7230 = vmul.f32 %v6837, %v6837
  %v7231 = vmul.f32 %v6842, %v6842
  %v7232 = vmul.f32 %v6847, %v6847
  %v7233 = vmul.f32 %v6852, %v6852
  %v7234 = vmul.f32 %v6857, %v6857
  %v7235 = vmul.f32 %v6862, %v6862
  %v7236 = vmul.f32 %v6867, %v6867
  %v7237 = vmul.f32 %v6872, %v6872
  %v7238 = vmul.f32 %v6877, %v6877
  %v7239 = vsel %vm103, %v7207, 0.0
  %v7240 = vsel %vm103, %v7208, 0.0
  %v7241 = vadd.f32 %v7239, %v7240
  %v7242 = vsel %vm103, %v7209, 0.0
  %v7243 = vadd.f32 %v7241, %v7242
  %v7244 = vsel %vm103, %v7210, 0.0
  %v7245 = vadd.f32 %v7243, %v7244
  %v7246 = vsel %vm103, %v7211, 0.0
  %v7247 = vadd.f32 %v7245, %v7246
  %v7248 = vsel %vm103, %v7212, 0.0
  %v7249 = vadd.f32 %v7247, %v7248
  %v7250 = vsel %vm103, %v7213, 0.0
  %v7251 = vadd.f32 %v7249, %v7250
  %v7252 = vsel %vm103, %v7214, 0.0
  %v7253 = vadd.f32 %v7251, %v7252
  %v7254 = vsel %vm103, %v7215, 0.0
  %v7255 = vadd.f32 %v7253, %v7254
  %v7256 = vsel %vm103, %v7216, 0.0
  %v7257 = vadd.f32 %v7255, %v7256
  %v7258 = vsel %vm103, %v7217, 0.0
  %v7259 = vadd.f32 %v7257, %v7258
  %v7260 = vsel %vm103, %v7218, 0.0
  %v7261 = vadd.f32 %v7259, %v7260
  %v7262 = vsel %vm103, %v7219, 0.0
  %v7263 = vadd.f32 %v7261, %v7262
  %v7264 = vsel %vm103, %v7220, 0.0
  %v7265 = vadd.f32 %v7263, %v7264
  %v7266 = vsel %vm103, %v7221, 0.0
  %v7267 = vadd.f32 %v7265, %v7266
  %v7268 = vsel %vm103, %v7222, 0.0
  %v7269 = vadd.f32 %v7267, %v7268
  %v7270 = vsel %vm103, %v7223, 0.0
  %v7271 = vadd.f32 %v7269, %v7270
  %v7272 = vsel %vm103, %v7224, 0.0
  %v7273 = vadd.f32 %v7271, %v7272
  %v7274 = vsel %vm103, %v7225, 0.0
  %v7275 = vadd.f32 %v7273, %v7274
  %v7276 = vsel %vm103, %v7226, 0.0
  %v7277 = vadd.f32 %v7275, %v7276
  %v7278 = vsel %vm103, %v7227, 0.0
  %v7279 = vadd.f32 %v7277, %v7278
  %v7280 = vsel %vm103, %v7228, 0.0
  %v7281 = vadd.f32 %v7279, %v7280
  %v7282 = vsel %vm103, %v7229, 0.0
  %v7283 = vadd.f32 %v7281, %v7282
  %v7284 = vsel %vm103, %v7230, 0.0
  %v7285 = vadd.f32 %v7283, %v7284
  %v7286 = vsel %vm103, %v7231, 0.0
  %v7287 = vadd.f32 %v7285, %v7286
  %v7288 = vsel %vm103, %v7232, 0.0
  %v7289 = vadd.f32 %v7287, %v7288
  %v7290 = vsel %vm103, %v7233, 0.0
  %v7291 = vadd.f32 %v7289, %v7290
  %v7292 = vsel %vm103, %v7234, 0.0
  %v7293 = vadd.f32 %v7291, %v7292
  %v7294 = vsel %vm103, %v7235, 0.0
  %v7295 = vadd.f32 %v7293, %v7294
  %v7296 = vsel %vm103, %v7236, 0.0
  %v7297 = vadd.f32 %v7295, %v7296
  %v7298 = vsel %vm103, %v7237, 0.0
  %v7299 = vadd.f32 %v7297, %v7298
  %v7300 = vsel %vm103, %v7238, 0.0
  %v7301 = vadd.f32 %v7299, %v7300
  %v7302 = vrot.slane %v7301, 4
  %v7303 = vadd.f32 %v7301, %v7302
  %v7304 = vrot.slane %v7303, 2
  %v7305 = vadd.f32 %v7303, %v7304
  %v7306 = vrot.slane %v7305, 1
  %v7307 = vadd.f32 %v7305, %v7306
  %v7308 = vmul.f32 %v6906, %v6906
  %v7309 = vmul.f32 %v6911, %v6911
  %v7310 = vmul.f32 %v6916, %v6916
  %v7311 = vmul.f32 %v6921, %v6921
  %v7312 = vmul.f32 %v6926, %v6926
  %v7313 = vmul.f32 %v6931, %v6931
  %v7314 = vmul.f32 %v6936, %v6936
  %v7315 = vmul.f32 %v6941, %v6941
  %v7316 = vmul.f32 %v6946, %v6946
  %v7317 = vmul.f32 %v6951, %v6951
  %v7318 = vmul.f32 %v6956, %v6956
  %v7319 = vmul.f32 %v6961, %v6961
  %v7320 = vmul.f32 %v6966, %v6966
  %v7321 = vmul.f32 %v6971, %v6971
  %v7322 = vmul.f32 %v6976, %v6976
  %v7323 = vmul.f32 %v6981, %v6981
  %v7324 = vmul.f32 %v6986, %v6986
  %v7325 = vmul.f32 %v6991, %v6991
  %v7326 = vmul.f32 %v6996, %v6996
  %v7327 = vmul.f32 %v7001, %v7001
  %v7328 = vmul.f32 %v7006, %v7006
  %v7329 = vmul.f32 %v7011, %v7011
  %v7330 = vmul.f32 %v7016, %v7016
  %v7331 = vmul.f32 %v7021, %v7021
  %v7332 = vmul.f32 %v7026, %v7026
  %v7333 = vmul.f32 %v7031, %v7031
  %v7334 = vmul.f32 %v7036, %v7036
  %v7335 = vmul.f32 %v7041, %v7041
  %v7336 = vmul.f32 %v7046, %v7046
  %v7337 = vmul.f32 %v7051, %v7051
  %v7338 = vmul.f32 %v7056, %v7056
  %v7339 = vmul.f32 %v7061, %v7061
  %v7340 = vsel %vm103, %v7308, 0.0
  %v7341 = vsel %vm103, %v7309, 0.0
  %v7342 = vadd.f32 %v7340, %v7341
  %v7343 = vsel %vm103, %v7310, 0.0
  %v7344 = vadd.f32 %v7342, %v7343
  %v7345 = vsel %vm103, %v7311, 0.0
  %v7346 = vadd.f32 %v7344, %v7345
  %v7347 = vsel %vm103, %v7312, 0.0
  %v7348 = vadd.f32 %v7346, %v7347
  %v7349 = vsel %vm103, %v7313, 0.0
  %v7350 = vadd.f32 %v7348, %v7349
  %v7351 = vsel %vm103, %v7314, 0.0
  %v7352 = vadd.f32 %v7350, %v7351
  %v7353 = vsel %vm103, %v7315, 0.0
  %v7354 = vadd.f32 %v7352, %v7353
  %v7355 = vsel %vm103, %v7316, 0.0
  %v7356 = vadd.f32 %v7354, %v7355
  %v7357 = vsel %vm103, %v7317, 0.0
  %v7358 = vadd.f32 %v7356, %v7357
  %v7359 = vsel %vm103, %v7318, 0.0
  %v7360 = vadd.f32 %v7358, %v7359
  %v7361 = vsel %vm103, %v7319, 0.0
  %v7362 = vadd.f32 %v7360, %v7361
  %v7363 = vsel %vm103, %v7320, 0.0
  %v7364 = vadd.f32 %v7362, %v7363
  %v7365 = vsel %vm103, %v7321, 0.0
  %v7366 = vadd.f32 %v7364, %v7365
  %v7367 = vsel %vm103, %v7322, 0.0
  %v7368 = vadd.f32 %v7366, %v7367
  %v7369 = vsel %vm103, %v7323, 0.0
  %v7370 = vadd.f32 %v7368, %v7369
  %v7371 = vsel %vm103, %v7324, 0.0
  %v7372 = vadd.f32 %v7370, %v7371
  %v7373 = vsel %vm103, %v7325, 0.0
  %v7374 = vadd.f32 %v7372, %v7373
  %v7375 = vsel %vm103, %v7326, 0.0
  %v7376 = vadd.f32 %v7374, %v7375
  %v7377 = vsel %vm103, %v7327, 0.0
  %v7378 = vadd.f32 %v7376, %v7377
  %v7379 = vsel %vm103, %v7328, 0.0
  %v7380 = vadd.f32 %v7378, %v7379
  %v7381 = vsel %vm103, %v7329, 0.0
  %v7382 = vadd.f32 %v7380, %v7381
  %v7383 = vsel %vm103, %v7330, 0.0
  %v7384 = vadd.f32 %v7382, %v7383
  %v7385 = vsel %vm103, %v7331, 0.0
  %v7386 = vadd.f32 %v7384, %v7385
  %v7387 = vsel %vm103, %v7332, 0.0
  %v7388 = vadd.f32 %v7386, %v7387
  %v7389 = vsel %vm103, %v7333, 0.0
  %v7390 = vadd.f32 %v7388, %v7389
  %v7391 = vsel %vm103, %v7334, 0.0
  %v7392 = vadd.f32 %v7390, %v7391
  %v7393 = vsel %vm103, %v7335, 0.0
  %v7394 = vadd.f32 %v7392, %v7393
  %v7395 = vsel %vm103, %v7336, 0.0
  %v7396 = vadd.f32 %v7394, %v7395
  %v7397 = vsel %vm103, %v7337, 0.0
  %v7398 = vadd.f32 %v7396, %v7397
  %v7399 = vsel %vm103, %v7338, 0.0
  %v7400 = vadd.f32 %v7398, %v7399
  %v7401 = vsel %vm103, %v7339, 0.0
  %v7402 = vadd.f32 %v7400, %v7401
  %v7403 = vrot.slane %v7402, 4
  %v7404 = vadd.f32 %v7402, %v7403
  %v7405 = vrot.slane %v7404, 2
  %v7406 = vadd.f32 %v7404, %v7405
  %v7407 = vrot.slane %v7406, 1
  %v7408 = vadd.f32 %v7406, %v7407
  %v7409 = vadd.f32 %v7137, %v7206
  %v7410 = vadd.f32 %v7307, %v7408
  %v7411 = vmul.f32 %v7409, 0.001953125
  %v7412 = vmul.f32 %v7410, 0.001953125
  %v7413 = vmul.f32 %v7411, %v7411
  %v7414 = vsub.f32 %v7412, %v7413
  %v7415 = vmax.f32 %v7414, 0.0
  %v7416 = vmul.f32 %v7137, 0.00390625
  %v7417 = vmul.f32 %v7307, 0.00390625
  %v7418 = vmul.f32 %v7416, %v7416
  %v7419 = vsub.f32 %v7417, %v7418
  %v7420 = vmax.f32 %v7419, 0.0
  %v7421 = vsel %vm7068, %v7416, %v7411
  %v7422 = vsel %vm7068, %v7420, %v7415
  %v7423 = vsub.f32 %v6722, %v7421
  %v7424 = vsub.f32 %v6727, %v7421
  %v7425 = vsub.f32 %v6732, %v7421
  %v7426 = vsub.f32 %v6737, %v7421
  %v7427 = vsub.f32 %v6742, %v7421
  %v7428 = vsub.f32 %v6747, %v7421
  %v7429 = vsub.f32 %v6752, %v7421
  %v7430 = vsub.f32 %v6757, %v7421
  %v7431 = vsub.f32 %v6762, %v7421
  %v7432 = vsub.f32 %v6767, %v7421
  %v7433 = vsub.f32 %v6772, %v7421
  %v7434 = vsub.f32 %v6777, %v7421
  %v7435 = vsub.f32 %v6782, %v7421
  %v7436 = vsub.f32 %v6787, %v7421
  %v7437 = vsub.f32 %v6792, %v7421
  %v7438 = vsub.f32 %v6797, %v7421
  %v7439 = vsub.f32 %v6802, %v7421
  %v7440 = vsub.f32 %v6807, %v7421
  %v7441 = vsub.f32 %v6812, %v7421
  %v7442 = vsub.f32 %v6817, %v7421
  %v7443 = vsub.f32 %v6822, %v7421
  %v7444 = vsub.f32 %v6827, %v7421
  %v7445 = vsub.f32 %v6832, %v7421
  %v7446 = vsub.f32 %v6837, %v7421
  %v7447 = vsub.f32 %v6842, %v7421
  %v7448 = vsub.f32 %v6847, %v7421
  %v7449 = vsub.f32 %v6852, %v7421
  %v7450 = vsub.f32 %v6857, %v7421
  %v7451 = vsub.f32 %v6862, %v7421
  %v7452 = vsub.f32 %v6867, %v7421
  %v7453 = vsub.f32 %v6872, %v7421
  %v7454 = vsub.f32 %v6877, %v7421
  %v7455 = vadd.f32 %v7422, 1e-05
  %v7456 = vrsqrt.pop %v7455
  %v7457 = vmul.f32 %v7423, %v7456
  %v7458 = vmul.f32 %v7424, %v7456
  %v7459 = vmul.f32 %v7425, %v7456
  %v7460 = vmul.f32 %v7426, %v7456
  %v7461 = vmul.f32 %v7427, %v7456
  %v7462 = vmul.f32 %v7428, %v7456
  %v7463 = vmul.f32 %v7429, %v7456
  %v7464 = vmul.f32 %v7430, %v7456
  %v7465 = vmul.f32 %v7431, %v7456
  %v7466 = vmul.f32 %v7432, %v7456
  %v7467 = vmul.f32 %v7433, %v7456
  %v7468 = vmul.f32 %v7434, %v7456
  %v7469 = vmul.f32 %v7435, %v7456
  %v7470 = vmul.f32 %v7436, %v7456
  %v7471 = vmul.f32 %v7437, %v7456
  %v7472 = vmul.f32 %v7438, %v7456
  %v7473 = vmul.f32 %v7439, %v7456
  %v7474 = vmul.f32 %v7440, %v7456
  %v7475 = vmul.f32 %v7441, %v7456
  %v7476 = vmul.f32 %v7442, %v7456
  %v7477 = vmul.f32 %v7443, %v7456
  %v7478 = vmul.f32 %v7444, %v7456
  %v7479 = vmul.f32 %v7445, %v7456
  %v7480 = vmul.f32 %v7446, %v7456
  %v7481 = vmul.f32 %v7447, %v7456
  %v7482 = vmul.f32 %v7448, %v7456
  %v7483 = vmul.f32 %v7449, %v7456
  %v7484 = vmul.f32 %v7450, %v7456
  %v7485 = vmul.f32 %v7451, %v7456
  %v7486 = vmul.f32 %v7452, %v7456
  %v7487 = vmul.f32 %v7453, %v7456
  %v7488 = vmul.f32 %v7454, %v7456
  %v7490 = vlaneseq
  %v7491 = vshrl.u32 %v7490, 7
  %v7492 = vsub.s32 0, %v7491
  %v7493 = vrot.slane %v7064, %v7492
  %v7495 = vmul.f32 %v7457, %v7493
  %v7496 = vmul.f32 %v7458, %v7493
  %v7497 = vmul.f32 %v7459, %v7493
  %v7498 = vmul.f32 %v7460, %v7493
  %v7499 = vmul.f32 %v7461, %v7493
  %v7500 = vmul.f32 %v7462, %v7493
  %v7501 = vmul.f32 %v7463, %v7493
  %v7502 = vmul.f32 %v7464, %v7493
  %v7503 = vmul.f32 %v7465, %v7493
  %v7504 = vmul.f32 %v7466, %v7493
  %v7505 = vmul.f32 %v7467, %v7493
  %v7506 = vmul.f32 %v7468, %v7493
  %v7507 = vmul.f32 %v7469, %v7493
  %v7508 = vmul.f32 %v7470, %v7493
  %v7509 = vmul.f32 %v7471, %v7493
  %v7510 = vmul.f32 %v7472, %v7493
  %v7511 = vmul.f32 %v7473, %v7493
  %v7512 = vmul.f32 %v7474, %v7493
  %v7513 = vmul.f32 %v7475, %v7493
  %v7514 = vmul.f32 %v7476, %v7493
  %v7515 = vmul.f32 %v7477, %v7493
  %v7516 = vmul.f32 %v7478, %v7493
  %v7517 = vmul.f32 %v7479, %v7493
  %v7518 = vmul.f32 %v7480, %v7493
  %v7519 = vmul.f32 %v7481, %v7493
  %v7520 = vmul.f32 %v7482, %v7493
  %v7521 = vmul.f32 %v7483, %v7493
  %v7522 = vmul.f32 %v7484, %v7493
  %v7523 = vmul.f32 %v7485, %v7493
  %v7524 = vmul.f32 %v7486, %v7493
  %v7525 = vmul.f32 %v7487, %v7493
  %v7526 = vmul.f32 %v7488, %v7493
  %v7528 = vlaneseq
  %v7529 = vshrl.u32 %v7528, 7
  %v7530 = vsub.s32 0, %v7529
  %v7531 = vrot.slane %v7065, %v7530
  %v7533 = vadd.f32 %v7495, %v7531
  %v7534 = vadd.f32 %v7496, %v7531
  %v7535 = vadd.f32 %v7497, %v7531
  %v7536 = vadd.f32 %v7498, %v7531
  %v7537 = vadd.f32 %v7499, %v7531
  %v7538 = vadd.f32 %v7500, %v7531
  %v7539 = vadd.f32 %v7501, %v7531
  %v7540 = vadd.f32 %v7502, %v7531
  %v7541 = vadd.f32 %v7503, %v7531
  %v7542 = vadd.f32 %v7504, %v7531
  %v7543 = vadd.f32 %v7505, %v7531
  %v7544 = vadd.f32 %v7506, %v7531
  %v7545 = vadd.f32 %v7507, %v7531
  %v7546 = vadd.f32 %v7508, %v7531
  %v7547 = vadd.f32 %v7509, %v7531
  %v7548 = vadd.f32 %v7510, %v7531
  %v7549 = vadd.f32 %v7511, %v7531
  %v7550 = vadd.f32 %v7512, %v7531
  %v7551 = vadd.f32 %v7513, %v7531
  %v7552 = vadd.f32 %v7514, %v7531
  %v7553 = vadd.f32 %v7515, %v7531
  %v7554 = vadd.f32 %v7516, %v7531
  %v7555 = vadd.f32 %v7517, %v7531
  %v7556 = vadd.f32 %v7518, %v7531
  %v7557 = vadd.f32 %v7519, %v7531
  %v7558 = vadd.f32 %v7520, %v7531
  %v7559 = vadd.f32 %v7521, %v7531
  %v7560 = vadd.f32 %v7522, %v7531
  %v7561 = vadd.f32 %v7523, %v7531
  %v7562 = vadd.f32 %v7524, %v7531
  %v7563 = vadd.f32 %v7525, %v7531
  %v7564 = vadd.f32 %v7526, %v7531
  %v7565 = vmax.f32 %v7533, 0.0
  %v7566 = vmax.f32 %v7534, 0.0
  %v7567 = vmax.f32 %v7535, 0.0
  %v7568 = vmax.f32 %v7536, 0.0
  %v7569 = vmax.f32 %v7537, 0.0
  %v7570 = vmax.f32 %v7538, 0.0
  %v7571 = vmax.f32 %v7539, 0.0
  %v7572 = vmax.f32 %v7540, 0.0
  %v7573 = vmax.f32 %v7541, 0.0
  %v7574 = vmax.f32 %v7542, 0.0
  %v7575 = vmax.f32 %v7543, 0.0
  %v7576 = vmax.f32 %v7544, 0.0
  %v7577 = vmax.f32 %v7545, 0.0
  %v7578 = vmax.f32 %v7546, 0.0
  %v7579 = vmax.f32 %v7547, 0.0
  %v7580 = vmax.f32 %v7548, 0.0
  %v7581 = vmax.f32 %v7549, 0.0
  %v7582 = vmax.f32 %v7550, 0.0
  %v7583 = vmax.f32 %v7551, 0.0
  %v7584 = vmax.f32 %v7552, 0.0
  %v7585 = vmax.f32 %v7553, 0.0
  %v7586 = vmax.f32 %v7554, 0.0
  %v7587 = vmax.f32 %v7555, 0.0
  %v7588 = vmax.f32 %v7556, 0.0
  %v7589 = vmax.f32 %v7557, 0.0
  %v7590 = vmax.f32 %v7558, 0.0
  %v7591 = vmax.f32 %v7559, 0.0
  %v7592 = vmax.f32 %v7560, 0.0
  %v7593 = vmax.f32 %v7561, 0.0
  %v7594 = vmax.f32 %v7562, 0.0
  %v7595 = vmax.f32 %v7563, 0.0
  %v7596 = vmax.f32 %v7564, 0.0
  %v7597 = vmul.f32 %v7206, 0.00390625
  %v7598 = vmul.f32 %v7408, 0.00390625
  %v7599 = vmul.f32 %v7597, %v7597
  %v7600 = vsub.f32 %v7598, %v7599
  %v7601 = vmax.f32 %v7600, 0.0
  %v7602 = vsel %vm7068, %v7597, %v7411
  %v7603 = vsel %vm7068, %v7601, %v7415
  %v7604 = vsub.f32 %v6906, %v7602
  %v7605 = vsub.f32 %v6911, %v7602
  %v7606 = vsub.f32 %v6916, %v7602
  %v7607 = vsub.f32 %v6921, %v7602
  %v7608 = vsub.f32 %v6926, %v7602
  %v7609 = vsub.f32 %v6931, %v7602
  %v7610 = vsub.f32 %v6936, %v7602
  %v7611 = vsub.f32 %v6941, %v7602
  %v7612 = vsub.f32 %v6946, %v7602
  %v7613 = vsub.f32 %v6951, %v7602
  %v7614 = vsub.f32 %v6956, %v7602
  %v7615 = vsub.f32 %v6961, %v7602
  %v7616 = vsub.f32 %v6966, %v7602
  %v7617 = vsub.f32 %v6971, %v7602
  %v7618 = vsub.f32 %v6976, %v7602
  %v7619 = vsub.f32 %v6981, %v7602
  %v7620 = vsub.f32 %v6986, %v7602
  %v7621 = vsub.f32 %v6991, %v7602
  %v7622 = vsub.f32 %v6996, %v7602
  %v7623 = vsub.f32 %v7001, %v7602
  %v7624 = vsub.f32 %v7006, %v7602
  %v7625 = vsub.f32 %v7011, %v7602
  %v7626 = vsub.f32 %v7016, %v7602
  %v7627 = vsub.f32 %v7021, %v7602
  %v7628 = vsub.f32 %v7026, %v7602
  %v7629 = vsub.f32 %v7031, %v7602
  %v7630 = vsub.f32 %v7036, %v7602
  %v7631 = vsub.f32 %v7041, %v7602
  %v7632 = vsub.f32 %v7046, %v7602
  %v7633 = vsub.f32 %v7051, %v7602
  %v7634 = vsub.f32 %v7056, %v7602
  %v7635 = vsub.f32 %v7061, %v7602
  %v7636 = vadd.f32 %v7603, 1e-05
  %v7637 = vrsqrt.pop %v7636
  %v7638 = vmul.f32 %v7604, %v7637
  %v7639 = vmul.f32 %v7605, %v7637
  %v7640 = vmul.f32 %v7606, %v7637
  %v7641 = vmul.f32 %v7607, %v7637
  %v7642 = vmul.f32 %v7608, %v7637
  %v7643 = vmul.f32 %v7609, %v7637
  %v7644 = vmul.f32 %v7610, %v7637
  %v7645 = vmul.f32 %v7611, %v7637
  %v7646 = vmul.f32 %v7612, %v7637
  %v7647 = vmul.f32 %v7613, %v7637
  %v7648 = vmul.f32 %v7614, %v7637
  %v7649 = vmul.f32 %v7615, %v7637
  %v7650 = vmul.f32 %v7616, %v7637
  %v7651 = vmul.f32 %v7617, %v7637
  %v7652 = vmul.f32 %v7618, %v7637
  %v7653 = vmul.f32 %v7619, %v7637
  %v7654 = vmul.f32 %v7620, %v7637
  %v7655 = vmul.f32 %v7621, %v7637
  %v7656 = vmul.f32 %v7622, %v7637
  %v7657 = vmul.f32 %v7623, %v7637
  %v7658 = vmul.f32 %v7624, %v7637
  %v7659 = vmul.f32 %v7625, %v7637
  %v7660 = vmul.f32 %v7626, %v7637
  %v7661 = vmul.f32 %v7627, %v7637
  %v7662 = vmul.f32 %v7628, %v7637
  %v7663 = vmul.f32 %v7629, %v7637
  %v7664 = vmul.f32 %v7630, %v7637
  %v7665 = vmul.f32 %v7631, %v7637
  %v7666 = vmul.f32 %v7632, %v7637
  %v7667 = vmul.f32 %v7633, %v7637
  %v7668 = vmul.f32 %v7634, %v7637
  %v7669 = vmul.f32 %v7635, %v7637
  %v7670 = vmul.f32 %v7638, %v7493
  %v7671 = vmul.f32 %v7639, %v7493
  %v7672 = vmul.f32 %v7640, %v7493
  %v7673 = vmul.f32 %v7641, %v7493
  %v7674 = vmul.f32 %v7642, %v7493
  %v7675 = vmul.f32 %v7643, %v7493
  %v7676 = vmul.f32 %v7644, %v7493
  %v7677 = vmul.f32 %v7645, %v7493
  %v7678 = vmul.f32 %v7646, %v7493
  %v7679 = vmul.f32 %v7647, %v7493
  %v7680 = vmul.f32 %v7648, %v7493
  %v7681 = vmul.f32 %v7649, %v7493
  %v7682 = vmul.f32 %v7650, %v7493
  %v7683 = vmul.f32 %v7651, %v7493
  %v7684 = vmul.f32 %v7652, %v7493
  %v7685 = vmul.f32 %v7653, %v7493
  %v7686 = vmul.f32 %v7654, %v7493
  %v7687 = vmul.f32 %v7655, %v7493
  %v7688 = vmul.f32 %v7656, %v7493
  %v7689 = vmul.f32 %v7657, %v7493
  %v7690 = vmul.f32 %v7658, %v7493
  %v7691 = vmul.f32 %v7659, %v7493
  %v7692 = vmul.f32 %v7660, %v7493
  %v7693 = vmul.f32 %v7661, %v7493
  %v7694 = vmul.f32 %v7662, %v7493
  %v7695 = vmul.f32 %v7663, %v7493
  %v7696 = vmul.f32 %v7664, %v7493
  %v7697 = vmul.f32 %v7665, %v7493
  %v7698 = vmul.f32 %v7666, %v7493
  %v7699 = vmul.f32 %v7667, %v7493
  %v7700 = vmul.f32 %v7668, %v7493
  %v7701 = vmul.f32 %v7669, %v7493
  %v7702 = vadd.f32 %v7670, %v7531
  %v7703 = vadd.f32 %v7671, %v7531
  %v7704 = vadd.f32 %v7672, %v7531
  %v7705 = vadd.f32 %v7673, %v7531
  %v7706 = vadd.f32 %v7674, %v7531
  %v7707 = vadd.f32 %v7675, %v7531
  %v7708 = vadd.f32 %v7676, %v7531
  %v7709 = vadd.f32 %v7677, %v7531
  %v7710 = vadd.f32 %v7678, %v7531
  %v7711 = vadd.f32 %v7679, %v7531
  %v7712 = vadd.f32 %v7680, %v7531
  %v7713 = vadd.f32 %v7681, %v7531
  %v7714 = vadd.f32 %v7682, %v7531
  %v7715 = vadd.f32 %v7683, %v7531
  %v7716 = vadd.f32 %v7684, %v7531
  %v7717 = vadd.f32 %v7685, %v7531
  %v7718 = vadd.f32 %v7686, %v7531
  %v7719 = vadd.f32 %v7687, %v7531
  %v7720 = vadd.f32 %v7688, %v7531
  %v7721 = vadd.f32 %v7689, %v7531
  %v7722 = vadd.f32 %v7690, %v7531
  %v7723 = vadd.f32 %v7691, %v7531
  %v7724 = vadd.f32 %v7692, %v7531
  %v7725 = vadd.f32 %v7693, %v7531
  %v7726 = vadd.f32 %v7694, %v7531
  %v7727 = vadd.f32 %v7695, %v7531
  %v7728 = vadd.f32 %v7696, %v7531
  %v7729 = vadd.f32 %v7697, %v7531
  %v7730 = vadd.f32 %v7698, %v7531
  %v7731 = vadd.f32 %v7699, %v7531
  %v7732 = vadd.f32 %v7700, %v7531
  %v7733 = vadd.f32 %v7701, %v7531
  %v7734 = vmax.f32 %v7702, 0.0
  %v7735 = vmax.f32 %v7703, 0.0
  %v7736 = vmax.f32 %v7704, 0.0
  %v7737 = vmax.f32 %v7705, 0.0
  %v7738 = vmax.f32 %v7706, 0.0
  %v7739 = vmax.f32 %v7707, 0.0
  %v7740 = vmax.f32 %v7708, 0.0
  %v7741 = vmax.f32 %v7709, 0.0
  %v7742 = vmax.f32 %v7710, 0.0
  %v7743 = vmax.f32 %v7711, 0.0
  %v7744 = vmax.f32 %v7712, 0.0
  %v7745 = vmax.f32 %v7713, 0.0
  %v7746 = vmax.f32 %v7714, 0.0
  %v7747 = vmax.f32 %v7715, 0.0
  %v7748 = vmax.f32 %v7716, 0.0
  %v7749 = vmax.f32 %v7717, 0.0
  %v7750 = vmax.f32 %v7718, 0.0
  %v7751 = vmax.f32 %v7719, 0.0
  %v7752 = vmax.f32 %v7720, 0.0
  %v7753 = vmax.f32 %v7721, 0.0
  %v7754 = vmax.f32 %v7722, 0.0
  %v7755 = vmax.f32 %v7723, 0.0
  %v7756 = vmax.f32 %v7724, 0.0
  %v7757 = vmax.f32 %v7725, 0.0
  %v7758 = vmax.f32 %v7726, 0.0
  %v7759 = vmax.f32 %v7727, 0.0
  %v7760 = vmax.f32 %v7728, 0.0
  %v7761 = vmax.f32 %v7729, 0.0
  %v7762 = vmax.f32 %v7730, 0.0
  %v7763 = vmax.f32 %v7731, 0.0
  %v7764 = vmax.f32 %v7732, 0.0
  %v7765 = vmax.f32 %v7733, 0.0
  %7766 = vst.msk [vmem:[#allocation3 + $0x18] sm:$0xff] %vm103, %v7565
  %7767 = vst.msk [vmem:[#allocation3 + $0x20] sm:$0xff] %vm103, %v7566
  %7768 = vst.msk [vmem:[#allocation3 + $0x28] sm:$0xff] %vm103, %v7567
  %7769 = vst.msk [vmem:[#allocation3 + $0x30] sm:$0xff] %vm103, %v7568
  %7770 = vst.msk [vmem:[#allocation3 + $0x38] sm:$0xff] %vm103, %v7569
  %7771 = vst.msk [vmem:[#allocation3 + $0x40] sm:$0xff] %vm103, %v7570
  %7772 = vst.msk [vmem:[#allocation3 + $0x48] sm:$0xff] %vm103, %v7571
  %7773 = vst.msk [vmem:[#allocation3 + $0x50] sm:$0xff] %vm103, %v7572
  %7774 = vst.msk [vmem:[#allocation3 + $0x58] sm:$0xff] %vm103, %v7573
  %7775 = vst.msk [vmem:[#allocation3 + $0x60] sm:$0xff] %vm103, %v7574
  %7776 = vst.msk [vmem:[#allocation3 + $0x68] sm:$0xff] %vm103, %v7575
  %7777 = vst.msk [vmem:[#allocation3 + $0x70] sm:$0xff] %vm103, %v7576
  %7778 = vst.msk [vmem:[#allocation3 + $0x78] sm:$0xff] %vm103, %v7577
  %7779 = vst.msk [vmem:[#allocation3 + $0x80] sm:$0xff] %vm103, %v7578
  %7780 = vst.msk [vmem:[#allocation3 + $0x88] sm:$0xff] %vm103, %v7579
  %7781 = vst.msk [vmem:[#allocation3 + $0x90] sm:$0xff] %vm103, %v7580
  %7782 = vst.msk [vmem:[#allocation3 + $0x98] sm:$0xff] %vm103, %v7581
  %7783 = vst.msk [vmem:[#allocation3 + $0xa0] sm:$0xff] %vm103, %v7582
  %7784 = vst.msk [vmem:[#allocation3 + $0xa8] sm:$0xff] %vm103, %v7583
  %7785 = vst.msk [vmem:[#allocation3 + $0xb0] sm:$0xff] %vm103, %v7584
  %7786 = vst.msk [vmem:[#allocation3 + $0xb8] sm:$0xff] %vm103, %v7585
  %7787 = vst.msk [vmem:[#allocation3 + $0xc0] sm:$0xff] %vm103, %v7586
  %7788 = vst.msk [vmem:[#allocation3 + $0xc8] sm:$0xff] %vm103, %v7587
  %7789 = vst.msk [vmem:[#allocation3 + $0xd0] sm:$0xff] %vm103, %v7588
  %7790 = vst.msk [vmem:[#allocation3 + $0xd8] sm:$0xff] %vm103, %v7589
  %7791 = vst.msk [vmem:[#allocation3 + $0xe0] sm:$0xff] %vm103, %v7590
  %7792 = vst.msk [vmem:[#allocation3 + $0xe8] sm:$0xff] %vm103, %v7591
  %7793 = vst.msk [vmem:[#allocation3 + $0xf0] sm:$0xff] %vm103, %v7592
  %7794 = vst.msk [vmem:[#allocation3 + $0xf8] sm:$0xff] %vm103, %v7593
  %7795 = vst.msk [vmem:[#allocation3 + $0x100] sm:$0xff] %vm103, %v7594
  %7796 = vst.msk [vmem:[#allocation3 + $0x108] sm:$0xff] %vm103, %v7595
  %7797 = vst.msk [vmem:[#allocation3 + $0x110] sm:$0xff] %vm103, %v7596
  %7798 = vst.msk [vmem:[#allocation3 + $0x148] sm:$0xff] %vm103, %v7734
  %7799 = vst.msk [vmem:[#allocation3 + $0x150] sm:$0xff] %vm103, %v7735
  %7800 = vst.msk [vmem:[#allocation3 + $0x158] sm:$0xff] %vm103, %v7736
  %7801 = vst.msk [vmem:[#allocation3 + $0x160] sm:$0xff] %vm103, %v7737
  %7802 = vst.msk [vmem:[#allocation3 + $0x168] sm:$0xff] %vm103, %v7738
  %7803 = vst.msk [vmem:[#allocation3 + $0x170] sm:$0xff] %vm103, %v7739
  %7804 = vst.msk [vmem:[#allocation3 + $0x178] sm:$0xff] %vm103, %v7740
  %7805 = vst.msk [vmem:[#allocation3 + $0x180] sm:$0xff] %vm103, %v7741
  %7806 = vst.msk [vmem:[#allocation3 + $0x188] sm:$0xff] %vm103, %v7742
  %7807 = vst.msk [vmem:[#allocation3 + $0x190] sm:$0xff] %vm103, %v7743
  %7808 = vst.msk [vmem:[#allocation3 + $0x198] sm:$0xff] %vm103, %v7744
  %7809 = vst.msk [vmem:[#allocation3 + $0x1a0] sm:$0xff] %vm103, %v7745
  %7810 = vst.msk [vmem:[#allocation3 + $0x1a8] sm:$0xff] %vm103, %v7746
  %7811 = vst.msk [vmem:[#allocation3 + $0x1b0] sm:$0xff] %vm103, %v7747
  %7812 = vst.msk [vmem:[#allocation3 + $0x1b8] sm:$0xff] %vm103, %v7748
  %7813 = vst.msk [vmem:[#allocation3 + $0x1c0] sm:$0xff] %vm103, %v7749
  %7814 = vst.msk [vmem:[#allocation3 + $0x1c8] sm:$0xff] %vm103, %v7750
  %7815 = vst.msk [vmem:[#allocation3 + $0x1d0] sm:$0xff] %vm103, %v7751
  %7816 = vst.msk [vmem:[#allocation3 + $0x1d8] sm:$0xff] %vm103, %v7752
  %7817 = vst.msk [vmem:[#allocation3 + $0x1e0] sm:$0xff] %vm103, %v7753
  %7818 = vst.msk [vmem:[#allocation3 + $0x1e8] sm:$0xff] %vm103, %v7754
  %7819 = vst.msk [vmem:[#allocation3 + $0x1f0] sm:$0xff] %vm103, %v7755
  %7820 = vst.msk [vmem:[#allocation3 + $0x1f8] sm:$0xff] %vm103, %v7756
  %7821 = vst.msk [vmem:[#allocation3 + $0x200] sm:$0xff] %vm103, %v7757
  %7822 = vst.msk [vmem:[#allocation3 + $0x208] sm:$0xff] %vm103, %v7758
  %7823 = vst.msk [vmem:[#allocation3 + $0x210] sm:$0xff] %vm103, %v7759
  %7824 = vst.msk [vmem:[#allocation3 + $0x218] sm:$0xff] %vm103, %v7760
  %7825 = vst.msk [vmem:[#allocation3 + $0x220] sm:$0xff] %vm103, %v7761
  %7826 = vst.msk [vmem:[#allocation3 + $0x228] sm:$0xff] %vm103, %v7762
  %7827 = vst.msk [vmem:[#allocation3 + $0x230] sm:$0xff] %vm103, %v7763
  %7828 = vst.msk [vmem:[#allocation3 + $0x238] sm:$0xff] %vm103, %v7764
  %7829 = vst.msk [vmem:[#allocation3 + $0x240] sm:$0xff] %vm103, %v7765
  %v7830 = vld [vmem:[#allocation3] sm:$0xff]
  %v7831 = vld [vmem:[#allocation3 + $0x8] sm:$0xff]
  %v7832 = vld [vmem:[#allocation3 + $0x10] sm:$0xff]
  %v7833 = vld [vmem:[#allocation3 + $0x18] sm:$0xff]
  %v7834 = vld [vmem:[#allocation3 + $0x20] sm:$0xff]
  %v7835 = vld [vmem:[#allocation3 + $0x28] sm:$0xff]
  %v7836 = vld [vmem:[#allocation3 + $0x30] sm:$0xff]
  %v7837 = vld [vmem:[#allocation3 + $0x38] sm:$0xff]
  %v7838 = vld [vmem:[#allocation3 + $0x40] sm:$0xff]
  %v7839 = vld [vmem:[#allocation3 + $0x48] sm:$0xff]
  %v7840 = vld [vmem:[#allocation3 + $0x50] sm:$0xff]
  %v7841 = vld [vmem:[#allocation3 + $0x58] sm:$0xff]
  %v7842 = vld [vmem:[#allocation3 + $0x60] sm:$0xff]
  %v7843 = vld [vmem:[#allocation3 + $0x68] sm:$0xff]
  %v7844 = vld [vmem:[#allocation3 + $0x70] sm:$0xff]
  %v7845 = vld [vmem:[#allocation3 + $0x78] sm:$0xff]
  %v7846 = vld [vmem:[#allocation3 + $0x80] sm:$0xff]
  %v7847 = vld [vmem:[#allocation3 + $0x88] sm:$0xff]
  %v7848 = vld [vmem:[#allocation3 + $0x90] sm:$0xff]
  %v7849 = vld [vmem:[#allocation3 + $0x98] sm:$0xff]
  %v7850 = vld [vmem:[#allocation3 + $0xa0] sm:$0xff]
  %v7851 = vld [vmem:[#allocation3 + $0xa8] sm:$0xff]
  %v7852 = vld [vmem:[#allocation3 + $0xb0] sm:$0xff]
  %v7853 = vld [vmem:[#allocation3 + $0xb8] sm:$0xff]
  %v7854 = vld [vmem:[#allocation3 + $0xc0] sm:$0xff]
  %v7855 = vld [vmem:[#allocation3 + $0xc8] sm:$0xff]
  %v7856 = vld [vmem:[#allocation3 + $0xd0] sm:$0xff]
  %v7857 = vld [vmem:[#allocation3 + $0xd8] sm:$0xff]
  %v7858 = vld [vmem:[#allocation3 + $0xe0] sm:$0xff]
  %v7859 = vld [vmem:[#allocation3 + $0xe8] sm:$0xff]
  %v7860 = vld [vmem:[#allocation3 + $0xf0] sm:$0xff]
  %v7861 = vld [vmem:[#allocation3 + $0xf8] sm:$0xff]
  %v7862 = vld [vmem:[#allocation3 + $0x100] sm:$0xff]
  %v7863 = vld [vmem:[#allocation3 + $0x108] sm:$0xff]
  %v7864 = vld [vmem:[#allocation3 + $0x110] sm:$0xff]
  %v7865 = vld [vmem:[#allocation3 + $0x118] sm:$0xff]
  %v7866 = vld [vmem:[#allocation3 + $0x120] sm:$0xff]
  %v7867 = vld [vmem:[#allocation3 + $0x128] sm:$0xff]
  %v7868 = vld [vmem:[#allocation3 + $0x130] sm:$0xff]
  %v7869 = vld [vmem:[#allocation3 + $0x138] sm:$0xff]
  %v7870 = vld [vmem:[#allocation3 + $0x140] sm:$0xff]
  %v7871 = vld [vmem:[#allocation3 + $0x148] sm:$0xff]
  %v7872 = vld [vmem:[#allocation3 + $0x150] sm:$0xff]
  %v7873 = vld [vmem:[#allocation3 + $0x158] sm:$0xff]
  %v7874 = vld [vmem:[#allocation3 + $0x160] sm:$0xff]
  %v7875 = vld [vmem:[#allocation3 + $0x168] sm:$0xff]
  %v7876 = vld [vmem:[#allocation3 + $0x170] sm:$0xff]
  %v7877 = vld [vmem:[#allocation3 + $0x178] sm:$0xff]
  %v7878 = vld [vmem:[#allocation3 + $0x180] sm:$0xff]
  %v7879 = vld [vmem:[#allocation3 + $0x188] sm:$0xff]
  %v7880 = vld [vmem:[#allocation3 + $0x190] sm:$0xff]
  %v7881 = vld [vmem:[#allocation3 + $0x198] sm:$0xff]
  %v7882 = vld [vmem:[#allocation3 + $0x1a0] sm:$0xff]
  %v7883 = vld [vmem:[#allocation3 + $0x1a8] sm:$0xff]
  %v7884 = vld [vmem:[#allocation3 + $0x1b0] sm:$0xff]
  %v7885 = vld [vmem:[#allocation3 + $0x1b8] sm:$0xff]
  %v7886 = vld [vmem:[#allocation3 + $0x1c0] sm:$0xff]
  %v7887 = vld [vmem:[#allocation3 + $0x1c8] sm:$0xff]
  %v7888 = vld [vmem:[#allocation3 + $0x1d0] sm:$0xff]
  %v7889 = vld [vmem:[#allocation3 + $0x1d8] sm:$0xff]
  %v7890 = vld [vmem:[#allocation3 + $0x1e0] sm:$0xff]
  %v7891 = vld [vmem:[#allocation3 + $0x1e8] sm:$0xff]
  %v7892 = vld [vmem:[#allocation3 + $0x1f0] sm:$0xff]
  %v7893 = vld [vmem:[#allocation3 + $0x1f8] sm:$0xff]
  %v7894 = vld [vmem:[#allocation3 + $0x200] sm:$0xff]
  %v7895 = vld [vmem:[#allocation3 + $0x208] sm:$0xff]
  %v7896 = vld [vmem:[#allocation3 + $0x210] sm:$0xff]
  %v7897 = vld [vmem:[#allocation3 + $0x218] sm:$0xff]
  %v7898 = vld [vmem:[#allocation3 + $0x220] sm:$0xff]
  %v7899 = vld [vmem:[#allocation3 + $0x228] sm:$0xff]
  %v7900 = vld [vmem:[#allocation3 + $0x230] sm:$0xff]
  %v7901 = vld [vmem:[#allocation3 + $0x238] sm:$0xff]
  %v7902 = vld [vmem:[#allocation3 + $0x240] sm:$0xff]
  %v7903 = vld [vmem:[#allocation3 + $0x248] sm:$0xff]
  %v7904 = vld [vmem:[#allocation3 + $0x250] sm:$0xff]
  %v7905 = vld [vmem:[#allocation3 + $0x258] sm:$0xff]
  %v7906 = vsel %vm3044, 0.0, %v7830
  %v7907 = vsel %vm3045, 0.0, %v7831
  %v7908 = vsel %vm3046, 0.0, %v7832
  %v7909 = vsel %vm3047, 0.0, %v7833
  %v7910 = vsel %vm3048, 0.0, %v7834
  %v7911 = vsel %vm3049, 0.0, %v7835
  %v7912 = vsel %vm3050, 0.0, %v7836
  %v7913 = vsel %vm3051, 0.0, %v7837
  %v7914 = vsel %vm3052, 0.0, %v7838
  %v7915 = vsel %vm3053, 0.0, %v7839
  %v7916 = vsel %vm3054, 0.0, %v7840
  %v7917 = vsel %vm3055, 0.0, %v7841
  %v7918 = vsel %vm3056, 0.0, %v7842
  %v7919 = vsel %vm3057, 0.0, %v7843
  %v7920 = vsel %vm3058, 0.0, %v7844
  %v7921 = vsel %vm3059, 0.0, %v7845
  %v7922 = vsel %vm3060, 0.0, %v7846
  %v7923 = vsel %vm3061, 0.0, %v7847
  %v7924 = vsel %vm3062, 0.0, %v7848
  %v7925 = vsel %vm3063, 0.0, %v7849
  %v7926 = vsel %vm3064, 0.0, %v7850
  %v7927 = vsel %vm3065, 0.0, %v7851
  %v7928 = vsel %vm3066, 0.0, %v7852
  %v7929 = vsel %vm3067, 0.0, %v7853
  %v7930 = vsel %vm3068, 0.0, %v7854
  %v7931 = vsel %vm3069, 0.0, %v7855
  %v7932 = vsel %vm3070, 0.0, %v7856
  %v7933 = vsel %vm3071, 0.0, %v7857
  %v7934 = vsel %vm3072, 0.0, %v7858
  %v7935 = vsel %vm3073, 0.0, %v7859
  %v7936 = vsel %vm3074, 0.0, %v7860
  %v7937 = vsel %vm3075, 0.0, %v7861
  %v7938 = vsel %vm3076, 0.0, %v7862
  %v7939 = vsel %vm3077, 0.0, %v7863
  %v7940 = vsel %vm3078, 0.0, %v7864
  %v7941 = vsel %vm3079, 0.0, %v7865
  %v7942 = vsel %vm3080, 0.0, %v7866
  %v7943 = vsel %vm3081, 0.0, %v7867
  %v7944 = vsel %vm3082, 0.0, %v7868
  %v7945 = vsel %vm3083, 0.0, %v7869
  %v7946 = vsel %vm3084, 0.0, %v7870
  %v7947 = vsel %vm3085, 0.0, %v7871
  %v7948 = vsel %vm3086, 0.0, %v7872
  %v7949 = vsel %vm3087, 0.0, %v7873
  %v7950 = vsel %vm3088, 0.0, %v7874
  %v7951 = vsel %vm3089, 0.0, %v7875
  %v7952 = vsel %vm3090, 0.0, %v7876
  %v7953 = vsel %vm3091, 0.0, %v7877
  %v7954 = vsel %vm3092, 0.0, %v7878
  %v7955 = vsel %vm3093, 0.0, %v7879
  %v7956 = vsel %vm3094, 0.0, %v7880
  %v7957 = vsel %vm3095, 0.0, %v7881
  %v7958 = vsel %vm3096, 0.0, %v7882
  %v7959 = vsel %vm3097, 0.0, %v7883
  %v7960 = vsel %vm3098, 0.0, %v7884
  %v7961 = vsel %vm3099, 0.0, %v7885
  %v7962 = vsel %vm3100, 0.0, %v7886
  %v7963 = vsel %vm3101, 0.0, %v7887
  %v7964 = vsel %vm3102, 0.0, %v7888
  %v7965 = vsel %vm3103, 0.0, %v7889
  %v7966 = vsel %vm3104, 0.0, %v7890
  %v7967 = vsel %vm3105, 0.0, %v7891
  %v7968 = vsel %vm3106, 0.0, %v7892
  %v7969 = vsel %vm3107, 0.0, %v7893
  %v7970 = vsel %vm3108, 0.0, %v7894
  %v7971 = vsel %vm3109, 0.0, %v7895
  %v7972 = vsel %vm3110, 0.0, %v7896
  %v7973 = vsel %vm3111, 0.0, %v7897
  %v7974 = vsel %vm3112, 0.0, %v7898
  %v7975 = vsel %vm3113, 0.0, %v7899
  %v7976 = vsel %vm3114, 0.0, %v7900
  %v7977 = vsel %vm3115, 0.0, %v7901
  %v7978 = vsel %vm3116, 0.0, %v7902
  %v7979 = vsel %vm3117, 0.0, %v7903
  %v7980 = vsel %vm3118, 0.0, %v7904
  %v7981 = vsel %vm3344, 0.0, %v7831
  %v7982 = vsel %vm3345, 0.0, %v7832
  %v7983 = vsel %vm3346, 0.0, %v7833
  %v7984 = vsel %vm3347, 0.0, %v7834
  %v7985 = vsel %vm3348, 0.0, %v7835
  %v7986 = vsel %vm3349, 0.0, %v7836
  %v7987 = vsel %vm3350, 0.0, %v7837
  %v7988 = vsel %vm3351, 0.0, %v7838
  %v7989 = vsel %vm3352, 0.0, %v7839
  %v7990 = vsel %vm3353, 0.0, %v7840
  %v7991 = vsel %vm3354, 0.0, %v7841
  %v7992 = vsel %vm3355, 0.0, %v7842
  %v7993 = vsel %vm3356, 0.0, %v7843
  %v7994 = vsel %vm3357, 0.0, %v7844
  %v7995 = vsel %vm3358, 0.0, %v7845
  %v7996 = vsel %vm3359, 0.0, %v7846
  %v7997 = vsel %vm3360, 0.0, %v7847
  %v7998 = vsel %vm3361, 0.0, %v7848
  %v7999 = vsel %vm3362, 0.0, %v7849
  %v8000 = vsel %vm3363, 0.0, %v7850
  %v8001 = vsel %vm3364, 0.0, %v7851
  %v8002 = vsel %vm3365, 0.0, %v7852
  %v8003 = vsel %vm3366, 0.0, %v7853
  %v8004 = vsel %vm3367, 0.0, %v7854
  %v8005 = vsel %vm3368, 0.0, %v7855
  %v8006 = vsel %vm3369, 0.0, %v7856
  %v8007 = vsel %vm3370, 0.0, %v7857
  %v8008 = vsel %vm3371, 0.0, %v7858
  %v8009 = vsel %vm3372, 0.0, %v7859
  %v8010 = vsel %vm3373, 0.0, %v7860
  %v8011 = vsel %vm3374, 0.0, %v7861
  %v8012 = vsel %vm3375, 0.0, %v7862
  %v8013 = vsel %vm3376, 0.0, %v7863
  %v8014 = vsel %vm3377, 0.0, %v7864
  %v8015 = vsel %vm3378, 0.0, %v7865
  %v8016 = vsel %vm3379, 0.0, %v7866
  %v8017 = vsel %vm3380, 0.0, %v7867
  %v8018 = vsel %vm3381, 0.0, %v7868
  %v8019 = vsel %vm3382, 0.0, %v7869
  %v8020 = vsel %vm3383, 0.0, %v7870
  %v8021 = vsel %vm3384, 0.0, %v7871
  %v8022 = vsel %vm3385, 0.0, %v7872
  %v8023 = vsel %vm3386, 0.0, %v7873
  %v8024 = vsel %vm3387, 0.0, %v7874
  %v8025 = vsel %vm3388, 0.0, %v7875
  %v8026 = vsel %vm3389, 0.0, %v7876
  %v8027 = vsel %vm3390, 0.0, %v7877
  %v8028 = vsel %vm3391, 0.0, %v7878
  %v8029 = vsel %vm3392, 0.0, %v7879
  %v8030 = vsel %vm3393, 0.0, %v7880
  %v8031 = vsel %vm3394, 0.0, %v7881
  %v8032 = vsel %vm3395, 0.0, %v7882
  %v8033 = vsel %vm3396, 0.0, %v7883
  %v8034 = vsel %vm3397, 0.0, %v7884
  %v8035 = vsel %vm3398, 0.0, %v7885
  %v8036 = vsel %vm3399, 0.0, %v7886
  %v8037 = vsel %vm3400, 0.0, %v7887
  %v8038 = vsel %vm3401, 0.0, %v7888
  %v8039 = vsel %vm3402, 0.0, %v7889
  %v8040 = vsel %vm3403, 0.0, %v7890
  %v8041 = vsel %vm3404, 0.0, %v7891
  %v8042 = vsel %vm3405, 0.0, %v7892
  %v8043 = vsel %vm3406, 0.0, %v7893
  %v8044 = vsel %vm3407, 0.0, %v7894
  %v8045 = vsel %vm3408, 0.0, %v7895
  %v8046 = vsel %vm3409, 0.0, %v7896
  %v8047 = vsel %vm3410, 0.0, %v7897
  %v8048 = vsel %vm3411, 0.0, %v7898
  %v8049 = vsel %vm3412, 0.0, %v7899
  %v8050 = vsel %vm3413, 0.0, %v7900
  %v8051 = vsel %vm3414, 0.0, %v7901
  %v8052 = vsel %vm3415, 0.0, %v7902
  %v8053 = vsel %vm3416, 0.0, %v7903
  %v8054 = vsel %vm3417, 0.0, %v7904
  %v8055 = vsel %vm3418, 0.0, %v7905
  %v8126 = vrot.slane %v7831, 1
  %v8127 = vrot.slane %v7832, 1
  %v8128 = vsel %vm3564, %v8126, %v8127
  %v8129 = vrot.slane %v7833, 1
  %v8130 = vsel %vm3564, %v8127, %v8129
  %v8131 = vrot.slane %v7834, 1
  %v8132 = vsel %vm3564, %v8129, %v8131
  %v8133 = vrot.slane %v7835, 1
  %v8134 = vsel %vm3564, %v8131, %v8133
  %v8135 = vrot.slane %v7836, 1
  %v8136 = vsel %vm3564, %v8133, %v8135
  %v8137 = vrot.slane %v7837, 1
  %v8138 = vsel %vm3564, %v8135, %v8137
  %v8139 = vrot.slane %v7838, 1
  %v8140 = vsel %vm3564, %v8137, %v8139
  %v8141 = vrot.slane %v7839, 1
  %v8142 = vsel %vm3564, %v8139, %v8141
  %v8143 = vrot.slane %v7840, 1
  %v8144 = vsel %vm3564, %v8141, %v8143
  %v8145 = vrot.slane %v7841, 1
  %v8146 = vsel %vm3564, %v8143, %v8145
  %v8147 = vrot.slane %v7842, 1
  %v8148 = vsel %vm3564, %v8145, %v8147
  %v8149 = vrot.slane %v7843, 1
  %v8150 = vsel %vm3564, %v8147, %v8149
  %v8151 = vrot.slane %v7844, 1
  %v8152 = vsel %vm3564, %v8149, %v8151
  %v8153 = vrot.slane %v7845, 1
  %v8154 = vsel %vm3564, %v8151, %v8153
  %v8155 = vrot.slane %v7846, 1
  %v8156 = vsel %vm3564, %v8153, %v8155
  %v8157 = vrot.slane %v7847, 1
  %v8158 = vsel %vm3564, %v8155, %v8157
  %v8159 = vrot.slane %v7848, 1
  %v8160 = vsel %vm3564, %v8157, %v8159
  %v8161 = vrot.slane %v7849, 1
  %v8162 = vsel %vm3564, %v8159, %v8161
  %v8163 = vrot.slane %v7850, 1
  %v8164 = vsel %vm3564, %v8161, %v8163
  %v8165 = vrot.slane %v7851, 1
  %v8166 = vsel %vm3564, %v8163, %v8165
  %v8167 = vrot.slane %v7852, 1
  %v8168 = vsel %vm3564, %v8165, %v8167
  %v8169 = vrot.slane %v7853, 1
  %v8170 = vsel %vm3564, %v8167, %v8169
  %v8171 = vrot.slane %v7854, 1
  %v8172 = vsel %vm3564, %v8169, %v8171
  %v8173 = vrot.slane %v7855, 1
  %v8174 = vsel %vm3564, %v8171, %v8173
  %v8175 = vrot.slane %v7856, 1
  %v8176 = vsel %vm3564, %v8173, %v8175
  %v8177 = vrot.slane %v7857, 1
  %v8178 = vsel %vm3564, %v8175, %v8177
  %v8179 = vrot.slane %v7858, 1
  %v8180 = vsel %vm3564, %v8177, %v8179
  %v8181 = vrot.slane %v7859, 1
  %v8182 = vsel %vm3564, %v8179, %v8181
  %v8183 = vrot.slane %v7860, 1
  %v8184 = vsel %vm3564, %v8181, %v8183
  %v8185 = vrot.slane %v7861, 1
  %v8186 = vsel %vm3564, %v8183, %v8185
  %v8187 = vrot.slane %v7862, 1
  %v8188 = vsel %vm3564, %v8185, %v8187
  %v8189 = vrot.slane %v7863, 1
  %v8190 = vsel %vm3564, %v8187, %v8189
  %v8191 = vrot.slane %v7864, 1
  %v8192 = vsel %vm3564, %v8189, %v8191
  %v8193 = vrot.slane %v7865, 1
  %v8194 = vsel %vm3564, %v8191, %v8193
  %v8195 = vrot.slane %v7866, 1
  %v8196 = vsel %vm3564, %v8193, %v8195
  %v8197 = vrot.slane %v7867, 1
  %v8198 = vsel %vm3564, %v8195, %v8197
  %v8199 = vrot.slane %v7868, 1
  %v8200 = vsel %vm3564, %v8197, %v8199
  %v8201 = vrot.slane %v7869, 1
  %v8202 = vsel %vm3564, %v8199, %v8201
  %v8203 = vrot.slane %v7870, 1
  %v8204 = vsel %vm3564, %v8201, %v8203
  %v8205 = vrot.slane %v7871, 1
  %v8206 = vsel %vm3564, %v8203, %v8205
  %v8207 = vrot.slane %v7872, 1
  %v8208 = vsel %vm3564, %v8205, %v8207
  %v8209 = vrot.slane %v7873, 1
  %v8210 = vsel %vm3564, %v8207, %v8209
  %v8211 = vrot.slane %v7874, 1
  %v8212 = vsel %vm3564, %v8209, %v8211
  %v8213 = vrot.slane %v7875, 1
  %v8214 = vsel %vm3564, %v8211, %v8213
  %v8215 = vrot.slane %v7876, 1
  %v8216 = vsel %vm3564, %v8213, %v8215
  %v8217 = vrot.slane %v7877, 1
  %v8218 = vsel %vm3564, %v8215, %v8217
  %v8219 = vrot.slane %v7878, 1
  %v8220 = vsel %vm3564, %v8217, %v8219
  %v8221 = vrot.slane %v7879, 1
  %v8222 = vsel %vm3564, %v8219, %v8221
  %v8223 = vrot.slane %v7880, 1
  %v8224 = vsel %vm3564, %v8221, %v8223
  %v8225 = vrot.slane %v7881, 1
  %v8226 = vsel %vm3564, %v8223, %v8225
  %v8227 = vrot.slane %v7882, 1
  %v8228 = vsel %vm3564, %v8225, %v8227
  %v8229 = vrot.slane %v7883, 1
  %v8230 = vsel %vm3564, %v8227, %v8229
  %v8231 = vrot.slane %v7884, 1
  %v8232 = vsel %vm3564, %v8229, %v8231
  %v8233 = vrot.slane %v7885, 1
  %v8234 = vsel %vm3564, %v8231, %v8233
  %v8235 = vrot.slane %v7886, 1
  %v8236 = vsel %vm3564, %v8233, %v8235
  %v8237 = vrot.slane %v7887, 1
  %v8238 = vsel %vm3564, %v8235, %v8237
  %v8239 = vrot.slane %v7888, 1
  %v8240 = vsel %vm3564, %v8237, %v8239
  %v8241 = vrot.slane %v7889, 1
  %v8242 = vsel %vm3564, %v8239, %v8241
  %v8243 = vrot.slane %v7890, 1
  %v8244 = vsel %vm3564, %v8241, %v8243
  %v8245 = vrot.slane %v7891, 1
  %v8246 = vsel %vm3564, %v8243, %v8245
  %v8247 = vrot.slane %v7892, 1
  %v8248 = vsel %vm3564, %v8245, %v8247
  %v8249 = vrot.slane %v7893, 1
  %v8250 = vsel %vm3564, %v8247, %v8249
  %v8251 = vrot.slane %v7894, 1
  %v8252 = vsel %vm3564, %v8249, %v8251
  %v8253 = vrot.slane %v7895, 1
  %v8254 = vsel %vm3564, %v8251, %v8253
  %v8255 = vrot.slane %v7896, 1
  %v8256 = vsel %vm3564, %v8253, %v8255
  %v8257 = vrot.slane %v7897, 1
  %v8258 = vsel %vm3564, %v8255, %v8257
  %v8259 = vrot.slane %v7898, 1
  %v8260 = vsel %vm3564, %v8257, %v8259
  %v8261 = vrot.slane %v7899, 1
  %v8262 = vsel %vm3564, %v8259, %v8261
  %v8263 = vrot.slane %v7900, 1
  %v8264 = vsel %vm3564, %v8261, %v8263
  %8265 = vrot.lane.b32.xlu0 %v8126, 8
  %v8266 = vpop.permute.xlu0 %8265
  %8267 = vrot.lane.b32.xlu0 %v8128, 8
  %v8268 = vpop.permute.xlu0 %8267
  %8269 = vrot.lane.b32.xlu0 %v8130, 8
  %v8270 = vpop.permute.xlu0 %8269
  %8271 = vrot.lane.b32.xlu0 %v8132, 8
  %v8272 = vpop.permute.xlu0 %8271
  %8273 = vrot.lane.b32.xlu0 %v8134, 8
  %v8274 = vpop.permute.xlu0 %8273
  %8275 = vrot.lane.b32.xlu0 %v8136, 8
  %v8276 = vpop.permute.xlu0 %8275
  %8277 = vrot.lane.b32.xlu0 %v8138, 8
  %v8278 = vpop.permute.xlu0 %8277
  %8279 = vrot.lane.b32.xlu0 %v8140, 8
  %v8280 = vpop.permute.xlu0 %8279
  %8281 = vrot.lane.b32.xlu0 %v8142, 8
  %v8282 = vpop.permute.xlu0 %8281
  %8283 = vrot.lane.b32.xlu0 %v8144, 8
  %v8284 = vpop.permute.xlu0 %8283
  %8285 = vrot.lane.b32.xlu0 %v8146, 8
  %v8286 = vpop.permute.xlu0 %8285
  %8287 = vrot.lane.b32.xlu0 %v8148, 8
  %v8288 = vpop.permute.xlu0 %8287
  %8289 = vrot.lane.b32.xlu0 %v8150, 8
  %v8290 = vpop.permute.xlu0 %8289
  %8291 = vrot.lane.b32.xlu0 %v8152, 8
  %v8292 = vpop.permute.xlu0 %8291
  %8293 = vrot.lane.b32.xlu0 %v8154, 8
  %v8294 = vpop.permute.xlu0 %8293
  %8295 = vrot.lane.b32.xlu0 %v8156, 8
  %v8296 = vpop.permute.xlu0 %8295
  %8297 = vrot.lane.b32.xlu0 %v8158, 8
  %v8298 = vpop.permute.xlu0 %8297
  %8299 = vrot.lane.b32.xlu0 %v8160, 8
  %v8300 = vpop.permute.xlu0 %8299
  %8301 = vrot.lane.b32.xlu0 %v8162, 8
  %v8302 = vpop.permute.xlu0 %8301
  %8303 = vrot.lane.b32.xlu0 %v8164, 8
  %v8304 = vpop.permute.xlu0 %8303
  %8305 = vrot.lane.b32.xlu0 %v8166, 8
  %v8306 = vpop.permute.xlu0 %8305
  %8307 = vrot.lane.b32.xlu0 %v8168, 8
  %v8308 = vpop.permute.xlu0 %8307
  %8309 = vrot.lane.b32.xlu0 %v8170, 8
  %v8310 = vpop.permute.xlu0 %8309
  %8311 = vrot.lane.b32.xlu0 %v8172, 8
  %v8312 = vpop.permute.xlu0 %8311
  %8313 = vrot.lane.b32.xlu0 %v8174, 8
  %v8314 = vpop.permute.xlu0 %8313
  %8315 = vrot.lane.b32.xlu0 %v8176, 8
  %v8316 = vpop.permute.xlu0 %8315
  %8317 = vrot.lane.b32.xlu0 %v8178, 8
  %v8318 = vpop.permute.xlu0 %8317
  %8319 = vrot.lane.b32.xlu0 %v8180, 8
  %v8320 = vpop.permute.xlu0 %8319
  %8321 = vrot.lane.b32.xlu0 %v8182, 8
  %v8322 = vpop.permute.xlu0 %8321
  %8323 = vrot.lane.b32.xlu0 %v8184, 8
  %v8324 = vpop.permute.xlu0 %8323
  %8325 = vrot.lane.b32.xlu0 %v8186, 8
  %v8326 = vpop.permute.xlu0 %8325
  %8327 = vrot.lane.b32.xlu0 %v8188, 8
  %v8328 = vpop.permute.xlu0 %8327
  %8329 = vrot.lane.b32.xlu0 %v8190, 8
  %v8330 = vpop.permute.xlu0 %8329
  %8331 = vrot.lane.b32.xlu0 %v8192, 8
  %v8332 = vpop.permute.xlu0 %8331
  %8333 = vrot.lane.b32.xlu0 %v8194, 8
  %v8334 = vpop.permute.xlu0 %8333
  %8335 = vrot.lane.b32.xlu0 %v8196, 8
  %v8336 = vpop.permute.xlu0 %8335
  %8337 = vrot.lane.b32.xlu0 %v8198, 8
  %v8338 = vpop.permute.xlu0 %8337
  %8339 = vrot.lane.b32.xlu0 %v8200, 8
  %v8340 = vpop.permute.xlu0 %8339
  %8341 = vrot.lane.b32.xlu0 %v8202, 8
  %v8342 = vpop.permute.xlu0 %8341
  %8343 = vrot.lane.b32.xlu0 %v8204, 8
  %v8344 = vpop.permute.xlu0 %8343
  %8345 = vrot.lane.b32.xlu0 %v8206, 8
  %v8346 = vpop.permute.xlu0 %8345
  %8347 = vrot.lane.b32.xlu0 %v8208, 8
  %v8348 = vpop.permute.xlu0 %8347
  %8349 = vrot.lane.b32.xlu0 %v8210, 8
  %v8350 = vpop.permute.xlu0 %8349
  %8351 = vrot.lane.b32.xlu0 %v8212, 8
  %v8352 = vpop.permute.xlu0 %8351
  %8353 = vrot.lane.b32.xlu0 %v8214, 8
  %v8354 = vpop.permute.xlu0 %8353
  %8355 = vrot.lane.b32.xlu0 %v8216, 8
  %v8356 = vpop.permute.xlu0 %8355
  %8357 = vrot.lane.b32.xlu0 %v8218, 8
  %v8358 = vpop.permute.xlu0 %8357
  %8359 = vrot.lane.b32.xlu0 %v8220, 8
  %v8360 = vpop.permute.xlu0 %8359
  %8361 = vrot.lane.b32.xlu0 %v8222, 8
  %v8362 = vpop.permute.xlu0 %8361
  %8363 = vrot.lane.b32.xlu0 %v8224, 8
  %v8364 = vpop.permute.xlu0 %8363
  %8365 = vrot.lane.b32.xlu0 %v8226, 8
  %v8366 = vpop.permute.xlu0 %8365
  %8367 = vrot.lane.b32.xlu0 %v8228, 8
  %v8368 = vpop.permute.xlu0 %8367
  %8369 = vrot.lane.b32.xlu0 %v8230, 8
  %v8370 = vpop.permute.xlu0 %8369
  %8371 = vrot.lane.b32.xlu0 %v8232, 8
  %v8372 = vpop.permute.xlu0 %8371
  %8373 = vrot.lane.b32.xlu0 %v8234, 8
  %v8374 = vpop.permute.xlu0 %8373
  %8375 = vrot.lane.b32.xlu0 %v8236, 8
  %v8376 = vpop.permute.xlu0 %8375
  %8377 = vrot.lane.b32.xlu0 %v8238, 8
  %v8378 = vpop.permute.xlu0 %8377
  %8379 = vrot.lane.b32.xlu0 %v8240, 8
  %v8380 = vpop.permute.xlu0 %8379
  %8381 = vrot.lane.b32.xlu0 %v8242, 8
  %v8382 = vpop.permute.xlu0 %8381
  %8383 = vrot.lane.b32.xlu0 %v8244, 8
  %v8384 = vpop.permute.xlu0 %8383
  %8385 = vrot.lane.b32.xlu0 %v8246, 8
  %v8386 = vpop.permute.xlu0 %8385
  %8387 = vrot.lane.b32.xlu0 %v8248, 8
  %v8388 = vpop.permute.xlu0 %8387
  %8389 = vrot.lane.b32.xlu0 %v8250, 8
  %v8390 = vpop.permute.xlu0 %8389
  %8391 = vrot.lane.b32.xlu0 %v8252, 8
  %v8392 = vpop.permute.xlu0 %8391
  %8393 = vrot.lane.b32.xlu0 %v8254, 8
  %v8394 = vpop.permute.xlu0 %8393
  %8395 = vrot.lane.b32.xlu0 %v8256, 8
  %v8396 = vpop.permute.xlu0 %8395
  %8397 = vrot.lane.b32.xlu0 %v8258, 8
  %v8398 = vpop.permute.xlu0 %8397
  %8399 = vrot.lane.b32.xlu0 %v8260, 8
  %v8400 = vpop.permute.xlu0 %8399
  %8401 = vrot.lane.b32.xlu0 %v8262, 8
  %v8402 = vpop.permute.xlu0 %8401
  %8403 = vrot.lane.b32.xlu0 %v8264, 8
  %v8404 = vpop.permute.xlu0 %8403
  %8405 = vrot.lane.b32.xlu0 %v8263, 8
  %v8406 = vpop.permute.xlu0 %8405
  %v8549 = vrot.slane %v7981, 2
  %v8550 = vrot.slane %v7982, 2
  %v8551 = vsel %vm3988, %v8549, %v8550
  %v8552 = vrot.slane %v7983, 2
  %v8553 = vsel %vm3988, %v8550, %v8552
  %v8554 = vrot.slane %v7984, 2
  %v8555 = vsel %vm3988, %v8552, %v8554
  %v8556 = vrot.slane %v7985, 2
  %v8557 = vsel %vm3988, %v8554, %v8556
  %v8558 = vrot.slane %v7986, 2
  %v8559 = vsel %vm3988, %v8556, %v8558
  %v8560 = vrot.slane %v7987, 2
  %v8561 = vsel %vm3988, %v8558, %v8560
  %v8562 = vrot.slane %v7988, 2
  %v8563 = vsel %vm3988, %v8560, %v8562
  %v8564 = vrot.slane %v7989, 2
  %v8565 = vsel %vm3988, %v8562, %v8564
  %v8566 = vrot.slane %v7990, 2
  %v8567 = vsel %vm3988, %v8564, %v8566
  %v8568 = vrot.slane %v7991, 2
  %v8569 = vsel %vm3988, %v8566, %v8568
  %v8570 = vrot.slane %v7992, 2
  %v8571 = vsel %vm3988, %v8568, %v8570
  %v8572 = vrot.slane %v7993, 2
  %v8573 = vsel %vm3988, %v8570, %v8572
  %v8574 = vrot.slane %v7994, 2
  %v8575 = vsel %vm3988, %v8572, %v8574
  %v8576 = vrot.slane %v7995, 2
  %v8577 = vsel %vm3988, %v8574, %v8576
  %v8578 = vrot.slane %v7996, 2
  %v8579 = vsel %vm3988, %v8576, %v8578
  %v8580 = vrot.slane %v7997, 2
  %v8581 = vsel %vm3988, %v8578, %v8580
  %v8582 = vrot.slane %v7998, 2
  %v8583 = vsel %vm3988, %v8580, %v8582
  %v8584 = vrot.slane %v7999, 2
  %v8585 = vsel %vm3988, %v8582, %v8584
  %v8586 = vrot.slane %v8000, 2
  %v8587 = vsel %vm3988, %v8584, %v8586
  %v8588 = vrot.slane %v8001, 2
  %v8589 = vsel %vm3988, %v8586, %v8588
  %v8590 = vrot.slane %v8002, 2
  %v8591 = vsel %vm3988, %v8588, %v8590
  %v8592 = vrot.slane %v8003, 2
  %v8593 = vsel %vm3988, %v8590, %v8592
  %v8594 = vrot.slane %v8004, 2
  %v8595 = vsel %vm3988, %v8592, %v8594
  %v8596 = vrot.slane %v8005, 2
  %v8597 = vsel %vm3988, %v8594, %v8596
  %v8598 = vrot.slane %v8006, 2
  %v8599 = vsel %vm3988, %v8596, %v8598
  %v8600 = vrot.slane %v8007, 2
  %v8601 = vsel %vm3988, %v8598, %v8600
  %v8602 = vrot.slane %v8008, 2
  %v8603 = vsel %vm3988, %v8600, %v8602
  %v8604 = vrot.slane %v8009, 2
  %v8605 = vsel %vm3988, %v8602, %v8604
  %v8606 = vrot.slane %v8010, 2
  %v8607 = vsel %vm3988, %v8604, %v8606
  %v8608 = vrot.slane %v8011, 2
  %v8609 = vsel %vm3988, %v8606, %v8608
  %v8610 = vrot.slane %v8012, 2
  %v8611 = vsel %vm3988, %v8608, %v8610
  %v8612 = vrot.slane %v8013, 2
  %v8613 = vsel %vm3988, %v8610, %v8612
  %v8614 = vrot.slane %v8014, 2
  %v8615 = vsel %vm3988, %v8612, %v8614
  %v8616 = vrot.slane %v8015, 2
  %v8617 = vsel %vm3988, %v8614, %v8616
  %v8618 = vrot.slane %v8016, 2
  %v8619 = vsel %vm3988, %v8616, %v8618
  %v8620 = vrot.slane %v8017, 2
  %v8621 = vsel %vm3988, %v8618, %v8620
  %v8622 = vrot.slane %v8018, 2
  %v8623 = vsel %vm3988, %v8620, %v8622
  %v8624 = vrot.slane %v8019, 2
  %v8625 = vsel %vm3988, %v8622, %v8624
  %v8626 = vrot.slane %v8020, 2
  %v8627 = vsel %vm3988, %v8624, %v8626
  %v8628 = vrot.slane %v8021, 2
  %v8629 = vsel %vm3988, %v8626, %v8628
  %v8630 = vrot.slane %v8022, 2
  %v8631 = vsel %vm3988, %v8628, %v8630
  %v8632 = vrot.slane %v8023, 2
  %v8633 = vsel %vm3988, %v8630, %v8632
  %v8634 = vrot.slane %v8024, 2
  %v8635 = vsel %vm3988, %v8632, %v8634
  %v8636 = vrot.slane %v8025, 2
  %v8637 = vsel %vm3988, %v8634, %v8636
  %v8638 = vrot.slane %v8026, 2
  %v8639 = vsel %vm3988, %v8636, %v8638
  %v8640 = vrot.slane %v8027, 2
  %v8641 = vsel %vm3988, %v8638, %v8640
  %v8642 = vrot.slane %v8028, 2
  %v8643 = vsel %vm3988, %v8640, %v8642
  %v8644 = vrot.slane %v8029, 2
  %v8645 = vsel %vm3988, %v8642, %v8644
  %v8646 = vrot.slane %v8030, 2
  %v8647 = vsel %vm3988, %v8644, %v8646
  %v8648 = vrot.slane %v8031, 2
  %v8649 = vsel %vm3988, %v8646, %v8648
  %v8650 = vrot.slane %v8032, 2
  %v8651 = vsel %vm3988, %v8648, %v8650
  %v8652 = vrot.slane %v8033, 2
  %v8653 = vsel %vm3988, %v8650, %v8652
  %v8654 = vrot.slane %v8034, 2
  %v8655 = vsel %vm3988, %v8652, %v8654
  %v8656 = vrot.slane %v8035, 2
  %v8657 = vsel %vm3988, %v8654, %v8656
  %v8658 = vrot.slane %v8036, 2
  %v8659 = vsel %vm3988, %v8656, %v8658
  %v8660 = vrot.slane %v8037, 2
  %v8661 = vsel %vm3988, %v8658, %v8660
  %v8662 = vrot.slane %v8038, 2
  %v8663 = vsel %vm3988, %v8660, %v8662
  %v8664 = vrot.slane %v8039, 2
  %v8665 = vsel %vm3988, %v8662, %v8664
  %v8666 = vrot.slane %v8040, 2
  %v8667 = vsel %vm3988, %v8664, %v8666
  %v8668 = vrot.slane %v8041, 2
  %v8669 = vsel %vm3988, %v8666, %v8668
  %v8670 = vrot.slane %v8042, 2
  %v8671 = vsel %vm3988, %v8668, %v8670
  %v8672 = vrot.slane %v8043, 2
  %v8673 = vsel %vm3988, %v8670, %v8672
  %v8674 = vrot.slane %v8044, 2
  %v8675 = vsel %vm3988, %v8672, %v8674
  %v8676 = vrot.slane %v8045, 2
  %v8677 = vsel %vm3988, %v8674, %v8676
  %v8678 = vrot.slane %v8046, 2
  %v8679 = vsel %vm3988, %v8676, %v8678
  %v8680 = vrot.slane %v8047, 2
  %v8681 = vsel %vm3988, %v8678, %v8680
  %v8682 = vrot.slane %v8048, 2
  %v8683 = vsel %vm3988, %v8680, %v8682
  %v8684 = vrot.slane %v8049, 2
  %v8685 = vsel %vm3988, %v8682, %v8684
  %v8686 = vrot.slane %v8050, 2
  %v8687 = vsel %vm3988, %v8684, %v8686
  %v8688 = vrot.slane %v8051, 2
  %v8689 = vsel %vm3988, %v8686, %v8688
  %8690 = vrot.lane.b32.xlu0 %v8549, 16
  %v8691 = vpop.permute.xlu0 %8690
  %8692 = vrot.lane.b32.xlu0 %v8551, 16
  %v8693 = vpop.permute.xlu0 %8692
  %8694 = vrot.lane.b32.xlu0 %v8553, 16
  %v8695 = vpop.permute.xlu0 %8694
  %8696 = vrot.lane.b32.xlu0 %v8555, 16
  %v8697 = vpop.permute.xlu0 %8696
  %8698 = vrot.lane.b32.xlu0 %v8557, 16
  %v8699 = vpop.permute.xlu0 %8698
  %8700 = vrot.lane.b32.xlu0 %v8559, 16
  %v8701 = vpop.permute.xlu0 %8700
  %8702 = vrot.lane.b32.xlu0 %v8561, 16
  %v8703 = vpop.permute.xlu0 %8702
  %8704 = vrot.lane.b32.xlu0 %v8563, 16
  %v8705 = vpop.permute.xlu0 %8704
  %8706 = vrot.lane.b32.xlu0 %v8565, 16
  %v8707 = vpop.permute.xlu0 %8706
  %8708 = vrot.lane.b32.xlu0 %v8567, 16
  %v8709 = vpop.permute.xlu0 %8708
  %8710 = vrot.lane.b32.xlu0 %v8569, 16
  %v8711 = vpop.permute.xlu0 %8710
  %8712 = vrot.lane.b32.xlu0 %v8571, 16
  %v8713 = vpop.permute.xlu0 %8712
  %8714 = vrot.lane.b32.xlu0 %v8573, 16
  %v8715 = vpop.permute.xlu0 %8714
  %8716 = vrot.lane.b32.xlu0 %v8575, 16
  %v8717 = vpop.permute.xlu0 %8716
  %8718 = vrot.lane.b32.xlu0 %v8577, 16
  %v8719 = vpop.permute.xlu0 %8718
  %8720 = vrot.lane.b32.xlu0 %v8579, 16
  %v8721 = vpop.permute.xlu0 %8720
  %8722 = vrot.lane.b32.xlu0 %v8581, 16
  %v8723 = vpop.permute.xlu0 %8722
  %8724 = vrot.lane.b32.xlu0 %v8583, 16
  %v8725 = vpop.permute.xlu0 %8724
  %8726 = vrot.lane.b32.xlu0 %v8585, 16
  %v8727 = vpop.permute.xlu0 %8726
  %8728 = vrot.lane.b32.xlu0 %v8587, 16
  %v8729 = vpop.permute.xlu0 %8728
  %8730 = vrot.lane.b32.xlu0 %v8589, 16
  %v8731 = vpop.permute.xlu0 %8730
  %8732 = vrot.lane.b32.xlu0 %v8591, 16
  %v8733 = vpop.permute.xlu0 %8732
  %8734 = vrot.lane.b32.xlu0 %v8593, 16
  %v8735 = vpop.permute.xlu0 %8734
  %8736 = vrot.lane.b32.xlu0 %v8595, 16
  %v8737 = vpop.permute.xlu0 %8736
  %8738 = vrot.lane.b32.xlu0 %v8597, 16
  %v8739 = vpop.permute.xlu0 %8738
  %8740 = vrot.lane.b32.xlu0 %v8599, 16
  %v8741 = vpop.permute.xlu0 %8740
  %8742 = vrot.lane.b32.xlu0 %v8601, 16
  %v8743 = vpop.permute.xlu0 %8742
  %8744 = vrot.lane.b32.xlu0 %v8603, 16
  %v8745 = vpop.permute.xlu0 %8744
  %8746 = vrot.lane.b32.xlu0 %v8605, 16
  %v8747 = vpop.permute.xlu0 %8746
  %8748 = vrot.lane.b32.xlu0 %v8607, 16
  %v8749 = vpop.permute.xlu0 %8748
  %8750 = vrot.lane.b32.xlu0 %v8609, 16
  %v8751 = vpop.permute.xlu0 %8750
  %8752 = vrot.lane.b32.xlu0 %v8611, 16
  %v8753 = vpop.permute.xlu0 %8752
  %8754 = vrot.lane.b32.xlu0 %v8613, 16
  %v8755 = vpop.permute.xlu0 %8754
  %8756 = vrot.lane.b32.xlu0 %v8615, 16
  %v8757 = vpop.permute.xlu0 %8756
  %8758 = vrot.lane.b32.xlu0 %v8617, 16
  %v8759 = vpop.permute.xlu0 %8758
  %8760 = vrot.lane.b32.xlu0 %v8619, 16
  %v8761 = vpop.permute.xlu0 %8760
  %8762 = vrot.lane.b32.xlu0 %v8621, 16
  %v8763 = vpop.permute.xlu0 %8762
  %8764 = vrot.lane.b32.xlu0 %v8623, 16
  %v8765 = vpop.permute.xlu0 %8764
  %8766 = vrot.lane.b32.xlu0 %v8625, 16
  %v8767 = vpop.permute.xlu0 %8766
  %8768 = vrot.lane.b32.xlu0 %v8627, 16
  %v8769 = vpop.permute.xlu0 %8768
  %8770 = vrot.lane.b32.xlu0 %v8629, 16
  %v8771 = vpop.permute.xlu0 %8770
  %8772 = vrot.lane.b32.xlu0 %v8631, 16
  %v8773 = vpop.permute.xlu0 %8772
  %8774 = vrot.lane.b32.xlu0 %v8633, 16
  %v8775 = vpop.permute.xlu0 %8774
  %8776 = vrot.lane.b32.xlu0 %v8635, 16
  %v8777 = vpop.permute.xlu0 %8776
  %8778 = vrot.lane.b32.xlu0 %v8637, 16
  %v8779 = vpop.permute.xlu0 %8778
  %8780 = vrot.lane.b32.xlu0 %v8639, 16
  %v8781 = vpop.permute.xlu0 %8780
  %8782 = vrot.lane.b32.xlu0 %v8641, 16
  %v8783 = vpop.permute.xlu0 %8782
  %8784 = vrot.lane.b32.xlu0 %v8643, 16
  %v8785 = vpop.permute.xlu0 %8784
  %8786 = vrot.lane.b32.xlu0 %v8645, 16
  %v8787 = vpop.permute.xlu0 %8786
  %8788 = vrot.lane.b32.xlu0 %v8647, 16
  %v8789 = vpop.permute.xlu0 %8788
  %8790 = vrot.lane.b32.xlu0 %v8649, 16
  %v8791 = vpop.permute.xlu0 %8790
  %8792 = vrot.lane.b32.xlu0 %v8651, 16
  %v8793 = vpop.permute.xlu0 %8792
  %8794 = vrot.lane.b32.xlu0 %v8653, 16
  %v8795 = vpop.permute.xlu0 %8794
  %8796 = vrot.lane.b32.xlu0 %v8655, 16
  %v8797 = vpop.permute.xlu0 %8796
  %8798 = vrot.lane.b32.xlu0 %v8657, 16
  %v8799 = vpop.permute.xlu0 %8798
  %8800 = vrot.lane.b32.xlu0 %v8659, 16
  %v8801 = vpop.permute.xlu0 %8800
  %8802 = vrot.lane.b32.xlu0 %v8661, 16
  %v8803 = vpop.permute.xlu0 %8802
  %8804 = vrot.lane.b32.xlu0 %v8663, 16
  %v8805 = vpop.permute.xlu0 %8804
  %8806 = vrot.lane.b32.xlu0 %v8665, 16
  %v8807 = vpop.permute.xlu0 %8806
  %8808 = vrot.lane.b32.xlu0 %v8667, 16
  %v8809 = vpop.permute.xlu0 %8808
  %8810 = vrot.lane.b32.xlu0 %v8669, 16
  %v8811 = vpop.permute.xlu0 %8810
  %8812 = vrot.lane.b32.xlu0 %v8671, 16
  %v8813 = vpop.permute.xlu0 %8812
  %8814 = vrot.lane.b32.xlu0 %v8673, 16
  %v8815 = vpop.permute.xlu0 %8814
  %8816 = vrot.lane.b32.xlu0 %v8675, 16
  %v8817 = vpop.permute.xlu0 %8816
  %8818 = vrot.lane.b32.xlu0 %v8677, 16
  %v8819 = vpop.permute.xlu0 %8818
  %8820 = vrot.lane.b32.xlu0 %v8679, 16
  %v8821 = vpop.permute.xlu0 %8820
  %8822 = vrot.lane.b32.xlu0 %v8681, 16
  %v8823 = vpop.permute.xlu0 %8822
  %8824 = vrot.lane.b32.xlu0 %v8683, 16
  %v8825 = vpop.permute.xlu0 %8824
  %8826 = vrot.lane.b32.xlu0 %v8685, 16
  %v8827 = vpop.permute.xlu0 %8826
  %8828 = vrot.lane.b32.xlu0 %v8687, 16
  %v8829 = vpop.permute.xlu0 %8828
  %8830 = vrot.lane.b32.xlu0 %v8689, 16
  %v8831 = vpop.permute.xlu0 %8830
  %8974 = vrot.lane.b32.xlu0 %v7908, 24
  %v8975 = vpop.permute.xlu0 %8974
  %8976 = vrot.lane.b32.xlu0 %v7909, 24
  %v8977 = vpop.permute.xlu0 %8976
  %8978 = vrot.lane.b32.xlu0 %v7910, 24
  %v8979 = vpop.permute.xlu0 %8978
  %8980 = vrot.lane.b32.xlu0 %v7911, 24
  %v8981 = vpop.permute.xlu0 %8980
  %8982 = vrot.lane.b32.xlu0 %v7912, 24
  %v8983 = vpop.permute.xlu0 %8982
  %8984 = vrot.lane.b32.xlu0 %v7913, 24
  %v8985 = vpop.permute.xlu0 %8984
  %8986 = vrot.lane.b32.xlu0 %v7914, 24
  %v8987 = vpop.permute.xlu0 %8986
  %8988 = vrot.lane.b32.xlu0 %v7915, 24
  %v8989 = vpop.permute.xlu0 %8988
  %8990 = vrot.lane.b32.xlu0 %v7916, 24
  %v8991 = vpop.permute.xlu0 %8990
  %8992 = vrot.lane.b32.xlu0 %v7917, 24
  %v8993 = vpop.permute.xlu0 %8992
  %8994 = vrot.lane.b32.xlu0 %v7918, 24
  %v8995 = vpop.permute.xlu0 %8994
  %8996 = vrot.lane.b32.xlu0 %v7919, 24
  %v8997 = vpop.permute.xlu0 %8996
  %8998 = vrot.lane.b32.xlu0 %v7920, 24
  %v8999 = vpop.permute.xlu0 %8998
  %9000 = vrot.lane.b32.xlu0 %v7921, 24
  %v9001 = vpop.permute.xlu0 %9000
  %9002 = vrot.lane.b32.xlu0 %v7922, 24
  %v9003 = vpop.permute.xlu0 %9002
  %9004 = vrot.lane.b32.xlu0 %v7923, 24
  %v9005 = vpop.permute.xlu0 %9004
  %9006 = vrot.lane.b32.xlu0 %v7924, 24
  %v9007 = vpop.permute.xlu0 %9006
  %9008 = vrot.lane.b32.xlu0 %v7925, 24
  %v9009 = vpop.permute.xlu0 %9008
  %9010 = vrot.lane.b32.xlu0 %v7926, 24
  %v9011 = vpop.permute.xlu0 %9010
  %9012 = vrot.lane.b32.xlu0 %v7927, 24
  %v9013 = vpop.permute.xlu0 %9012
  %9014 = vrot.lane.b32.xlu0 %v7928, 24
  %v9015 = vpop.permute.xlu0 %9014
  %9016 = vrot.lane.b32.xlu0 %v7929, 24
  %v9017 = vpop.permute.xlu0 %9016
  %9018 = vrot.lane.b32.xlu0 %v7930, 24
  %v9019 = vpop.permute.xlu0 %9018
  %9020 = vrot.lane.b32.xlu0 %v7931, 24
  %v9021 = vpop.permute.xlu0 %9020
  %9022 = vrot.lane.b32.xlu0 %v7932, 24
  %v9023 = vpop.permute.xlu0 %9022
  %9024 = vrot.lane.b32.xlu0 %v7933, 24
  %v9025 = vpop.permute.xlu0 %9024
  %9026 = vrot.lane.b32.xlu0 %v7934, 24
  %v9027 = vpop.permute.xlu0 %9026
  %9028 = vrot.lane.b32.xlu0 %v7935, 24
  %v9029 = vpop.permute.xlu0 %9028
  %9030 = vrot.lane.b32.xlu0 %v7936, 24
  %v9031 = vpop.permute.xlu0 %9030
  %9032 = vrot.lane.b32.xlu0 %v7937, 24
  %v9033 = vpop.permute.xlu0 %9032
  %9034 = vrot.lane.b32.xlu0 %v7938, 24
  %v9035 = vpop.permute.xlu0 %9034
  %9036 = vrot.lane.b32.xlu0 %v7939, 24
  %v9037 = vpop.permute.xlu0 %9036
  %9038 = vrot.lane.b32.xlu0 %v7940, 24
  %v9039 = vpop.permute.xlu0 %9038
  %9040 = vrot.lane.b32.xlu0 %v7941, 24
  %v9041 = vpop.permute.xlu0 %9040
  %9042 = vrot.lane.b32.xlu0 %v7942, 24
  %v9043 = vpop.permute.xlu0 %9042
  %9044 = vrot.lane.b32.xlu0 %v7943, 24
  %v9045 = vpop.permute.xlu0 %9044
  %9046 = vrot.lane.b32.xlu0 %v7944, 24
  %v9047 = vpop.permute.xlu0 %9046
  %9048 = vrot.lane.b32.xlu0 %v7945, 24
  %v9049 = vpop.permute.xlu0 %9048
  %9050 = vrot.lane.b32.xlu0 %v7946, 24
  %v9051 = vpop.permute.xlu0 %9050
  %9052 = vrot.lane.b32.xlu0 %v7947, 24
  %v9053 = vpop.permute.xlu0 %9052
  %9054 = vrot.lane.b32.xlu0 %v7948, 24
  %v9055 = vpop.permute.xlu0 %9054
  %9056 = vrot.lane.b32.xlu0 %v7949, 24
  %v9057 = vpop.permute.xlu0 %9056
  %9058 = vrot.lane.b32.xlu0 %v7950, 24
  %v9059 = vpop.permute.xlu0 %9058
  %9060 = vrot.lane.b32.xlu0 %v7951, 24
  %v9061 = vpop.permute.xlu0 %9060
  %9062 = vrot.lane.b32.xlu0 %v7952, 24
  %v9063 = vpop.permute.xlu0 %9062
  %9064 = vrot.lane.b32.xlu0 %v7953, 24
  %v9065 = vpop.permute.xlu0 %9064
  %9066 = vrot.lane.b32.xlu0 %v7954, 24
  %v9067 = vpop.permute.xlu0 %9066
  %9068 = vrot.lane.b32.xlu0 %v7955, 24
  %v9069 = vpop.permute.xlu0 %9068
  %9070 = vrot.lane.b32.xlu0 %v7956, 24
  %v9071 = vpop.permute.xlu0 %9070
  %9072 = vrot.lane.b32.xlu0 %v7957, 24
  %v9073 = vpop.permute.xlu0 %9072
  %9074 = vrot.lane.b32.xlu0 %v7958, 24
  %v9075 = vpop.permute.xlu0 %9074
  %9076 = vrot.lane.b32.xlu0 %v7959, 24
  %v9077 = vpop.permute.xlu0 %9076
  %9078 = vrot.lane.b32.xlu0 %v7960, 24
  %v9079 = vpop.permute.xlu0 %9078
  %9080 = vrot.lane.b32.xlu0 %v7961, 24
  %v9081 = vpop.permute.xlu0 %9080
  %9082 = vrot.lane.b32.xlu0 %v7962, 24
  %v9083 = vpop.permute.xlu0 %9082
  %9084 = vrot.lane.b32.xlu0 %v7963, 24
  %v9085 = vpop.permute.xlu0 %9084
  %9086 = vrot.lane.b32.xlu0 %v7964, 24
  %v9087 = vpop.permute.xlu0 %9086
  %9088 = vrot.lane.b32.xlu0 %v7965, 24
  %v9089 = vpop.permute.xlu0 %9088
  %9090 = vrot.lane.b32.xlu0 %v7966, 24
  %v9091 = vpop.permute.xlu0 %9090
  %9092 = vrot.lane.b32.xlu0 %v7967, 24
  %v9093 = vpop.permute.xlu0 %9092
  %9094 = vrot.lane.b32.xlu0 %v7968, 24
  %v9095 = vpop.permute.xlu0 %9094
  %9096 = vrot.lane.b32.xlu0 %v7969, 24
  %v9097 = vpop.permute.xlu0 %9096
  %9098 = vrot.lane.b32.xlu0 %v7970, 24
  %v9099 = vpop.permute.xlu0 %9098
  %9100 = vrot.lane.b32.xlu0 %v7971, 24
  %v9101 = vpop.permute.xlu0 %9100
  %9102 = vrot.lane.b32.xlu0 %v7972, 24
  %v9103 = vpop.permute.xlu0 %9102
  %9104 = vrot.lane.b32.xlu0 %v7973, 24
  %v9105 = vpop.permute.xlu0 %9104
  %9106 = vrot.lane.b32.xlu0 %v7974, 24
  %v9107 = vpop.permute.xlu0 %9106
  %9108 = vrot.lane.b32.xlu0 %v7975, 24
  %v9109 = vpop.permute.xlu0 %9108
  %9110 = vrot.lane.b32.xlu0 %v7976, 24
  %v9111 = vpop.permute.xlu0 %9110
  %9112 = vrot.lane.b32.xlu0 %v7977, 24
  %v9113 = vpop.permute.xlu0 %9112
  %9114 = vrot.lane.b32.xlu0 %v7978, 24
  %v9115 = vpop.permute.xlu0 %9114
  %v9189 = vrot.slane %v7901, 1
  %v9190 = vsel %vm3564, %v8263, %v9189
  %v9191 = vrot.slane %v7902, 1
  %v9192 = vsel %vm3564, %v9189, %v9191
  %9193 = vrot.lane.b32.xlu0 %v8129, 32
  %v9194 = vpop.permute.xlu0 %9193
  %9195 = vrot.lane.b32.xlu0 %v8132, 32
  %v9196 = vpop.permute.xlu0 %9195
  %9197 = vrot.lane.b32.xlu0 %v8134, 32
  %v9198 = vpop.permute.xlu0 %9197
  %9199 = vrot.lane.b32.xlu0 %v8136, 32
  %v9200 = vpop.permute.xlu0 %9199
  %9201 = vrot.lane.b32.xlu0 %v8138, 32
  %v9202 = vpop.permute.xlu0 %9201
  %9203 = vrot.lane.b32.xlu0 %v8140, 32
  %v9204 = vpop.permute.xlu0 %9203
  %9205 = vrot.lane.b32.xlu0 %v8142, 32
  %v9206 = vpop.permute.xlu0 %9205
  %9207 = vrot.lane.b32.xlu0 %v8144, 32
  %v9208 = vpop.permute.xlu0 %9207
  %9209 = vrot.lane.b32.xlu0 %v8146, 32
  %v9210 = vpop.permute.xlu0 %9209
  %9211 = vrot.lane.b32.xlu0 %v8148, 32
  %v9212 = vpop.permute.xlu0 %9211
  %9213 = vrot.lane.b32.xlu0 %v8150, 32
  %v9214 = vpop.permute.xlu0 %9213
  %9215 = vrot.lane.b32.xlu0 %v8152, 32
  %v9216 = vpop.permute.xlu0 %9215
  %9217 = vrot.lane.b32.xlu0 %v8154, 32
  %v9218 = vpop.permute.xlu0 %9217
  %9219 = vrot.lane.b32.xlu0 %v8156, 32
  %v9220 = vpop.permute.xlu0 %9219
  %9221 = vrot.lane.b32.xlu0 %v8158, 32
  %v9222 = vpop.permute.xlu0 %9221
  %9223 = vrot.lane.b32.xlu0 %v8160, 32
  %v9224 = vpop.permute.xlu0 %9223
  %9225 = vrot.lane.b32.xlu0 %v8162, 32
  %v9226 = vpop.permute.xlu0 %9225
  %9227 = vrot.lane.b32.xlu0 %v8164, 32
  %v9228 = vpop.permute.xlu0 %9227
  %9229 = vrot.lane.b32.xlu0 %v8166, 32
  %v9230 = vpop.permute.xlu0 %9229
  %9231 = vrot.lane.b32.xlu0 %v8168, 32
  %v9232 = vpop.permute.xlu0 %9231
  %9233 = vrot.lane.b32.xlu0 %v8170, 32
  %v9234 = vpop.permute.xlu0 %9233
  %9235 = vrot.lane.b32.xlu0 %v8172, 32
  %v9236 = vpop.permute.xlu0 %9235
  %9237 = vrot.lane.b32.xlu0 %v8174, 32
  %v9238 = vpop.permute.xlu0 %9237
  %9239 = vrot.lane.b32.xlu0 %v8176, 32
  %v9240 = vpop.permute.xlu0 %9239
  %9241 = vrot.lane.b32.xlu0 %v8178, 32
  %v9242 = vpop.permute.xlu0 %9241
  %9243 = vrot.lane.b32.xlu0 %v8180, 32
  %v9244 = vpop.permute.xlu0 %9243
  %9245 = vrot.lane.b32.xlu0 %v8182, 32
  %v9246 = vpop.permute.xlu0 %9245
  %9247 = vrot.lane.b32.xlu0 %v8184, 32
  %v9248 = vpop.permute.xlu0 %9247
  %9249 = vrot.lane.b32.xlu0 %v8186, 32
  %v9250 = vpop.permute.xlu0 %9249
  %9251 = vrot.lane.b32.xlu0 %v8188, 32
  %v9252 = vpop.permute.xlu0 %9251
  %9253 = vrot.lane.b32.xlu0 %v8190, 32
  %v9254 = vpop.permute.xlu0 %9253
  %9255 = vrot.lane.b32.xlu0 %v8192, 32
  %v9256 = vpop.permute.xlu0 %9255
  %9257 = vrot.lane.b32.xlu0 %v8194, 32
  %v9258 = vpop.permute.xlu0 %9257
  %9259 = vrot.lane.b32.xlu0 %v8196, 32
  %v9260 = vpop.permute.xlu0 %9259
  %9261 = vrot.lane.b32.xlu0 %v8198, 32
  %v9262 = vpop.permute.xlu0 %9261
  %9263 = vrot.lane.b32.xlu0 %v8200, 32
  %v9264 = vpop.permute.xlu0 %9263
  %9265 = vrot.lane.b32.xlu0 %v8202, 32
  %v9266 = vpop.permute.xlu0 %9265
  %9267 = vrot.lane.b32.xlu0 %v8204, 32
  %v9268 = vpop.permute.xlu0 %9267
  %9269 = vrot.lane.b32.xlu0 %v8206, 32
  %v9270 = vpop.permute.xlu0 %9269
  %9271 = vrot.lane.b32.xlu0 %v8208, 32
  %v9272 = vpop.permute.xlu0 %9271
  %9273 = vrot.lane.b32.xlu0 %v8210, 32
  %v9274 = vpop.permute.xlu0 %9273
  %9275 = vrot.lane.b32.xlu0 %v8212, 32
  %v9276 = vpop.permute.xlu0 %9275
  %9277 = vrot.lane.b32.xlu0 %v8214, 32
  %v9278 = vpop.permute.xlu0 %9277
  %9279 = vrot.lane.b32.xlu0 %v8216, 32
  %v9280 = vpop.permute.xlu0 %9279
  %9281 = vrot.lane.b32.xlu0 %v8218, 32
  %v9282 = vpop.permute.xlu0 %9281
  %9283 = vrot.lane.b32.xlu0 %v8220, 32
  %v9284 = vpop.permute.xlu0 %9283
  %9285 = vrot.lane.b32.xlu0 %v8222, 32
  %v9286 = vpop.permute.xlu0 %9285
  %9287 = vrot.lane.b32.xlu0 %v8224, 32
  %v9288 = vpop.permute.xlu0 %9287
  %9289 = vrot.lane.b32.xlu0 %v8226, 32
  %v9290 = vpop.permute.xlu0 %9289
  %9291 = vrot.lane.b32.xlu0 %v8228, 32
  %v9292 = vpop.permute.xlu0 %9291
  %9293 = vrot.lane.b32.xlu0 %v8230, 32
  %v9294 = vpop.permute.xlu0 %9293
  %9295 = vrot.lane.b32.xlu0 %v8232, 32
  %v9296 = vpop.permute.xlu0 %9295
  %9297 = vrot.lane.b32.xlu0 %v8234, 32
  %v9298 = vpop.permute.xlu0 %9297
  %9299 = vrot.lane.b32.xlu0 %v8236, 32
  %v9300 = vpop.permute.xlu0 %9299
  %9301 = vrot.lane.b32.xlu0 %v8238, 32
  %v9302 = vpop.permute.xlu0 %9301
  %9303 = vrot.lane.b32.xlu0 %v8240, 32
  %v9304 = vpop.permute.xlu0 %9303
  %9305 = vrot.lane.b32.xlu0 %v8242, 32
  %v9306 = vpop.permute.xlu0 %9305
  %9307 = vrot.lane.b32.xlu0 %v8244, 32
  %v9308 = vpop.permute.xlu0 %9307
  %9309 = vrot.lane.b32.xlu0 %v8246, 32
  %v9310 = vpop.permute.xlu0 %9309
  %9311 = vrot.lane.b32.xlu0 %v8248, 32
  %v9312 = vpop.permute.xlu0 %9311
  %9313 = vrot.lane.b32.xlu0 %v8250, 32
  %v9314 = vpop.permute.xlu0 %9313
  %9315 = vrot.lane.b32.xlu0 %v8252, 32
  %v9316 = vpop.permute.xlu0 %9315
  %9317 = vrot.lane.b32.xlu0 %v8254, 32
  %v9318 = vpop.permute.xlu0 %9317
  %9319 = vrot.lane.b32.xlu0 %v8256, 32
  %v9320 = vpop.permute.xlu0 %9319
  %9321 = vrot.lane.b32.xlu0 %v8258, 32
  %v9322 = vpop.permute.xlu0 %9321
  %9323 = vrot.lane.b32.xlu0 %v8260, 32
  %v9324 = vpop.permute.xlu0 %9323
  %9325 = vrot.lane.b32.xlu0 %v8262, 32
  %v9326 = vpop.permute.xlu0 %9325
  %9327 = vrot.lane.b32.xlu0 %v8264, 32
  %v9328 = vpop.permute.xlu0 %9327
  %9329 = vrot.lane.b32.xlu0 %v9190, 32
  %v9330 = vpop.permute.xlu0 %9329
  %9331 = vrot.lane.b32.xlu0 %v9192, 32
  %v9332 = vpop.permute.xlu0 %9331
  %9333 = vrot.lane.b32.xlu0 %v9191, 32
  %v9334 = vpop.permute.xlu0 %9333
  %v9408 = vrot.slane %v8052, 2
  %v9409 = vsel %vm3988, %v8688, %v9408
  %v9410 = vrot.slane %v8053, 2
  %v9411 = vsel %vm3988, %v9408, %v9410
  %9412 = vrot.lane.b32.xlu0 %v8552, 40
  %v9413 = vpop.permute.xlu0 %9412
  %9414 = vrot.lane.b32.xlu0 %v8555, 40
  %v9415 = vpop.permute.xlu0 %9414
  %9416 = vrot.lane.b32.xlu0 %v8557, 40
  %v9417 = vpop.permute.xlu0 %9416
  %9418 = vrot.lane.b32.xlu0 %v8559, 40
  %v9419 = vpop.permute.xlu0 %9418
  %9420 = vrot.lane.b32.xlu0 %v8561, 40
  %v9421 = vpop.permute.xlu0 %9420
  %9422 = vrot.lane.b32.xlu0 %v8563, 40
  %v9423 = vpop.permute.xlu0 %9422
  %9424 = vrot.lane.b32.xlu0 %v8565, 40
  %v9425 = vpop.permute.xlu0 %9424
  %9426 = vrot.lane.b32.xlu0 %v8567, 40
  %v9427 = vpop.permute.xlu0 %9426
  %9428 = vrot.lane.b32.xlu0 %v8569, 40
  %v9429 = vpop.permute.xlu0 %9428
  %9430 = vrot.lane.b32.xlu0 %v8571, 40
  %v9431 = vpop.permute.xlu0 %9430
  %9432 = vrot.lane.b32.xlu0 %v8573, 40
  %v9433 = vpop.permute.xlu0 %9432
  %9434 = vrot.lane.b32.xlu0 %v8575, 40
  %v9435 = vpop.permute.xlu0 %9434
  %9436 = vrot.lane.b32.xlu0 %v8577, 40
  %v9437 = vpop.permute.xlu0 %9436
  %9438 = vrot.lane.b32.xlu0 %v8579, 40
  %v9439 = vpop.permute.xlu0 %9438
  %9440 = vrot.lane.b32.xlu0 %v8581, 40
  %v9441 = vpop.permute.xlu0 %9440
  %9442 = vrot.lane.b32.xlu0 %v8583, 40
  %v9443 = vpop.permute.xlu0 %9442
  %9444 = vrot.lane.b32.xlu0 %v8585, 40
  %v9445 = vpop.permute.xlu0 %9444
  %9446 = vrot.lane.b32.xlu0 %v8587, 40
  %v9447 = vpop.permute.xlu0 %9446
  %9448 = vrot.lane.b32.xlu0 %v8589, 40
  %v9449 = vpop.permute.xlu0 %9448
  %9450 = vrot.lane.b32.xlu0 %v8591, 40
  %v9451 = vpop.permute.xlu0 %9450
  %9452 = vrot.lane.b32.xlu0 %v8593, 40
  %v9453 = vpop.permute.xlu0 %9452
  %9454 = vrot.lane.b32.xlu0 %v8595, 40
  %v9455 = vpop.permute.xlu0 %9454
  %9456 = vrot.lane.b32.xlu0 %v8597, 40
  %v9457 = vpop.permute.xlu0 %9456
  %9458 = vrot.lane.b32.xlu0 %v8599, 40
  %v9459 = vpop.permute.xlu0 %9458
  %9460 = vrot.lane.b32.xlu0 %v8601, 40
  %v9461 = vpop.permute.xlu0 %9460
  %9462 = vrot.lane.b32.xlu0 %v8603, 40
  %v9463 = vpop.permute.xlu0 %9462
  %9464 = vrot.lane.b32.xlu0 %v8605, 40
  %v9465 = vpop.permute.xlu0 %9464
  %9466 = vrot.lane.b32.xlu0 %v8607, 40
  %v9467 = vpop.permute.xlu0 %9466
  %9468 = vrot.lane.b32.xlu0 %v8609, 40
  %v9469 = vpop.permute.xlu0 %9468
  %9470 = vrot.lane.b32.xlu0 %v8611, 40
  %v9471 = vpop.permute.xlu0 %9470
  %9472 = vrot.lane.b32.xlu0 %v8613, 40
  %v9473 = vpop.permute.xlu0 %9472
  %9474 = vrot.lane.b32.xlu0 %v8615, 40
  %v9475 = vpop.permute.xlu0 %9474
  %9476 = vrot.lane.b32.xlu0 %v8617, 40
  %v9477 = vpop.permute.xlu0 %9476
  %9478 = vrot.lane.b32.xlu0 %v8619, 40
  %v9479 = vpop.permute.xlu0 %9478
  %9480 = vrot.lane.b32.xlu0 %v8621, 40
  %v9481 = vpop.permute.xlu0 %9480
  %9482 = vrot.lane.b32.xlu0 %v8623, 40
  %v9483 = vpop.permute.xlu0 %9482
  %9484 = vrot.lane.b32.xlu0 %v8625, 40
  %v9485 = vpop.permute.xlu0 %9484
  %9486 = vrot.lane.b32.xlu0 %v8627, 40
  %v9487 = vpop.permute.xlu0 %9486
  %9488 = vrot.lane.b32.xlu0 %v8629, 40
  %v9489 = vpop.permute.xlu0 %9488
  %9490 = vrot.lane.b32.xlu0 %v8631, 40
  %v9491 = vpop.permute.xlu0 %9490
  %9492 = vrot.lane.b32.xlu0 %v8633, 40
  %v9493 = vpop.permute.xlu0 %9492
  %9494 = vrot.lane.b32.xlu0 %v8635, 40
  %v9495 = vpop.permute.xlu0 %9494
  %9496 = vrot.lane.b32.xlu0 %v8637, 40
  %v9497 = vpop.permute.xlu0 %9496
  %9498 = vrot.lane.b32.xlu0 %v8639, 40
  %v9499 = vpop.permute.xlu0 %9498
  %9500 = vrot.lane.b32.xlu0 %v8641, 40
  %v9501 = vpop.permute.xlu0 %9500
  %9502 = vrot.lane.b32.xlu0 %v8643, 40
  %v9503 = vpop.permute.xlu0 %9502
  %9504 = vrot.lane.b32.xlu0 %v8645, 40
  %v9505 = vpop.permute.xlu0 %9504
  %9506 = vrot.lane.b32.xlu0 %v8647, 40
  %v9507 = vpop.permute.xlu0 %9506
  %9508 = vrot.lane.b32.xlu0 %v8649, 40
  %v9509 = vpop.permute.xlu0 %9508
  %9510 = vrot.lane.b32.xlu0 %v8651, 40
  %v9511 = vpop.permute.xlu0 %9510
  %9512 = vrot.lane.b32.xlu0 %v8653, 40
  %v9513 = vpop.permute.xlu0 %9512
  %9514 = vrot.lane.b32.xlu0 %v8655, 40
  %v9515 = vpop.permute.xlu0 %9514
  %9516 = vrot.lane.b32.xlu0 %v8657, 40
  %v9517 = vpop.permute.xlu0 %9516
  %9518 = vrot.lane.b32.xlu0 %v8659, 40
  %v9519 = vpop.permute.xlu0 %9518
  %9520 = vrot.lane.b32.xlu0 %v8661, 40
  %v9521 = vpop.permute.xlu0 %9520
  %9522 = vrot.lane.b32.xlu0 %v8663, 40
  %v9523 = vpop.permute.xlu0 %9522
  %9524 = vrot.lane.b32.xlu0 %v8665, 40
  %v9525 = vpop.permute.xlu0 %9524
  %9526 = vrot.lane.b32.xlu0 %v8667, 40
  %v9527 = vpop.permute.xlu0 %9526
  %9528 = vrot.lane.b32.xlu0 %v8669, 40
  %v9529 = vpop.permute.xlu0 %9528
  %9530 = vrot.lane.b32.xlu0 %v8671, 40
  %v9531 = vpop.permute.xlu0 %9530
  %9532 = vrot.lane.b32.xlu0 %v8673, 40
  %v9533 = vpop.permute.xlu0 %9532
  %9534 = vrot.lane.b32.xlu0 %v8675, 40
  %v9535 = vpop.permute.xlu0 %9534
  %9536 = vrot.lane.b32.xlu0 %v8677, 40
  %v9537 = vpop.permute.xlu0 %9536
  %9538 = vrot.lane.b32.xlu0 %v8679, 40
  %v9539 = vpop.permute.xlu0 %9538
  %9540 = vrot.lane.b32.xlu0 %v8681, 40
  %v9541 = vpop.permute.xlu0 %9540
  %9542 = vrot.lane.b32.xlu0 %v8683, 40
  %v9543 = vpop.permute.xlu0 %9542
  %9544 = vrot.lane.b32.xlu0 %v8685, 40
  %v9545 = vpop.permute.xlu0 %9544
  %9546 = vrot.lane.b32.xlu0 %v8687, 40
  %v9547 = vpop.permute.xlu0 %9546
  %9548 = vrot.lane.b32.xlu0 %v8689, 40
  %v9549 = vpop.permute.xlu0 %9548
  %9550 = vrot.lane.b32.xlu0 %v9409, 40
  %v9551 = vpop.permute.xlu0 %9550
  %9552 = vrot.lane.b32.xlu0 %v9411, 40
  %v9553 = vpop.permute.xlu0 %9552
  %9627 = vrot.lane.b32.xlu0 %v7910, 48
  %v9628 = vpop.permute.xlu0 %9627
  %9629 = vrot.lane.b32.xlu0 %v7911, 48
  %v9630 = vpop.permute.xlu0 %9629
  %9631 = vrot.lane.b32.xlu0 %v7912, 48
  %v9632 = vpop.permute.xlu0 %9631
  %9633 = vrot.lane.b32.xlu0 %v7913, 48
  %v9634 = vpop.permute.xlu0 %9633
  %9635 = vrot.lane.b32.xlu0 %v7914, 48
  %v9636 = vpop.permute.xlu0 %9635
  %9637 = vrot.lane.b32.xlu0 %v7915, 48
  %v9638 = vpop.permute.xlu0 %9637
  %9639 = vrot.lane.b32.xlu0 %v7916, 48
  %v9640 = vpop.permute.xlu0 %9639
  %9641 = vrot.lane.b32.xlu0 %v7917, 48
  %v9642 = vpop.permute.xlu0 %9641
  %9643 = vrot.lane.b32.xlu0 %v7918, 48
  %v9644 = vpop.permute.xlu0 %9643
  %9645 = vrot.lane.b32.xlu0 %v7919, 48
  %v9646 = vpop.permute.xlu0 %9645
  %9647 = vrot.lane.b32.xlu0 %v7920, 48
  %v9648 = vpop.permute.xlu0 %9647
  %9649 = vrot.lane.b32.xlu0 %v7921, 48
  %v9650 = vpop.permute.xlu0 %9649
  %9651 = vrot.lane.b32.xlu0 %v7922, 48
  %v9652 = vpop.permute.xlu0 %9651
  %9653 = vrot.lane.b32.xlu0 %v7923, 48
  %v9654 = vpop.permute.xlu0 %9653
  %9655 = vrot.lane.b32.xlu0 %v7924, 48
  %v9656 = vpop.permute.xlu0 %9655
  %9657 = vrot.lane.b32.xlu0 %v7925, 48
  %v9658 = vpop.permute.xlu0 %9657
  %9659 = vrot.lane.b32.xlu0 %v7926, 48
  %v9660 = vpop.permute.xlu0 %9659
  %9661 = vrot.lane.b32.xlu0 %v7927, 48
  %v9662 = vpop.permute.xlu0 %9661
  %9663 = vrot.lane.b32.xlu0 %v7928, 48
  %v9664 = vpop.permute.xlu0 %9663
  %9665 = vrot.lane.b32.xlu0 %v7929, 48
  %v9666 = vpop.permute.xlu0 %9665
  %9667 = vrot.lane.b32.xlu0 %v7930, 48
  %v9668 = vpop.permute.xlu0 %9667
  %9669 = vrot.lane.b32.xlu0 %v7931, 48
  %v9670 = vpop.permute.xlu0 %9669
  %9671 = vrot.lane.b32.xlu0 %v7932, 48
  %v9672 = vpop.permute.xlu0 %9671
  %9673 = vrot.lane.b32.xlu0 %v7933, 48
  %v9674 = vpop.permute.xlu0 %9673
  %9675 = vrot.lane.b32.xlu0 %v7934, 48
  %v9676 = vpop.permute.xlu0 %9675
  %9677 = vrot.lane.b32.xlu0 %v7935, 48
  %v9678 = vpop.permute.xlu0 %9677
  %9679 = vrot.lane.b32.xlu0 %v7936, 48
  %v9680 = vpop.permute.xlu0 %9679
  %9681 = vrot.lane.b32.xlu0 %v7937, 48
  %v9682 = vpop.permute.xlu0 %9681
  %9683 = vrot.lane.b32.xlu0 %v7938, 48
  %v9684 = vpop.permute.xlu0 %9683
  %9685 = vrot.lane.b32.xlu0 %v7939, 48
  %v9686 = vpop.permute.xlu0 %9685
  %9687 = vrot.lane.b32.xlu0 %v7940, 48
  %v9688 = vpop.permute.xlu0 %9687
  %9689 = vrot.lane.b32.xlu0 %v7941, 48
  %v9690 = vpop.permute.xlu0 %9689
  %9691 = vrot.lane.b32.xlu0 %v7942, 48
  %v9692 = vpop.permute.xlu0 %9691
  %9693 = vrot.lane.b32.xlu0 %v7943, 48
  %v9694 = vpop.permute.xlu0 %9693
  %9695 = vrot.lane.b32.xlu0 %v7944, 48
  %v9696 = vpop.permute.xlu0 %9695
  %9697 = vrot.lane.b32.xlu0 %v7945, 48
  %v9698 = vpop.permute.xlu0 %9697
  %9699 = vrot.lane.b32.xlu0 %v7946, 48
  %v9700 = vpop.permute.xlu0 %9699
  %9701 = vrot.lane.b32.xlu0 %v7947, 48
  %v9702 = vpop.permute.xlu0 %9701
  %9703 = vrot.lane.b32.xlu0 %v7948, 48
  %v9704 = vpop.permute.xlu0 %9703
  %9705 = vrot.lane.b32.xlu0 %v7949, 48
  %v9706 = vpop.permute.xlu0 %9705
  %9707 = vrot.lane.b32.xlu0 %v7950, 48
  %v9708 = vpop.permute.xlu0 %9707
  %9709 = vrot.lane.b32.xlu0 %v7951, 48
  %v9710 = vpop.permute.xlu0 %9709
  %9711 = vrot.lane.b32.xlu0 %v7952, 48
  %v9712 = vpop.permute.xlu0 %9711
  %9713 = vrot.lane.b32.xlu0 %v7953, 48
  %v9714 = vpop.permute.xlu0 %9713
  %9715 = vrot.lane.b32.xlu0 %v7954, 48
  %v9716 = vpop.permute.xlu0 %9715
  %9717 = vrot.lane.b32.xlu0 %v7955, 48
  %v9718 = vpop.permute.xlu0 %9717
  %9719 = vrot.lane.b32.xlu0 %v7956, 48
  %v9720 = vpop.permute.xlu0 %9719
  %9721 = vrot.lane.b32.xlu0 %v7957, 48
  %v9722 = vpop.permute.xlu0 %9721
  %9723 = vrot.lane.b32.xlu0 %v7958, 48
  %v9724 = vpop.permute.xlu0 %9723
  %9725 = vrot.lane.b32.xlu0 %v7959, 48
  %v9726 = vpop.permute.xlu0 %9725
  %9727 = vrot.lane.b32.xlu0 %v7960, 48
  %v9728 = vpop.permute.xlu0 %9727
  %9729 = vrot.lane.b32.xlu0 %v7961, 48
  %v9730 = vpop.permute.xlu0 %9729
  %9731 = vrot.lane.b32.xlu0 %v7962, 48
  %v9732 = vpop.permute.xlu0 %9731
  %9733 = vrot.lane.b32.xlu0 %v7963, 48
  %v9734 = vpop.permute.xlu0 %9733
  %9735 = vrot.lane.b32.xlu0 %v7964, 48
  %v9736 = vpop.permute.xlu0 %9735
  %9737 = vrot.lane.b32.xlu0 %v7965, 48
  %v9738 = vpop.permute.xlu0 %9737
  %9739 = vrot.lane.b32.xlu0 %v7966, 48
  %v9740 = vpop.permute.xlu0 %9739
  %9741 = vrot.lane.b32.xlu0 %v7967, 48
  %v9742 = vpop.permute.xlu0 %9741
  %9743 = vrot.lane.b32.xlu0 %v7968, 48
  %v9744 = vpop.permute.xlu0 %9743
  %9745 = vrot.lane.b32.xlu0 %v7969, 48
  %v9746 = vpop.permute.xlu0 %9745
  %9747 = vrot.lane.b32.xlu0 %v7970, 48
  %v9748 = vpop.permute.xlu0 %9747
  %9749 = vrot.lane.b32.xlu0 %v7971, 48
  %v9750 = vpop.permute.xlu0 %9749
  %9751 = vrot.lane.b32.xlu0 %v7972, 48
  %v9752 = vpop.permute.xlu0 %9751
  %9753 = vrot.lane.b32.xlu0 %v7973, 48
  %v9754 = vpop.permute.xlu0 %9753
  %9755 = vrot.lane.b32.xlu0 %v7974, 48
  %v9756 = vpop.permute.xlu0 %9755
  %9757 = vrot.lane.b32.xlu0 %v7975, 48
  %v9758 = vpop.permute.xlu0 %9757
  %9759 = vrot.lane.b32.xlu0 %v7976, 48
  %v9760 = vpop.permute.xlu0 %9759
  %9761 = vrot.lane.b32.xlu0 %v7977, 48
  %v9762 = vpop.permute.xlu0 %9761
  %9763 = vrot.lane.b32.xlu0 %v7978, 48
  %v9764 = vpop.permute.xlu0 %9763
  %9765 = vrot.lane.b32.xlu0 %v7979, 48
  %v9766 = vpop.permute.xlu0 %9765
  %9767 = vrot.lane.b32.xlu0 %v7980, 48
  %v9768 = vpop.permute.xlu0 %9767
  %v9842 = vrot.slane %v7903, 1
  %v9843 = vsel %vm3564, %v9191, %v9842
  %v9844 = vrot.slane %v7904, 1
  %v9845 = vsel %vm3564, %v9842, %v9844
  %9846 = vrot.lane.b32.xlu0 %v8133, 56
  %v9847 = vpop.permute.xlu0 %9846
  %9848 = vrot.lane.b32.xlu0 %v8136, 56
  %v9849 = vpop.permute.xlu0 %9848
  %9850 = vrot.lane.b32.xlu0 %v8138, 56
  %v9851 = vpop.permute.xlu0 %9850
  %9852 = vrot.lane.b32.xlu0 %v8140, 56
  %v9853 = vpop.permute.xlu0 %9852
  %9854 = vrot.lane.b32.xlu0 %v8142, 56
  %v9855 = vpop.permute.xlu0 %9854
  %9856 = vrot.lane.b32.xlu0 %v8144, 56
  %v9857 = vpop.permute.xlu0 %9856
  %9858 = vrot.lane.b32.xlu0 %v8146, 56
  %v9859 = vpop.permute.xlu0 %9858
  %9860 = vrot.lane.b32.xlu0 %v8148, 56
  %v9861 = vpop.permute.xlu0 %9860
  %9862 = vrot.lane.b32.xlu0 %v8150, 56
  %v9863 = vpop.permute.xlu0 %9862
  %9864 = vrot.lane.b32.xlu0 %v8152, 56
  %v9865 = vpop.permute.xlu0 %9864
  %9866 = vrot.lane.b32.xlu0 %v8154, 56
  %v9867 = vpop.permute.xlu0 %9866
  %9868 = vrot.lane.b32.xlu0 %v8156, 56
  %v9869 = vpop.permute.xlu0 %9868
  %9870 = vrot.lane.b32.xlu0 %v8158, 56
  %v9871 = vpop.permute.xlu0 %9870
  %9872 = vrot.lane.b32.xlu0 %v8160, 56
  %v9873 = vpop.permute.xlu0 %9872
  %9874 = vrot.lane.b32.xlu0 %v8162, 56
  %v9875 = vpop.permute.xlu0 %9874
  %9876 = vrot.lane.b32.xlu0 %v8164, 56
  %v9877 = vpop.permute.xlu0 %9876
  %9878 = vrot.lane.b32.xlu0 %v8166, 56
  %v9879 = vpop.permute.xlu0 %9878
  %9880 = vrot.lane.b32.xlu0 %v8168, 56
  %v9881 = vpop.permute.xlu0 %9880
  %9882 = vrot.lane.b32.xlu0 %v8170, 56
  %v9883 = vpop.permute.xlu0 %9882
  %9884 = vrot.lane.b32.xlu0 %v8172, 56
  %v9885 = vpop.permute.xlu0 %9884
  %9886 = vrot.lane.b32.xlu0 %v8174, 56
  %v9887 = vpop.permute.xlu0 %9886
  %9888 = vrot.lane.b32.xlu0 %v8176, 56
  %v9889 = vpop.permute.xlu0 %9888
  %9890 = vrot.lane.b32.xlu0 %v8178, 56
  %v9891 = vpop.permute.xlu0 %9890
  %9892 = vrot.lane.b32.xlu0 %v8180, 56
  %v9893 = vpop.permute.xlu0 %9892
  %9894 = vrot.lane.b32.xlu0 %v8182, 56
  %v9895 = vpop.permute.xlu0 %9894
  %9896 = vrot.lane.b32.xlu0 %v8184, 56
  %v9897 = vpop.permute.xlu0 %9896
  %9898 = vrot.lane.b32.xlu0 %v8186, 56
  %v9899 = vpop.permute.xlu0 %9898
  %9900 = vrot.lane.b32.xlu0 %v8188, 56
  %v9901 = vpop.permute.xlu0 %9900
  %9902 = vrot.lane.b32.xlu0 %v8190, 56
  %v9903 = vpop.permute.xlu0 %9902
  %9904 = vrot.lane.b32.xlu0 %v8192, 56
  %v9905 = vpop.permute.xlu0 %9904
  %9906 = vrot.lane.b32.xlu0 %v8194, 56
  %v9907 = vpop.permute.xlu0 %9906
  %9908 = vrot.lane.b32.xlu0 %v8196, 56
  %v9909 = vpop.permute.xlu0 %9908
  %9910 = vrot.lane.b32.xlu0 %v8198, 56
  %v9911 = vpop.permute.xlu0 %9910
  %9912 = vrot.lane.b32.xlu0 %v8200, 56
  %v9913 = vpop.permute.xlu0 %9912
  %9914 = vrot.lane.b32.xlu0 %v8202, 56
  %v9915 = vpop.permute.xlu0 %9914
  %9916 = vrot.lane.b32.xlu0 %v8204, 56
  %v9917 = vpop.permute.xlu0 %9916
  %9918 = vrot.lane.b32.xlu0 %v8206, 56
  %v9919 = vpop.permute.xlu0 %9918
  %9920 = vrot.lane.b32.xlu0 %v8208, 56
  %v9921 = vpop.permute.xlu0 %9920
  %9922 = vrot.lane.b32.xlu0 %v8210, 56
  %v9923 = vpop.permute.xlu0 %9922
  %9924 = vrot.lane.b32.xlu0 %v8212, 56
  %v9925 = vpop.permute.xlu0 %9924
  %9926 = vrot.lane.b32.xlu0 %v8214, 56
  %v9927 = vpop.permute.xlu0 %9926
  %9928 = vrot.lane.b32.xlu0 %v8216, 56
  %v9929 = vpop.permute.xlu0 %9928
  %9930 = vrot.lane.b32.xlu0 %v8218, 56
  %v9931 = vpop.permute.xlu0 %9930
  %9932 = vrot.lane.b32.xlu0 %v8220, 56
  %v9933 = vpop.permute.xlu0 %9932
  %9934 = vrot.lane.b32.xlu0 %v8222, 56
  %v9935 = vpop.permute.xlu0 %9934
  %9936 = vrot.lane.b32.xlu0 %v8224, 56
  %v9937 = vpop.permute.xlu0 %9936
  %9938 = vrot.lane.b32.xlu0 %v8226, 56
  %v9939 = vpop.permute.xlu0 %9938
  %9940 = vrot.lane.b32.xlu0 %v8228, 56
  %v9941 = vpop.permute.xlu0 %9940
  %9942 = vrot.lane.b32.xlu0 %v8230, 56
  %v9943 = vpop.permute.xlu0 %9942
  %9944 = vrot.lane.b32.xlu0 %v8232, 56
  %v9945 = vpop.permute.xlu0 %9944
  %9946 = vrot.lane.b32.xlu0 %v8234, 56
  %v9947 = vpop.permute.xlu0 %9946
  %9948 = vrot.lane.b32.xlu0 %v8236, 56
  %v9949 = vpop.permute.xlu0 %9948
  %9950 = vrot.lane.b32.xlu0 %v8238, 56
  %v9951 = vpop.permute.xlu0 %9950
  %9952 = vrot.lane.b32.xlu0 %v8240, 56
  %v9953 = vpop.permute.xlu0 %9952
  %9954 = vrot.lane.b32.xlu0 %v8242, 56
  %v9955 = vpop.permute.xlu0 %9954
  %9956 = vrot.lane.b32.xlu0 %v8244, 56
  %v9957 = vpop.permute.xlu0 %9956
  %9958 = vrot.lane.b32.xlu0 %v8246, 56
  %v9959 = vpop.permute.xlu0 %9958
  %9960 = vrot.lane.b32.xlu0 %v8248, 56
  %v9961 = vpop.permute.xlu0 %9960
  %9962 = vrot.lane.b32.xlu0 %v8250, 56
  %v9963 = vpop.permute.xlu0 %9962
  %9964 = vrot.lane.b32.xlu0 %v8252, 56
  %v9965 = vpop.permute.xlu0 %9964
  %9966 = vrot.lane.b32.xlu0 %v8254, 56
  %v9967 = vpop.permute.xlu0 %9966
  %9968 = vrot.lane.b32.xlu0 %v8256, 56
  %v9969 = vpop.permute.xlu0 %9968
  %9970 = vrot.lane.b32.xlu0 %v8258, 56
  %v9971 = vpop.permute.xlu0 %9970
  %9972 = vrot.lane.b32.xlu0 %v8260, 56
  %v9973 = vpop.permute.xlu0 %9972
  %9974 = vrot.lane.b32.xlu0 %v8262, 56
  %v9975 = vpop.permute.xlu0 %9974
  %9976 = vrot.lane.b32.xlu0 %v8264, 56
  %v9977 = vpop.permute.xlu0 %9976
  %9978 = vrot.lane.b32.xlu0 %v9190, 56
  %v9979 = vpop.permute.xlu0 %9978
  %9980 = vrot.lane.b32.xlu0 %v9192, 56
  %v9981 = vpop.permute.xlu0 %9980
  %9982 = vrot.lane.b32.xlu0 %v9843, 56
  %v9983 = vpop.permute.xlu0 %9982
  %9984 = vrot.lane.b32.xlu0 %v9845, 56
  %v9985 = vpop.permute.xlu0 %9984
  %9986 = vrot.lane.b32.xlu0 %v9844, 56
  %v9987 = vpop.permute.xlu0 %9986
  %v10061 = vrot.slane %v8054, 2
  %v10062 = vsel %vm3988, %v9410, %v10061
  %v10063 = vrot.slane %v8055, 2
  %v10064 = vsel %vm3988, %v10061, %v10063
  %10065 = vrot.lane.b32.xlu0 %v8556, 64
  %v10066 = vpop.permute.xlu0 %10065
  %10067 = vrot.lane.b32.xlu0 %v8559, 64
  %v10068 = vpop.permute.xlu0 %10067
  %10069 = vrot.lane.b32.xlu0 %v8561, 64
  %v10070 = vpop.permute.xlu0 %10069
  %10071 = vrot.lane.b32.xlu0 %v8563, 64
  %v10072 = vpop.permute.xlu0 %10071
  %10073 = vrot.lane.b32.xlu0 %v8565, 64
  %v10074 = vpop.permute.xlu0 %10073
  %10075 = vrot.lane.b32.xlu0 %v8567, 64
  %v10076 = vpop.permute.xlu0 %10075
  %10077 = vrot.lane.b32.xlu0 %v8569, 64
  %v10078 = vpop.permute.xlu0 %10077
  %10079 = vrot.lane.b32.xlu0 %v8571, 64
  %v10080 = vpop.permute.xlu0 %10079
  %10081 = vrot.lane.b32.xlu0 %v8573, 64
  %v10082 = vpop.permute.xlu0 %10081
  %10083 = vrot.lane.b32.xlu0 %v8575, 64
  %v10084 = vpop.permute.xlu0 %10083
  %10085 = vrot.lane.b32.xlu0 %v8577, 64
  %v10086 = vpop.permute.xlu0 %10085
  %10087 = vrot.lane.b32.xlu0 %v8579, 64
  %v10088 = vpop.permute.xlu0 %10087
  %10089 = vrot.lane.b32.xlu0 %v8581, 64
  %v10090 = vpop.permute.xlu0 %10089
  %10091 = vrot.lane.b32.xlu0 %v8583, 64
  %v10092 = vpop.permute.xlu0 %10091
  %10093 = vrot.lane.b32.xlu0 %v8585, 64
  %v10094 = vpop.permute.xlu0 %10093
  %10095 = vrot.lane.b32.xlu0 %v8587, 64
  %v10096 = vpop.permute.xlu0 %10095
  %10097 = vrot.lane.b32.xlu0 %v8589, 64
  %v10098 = vpop.permute.xlu0 %10097
  %10099 = vrot.lane.b32.xlu0 %v8591, 64
  %v10100 = vpop.permute.xlu0 %10099
  %10101 = vrot.lane.b32.xlu0 %v8593, 64
  %v10102 = vpop.permute.xlu0 %10101
  %10103 = vrot.lane.b32.xlu0 %v8595, 64
  %v10104 = vpop.permute.xlu0 %10103
  %10105 = vrot.lane.b32.xlu0 %v8597, 64
  %v10106 = vpop.permute.xlu0 %10105
  %10107 = vrot.lane.b32.xlu0 %v8599, 64
  %v10108 = vpop.permute.xlu0 %10107
  %10109 = vrot.lane.b32.xlu0 %v8601, 64
  %v10110 = vpop.permute.xlu0 %10109
  %10111 = vrot.lane.b32.xlu0 %v8603, 64
  %v10112 = vpop.permute.xlu0 %10111
  %10113 = vrot.lane.b32.xlu0 %v8605, 64
  %v10114 = vpop.permute.xlu0 %10113
  %10115 = vrot.lane.b32.xlu0 %v8607, 64
  %v10116 = vpop.permute.xlu0 %10115
  %10117 = vrot.lane.b32.xlu0 %v8609, 64
  %v10118 = vpop.permute.xlu0 %10117
  %10119 = vrot.lane.b32.xlu0 %v8611, 64
  %v10120 = vpop.permute.xlu0 %10119
  %10121 = vrot.lane.b32.xlu0 %v8613, 64
  %v10122 = vpop.permute.xlu0 %10121
  %10123 = vrot.lane.b32.xlu0 %v8615, 64
  %v10124 = vpop.permute.xlu0 %10123
  %10125 = vrot.lane.b32.xlu0 %v8617, 64
  %v10126 = vpop.permute.xlu0 %10125
  %10127 = vrot.lane.b32.xlu0 %v8619, 64
  %v10128 = vpop.permute.xlu0 %10127
  %10129 = vrot.lane.b32.xlu0 %v8621, 64
  %v10130 = vpop.permute.xlu0 %10129
  %10131 = vrot.lane.b32.xlu0 %v8623, 64
  %v10132 = vpop.permute.xlu0 %10131
  %10133 = vrot.lane.b32.xlu0 %v8625, 64
  %v10134 = vpop.permute.xlu0 %10133
  %10135 = vrot.lane.b32.xlu0 %v8627, 64
  %v10136 = vpop.permute.xlu0 %10135
  %10137 = vrot.lane.b32.xlu0 %v8629, 64
  %v10138 = vpop.permute.xlu0 %10137
  %10139 = vrot.lane.b32.xlu0 %v8631, 64
  %v10140 = vpop.permute.xlu0 %10139
  %10141 = vrot.lane.b32.xlu0 %v8633, 64
  %v10142 = vpop.permute.xlu0 %10141
  %10143 = vrot.lane.b32.xlu0 %v8635, 64
  %v10144 = vpop.permute.xlu0 %10143
  %10145 = vrot.lane.b32.xlu0 %v8637, 64
  %v10146 = vpop.permute.xlu0 %10145
  %10147 = vrot.lane.b32.xlu0 %v8639, 64
  %v10148 = vpop.permute.xlu0 %10147
  %10149 = vrot.lane.b32.xlu0 %v8641, 64
  %v10150 = vpop.permute.xlu0 %10149
  %10151 = vrot.lane.b32.xlu0 %v8643, 64
  %v10152 = vpop.permute.xlu0 %10151
  %10153 = vrot.lane.b32.xlu0 %v8645, 64
  %v10154 = vpop.permute.xlu0 %10153
  %10155 = vrot.lane.b32.xlu0 %v8647, 64
  %v10156 = vpop.permute.xlu0 %10155
  %10157 = vrot.lane.b32.xlu0 %v8649, 64
  %v10158 = vpop.permute.xlu0 %10157
  %10159 = vrot.lane.b32.xlu0 %v8651, 64
  %v10160 = vpop.permute.xlu0 %10159
  %10161 = vrot.lane.b32.xlu0 %v8653, 64
  %v10162 = vpop.permute.xlu0 %10161
  %10163 = vrot.lane.b32.xlu0 %v8655, 64
  %v10164 = vpop.permute.xlu0 %10163
  %10165 = vrot.lane.b32.xlu0 %v8657, 64
  %v10166 = vpop.permute.xlu0 %10165
  %10167 = vrot.lane.b32.xlu0 %v8659, 64
  %v10168 = vpop.permute.xlu0 %10167
  %10169 = vrot.lane.b32.xlu0 %v8661, 64
  %v10170 = vpop.permute.xlu0 %10169
  %10171 = vrot.lane.b32.xlu0 %v8663, 64
  %v10172 = vpop.permute.xlu0 %10171
  %10173 = vrot.lane.b32.xlu0 %v8665, 64
  %v10174 = vpop.permute.xlu0 %10173
  %10175 = vrot.lane.b32.xlu0 %v8667, 64
  %v10176 = vpop.permute.xlu0 %10175
  %10177 = vrot.lane.b32.xlu0 %v8669, 64
  %v10178 = vpop.permute.xlu0 %10177
  %10179 = vrot.lane.b32.xlu0 %v8671, 64
  %v10180 = vpop.permute.xlu0 %10179
  %10181 = vrot.lane.b32.xlu0 %v8673, 64
  %v10182 = vpop.permute.xlu0 %10181
  %10183 = vrot.lane.b32.xlu0 %v8675, 64
  %v10184 = vpop.permute.xlu0 %10183
  %10185 = vrot.lane.b32.xlu0 %v8677, 64
  %v10186 = vpop.permute.xlu0 %10185
  %10187 = vrot.lane.b32.xlu0 %v8679, 64
  %v10188 = vpop.permute.xlu0 %10187
  %10189 = vrot.lane.b32.xlu0 %v8681, 64
  %v10190 = vpop.permute.xlu0 %10189
  %10191 = vrot.lane.b32.xlu0 %v8683, 64
  %v10192 = vpop.permute.xlu0 %10191
  %10193 = vrot.lane.b32.xlu0 %v8685, 64
  %v10194 = vpop.permute.xlu0 %10193
  %10195 = vrot.lane.b32.xlu0 %v8687, 64
  %v10196 = vpop.permute.xlu0 %10195
  %10197 = vrot.lane.b32.xlu0 %v8689, 64
  %v10198 = vpop.permute.xlu0 %10197
  %10199 = vrot.lane.b32.xlu0 %v9409, 64
  %v10200 = vpop.permute.xlu0 %10199
  %10201 = vrot.lane.b32.xlu0 %v9411, 64
  %v10202 = vpop.permute.xlu0 %10201
  %10203 = vrot.lane.b32.xlu0 %v10062, 64
  %v10204 = vpop.permute.xlu0 %10203
  %10205 = vrot.lane.b32.xlu0 %v10064, 64
  %v10206 = vpop.permute.xlu0 %10205
  %v10278 = vsel %vm103, %v7906, %v8266
  %v10279 = vsel %vm103, %v7907, %v8268
  %v10280 = vsel %vm103, %v7908, %v8270
  %v10281 = vsel %vm103, %v7909, %v8272
  %v10282 = vsel %vm103, %v7910, %v8274
  %v10283 = vsel %vm103, %v7911, %v8276
  %v10284 = vsel %vm103, %v7912, %v8278
  %v10285 = vsel %vm103, %v7913, %v8280
  %v10286 = vsel %vm103, %v7914, %v8282
  %v10287 = vsel %vm103, %v7915, %v8284
  %v10288 = vsel %vm103, %v7916, %v8286
  %v10289 = vsel %vm103, %v7917, %v8288
  %v10290 = vsel %vm103, %v7918, %v8290
  %v10291 = vsel %vm103, %v7919, %v8292
  %v10292 = vsel %vm103, %v7920, %v8294
  %v10293 = vsel %vm103, %v7921, %v8296
  %v10294 = vsel %vm103, %v7922, %v8298
  %v10295 = vsel %vm103, %v7923, %v8300
  %v10296 = vsel %vm103, %v7924, %v8302
  %v10297 = vsel %vm103, %v7925, %v8304
  %v10298 = vsel %vm103, %v7926, %v8306
  %v10299 = vsel %vm103, %v7927, %v8308
  %v10300 = vsel %vm103, %v7928, %v8310
  %v10301 = vsel %vm103, %v7929, %v8312
  %v10302 = vsel %vm103, %v7930, %v8314
  %v10303 = vsel %vm103, %v7931, %v8316
  %v10304 = vsel %vm103, %v7932, %v8318
  %v10305 = vsel %vm103, %v7933, %v8320
  %v10306 = vsel %vm103, %v7934, %v8322
  %v10307 = vsel %vm103, %v7935, %v8324
  %v10308 = vsel %vm103, %v7936, %v8326
  %v10309 = vsel %vm103, %v7937, %v8328
  %v10310 = vsel %vm103, %v7938, %v8330
  %v10311 = vsel %vm103, %v7939, %v8332
  %v10312 = vsel %vm103, %v7940, %v8334
  %v10313 = vsel %vm103, %v7941, %v8336
  %v10314 = vsel %vm103, %v7942, %v8338
  %v10315 = vsel %vm103, %v7943, %v8340
  %v10316 = vsel %vm103, %v7944, %v8342
  %v10317 = vsel %vm103, %v7945, %v8344
  %v10318 = vsel %vm103, %v7946, %v8346
  %v10319 = vsel %vm103, %v7947, %v8348
  %v10320 = vsel %vm103, %v7948, %v8350
  %v10321 = vsel %vm103, %v7949, %v8352
  %v10322 = vsel %vm103, %v7950, %v8354
  %v10323 = vsel %vm103, %v7951, %v8356
  %v10324 = vsel %vm103, %v7952, %v8358
  %v10325 = vsel %vm103, %v7953, %v8360
  %v10326 = vsel %vm103, %v7954, %v8362
  %v10327 = vsel %vm103, %v7955, %v8364
  %v10328 = vsel %vm103, %v7956, %v8366
  %v10329 = vsel %vm103, %v7957, %v8368
  %v10330 = vsel %vm103, %v7958, %v8370
  %v10331 = vsel %vm103, %v7959, %v8372
  %v10332 = vsel %vm103, %v7960, %v8374
  %v10333 = vsel %vm103, %v7961, %v8376
  %v10334 = vsel %vm103, %v7962, %v8378
  %v10335 = vsel %vm103, %v7963, %v8380
  %v10336 = vsel %vm103, %v7964, %v8382
  %v10337 = vsel %vm103, %v7965, %v8384
  %v10338 = vsel %vm103, %v7966, %v8386
  %v10339 = vsel %vm103, %v7967, %v8388
  %v10340 = vsel %vm103, %v7968, %v8390
  %v10341 = vsel %vm103, %v7969, %v8392
  %v10342 = vsel %vm103, %v7970, %v8394
  %v10343 = vsel %vm103, %v7971, %v8396
  %v10344 = vsel %vm103, %v7972, %v8398
  %v10345 = vsel %vm103, %v7973, %v8400
  %v10346 = vsel %vm103, %v7974, %v8402
  %v10347 = vsel %vm103, %v7975, %v8404
  %v10348 = vsel %vm103, %v7976, %v8406
  %v10349 = vsel %vm5932, %v10278, %v8691
  %v10350 = vsel %vm5932, %v10279, %v8693
  %v10351 = vsel %vm5932, %v10280, %v8695
  %v10352 = vsel %vm5932, %v10281, %v8697
  %v10353 = vsel %vm5932, %v10282, %v8699
  %v10354 = vsel %vm5932, %v10283, %v8701
  %v10355 = vsel %vm5932, %v10284, %v8703
  %v10356 = vsel %vm5932, %v10285, %v8705
  %v10357 = vsel %vm5932, %v10286, %v8707
  %v10358 = vsel %vm5932, %v10287, %v8709
  %v10359 = vsel %vm5932, %v10288, %v8711
  %v10360 = vsel %vm5932, %v10289, %v8713
  %v10361 = vsel %vm5932, %v10290, %v8715
  %v10362 = vsel %vm5932, %v10291, %v8717
  %v10363 = vsel %vm5932, %v10292, %v8719
  %v10364 = vsel %vm5932, %v10293, %v8721
  %v10365 = vsel %vm5932, %v10294, %v8723
  %v10366 = vsel %vm5932, %v10295, %v8725
  %v10367 = vsel %vm5932, %v10296, %v8727
  %v10368 = vsel %vm5932, %v10297, %v8729
  %v10369 = vsel %vm5932, %v10298, %v8731
  %v10370 = vsel %vm5932, %v10299, %v8733
  %v10371 = vsel %vm5932, %v10300, %v8735
  %v10372 = vsel %vm5932, %v10301, %v8737
  %v10373 = vsel %vm5932, %v10302, %v8739
  %v10374 = vsel %vm5932, %v10303, %v8741
  %v10375 = vsel %vm5932, %v10304, %v8743
  %v10376 = vsel %vm5932, %v10305, %v8745
  %v10377 = vsel %vm5932, %v10306, %v8747
  %v10378 = vsel %vm5932, %v10307, %v8749
  %v10379 = vsel %vm5932, %v10308, %v8751
  %v10380 = vsel %vm5932, %v10309, %v8753
  %v10381 = vsel %vm5932, %v10310, %v8755
  %v10382 = vsel %vm5932, %v10311, %v8757
  %v10383 = vsel %vm5932, %v10312, %v8759
  %v10384 = vsel %vm5932, %v10313, %v8761
  %v10385 = vsel %vm5932, %v10314, %v8763
  %v10386 = vsel %vm5932, %v10315, %v8765
  %v10387 = vsel %vm5932, %v10316, %v8767
  %v10388 = vsel %vm5932, %v10317, %v8769
  %v10389 = vsel %vm5932, %v10318, %v8771
  %v10390 = vsel %vm5932, %v10319, %v8773
  %v10391 = vsel %vm5932, %v10320, %v8775
  %v10392 = vsel %vm5932, %v10321, %v8777
  %v10393 = vsel %vm5932, %v10322, %v8779
  %v10394 = vsel %vm5932, %v10323, %v8781
  %v10395 = vsel %vm5932, %v10324, %v8783
  %v10396 = vsel %vm5932, %v10325, %v8785
  %v10397 = vsel %vm5932, %v10326, %v8787
  %v10398 = vsel %vm5932, %v10327, %v8789
  %v10399 = vsel %vm5932, %v10328, %v8791
  %v10400 = vsel %vm5932, %v10329, %v8793
  %v10401 = vsel %vm5932, %v10330, %v8795
  %v10402 = vsel %vm5932, %v10331, %v8797
  %v10403 = vsel %vm5932, %v10332, %v8799
  %v10404 = vsel %vm5932, %v10333, %v8801
  %v10405 = vsel %vm5932, %v10334, %v8803
  %v10406 = vsel %vm5932, %v10335, %v8805
  %v10407 = vsel %vm5932, %v10336, %v8807
  %v10408 = vsel %vm5932, %v10337, %v8809
  %v10409 = vsel %vm5932, %v10338, %v8811
  %v10410 = vsel %vm5932, %v10339, %v8813
  %v10411 = vsel %vm5932, %v10340, %v8815
  %v10412 = vsel %vm5932, %v10341, %v8817
  %v10413 = vsel %vm5932, %v10342, %v8819
  %v10414 = vsel %vm5932, %v10343, %v8821
  %v10415 = vsel %vm5932, %v10344, %v8823
  %v10416 = vsel %vm5932, %v10345, %v8825
  %v10417 = vsel %vm5932, %v10346, %v8827
  %v10418 = vsel %vm5932, %v10347, %v8829
  %v10419 = vsel %vm5932, %v10348, %v8831
  %v10420 = vsel %vm6076, %v10349, %v8975
  %v10421 = vsel %vm6076, %v10350, %v8977
  %v10422 = vsel %vm6076, %v10351, %v8979
  %v10423 = vsel %vm6076, %v10352, %v8981
  %v10424 = vsel %vm6076, %v10353, %v8983
  %v10425 = vsel %vm6076, %v10354, %v8985
  %v10426 = vsel %vm6076, %v10355, %v8987
  %v10427 = vsel %vm6076, %v10356, %v8989
  %v10428 = vsel %vm6076, %v10357, %v8991
  %v10429 = vsel %vm6076, %v10358, %v8993
  %v10430 = vsel %vm6076, %v10359, %v8995
  %v10431 = vsel %vm6076, %v10360, %v8997
  %v10432 = vsel %vm6076, %v10361, %v8999
  %v10433 = vsel %vm6076, %v10362, %v9001
  %v10434 = vsel %vm6076, %v10363, %v9003
  %v10435 = vsel %vm6076, %v10364, %v9005
  %v10436 = vsel %vm6076, %v10365, %v9007
  %v10437 = vsel %vm6076, %v10366, %v9009
  %v10438 = vsel %vm6076, %v10367, %v9011
  %v10439 = vsel %vm6076, %v10368, %v9013
  %v10440 = vsel %vm6076, %v10369, %v9015
  %v10441 = vsel %vm6076, %v10370, %v9017
  %v10442 = vsel %vm6076, %v10371, %v9019
  %v10443 = vsel %vm6076, %v10372, %v9021
  %v10444 = vsel %vm6076, %v10373, %v9023
  %v10445 = vsel %vm6076, %v10374, %v9025
  %v10446 = vsel %vm6076, %v10375, %v9027
  %v10447 = vsel %vm6076, %v10376, %v9029
  %v10448 = vsel %vm6076, %v10377, %v9031
  %v10449 = vsel %vm6076, %v10378, %v9033
  %v10450 = vsel %vm6076, %v10379, %v9035
  %v10451 = vsel %vm6076, %v10380, %v9037
  %v10452 = vsel %vm6076, %v10381, %v9039
  %v10453 = vsel %vm6076, %v10382, %v9041
  %v10454 = vsel %vm6076, %v10383, %v9043
  %v10455 = vsel %vm6076, %v10384, %v9045
  %v10456 = vsel %vm6076, %v10385, %v9047
  %v10457 = vsel %vm6076, %v10386, %v9049
  %v10458 = vsel %vm6076, %v10387, %v9051
  %v10459 = vsel %vm6076, %v10388, %v9053
  %v10460 = vsel %vm6076, %v10389, %v9055
  %v10461 = vsel %vm6076, %v10390, %v9057
  %v10462 = vsel %vm6076, %v10391, %v9059
  %v10463 = vsel %vm6076, %v10392, %v9061
  %v10464 = vsel %vm6076, %v10393, %v9063
  %v10465 = vsel %vm6076, %v10394, %v9065
  %v10466 = vsel %vm6076, %v10395, %v9067
  %v10467 = vsel %vm6076, %v10396, %v9069
  %v10468 = vsel %vm6076, %v10397, %v9071
  %v10469 = vsel %vm6076, %v10398, %v9073
  %v10470 = vsel %vm6076, %v10399, %v9075
  %v10471 = vsel %vm6076, %v10400, %v9077
  %v10472 = vsel %vm6076, %v10401, %v9079
  %v10473 = vsel %vm6076, %v10402, %v9081
  %v10474 = vsel %vm6076, %v10403, %v9083
  %v10475 = vsel %vm6076, %v10404, %v9085
  %v10476 = vsel %vm6076, %v10405, %v9087
  %v10477 = vsel %vm6076, %v10406, %v9089
  %v10478 = vsel %vm6076, %v10407, %v9091
  %v10479 = vsel %vm6076, %v10408, %v9093
  %v10480 = vsel %vm6076, %v10409, %v9095
  %v10481 = vsel %vm6076, %v10410, %v9097
  %v10482 = vsel %vm6076, %v10411, %v9099
  %v10483 = vsel %vm6076, %v10412, %v9101
  %v10484 = vsel %vm6076, %v10413, %v9103
  %v10485 = vsel %vm6076, %v10414, %v9105
  %v10486 = vsel %vm6076, %v10415, %v9107
  %v10487 = vsel %vm6076, %v10416, %v9109
  %v10488 = vsel %vm6076, %v10417, %v9111
  %v10489 = vsel %vm6076, %v10418, %v9113
  %v10490 = vsel %vm6076, %v10419, %v9115
  %v10491 = vsel %vm6220, %v10420, %v9194
  %v10492 = vsel %vm6220, %v10421, %v9196
  %v10493 = vsel %vm6220, %v10422, %v9198
  %v10494 = vsel %vm6220, %v10423, %v9200
  %v10495 = vsel %vm6220, %v10424, %v9202
  %v10496 = vsel %vm6220, %v10425, %v9204
  %v10497 = vsel %vm6220, %v10426, %v9206
  %v10498 = vsel %vm6220, %v10427, %v9208
  %v10499 = vsel %vm6220, %v10428, %v9210
  %v10500 = vsel %vm6220, %v10429, %v9212
  %v10501 = vsel %vm6220, %v10430, %v9214
  %v10502 = vsel %vm6220, %v10431, %v9216
  %v10503 = vsel %vm6220, %v10432, %v9218
  %v10504 = vsel %vm6220, %v10433, %v9220
  %v10505 = vsel %vm6220, %v10434, %v9222
  %v10506 = vsel %vm6220, %v10435, %v9224
  %v10507 = vsel %vm6220, %v10436, %v9226
  %v10508 = vsel %vm6220, %v10437, %v9228
  %v10509 = vsel %vm6220, %v10438, %v9230
  %v10510 = vsel %vm6220, %v10439, %v9232
  %v10511 = vsel %vm6220, %v10440, %v9234
  %v10512 = vsel %vm6220, %v10441, %v9236
  %v10513 = vsel %vm6220, %v10442, %v9238
  %v10514 = vsel %vm6220, %v10443, %v9240
  %v10515 = vsel %vm6220, %v10444, %v9242
  %v10516 = vsel %vm6220, %v10445, %v9244
  %v10517 = vsel %vm6220, %v10446, %v9246
  %v10518 = vsel %vm6220, %v10447, %v9248
  %v10519 = vsel %vm6220, %v10448, %v9250
  %v10520 = vsel %vm6220, %v10449, %v9252
  %v10521 = vsel %vm6220, %v10450, %v9254
  %v10522 = vsel %vm6220, %v10451, %v9256
  %v10523 = vsel %vm6220, %v10452, %v9258
  %v10524 = vsel %vm6220, %v10453, %v9260
  %v10525 = vsel %vm6220, %v10454, %v9262
  %v10526 = vsel %vm6220, %v10455, %v9264
  %v10527 = vsel %vm6220, %v10456, %v9266
  %v10528 = vsel %vm6220, %v10457, %v9268
  %v10529 = vsel %vm6220, %v10458, %v9270
  %v10530 = vsel %vm6220, %v10459, %v9272
  %v10531 = vsel %vm6220, %v10460, %v9274
  %v10532 = vsel %vm6220, %v10461, %v9276
  %v10533 = vsel %vm6220, %v10462, %v9278
  %v10534 = vsel %vm6220, %v10463, %v9280
  %v10535 = vsel %vm6220, %v10464, %v9282
  %v10536 = vsel %vm6220, %v10465, %v9284
  %v10537 = vsel %vm6220, %v10466, %v9286
  %v10538 = vsel %vm6220, %v10467, %v9288
  %v10539 = vsel %vm6220, %v10468, %v9290
  %v10540 = vsel %vm6220, %v10469, %v9292
  %v10541 = vsel %vm6220, %v10470, %v9294
  %v10542 = vsel %vm6220, %v10471, %v9296
  %v10543 = vsel %vm6220, %v10472, %v9298
  %v10544 = vsel %vm6220, %v10473, %v9300
  %v10545 = vsel %vm6220, %v10474, %v9302
  %v10546 = vsel %vm6220, %v10475, %v9304
  %v10547 = vsel %vm6220, %v10476, %v9306
  %v10548 = vsel %vm6220, %v10477, %v9308
  %v10549 = vsel %vm6220, %v10478, %v9310
  %v10550 = vsel %vm6220, %v10479, %v9312
  %v10551 = vsel %vm6220, %v10480, %v9314
  %v10552 = vsel %vm6220, %v10481, %v9316
  %v10553 = vsel %vm6220, %v10482, %v9318
  %v10554 = vsel %vm6220, %v10483, %v9320
  %v10555 = vsel %vm6220, %v10484, %v9322
  %v10556 = vsel %vm6220, %v10485, %v9324
  %v10557 = vsel %vm6220, %v10486, %v9326
  %v10558 = vsel %vm6220, %v10487, %v9328
  %v10559 = vsel %vm6220, %v10488, %v9330
  %v10560 = vsel %vm6220, %v10489, %v9332
  %v10561 = vsel %vm6220, %v10490, %v9334
  %vm10562 = vcmask 326656
  %v10563 = vsel %vm10562, %v10491, %v9413
  %v10564 = vsel %vm10562, %v10492, %v9415
  %v10565 = vsel %vm10562, %v10493, %v9417
  %v10566 = vsel %vm10562, %v10494, %v9419
  %v10567 = vsel %vm10562, %v10495, %v9421
  %v10568 = vsel %vm10562, %v10496, %v9423
  %v10569 = vsel %vm10562, %v10497, %v9425
  %v10570 = vsel %vm10562, %v10498, %v9427
  %v10571 = vsel %vm10562, %v10499, %v9429
  %v10572 = vsel %vm10562, %v10500, %v9431
  %v10573 = vsel %vm10562, %v10501, %v9433
  %v10574 = vsel %vm10562, %v10502, %v9435
  %v10575 = vsel %vm10562, %v10503, %v9437
  %v10576 = vsel %vm10562, %v10504, %v9439
  %v10577 = vsel %vm10562, %v10505, %v9441
  %v10578 = vsel %vm10562, %v10506, %v9443
  %v10579 = vsel %vm10562, %v10507, %v9445
  %v10580 = vsel %vm10562, %v10508, %v9447
  %v10581 = vsel %vm10562, %v10509, %v9449
  %v10582 = vsel %vm10562, %v10510, %v9451
  %v10583 = vsel %vm10562, %v10511, %v9453
  %v10584 = vsel %vm10562, %v10512, %v9455
  %v10585 = vsel %vm10562, %v10513, %v9457
  %v10586 = vsel %vm10562, %v10514, %v9459
  %v10587 = vsel %vm10562, %v10515, %v9461
  %v10588 = vsel %vm10562, %v10516, %v9463
  %v10589 = vsel %vm10562, %v10517, %v9465
  %v10590 = vsel %vm10562, %v10518, %v9467
  %v10591 = vsel %vm10562, %v10519, %v9469
  %v10592 = vsel %vm10562, %v10520, %v9471
  %v10593 = vsel %vm10562, %v10521, %v9473
  %v10594 = vsel %vm10562, %v10522, %v9475
  %v10595 = vsel %vm10562, %v10523, %v9477
  %v10596 = vsel %vm10562, %v10524, %v9479
  %v10597 = vsel %vm10562, %v10525, %v9481
  %v10598 = vsel %vm10562, %v10526, %v9483
  %v10599 = vsel %vm10562, %v10527, %v9485
  %v10600 = vsel %vm10562, %v10528, %v9487
  %v10601 = vsel %vm10562, %v10529, %v9489
  %v10602 = vsel %vm10562, %v10530, %v9491
  %v10603 = vsel %vm10562, %v10531, %v9493
  %v10604 = vsel %vm10562, %v10532, %v9495
  %v10605 = vsel %vm10562, %v10533, %v9497
  %v10606 = vsel %vm10562, %v10534, %v9499
  %v10607 = vsel %vm10562, %v10535, %v9501
  %v10608 = vsel %vm10562, %v10536, %v9503
  %v10609 = vsel %vm10562, %v10537, %v9505
  %v10610 = vsel %vm10562, %v10538, %v9507
  %v10611 = vsel %vm10562, %v10539, %v9509
  %v10612 = vsel %vm10562, %v10540, %v9511
  %v10613 = vsel %vm10562, %v10541, %v9513
  %v10614 = vsel %vm10562, %v10542, %v9515
  %v10615 = vsel %vm10562, %v10543, %v9517
  %v10616 = vsel %vm10562, %v10544, %v9519
  %v10617 = vsel %vm10562, %v10545, %v9521
  %v10618 = vsel %vm10562, %v10546, %v9523
  %v10619 = vsel %vm10562, %v10547, %v9525
  %v10620 = vsel %vm10562, %v10548, %v9527
  %v10621 = vsel %vm10562, %v10549, %v9529
  %v10622 = vsel %vm10562, %v10550, %v9531
  %v10623 = vsel %vm10562, %v10551, %v9533
  %v10624 = vsel %vm10562, %v10552, %v9535
  %v10625 = vsel %vm10562, %v10553, %v9537
  %v10626 = vsel %vm10562, %v10554, %v9539
  %v10627 = vsel %vm10562, %v10555, %v9541
  %v10628 = vsel %vm10562, %v10556, %v9543
  %v10629 = vsel %vm10562, %v10557, %v9545
  %v10630 = vsel %vm10562, %v10558, %v9547
  %v10631 = vsel %vm10562, %v10559, %v9549
  %v10632 = vsel %vm10562, %v10560, %v9551
  %v10633 = vsel %vm10562, %v10561, %v9553
  %vm10634 = vcmask 392192
  %v10635 = vsel %vm10634, %v10563, %v9628
  %v10636 = vsel %vm10634, %v10564, %v9630
  %v10637 = vsel %vm10634, %v10565, %v9632
  %v10638 = vsel %vm10634, %v10566, %v9634
  %v10639 = vsel %vm10634, %v10567, %v9636
  %v10640 = vsel %vm10634, %v10568, %v9638
  %v10641 = vsel %vm10634, %v10569, %v9640
  %v10642 = vsel %vm10634, %v10570, %v9642
  %v10643 = vsel %vm10634, %v10571, %v9644
  %v10644 = vsel %vm10634, %v10572, %v9646
  %v10645 = vsel %vm10634, %v10573, %v9648
  %v10646 = vsel %vm10634, %v10574, %v9650
  %v10647 = vsel %vm10634, %v10575, %v9652
  %v10648 = vsel %vm10634, %v10576, %v9654
  %v10649 = vsel %vm10634, %v10577, %v9656
  %v10650 = vsel %vm10634, %v10578, %v9658
  %v10651 = vsel %vm10634, %v10579, %v9660
  %v10652 = vsel %vm10634, %v10580, %v9662
  %v10653 = vsel %vm10634, %v10581, %v9664
  %v10654 = vsel %vm10634, %v10582, %v9666
  %v10655 = vsel %vm10634, %v10583, %v9668
  %v10656 = vsel %vm10634, %v10584, %v9670
  %v10657 = vsel %vm10634, %v10585, %v9672
  %v10658 = vsel %vm10634, %v10586, %v9674
  %v10659 = vsel %vm10634, %v10587, %v9676
  %v10660 = vsel %vm10634, %v10588, %v9678
  %v10661 = vsel %vm10634, %v10589, %v9680
  %v10662 = vsel %vm10634, %v10590, %v9682
  %v10663 = vsel %vm10634, %v10591, %v9684
  %v10664 = vsel %vm10634, %v10592, %v9686
  %v10665 = vsel %vm10634, %v10593, %v9688
  %v10666 = vsel %vm10634, %v10594, %v9690
  %v10667 = vsel %vm10634, %v10595, %v9692
  %v10668 = vsel %vm10634, %v10596, %v9694
  %v10669 = vsel %vm10634, %v10597, %v9696
  %v10670 = vsel %vm10634, %v10598, %v9698
  %v10671 = vsel %vm10634, %v10599, %v9700
  %v10672 = vsel %vm10634, %v10600, %v9702
  %v10673 = vsel %vm10634, %v10601, %v9704
  %v10674 = vsel %vm10634, %v10602, %v9706
  %v10675 = vsel %vm10634, %v10603, %v9708
  %v10676 = vsel %vm10634, %v10604, %v9710
  %v10677 = vsel %vm10634, %v10605, %v9712
  %v10678 = vsel %vm10634, %v10606, %v9714
  %v10679 = vsel %vm10634, %v10607, %v9716
  %v10680 = vsel %vm10634, %v10608, %v9718
  %v10681 = vsel %vm10634, %v10609, %v9720
  %v10682 = vsel %vm10634, %v10610, %v9722
  %v10683 = vsel %vm10634, %v10611, %v9724
  %v10684 = vsel %vm10634, %v10612, %v9726
  %v10685 = vsel %vm10634, %v10613, %v9728
  %v10686 = vsel %vm10634, %v10614, %v9730
  %v10687 = vsel %vm10634, %v10615, %v9732
  %v10688 = vsel %vm10634, %v10616, %v9734
  %v10689 = vsel %vm10634, %v10617, %v9736
  %v10690 = vsel %vm10634, %v10618, %v9738
  %v10691 = vsel %vm10634, %v10619, %v9740
  %v10692 = vsel %vm10634, %v10620, %v9742
  %v10693 = vsel %vm10634, %v10621, %v9744
  %v10694 = vsel %vm10634, %v10622, %v9746
  %v10695 = vsel %vm10634, %v10623, %v9748
  %v10696 = vsel %vm10634, %v10624, %v9750
  %v10697 = vsel %vm10634, %v10625, %v9752
  %v10698 = vsel %vm10634, %v10626, %v9754
  %v10699 = vsel %vm10634, %v10627, %v9756
  %v10700 = vsel %vm10634, %v10628, %v9758
  %v10701 = vsel %vm10634, %v10629, %v9760
  %v10702 = vsel %vm10634, %v10630, %v9762
  %v10703 = vsel %vm10634, %v10631, %v9764
  %v10704 = vsel %vm10634, %v10632, %v9766
  %v10705 = vsel %vm10634, %v10633, %v9768
  %vm10706 = vcmask 457728
  %v10707 = vsel %vm10706, %v10635, %v9847
  %v10708 = vsel %vm10706, %v10636, %v9849
  %v10709 = vsel %vm10706, %v10637, %v9851
  %v10710 = vsel %vm10706, %v10638, %v9853
  %v10711 = vsel %vm10706, %v10639, %v9855
  %v10712 = vsel %vm10706, %v10640, %v9857
  %v10713 = vsel %vm10706, %v10641, %v9859
  %v10714 = vsel %vm10706, %v10642, %v9861
  %v10715 = vsel %vm10706, %v10643, %v9863
  %v10716 = vsel %vm10706, %v10644, %v9865
  %v10717 = vsel %vm10706, %v10645, %v9867
  %v10718 = vsel %vm10706, %v10646, %v9869
  %v10719 = vsel %vm10706, %v10647, %v9871
  %v10720 = vsel %vm10706, %v10648, %v9873
  %v10721 = vsel %vm10706, %v10649, %v9875
  %v10722 = vsel %vm10706, %v10650, %v9877
  %v10723 = vsel %vm10706, %v10651, %v9879
  %v10724 = vsel %vm10706, %v10652, %v9881
  %v10725 = vsel %vm10706, %v10653, %v9883
  %v10726 = vsel %vm10706, %v10654, %v9885
  %v10727 = vsel %vm10706, %v10655, %v9887
  %v10728 = vsel %vm10706, %v10656, %v9889
  %v10729 = vsel %vm10706, %v10657, %v9891
  %v10730 = vsel %vm10706, %v10658, %v9893
  %v10731 = vsel %vm10706, %v10659, %v9895
  %v10732 = vsel %vm10706, %v10660, %v9897
  %v10733 = vsel %vm10706, %v10661, %v9899
  %v10734 = vsel %vm10706, %v10662, %v9901
  %v10735 = vsel %vm10706, %v10663, %v9903
  %v10736 = vsel %vm10706, %v10664, %v9905
  %v10737 = vsel %vm10706, %v10665, %v9907
  %v10738 = vsel %vm10706, %v10666, %v9909
  %v10739 = vsel %vm10706, %v10667, %v9911
  %v10740 = vsel %vm10706, %v10668, %v9913
  %v10741 = vsel %vm10706, %v10669, %v9915
  %v10742 = vsel %vm10706, %v10670, %v9917
  %v10743 = vsel %vm10706, %v10671, %v9919
  %v10744 = vsel %vm10706, %v10672, %v9921
  %v10745 = vsel %vm10706, %v10673, %v9923
  %v10746 = vsel %vm10706, %v10674, %v9925
  %v10747 = vsel %vm10706, %v10675, %v9927
  %v10748 = vsel %vm10706, %v10676, %v9929
  %v10749 = vsel %vm10706, %v10677, %v9931
  %v10750 = vsel %vm10706, %v10678, %v9933
  %v10751 = vsel %vm10706, %v10679, %v9935
  %v10752 = vsel %vm10706, %v10680, %v9937
  %v10753 = vsel %vm10706, %v10681, %v9939
  %v10754 = vsel %vm10706, %v10682, %v9941
  %v10755 = vsel %vm10706, %v10683, %v9943
  %v10756 = vsel %vm10706, %v10684, %v9945
  %v10757 = vsel %vm10706, %v10685, %v9947
  %v10758 = vsel %vm10706, %v10686, %v9949
  %v10759 = vsel %vm10706, %v10687, %v9951
  %v10760 = vsel %vm10706, %v10688, %v9953
  %v10761 = vsel %vm10706, %v10689, %v9955
  %v10762 = vsel %vm10706, %v10690, %v9957
  %v10763 = vsel %vm10706, %v10691, %v9959
  %v10764 = vsel %vm10706, %v10692, %v9961
  %v10765 = vsel %vm10706, %v10693, %v9963
  %v10766 = vsel %vm10706, %v10694, %v9965
  %v10767 = vsel %vm10706, %v10695, %v9967
  %v10768 = vsel %vm10706, %v10696, %v9969
  %v10769 = vsel %vm10706, %v10697, %v9971
  %v10770 = vsel %vm10706, %v10698, %v9973
  %v10771 = vsel %vm10706, %v10699, %v9975
  %v10772 = vsel %vm10706, %v10700, %v9977
  %v10773 = vsel %vm10706, %v10701, %v9979
  %v10774 = vsel %vm10706, %v10702, %v9981
  %v10775 = vsel %vm10706, %v10703, %v9983
  %v10776 = vsel %vm10706, %v10704, %v9985
  %v10777 = vsel %vm10706, %v10705, %v9987
  %vm10778 = vcmask 523264
  %v10779 = vsel %vm10778, %v10707, %v10066
  %v10780 = vsel %vm10778, %v10708, %v10068
  %v10781 = vsel %vm10778, %v10709, %v10070
  %v10782 = vsel %vm10778, %v10710, %v10072
  %v10783 = vsel %vm10778, %v10711, %v10074
  %v10784 = vsel %vm10778, %v10712, %v10076
  %v10785 = vsel %vm10778, %v10713, %v10078
  %v10786 = vsel %vm10778, %v10714, %v10080
  %v10787 = vsel %vm10778, %v10715, %v10082
  %v10788 = vsel %vm10778, %v10716, %v10084
  %v10789 = vsel %vm10778, %v10717, %v10086
  %v10790 = vsel %vm10778, %v10718, %v10088
  %v10791 = vsel %vm10778, %v10719, %v10090
  %v10792 = vsel %vm10778, %v10720, %v10092
  %v10793 = vsel %vm10778, %v10721, %v10094
  %v10794 = vsel %vm10778, %v10722, %v10096
  %v10795 = vsel %vm10778, %v10723, %v10098
  %v10796 = vsel %vm10778, %v10724, %v10100
  %v10797 = vsel %vm10778, %v10725, %v10102
  %v10798 = vsel %vm10778, %v10726, %v10104
  %v10799 = vsel %vm10778, %v10727, %v10106
  %v10800 = vsel %vm10778, %v10728, %v10108
  %v10801 = vsel %vm10778, %v10729, %v10110
  %v10802 = vsel %vm10778, %v10730, %v10112
  %v10803 = vsel %vm10778, %v10731, %v10114
  %v10804 = vsel %vm10778, %v10732, %v10116
  %v10805 = vsel %vm10778, %v10733, %v10118
  %v10806 = vsel %vm10778, %v10734, %v10120
  %v10807 = vsel %vm10778, %v10735, %v10122
  %v10808 = vsel %vm10778, %v10736, %v10124
  %v10809 = vsel %vm10778, %v10737, %v10126
  %v10810 = vsel %vm10778, %v10738, %v10128
  %v10811 = vsel %vm10778, %v10739, %v10130
  %v10812 = vsel %vm10778, %v10740, %v10132
  %v10813 = vsel %vm10778, %v10741, %v10134
  %v10814 = vsel %vm10778, %v10742, %v10136
  %v10815 = vsel %vm10778, %v10743, %v10138
  %v10816 = vsel %vm10778, %v10744, %v10140
  %v10817 = vsel %vm10778, %v10745, %v10142
  %v10818 = vsel %vm10778, %v10746, %v10144
  %v10819 = vsel %vm10778, %v10747, %v10146
  %v10820 = vsel %vm10778, %v10748, %v10148
  %v10821 = vsel %vm10778, %v10749, %v10150
  %v10822 = vsel %vm10778, %v10750, %v10152
  %v10823 = vsel %vm10778, %v10751, %v10154
  %v10824 = vsel %vm10778, %v10752, %v10156
  %v10825 = vsel %vm10778, %v10753, %v10158
  %v10826 = vsel %vm10778, %v10754, %v10160
  %v10827 = vsel %vm10778, %v10755, %v10162
  %v10828 = vsel %vm10778, %v10756, %v10164
  %v10829 = vsel %vm10778, %v10757, %v10166
  %v10830 = vsel %vm10778, %v10758, %v10168
  %v10831 = vsel %vm10778, %v10759, %v10170
  %v10832 = vsel %vm10778, %v10760, %v10172
  %v10833 = vsel %vm10778, %v10761, %v10174
  %v10834 = vsel %vm10778, %v10762, %v10176
  %v10835 = vsel %vm10778, %v10763, %v10178
  %v10836 = vsel %vm10778, %v10764, %v10180
  %v10837 = vsel %vm10778, %v10765, %v10182
  %v10838 = vsel %vm10778, %v10766, %v10184
  %v10839 = vsel %vm10778, %v10767, %v10186
  %v10840 = vsel %vm10778, %v10768, %v10188
  %v10841 = vsel %vm10778, %v10769, %v10190
  %v10842 = vsel %vm10778, %v10770, %v10192
  %v10843 = vsel %vm10778, %v10771, %v10194
  %v10844 = vsel %vm10778, %v10772, %v10196
  %v10845 = vsel %vm10778, %v10773, %v10198
  %v10846 = vsel %vm10778, %v10774, %v10200
  %v10847 = vsel %vm10778, %v10775, %v10202
  %v10848 = vsel %vm10778, %v10776, %v10204
  %v10849 = vsel %vm10778, %v10777, %v10206
  %v10850 = vld [vmem:[%s2] sm:$0xff]
  %v10851 = vld [vmem:[%s2 + $0x8] sm:$0xff]
  %v10852 = vld [vmem:[%s2 + $0x10] sm:$0xff]
  %v10853 = vld [vmem:[%s2 + $0x18] sm:$0xff]
  %v10854 = vld [vmem:[%s2 + $0x20] sm:$0xff]
  %v10855 = vld [vmem:[%s2 + $0x28] sm:$0xff]
  %v10856 = vld [vmem:[%s2 + $0x30] sm:$0xff]
  %v10857 = vld [vmem:[%s2 + $0x38] sm:$0xff]
  %v10858 = vld [vmem:[%s2 + $0x40] sm:$0xff]
  %v10930 = vrot.slane %v10779, 7
  %v10931 = vrot.slane %v10780, 7
  %v10932 = vsel %vm6368, %v10930, %v10931
  %v10933 = vrot.slane %v10781, 7
  %v10934 = vsel %vm6368, %v10931, %v10933
  %v10935 = vrot.slane %v10782, 7
  %v10936 = vsel %vm6368, %v10933, %v10935
  %v10937 = vrot.slane %v10783, 7
  %v10938 = vsel %vm6368, %v10935, %v10937
  %v10939 = vrot.slane %v10784, 7
  %v10940 = vsel %vm6368, %v10937, %v10939
  %v10941 = vrot.slane %v10785, 7
  %v10942 = vsel %vm6368, %v10939, %v10941
  %v10943 = vrot.slane %v10786, 7
  %v10944 = vsel %vm6368, %v10941, %v10943
  %v10945 = vrot.slane %v10787, 7
  %v10946 = vsel %vm6368, %v10943, %v10945
  %v10947 = vrot.slane %v10788, 7
  %v10948 = vsel %vm6368, %v10945, %v10947
  %v10949 = vrot.slane %v10789, 7
  %v10950 = vsel %vm6368, %v10947, %v10949
  %v10951 = vrot.slane %v10790, 7
  %v10952 = vsel %vm6368, %v10949, %v10951
  %v10953 = vrot.slane %v10791, 7
  %v10954 = vsel %vm6368, %v10951, %v10953
  %v10955 = vrot.slane %v10792, 7
  %v10956 = vsel %vm6368, %v10953, %v10955
  %v10957 = vrot.slane %v10793, 7
  %v10958 = vsel %vm6368, %v10955, %v10957
  %v10959 = vrot.slane %v10794, 7
  %v10960 = vsel %vm6368, %v10957, %v10959
  %v10961 = vrot.slane %v10795, 7
  %v10962 = vsel %vm6368, %v10959, %v10961
  %v10963 = vrot.slane %v10796, 7
  %v10964 = vsel %vm6368, %v10961, %v10963
  %v10965 = vrot.slane %v10797, 7
  %v10966 = vsel %vm6368, %v10963, %v10965
  %v10967 = vrot.slane %v10798, 7
  %v10968 = vsel %vm6368, %v10965, %v10967
  %v10969 = vrot.slane %v10799, 7
  %v10970 = vsel %vm6368, %v10967, %v10969
  %v10971 = vrot.slane %v10800, 7
  %v10972 = vsel %vm6368, %v10969, %v10971
  %v10973 = vrot.slane %v10801, 7
  %v10974 = vsel %vm6368, %v10971, %v10973
  %v10975 = vrot.slane %v10802, 7
  %v10976 = vsel %vm6368, %v10973, %v10975
  %v10977 = vrot.slane %v10803, 7
  %v10978 = vsel %vm6368, %v10975, %v10977
  %v10979 = vrot.slane %v10804, 7
  %v10980 = vsel %vm6368, %v10977, %v10979
  %v10981 = vrot.slane %v10805, 7
  %v10982 = vsel %vm6368, %v10979, %v10981
  %v10983 = vrot.slane %v10806, 7
  %v10984 = vsel %vm6368, %v10981, %v10983
  %v10985 = vrot.slane %v10807, 7
  %v10986 = vsel %vm6368, %v10983, %v10985
  %v10987 = vrot.slane %v10808, 7
  %v10988 = vsel %vm6368, %v10985, %v10987
  %v10989 = vrot.slane %v10809, 7
  %v10990 = vsel %vm6368, %v10987, %v10989
  %v10991 = vrot.slane %v10810, 7
  %v10992 = vsel %vm6368, %v10989, %v10991
  %v10993 = vrot.slane %v10811, 7
  %v10994 = vsel %vm6368, %v10991, %v10993
  %v10995 = vrot.slane %v10812, 7
  %v10996 = vsel %vm6368, %v10993, %v10995
  %v10997 = vrot.slane %v10813, 7
  %v10998 = vsel %vm6368, %v10995, %v10997
  %v10999 = vrot.slane %v10814, 7
  %v11000 = vsel %vm6368, %v10997, %v10999
  %v11001 = vrot.slane %v10815, 7
  %v11002 = vsel %vm6368, %v10999, %v11001
  %v11003 = vrot.slane %v10816, 7
  %v11004 = vsel %vm6368, %v11001, %v11003
  %v11005 = vrot.slane %v10817, 7
  %v11006 = vsel %vm6368, %v11003, %v11005
  %v11007 = vrot.slane %v10818, 7
  %v11008 = vsel %vm6368, %v11005, %v11007
  %v11009 = vrot.slane %v10819, 7
  %v11010 = vsel %vm6368, %v11007, %v11009
  %v11011 = vrot.slane %v10820, 7
  %v11012 = vsel %vm6368, %v11009, %v11011
  %v11013 = vrot.slane %v10821, 7
  %v11014 = vsel %vm6368, %v11011, %v11013
  %v11015 = vrot.slane %v10822, 7
  %v11016 = vsel %vm6368, %v11013, %v11015
  %v11017 = vrot.slane %v10823, 7
  %v11018 = vsel %vm6368, %v11015, %v11017
  %v11019 = vrot.slane %v10824, 7
  %v11020 = vsel %vm6368, %v11017, %v11019
  %v11021 = vrot.slane %v10825, 7
  %v11022 = vsel %vm6368, %v11019, %v11021
  %v11023 = vrot.slane %v10826, 7
  %v11024 = vsel %vm6368, %v11021, %v11023
  %v11025 = vrot.slane %v10827, 7
  %v11026 = vsel %vm6368, %v11023, %v11025
  %v11027 = vrot.slane %v10828, 7
  %v11028 = vsel %vm6368, %v11025, %v11027
  %v11029 = vrot.slane %v10829, 7
  %v11030 = vsel %vm6368, %v11027, %v11029
  %v11031 = vrot.slane %v10830, 7
  %v11032 = vsel %vm6368, %v11029, %v11031
  %v11033 = vrot.slane %v10831, 7
  %v11034 = vsel %vm6368, %v11031, %v11033
  %v11035 = vrot.slane %v10832, 7
  %v11036 = vsel %vm6368, %v11033, %v11035
  %v11037 = vrot.slane %v10833, 7
  %v11038 = vsel %vm6368, %v11035, %v11037
  %v11039 = vrot.slane %v10834, 7
  %v11040 = vsel %vm6368, %v11037, %v11039
  %v11041 = vrot.slane %v10835, 7
  %v11042 = vsel %vm6368, %v11039, %v11041
  %v11043 = vrot.slane %v10836, 7
  %v11044 = vsel %vm6368, %v11041, %v11043
  %v11045 = vrot.slane %v10837, 7
  %v11046 = vsel %vm6368, %v11043, %v11045
  %v11047 = vrot.slane %v10838, 7
  %v11048 = vsel %vm6368, %v11045, %v11047
  %v11049 = vrot.slane %v10839, 7
  %v11050 = vsel %vm6368, %v11047, %v11049
  %v11051 = vrot.slane %v10840, 7
  %v11052 = vsel %vm6368, %v11049, %v11051
  %v11053 = vrot.slane %v10841, 7
  %v11054 = vsel %vm6368, %v11051, %v11053
  %v11055 = vrot.slane %v10842, 7
  %v11056 = vsel %vm6368, %v11053, %v11055
  %v11057 = vrot.slane %v10843, 7
  %v11058 = vsel %vm6368, %v11055, %v11057
  %v11059 = vrot.slane %v10844, 7
  %v11060 = vsel %vm6368, %v11057, %v11059
  %v11061 = vrot.slane %v10845, 7
  %v11062 = vsel %vm6368, %v11059, %v11061
  %v11063 = vrot.slane %v10846, 7
  %v11064 = vsel %vm6368, %v11061, %v11063
  %v11065 = vrot.slane %v10847, 7
  %v11066 = vsel %vm6368, %v11063, %v11065
  %v11067 = vrot.slane %v10848, 7
  %v11068 = vsel %vm6368, %v11065, %v11067
  %v11069 = vrot.slane %v10849, 7
  %v11070 = vsel %vm6368, %v11067, %v11069
  %vm11071 = vcmask 588800
  %v11072 = vsel %vm11071, %v10932, 0
  %v11074 = vsel %vm11071, %v10934, 0
  %v11076 = vsel %vm11071, %v10936, 0
  %v11078 = vsel %vm11071, %v10938, 0
  %v11080 = vsel %vm11071, %v10940, 0
  %v11082 = vsel %vm11071, %v10942, 0
  %v11084 = vsel %vm11071, %v10944, 0
  %v11086 = vsel %vm11071, %v10946, 0
  %v11088 = vsel %vm11071, %v10948, 0
  %v11090 = vsel %vm11071, %v10950, 0
  %v11092 = vsel %vm11071, %v10952, 0
  %v11094 = vsel %vm11071, %v10954, 0
  %v11096 = vsel %vm11071, %v10956, 0
  %v11098 = vsel %vm11071, %v10958, 0
  %v11100 = vsel %vm11071, %v10960, 0
  %v11102 = vsel %vm11071, %v10962, 0
  %v11104 = vsel %vm11071, %v10964, 0
  %v11106 = vsel %vm11071, %v10966, 0
  %v11108 = vsel %vm11071, %v10968, 0
  %v11110 = vsel %vm11071, %v10970, 0
  %v11112 = vsel %vm11071, %v10972, 0
  %v11114 = vsel %vm11071, %v10974, 0
  %v11116 = vsel %vm11071, %v10976, 0
  %v11118 = vsel %vm11071, %v10978, 0
  %v11120 = vsel %vm11071, %v10980, 0
  %v11122 = vsel %vm11071, %v10982, 0
  %v11124 = vsel %vm11071, %v10984, 0
  %v11126 = vsel %vm11071, %v10986, 0
  %v11128 = vsel %vm11071, %v10988, 0
  %v11130 = vsel %vm11071, %v10990, 0
  %v11132 = vsel %vm11071, %v10992, 0
  %v11134 = vsel %vm11071, %v10994, 0
  %v11136 = vsel %vm11071, %v10996, 0
  %v11138 = vsel %vm11071, %v10998, 0
  %v11140 = vsel %vm11071, %v11000, 0
  %v11142 = vsel %vm11071, %v11002, 0
  %v11144 = vsel %vm11071, %v11004, 0
  %v11146 = vsel %vm11071, %v11006, 0
  %v11148 = vsel %vm11071, %v11008, 0
  %v11150 = vsel %vm11071, %v11010, 0
  %v11152 = vsel %vm11071, %v11012, 0
  %v11154 = vsel %vm11071, %v11014, 0
  %v11156 = vsel %vm11071, %v11016, 0
  %v11158 = vsel %vm11071, %v11018, 0
  %v11160 = vsel %vm11071, %v11020, 0
  %v11162 = vsel %vm11071, %v11022, 0
  %v11164 = vsel %vm11071, %v11024, 0
  %v11166 = vsel %vm11071, %v11026, 0
  %v11168 = vsel %vm11071, %v11028, 0
  %v11170 = vsel %vm11071, %v11030, 0
  %v11172 = vsel %vm11071, %v11032, 0
  %v11174 = vsel %vm11071, %v11034, 0
  %v11176 = vsel %vm11071, %v11036, 0
  %v11178 = vsel %vm11071, %v11038, 0
  %v11180 = vsel %vm11071, %v11040, 0
  %v11182 = vsel %vm11071, %v11042, 0
  %v11184 = vsel %vm11071, %v11044, 0
  %v11186 = vsel %vm11071, %v11046, 0
  %v11188 = vsel %vm11071, %v11048, 0
  %v11190 = vsel %vm11071, %v11050, 0
  %v11192 = vsel %vm11071, %v11052, 0
  %v11194 = vsel %vm11071, %v11054, 0
  %v11196 = vsel %vm11071, %v11056, 0
  %v11198 = vsel %vm11071, %v11058, 0
  %v11200 = vsel %vm11071, %v11060, 0
  %v11202 = vsel %vm11071, %v11062, 0
  %v11204 = vsel %vm11071, %v11064, 0
  %v11206 = vsel %vm11071, %v11066, 0
  %v11208 = vsel %vm11071, %v11068, 0
  %v11210 = vsel %vm11071, %v11070, 0
  %11212 = vmatprep.subr.mxu0 0.0
  %11213 = vmatpush1.msra.mxu0 0.0
  %11214 = vmatprep.subr.mxu0 0.0
  %11215 = vmatpush1.msra.mxu0 0.0
  %11216 = vmatprep.subr.mxu0 0.0
  %11217 = vmatpush1.msra.mxu0 0.0
  %11218 = vmatprep.subr.mxu0 0.0
  %11219 = vmatpush1.msra.mxu0 0.0
  %11220 = vmatprep.subr.mxu0 0.0
  %11221 = vmatpush1.msra.mxu0 0.0
  %11222 = vmatprep.subr.mxu0 0.0
  %11223 = vmatpush1.msra.mxu0 0.0
  %11224 = vmatprep.subr.mxu0 0.0
  %11225 = vmatpush1.msra.mxu0 0.0
  %11226 = vmatprep.subr.mxu0 0.0
  %11227 = vmatpush1.msra.mxu0 %v10858
  %11228 = vmatprep.subr.mxu0 0.0
  %11229 = vmatpush1.msra.mxu0 %v10857
  %11230 = vmatprep.subr.mxu0 0.0
  %11231 = vmatpush1.msra.mxu0 %v10856
  %11232 = vmatprep.subr.mxu0 0.0
  %11233 = vmatpush1.msra.mxu0 %v10855
  %11234 = vmatprep.subr.mxu0 0.0
  %11235 = vmatpush1.msra.mxu0 %v10854
  %11236 = vmatprep.subr.mxu0 0.0
  %11237 = vmatpush1.msra.mxu0 %v10853
  %11238 = vmatprep.subr.mxu0 0.0
  %11239 = vmatpush1.msra.mxu0 %v10852
  %11240 = vmatprep.subr.mxu0 0.0
  %11241 = vmatpush1.msra.mxu0 %v10851
  %11242 = vmatprep.subr.mxu0 0.0
  %11243 = vmatpush1.msra.mxu0 %v10850
  %11244 = vmatprep.subr.mxu0 0.0
  %11245 = vmatpush2.msra.mxu0 0.0
  %11246 = vmatprep.subr.mxu0 0.0
  %11247 = vmatpush2.msra.mxu0 0.0
  %11248 = vmatprep.subr.mxu0 0.0
  %11249 = vmatpush2.msra.mxu0 0.0
  %11250 = vmatprep.subr.mxu0 0.0
  %11251 = vmatpush2.msra.mxu0 0.0
  %11252 = vmatprep.subr.mxu0 0.0
  %11253 = vmatpush2.msra.mxu0 0.0
  %11254 = vmatprep.subr.mxu0 0.0
  %11255 = vmatpush2.msra.mxu0 0.0
  %11256 = vmatprep.subr.mxu0 0.0
  %11257 = vmatpush2.msra.mxu0 0.0
  %11258 = vmatprep.subr.mxu0 0.0
  %11259 = vmatpush2.msra.mxu0 0.0
  %11260 = vmatprep.subr.mxu0 0.0
  %11261 = vmatpush2.msra.mxu0 0.0
  %11262 = vmatprep.subr.mxu0 0.0
  %11263 = vmatpush2.msra.mxu0 0.0
  %11264 = vmatprep.subr.mxu0 0.0
  %11265 = vmatpush2.msra.mxu0 0.0
  %11266 = vmatprep.subr.mxu0 0.0
  %11267 = vmatpush2.msra.mxu0 0.0
  %11268 = vmatprep.subr.mxu0 0.0
  %11269 = vmatpush2.msra.mxu0 0.0
  %11270 = vmatprep.subr.mxu0 0.0
  %11271 = vmatpush2.msra.mxu0 0.0
  %11272 = vmatprep.subr.mxu0 0.0
  %11273 = vmatpush2.msra.mxu0 0.0
  %11274 = vmatprep.subr.mxu0 0.0
  %11275 = vmatpush2.msra.mxu0 0.0
  %11276 = vmatprep.mubr.f32.mxu0 0.0
  %11277 = vmatmul.mubr.f32.gmra.mxu0 %v11072
  %v11278 = vpop.f32.mrf.mxu0
  %v11279 = vadd.f32 0.0, %v11278
  %v11280 = vpop.f32.mrf.mxu0
  %11281 = vmatprep.mubr.f32.mxu0 0.0
  %11282 = vmatmul.mubr.f32.gmra.mxu0 %v11074
  %v11283 = vpop.f32.mrf.mxu0
  %v11284 = vadd.f32 0.0, %v11283
  %v11285 = vpop.f32.mrf.mxu0
  %11286 = vmatprep.mubr.f32.mxu0 0.0
  %11287 = vmatmul.mubr.f32.gmra.mxu0 %v11076
  %v11288 = vpop.f32.mrf.mxu0
  %v11289 = vadd.f32 0.0, %v11288
  %v11290 = vpop.f32.mrf.mxu0
  %11291 = vmatprep.mubr.f32.mxu0 0.0
  %11292 = vmatmul.mubr.f32.gmra.mxu0 %v11078
  %v11293 = vpop.f32.mrf.mxu0
  %v11294 = vadd.f32 0.0, %v11293
  %v11295 = vpop.f32.mrf.mxu0
  %11296 = vmatprep.mubr.f32.mxu0 0.0
  %11297 = vmatmul.mubr.f32.gmra.mxu0 %v11080
  %v11298 = vpop.f32.mrf.mxu0
  %v11299 = vadd.f32 0.0, %v11298
  %v11300 = vpop.f32.mrf.mxu0
  %11301 = vmatprep.mubr.f32.mxu0 0.0
  %11302 = vmatmul.mubr.f32.gmra.mxu0 %v11082
  %v11303 = vpop.f32.mrf.mxu0
  %v11304 = vadd.f32 0.0, %v11303
  %v11305 = vpop.f32.mrf.mxu0
  %11306 = vmatprep.mubr.f32.mxu0 0.0
  %11307 = vmatmul.mubr.f32.gmra.mxu0 %v11084
  %v11308 = vpop.f32.mrf.mxu0
  %v11309 = vadd.f32 0.0, %v11308
  %v11310 = vpop.f32.mrf.mxu0
  %11311 = vmatprep.mubr.f32.mxu0 0.0
  %11312 = vmatmul.mubr.f32.gmra.mxu0 %v11086
  %v11313 = vpop.f32.mrf.mxu0
  %v11314 = vadd.f32 0.0, %v11313
  %v11315 = vpop.f32.mrf.mxu0
  %11316 = vmatprep.mubr.f32.mxu0 0.0
  %11317 = vmatmul.mubr.f32.gmra.mxu0 %v11088
  %v11318 = vpop.f32.mrf.mxu0
  %v11319 = vadd.f32 0.0, %v11318
  %v11320 = vpop.f32.mrf.mxu0
  %11321 = vmatprep.mubr.f32.mxu0 0.0
  %11322 = vmatmul.mubr.f32.gmra.mxu0 %v11090
  %v11323 = vpop.f32.mrf.mxu0
  %v11324 = vadd.f32 0.0, %v11323
  %v11325 = vpop.f32.mrf.mxu0
  %11326 = vmatprep.mubr.f32.mxu0 0.0
  %11327 = vmatmul.mubr.f32.gmra.mxu0 %v11092
  %v11328 = vpop.f32.mrf.mxu0
  %v11329 = vadd.f32 0.0, %v11328
  %v11330 = vpop.f32.mrf.mxu0
  %11331 = vmatprep.mubr.f32.mxu0 0.0
  %11332 = vmatmul.mubr.f32.gmra.mxu0 %v11094
  %v11333 = vpop.f32.mrf.mxu0
  %v11334 = vadd.f32 0.0, %v11333
  %v11335 = vpop.f32.mrf.mxu0
  %11336 = vmatprep.mubr.f32.mxu0 0.0
  %11337 = vmatmul.mubr.f32.gmra.mxu0 %v11096
  %v11338 = vpop.f32.mrf.mxu0
  %v11339 = vadd.f32 0.0, %v11338
  %v11340 = vpop.f32.mrf.mxu0
  %11341 = vmatprep.mubr.f32.mxu0 0.0
  %11342 = vmatmul.mubr.f32.gmra.mxu0 %v11098
  %v11343 = vpop.f32.mrf.mxu0
  %v11344 = vadd.f32 0.0, %v11343
  %v11345 = vpop.f32.mrf.mxu0
  %11346 = vmatprep.mubr.f32.mxu0 0.0
  %11347 = vmatmul.mubr.f32.gmra.mxu0 %v11100
  %v11348 = vpop.f32.mrf.mxu0
  %v11349 = vadd.f32 0.0, %v11348
  %v11350 = vpop.f32.mrf.mxu0
  %11351 = vmatprep.mubr.f32.mxu0 0.0
  %11352 = vmatmul.mubr.f32.gmra.mxu0 %v11102
  %v11353 = vpop.f32.mrf.mxu0
  %v11354 = vadd.f32 0.0, %v11353
  %v11355 = vpop.f32.mrf.mxu0
  %11356 = vmatprep.mubr.f32.mxu0 0.0
  %11357 = vmatmul.mubr.f32.gmra.mxu0 %v11104
  %v11358 = vpop.f32.mrf.mxu0
  %v11359 = vadd.f32 0.0, %v11358
  %v11360 = vpop.f32.mrf.mxu0
  %11361 = vmatprep.mubr.f32.mxu0 0.0
  %11362 = vmatmul.mubr.f32.gmra.mxu0 %v11106
  %v11363 = vpop.f32.mrf.mxu0
  %v11364 = vadd.f32 0.0, %v11363
  %v11365 = vpop.f32.mrf.mxu0
  %11366 = vmatprep.mubr.f32.mxu0 0.0
  %11367 = vmatmul.mubr.f32.gmra.mxu0 %v11108
  %v11368 = vpop.f32.mrf.mxu0
  %v11369 = vadd.f32 0.0, %v11368
  %v11370 = vpop.f32.mrf.mxu0
  %11371 = vmatprep.mubr.f32.mxu0 0.0
  %11372 = vmatmul.mubr.f32.gmra.mxu0 %v11110
  %v11373 = vpop.f32.mrf.mxu0
  %v11374 = vadd.f32 0.0, %v11373
  %v11375 = vpop.f32.mrf.mxu0
  %11376 = vmatprep.mubr.f32.mxu0 0.0
  %11377 = vmatmul.mubr.f32.gmra.mxu0 %v11112
  %v11378 = vpop.f32.mrf.mxu0
  %v11379 = vadd.f32 0.0, %v11378
  %v11380 = vpop.f32.mrf.mxu0
  %11381 = vmatprep.mubr.f32.mxu0 0.0
  %11382 = vmatmul.mubr.f32.gmra.mxu0 %v11114
  %v11383 = vpop.f32.mrf.mxu0
  %v11384 = vadd.f32 0.0, %v11383
  %v11385 = vpop.f32.mrf.mxu0
  %11386 = vmatprep.mubr.f32.mxu0 0.0
  %11387 = vmatmul.mubr.f32.gmra.mxu0 %v11116
  %v11388 = vpop.f32.mrf.mxu0
  %v11389 = vadd.f32 0.0, %v11388
  %v11390 = vpop.f32.mrf.mxu0
  %11391 = vmatprep.mubr.f32.mxu0 0.0
  %11392 = vmatmul.mubr.f32.gmra.mxu0 %v11118
  %v11393 = vpop.f32.mrf.mxu0
  %v11394 = vadd.f32 0.0, %v11393
  %v11395 = vpop.f32.mrf.mxu0
  %11396 = vmatprep.mubr.f32.mxu0 0.0
  %11397 = vmatmul.mubr.f32.gmra.mxu0 %v11120
  %v11398 = vpop.f32.mrf.mxu0
  %v11399 = vadd.f32 0.0, %v11398
  %v11400 = vpop.f32.mrf.mxu0
  %11401 = vmatprep.mubr.f32.mxu0 0.0
  %11402 = vmatmul.mubr.f32.gmra.mxu0 %v11122
  %v11403 = vpop.f32.mrf.mxu0
  %v11404 = vadd.f32 0.0, %v11403
  %v11405 = vpop.f32.mrf.mxu0
  %11406 = vmatprep.mubr.f32.mxu0 0.0
  %11407 = vmatmul.mubr.f32.gmra.mxu0 %v11124
  %v11408 = vpop.f32.mrf.mxu0
  %v11409 = vadd.f32 0.0, %v11408
  %v11410 = vpop.f32.mrf.mxu0
  %11411 = vmatprep.mubr.f32.mxu0 0.0
  %11412 = vmatmul.mubr.f32.gmra.mxu0 %v11126
  %v11413 = vpop.f32.mrf.mxu0
  %v11414 = vadd.f32 0.0, %v11413
  %v11415 = vpop.f32.mrf.mxu0
  %11416 = vmatprep.mubr.f32.mxu0 0.0
  %11417 = vmatmul.mubr.f32.gmra.mxu0 %v11128
  %v11418 = vpop.f32.mrf.mxu0
  %v11419 = vadd.f32 0.0, %v11418
  %v11420 = vpop.f32.mrf.mxu0
  %11421 = vmatprep.mubr.f32.mxu0 0.0
  %11422 = vmatmul.mubr.f32.gmra.mxu0 %v11130
  %v11423 = vpop.f32.mrf.mxu0
  %v11424 = vadd.f32 0.0, %v11423
  %v11425 = vpop.f32.mrf.mxu0
  %11426 = vmatprep.mubr.f32.mxu0 0.0
  %11427 = vmatmul.mubr.f32.gmra.mxu0 %v11132
  %v11428 = vpop.f32.mrf.mxu0
  %v11429 = vadd.f32 0.0, %v11428
  %v11430 = vpop.f32.mrf.mxu0
  %11431 = vmatprep.mubr.f32.mxu0 0.0
  %11432 = vmatmul.mubr.f32.gmra.mxu0 %v11134
  %v11433 = vpop.f32.mrf.mxu0
  %v11434 = vadd.f32 0.0, %v11433
  %v11435 = vpop.f32.mrf.mxu0
  %11436 = vmatprep.mubr.f32.mxu0 0.0
  %11437 = vmatmul.mubr.f32.gmra.mxu0 %v11136
  %v11438 = vpop.f32.mrf.mxu0
  %v11439 = vpop.f32.mrf.mxu0
  %11440 = vmatprep.mubr.f32.mxu0 0.0
  %11441 = vmatmul.mubr.f32.gmra.mxu0 %v11138
  %v11442 = vpop.f32.mrf.mxu0
  %v11443 = vpop.f32.mrf.mxu0
  %11444 = vmatprep.mubr.f32.mxu0 0.0
  %11445 = vmatmul.mubr.f32.gmra.mxu0 %v11140
  %v11446 = vpop.f32.mrf.mxu0
  %v11447 = vpop.f32.mrf.mxu0
  %11448 = vmatprep.mubr.f32.mxu0 0.0
  %11449 = vmatmul.mubr.f32.gmra.mxu0 %v11142
  %v11450 = vpop.f32.mrf.mxu0
  %v11451 = vpop.f32.mrf.mxu0
  %11452 = vmatprep.mubr.f32.mxu0 0.0
  %11453 = vmatmul.mubr.f32.gmra.mxu0 %v11144
  %v11454 = vpop.f32.mrf.mxu0
  %v11455 = vpop.f32.mrf.mxu0
  %11456 = vmatprep.mubr.f32.mxu0 0.0
  %11457 = vmatmul.mubr.f32.gmra.mxu0 %v11146
  %v11458 = vpop.f32.mrf.mxu0
  %v11459 = vpop.f32.mrf.mxu0
  %11460 = vmatprep.mubr.f32.mxu0 0.0
  %11461 = vmatmul.mubr.f32.gmra.mxu0 %v11148
  %v11462 = vpop.f32.mrf.mxu0
  %v11463 = vadd.f32 0.0, %v11462
  %v11464 = vpop.f32.mrf.mxu0
  %11465 = vmatprep.mubr.f32.mxu0 0.0
  %11466 = vmatmul.mubr.f32.gmra.mxu0 %v11150
  %v11467 = vpop.f32.mrf.mxu0
  %v11468 = vadd.f32 0.0, %v11467
  %v11469 = vpop.f32.mrf.mxu0
  %11470 = vmatprep.mubr.f32.mxu0 0.0
  %11471 = vmatmul.mubr.f32.gmra.mxu0 %v11152
  %v11472 = vpop.f32.mrf.mxu0
  %v11473 = vadd.f32 0.0, %v11472
  %v11474 = vpop.f32.mrf.mxu0
  %11475 = vmatprep.mubr.f32.mxu0 0.0
  %11476 = vmatmul.mubr.f32.gmra.mxu0 %v11154
  %v11477 = vpop.f32.mrf.mxu0
  %v11478 = vadd.f32 0.0, %v11477
  %v11479 = vpop.f32.mrf.mxu0
  %11480 = vmatprep.mubr.f32.mxu0 0.0
  %11481 = vmatmul.mubr.f32.gmra.mxu0 %v11156
  %v11482 = vpop.f32.mrf.mxu0
  %v11483 = vadd.f32 0.0, %v11482
  %v11484 = vpop.f32.mrf.mxu0
  %11485 = vmatprep.mubr.f32.mxu0 0.0
  %11486 = vmatmul.mubr.f32.gmra.mxu0 %v11158
  %v11487 = vpop.f32.mrf.mxu0
  %v11488 = vadd.f32 0.0, %v11487
  %v11489 = vpop.f32.mrf.mxu0
  %11490 = vmatprep.mubr.f32.mxu0 0.0
  %11491 = vmatmul.mubr.f32.gmra.mxu0 %v11160
  %v11492 = vpop.f32.mrf.mxu0
  %v11493 = vadd.f32 0.0, %v11492
  %v11494 = vpop.f32.mrf.mxu0
  %11495 = vmatprep.mubr.f32.mxu0 0.0
  %11496 = vmatmul.mubr.f32.gmra.mxu0 %v11162
  %v11497 = vpop.f32.mrf.mxu0
  %v11498 = vadd.f32 0.0, %v11497
  %v11499 = vpop.f32.mrf.mxu0
  %11500 = vmatprep.mubr.f32.mxu0 0.0
  %11501 = vmatmul.mubr.f32.gmra.mxu0 %v11164
  %v11502 = vpop.f32.mrf.mxu0
  %v11503 = vadd.f32 0.0, %v11502
  %v11504 = vpop.f32.mrf.mxu0
  %11505 = vmatprep.mubr.f32.mxu0 0.0
  %11506 = vmatmul.mubr.f32.gmra.mxu0 %v11166
  %v11507 = vpop.f32.mrf.mxu0
  %v11508 = vadd.f32 0.0, %v11507
  %v11509 = vpop.f32.mrf.mxu0
  %11510 = vmatprep.mubr.f32.mxu0 0.0
  %11511 = vmatmul.mubr.f32.gmra.mxu0 %v11168
  %v11512 = vpop.f32.mrf.mxu0
  %v11513 = vadd.f32 0.0, %v11512
  %v11514 = vpop.f32.mrf.mxu0
  %11515 = vmatprep.mubr.f32.mxu0 0.0
  %11516 = vmatmul.mubr.f32.gmra.mxu0 %v11170
  %v11517 = vpop.f32.mrf.mxu0
  %v11518 = vadd.f32 0.0, %v11517
  %v11519 = vpop.f32.mrf.mxu0
  %11520 = vmatprep.mubr.f32.mxu0 0.0
  %11521 = vmatmul.mubr.f32.gmra.mxu0 %v11172
  %v11522 = vpop.f32.mrf.mxu0
  %v11523 = vadd.f32 0.0, %v11522
  %v11524 = vpop.f32.mrf.mxu0
  %11525 = vmatprep.mubr.f32.mxu0 0.0
  %11526 = vmatmul.mubr.f32.gmra.mxu0 %v11174
  %v11527 = vpop.f32.mrf.mxu0
  %v11528 = vadd.f32 0.0, %v11527
  %v11529 = vpop.f32.mrf.mxu0
  %11530 = vmatprep.mubr.f32.mxu0 0.0
  %11531 = vmatmul.mubr.f32.gmra.mxu0 %v11176
  %v11532 = vpop.f32.mrf.mxu0
  %v11533 = vadd.f32 0.0, %v11532
  %v11534 = vpop.f32.mrf.mxu0
  %11535 = vmatprep.mubr.f32.mxu0 0.0
  %11536 = vmatmul.mubr.f32.gmra.mxu0 %v11178
  %v11537 = vpop.f32.mrf.mxu0
  %v11538 = vadd.f32 0.0, %v11537
  %v11539 = vpop.f32.mrf.mxu0
  %11540 = vmatprep.mubr.f32.mxu0 0.0
  %11541 = vmatmul.mubr.f32.gmra.mxu0 %v11180
  %v11542 = vpop.f32.mrf.mxu0
  %v11543 = vadd.f32 0.0, %v11542
  %v11544 = vpop.f32.mrf.mxu0
  %11545 = vmatprep.mubr.f32.mxu0 0.0
  %11546 = vmatmul.mubr.f32.gmra.mxu0 %v11182
  %v11547 = vpop.f32.mrf.mxu0
  %v11548 = vadd.f32 0.0, %v11547
  %v11549 = vpop.f32.mrf.mxu0
  %11550 = vmatprep.mubr.f32.mxu0 0.0
  %11551 = vmatmul.mubr.f32.gmra.mxu0 %v11184
  %v11552 = vpop.f32.mrf.mxu0
  %v11553 = vadd.f32 0.0, %v11552
  %v11554 = vpop.f32.mrf.mxu0
  %11555 = vmatprep.mubr.f32.mxu0 0.0
  %11556 = vmatmul.mubr.f32.gmra.mxu0 %v11186
  %v11557 = vpop.f32.mrf.mxu0
  %v11558 = vadd.f32 0.0, %v11557
  %v11559 = vpop.f32.mrf.mxu0
  %11560 = vmatprep.mubr.f32.mxu0 0.0
  %11561 = vmatmul.mubr.f32.gmra.mxu0 %v11188
  %v11562 = vpop.f32.mrf.mxu0
  %v11563 = vadd.f32 0.0, %v11562
  %v11564 = vpop.f32.mrf.mxu0
  %11565 = vmatprep.mubr.f32.mxu0 0.0
  %11566 = vmatmul.mubr.f32.gmra.mxu0 %v11190
  %v11567 = vpop.f32.mrf.mxu0
  %v11568 = vadd.f32 0.0, %v11567
  %v11569 = vpop.f32.mrf.mxu0
  %11570 = vmatprep.mubr.f32.mxu0 0.0
  %11571 = vmatmul.mubr.f32.gmra.mxu0 %v11192
  %v11572 = vpop.f32.mrf.mxu0
  %v11573 = vadd.f32 0.0, %v11572
  %v11574 = vpop.f32.mrf.mxu0
  %11575 = vmatprep.mubr.f32.mxu0 0.0
  %11576 = vmatmul.mubr.f32.gmra.mxu0 %v11194
  %v11577 = vpop.f32.mrf.mxu0
  %v11578 = vadd.f32 0.0, %v11577
  %v11579 = vpop.f32.mrf.mxu0
  %11580 = vmatprep.mubr.f32.mxu0 0.0
  %11581 = vmatmul.mubr.f32.gmra.mxu0 %v11196
  %v11582 = vpop.f32.mrf.mxu0
  %v11583 = vadd.f32 0.0, %v11582
  %v11584 = vpop.f32.mrf.mxu0
  %11585 = vmatprep.mubr.f32.mxu0 0.0
  %11586 = vmatmul.mubr.f32.gmra.mxu0 %v11198
  %v11587 = vpop.f32.mrf.mxu0
  %v11588 = vadd.f32 0.0, %v11587
  %v11589 = vpop.f32.mrf.mxu0
  %11590 = vmatprep.mubr.f32.mxu0 0.0
  %11591 = vmatmul.mubr.f32.gmra.mxu0 %v11200
  %v11592 = vpop.f32.mrf.mxu0
  %v11593 = vadd.f32 0.0, %v11592
  %v11594 = vpop.f32.mrf.mxu0
  %11595 = vmatprep.mubr.f32.mxu0 0.0
  %11596 = vmatmul.mubr.f32.gmra.mxu0 %v11202
  %v11597 = vpop.f32.mrf.mxu0
  %v11598 = vadd.f32 0.0, %v11597
  %v11599 = vpop.f32.mrf.mxu0
  %11600 = vmatprep.mubr.f32.mxu0 0.0
  %11601 = vmatmul.mubr.f32.gmra.mxu0 %v11204
  %v11602 = vpop.f32.mrf.mxu0
  %v11603 = vadd.f32 0.0, %v11602
  %v11604 = vpop.f32.mrf.mxu0
  %11605 = vmatprep.mubr.f32.mxu0 0.0
  %11606 = vmatmul.mubr.f32.gmra.mxu0 %v11206
  %v11607 = vpop.f32.mrf.mxu0
  %v11608 = vadd.f32 0.0, %v11607
  %v11609 = vpop.f32.mrf.mxu0
  %11610 = vmatprep.mubr.f32.mxu0 0.0
  %11611 = vmatmul.mubr.f32.gmra.mxu0 %v11208
  %v11612 = vpop.f32.mrf.mxu0
  %v11613 = vadd.f32 0.0, %v11612
  %v11614 = vpop.f32.mrf.mxu0
  %11615 = vmatprep.mubr.f32.mxu0 0.0
  %11616 = vmatmul.mubr.f32.gmra.mxu0 %v11210
  %v11617 = vpop.f32.mrf.mxu0
  %v11618 = vadd.f32 0.0, %v11617
  %v11619 = vpop.f32.mrf.mxu0
  %11620 = vdwg.mxu0
  %v11621 = vld [vmem:[%s5] sm:$0x1]
  %v11622 = vld [vmem:[%s6] sm:$0x1]
  %v11623 = vsel %vm103, %v11279, 0.0
  %v11624 = vsel %vm103, %v11284, 0.0
  %v11625 = vadd.f32 %v11623, %v11624
  %v11626 = vsel %vm103, %v11289, 0.0
  %v11627 = vadd.f32 %v11625, %v11626
  %v11628 = vsel %vm103, %v11294, 0.0
  %v11629 = vadd.f32 %v11627, %v11628
  %v11630 = vsel %vm103, %v11299, 0.0
  %v11631 = vadd.f32 %v11629, %v11630
  %v11632 = vsel %vm103, %v11304, 0.0
  %v11633 = vadd.f32 %v11631, %v11632
  %v11634 = vsel %vm103, %v11309, 0.0
  %v11635 = vadd.f32 %v11633, %v11634
  %v11636 = vsel %vm103, %v11314, 0.0
  %v11637 = vadd.f32 %v11635, %v11636
  %v11638 = vsel %vm103, %v11319, 0.0
  %v11639 = vadd.f32 %v11637, %v11638
  %v11640 = vsel %vm103, %v11324, 0.0
  %v11641 = vadd.f32 %v11639, %v11640
  %v11642 = vsel %vm103, %v11329, 0.0
  %v11643 = vadd.f32 %v11641, %v11642
  %v11644 = vsel %vm103, %v11334, 0.0
  %v11645 = vadd.f32 %v11643, %v11644
  %v11646 = vsel %vm103, %v11339, 0.0
  %v11647 = vadd.f32 %v11645, %v11646
  %v11648 = vsel %vm103, %v11344, 0.0
  %v11649 = vadd.f32 %v11647, %v11648
  %v11650 = vsel %vm103, %v11349, 0.0
  %v11651 = vadd.f32 %v11649, %v11650
  %v11652 = vsel %vm103, %v11354, 0.0
  %v11653 = vadd.f32 %v11651, %v11652
  %v11654 = vsel %vm103, %v11359, 0.0
  %v11655 = vadd.f32 %v11653, %v11654
  %v11656 = vsel %vm103, %v11364, 0.0
  %v11657 = vadd.f32 %v11655, %v11656
  %v11658 = vsel %vm103, %v11369, 0.0
  %v11659 = vadd.f32 %v11657, %v11658
  %v11660 = vsel %vm103, %v11374, 0.0
  %v11661 = vadd.f32 %v11659, %v11660
  %v11662 = vsel %vm103, %v11379, 0.0
  %v11663 = vadd.f32 %v11661, %v11662
  %v11664 = vsel %vm103, %v11384, 0.0
  %v11665 = vadd.f32 %v11663, %v11664
  %v11666 = vsel %vm103, %v11389, 0.0
  %v11667 = vadd.f32 %v11665, %v11666
  %v11668 = vsel %vm103, %v11394, 0.0
  %v11669 = vadd.f32 %v11667, %v11668
  %v11670 = vsel %vm103, %v11399, 0.0
  %v11671 = vadd.f32 %v11669, %v11670
  %v11672 = vsel %vm103, %v11404, 0.0
  %v11673 = vadd.f32 %v11671, %v11672
  %v11674 = vsel %vm103, %v11409, 0.0
  %v11675 = vadd.f32 %v11673, %v11674
  %v11676 = vsel %vm103, %v11414, 0.0
  %v11677 = vadd.f32 %v11675, %v11676
  %v11678 = vsel %vm103, %v11419, 0.0
  %v11679 = vadd.f32 %v11677, %v11678
  %v11680 = vsel %vm103, %v11424, 0.0
  %v11681 = vadd.f32 %v11679, %v11680
  %v11682 = vsel %vm103, %v11429, 0.0
  %v11683 = vadd.f32 %v11681, %v11682
  %v11684 = vsel %vm103, %v11434, 0.0
  %v11685 = vadd.f32 %v11683, %v11684
  %v11686 = vrot.slane %v11685, 4
  %v11687 = vadd.f32 %v11685, %v11686
  %v11688 = vrot.slane %v11687, 2
  %v11689 = vadd.f32 %v11687, %v11688
  %v11690 = vrot.slane %v11689, 1
  %v11691 = vadd.f32 %v11689, %v11690
  %v11692 = vsel %vm103, %v11463, 0.0
  %v11693 = vsel %vm103, %v11468, 0.0
  %v11694 = vadd.f32 %v11692, %v11693
  %v11695 = vsel %vm103, %v11473, 0.0
  %v11696 = vadd.f32 %v11694, %v11695
  %v11697 = vsel %vm103, %v11478, 0.0
  %v11698 = vadd.f32 %v11696, %v11697
  %v11699 = vsel %vm103, %v11483, 0.0
  %v11700 = vadd.f32 %v11698, %v11699
  %v11701 = vsel %vm103, %v11488, 0.0
  %v11702 = vadd.f32 %v11700, %v11701
  %v11703 = vsel %vm103, %v11493, 0.0
  %v11704 = vadd.f32 %v11702, %v11703
  %v11705 = vsel %vm103, %v11498, 0.0
  %v11706 = vadd.f32 %v11704, %v11705
  %v11707 = vsel %vm103, %v11503, 0.0
  %v11708 = vadd.f32 %v11706, %v11707
  %v11709 = vsel %vm103, %v11508, 0.0
  %v11710 = vadd.f32 %v11708, %v11709
  %v11711 = vsel %vm103, %v11513, 0.0
  %v11712 = vadd.f32 %v11710, %v11711
  %v11713 = vsel %vm103, %v11518, 0.0
  %v11714 = vadd.f32 %v11712, %v11713
  %v11715 = vsel %vm103, %v11523, 0.0
  %v11716 = vadd.f32 %v11714, %v11715
  %v11717 = vsel %vm103, %v11528, 0.0
  %v11718 = vadd.f32 %v11716, %v11717
  %v11719 = vsel %vm103, %v11533, 0.0
  %v11720 = vadd.f32 %v11718, %v11719
  %v11721 = vsel %vm103, %v11538, 0.0
  %v11722 = vadd.f32 %v11720, %v11721
  %v11723 = vsel %vm103, %v11543, 0.0
  %v11724 = vadd.f32 %v11722, %v11723
  %v11725 = vsel %vm103, %v11548, 0.0
  %v11726 = vadd.f32 %v11724, %v11725
  %v11727 = vsel %vm103, %v11553, 0.0
  %v11728 = vadd.f32 %v11726, %v11727
  %v11729 = vsel %vm103, %v11558, 0.0
  %v11730 = vadd.f32 %v11728, %v11729
  %v11731 = vsel %vm103, %v11563, 0.0
  %v11732 = vadd.f32 %v11730, %v11731
  %v11733 = vsel %vm103, %v11568, 0.0
  %v11734 = vadd.f32 %v11732, %v11733
  %v11735 = vsel %vm103, %v11573, 0.0
  %v11736 = vadd.f32 %v11734, %v11735
  %v11737 = vsel %vm103, %v11578, 0.0
  %v11738 = vadd.f32 %v11736, %v11737
  %v11739 = vsel %vm103, %v11583, 0.0
  %v11740 = vadd.f32 %v11738, %v11739
  %v11741 = vsel %vm103, %v11588, 0.0
  %v11742 = vadd.f32 %v11740, %v11741
  %v11743 = vsel %vm103, %v11593, 0.0
  %v11744 = vadd.f32 %v11742, %v11743
  %v11745 = vsel %vm103, %v11598, 0.0
  %v11746 = vadd.f32 %v11744, %v11745
  %v11747 = vsel %vm103, %v11603, 0.0
  %v11748 = vadd.f32 %v11746, %v11747
  %v11749 = vsel %vm103, %v11608, 0.0
  %v11750 = vadd.f32 %v11748, %v11749
  %v11751 = vsel %vm103, %v11613, 0.0
  %v11752 = vadd.f32 %v11750, %v11751
  %v11753 = vsel %vm103, %v11618, 0.0
  %v11754 = vadd.f32 %v11752, %v11753
  %v11755 = vrot.slane %v11754, 4
  %v11756 = vadd.f32 %v11754, %v11755
  %v11757 = vrot.slane %v11756, 2
  %v11758 = vadd.f32 %v11756, %v11757
  %v11759 = vrot.slane %v11758, 1
  %v11760 = vadd.f32 %v11758, %v11759
  %v11761 = vmul.f32 %v11279, %v11279
  %v11762 = vmul.f32 %v11284, %v11284
  %v11763 = vmul.f32 %v11289, %v11289
  %v11764 = vmul.f32 %v11294, %v11294
  %v11765 = vmul.f32 %v11299, %v11299
  %v11766 = vmul.f32 %v11304, %v11304
  %v11767 = vmul.f32 %v11309, %v11309
  %v11768 = vmul.f32 %v11314, %v11314
  %v11769 = vmul.f32 %v11319, %v11319
  %v11770 = vmul.f32 %v11324, %v11324
  %v11771 = vmul.f32 %v11329, %v11329
  %v11772 = vmul.f32 %v11334, %v11334
  %v11773 = vmul.f32 %v11339, %v11339
  %v11774 = vmul.f32 %v11344, %v11344
  %v11775 = vmul.f32 %v11349, %v11349
  %v11776 = vmul.f32 %v11354, %v11354
  %v11777 = vmul.f32 %v11359, %v11359
  %v11778 = vmul.f32 %v11364, %v11364
  %v11779 = vmul.f32 %v11369, %v11369
  %v11780 = vmul.f32 %v11374, %v11374
  %v11781 = vmul.f32 %v11379, %v11379
  %v11782 = vmul.f32 %v11384, %v11384
  %v11783 = vmul.f32 %v11389, %v11389
  %v11784 = vmul.f32 %v11394, %v11394
  %v11785 = vmul.f32 %v11399, %v11399
  %v11786 = vmul.f32 %v11404, %v11404
  %v11787 = vmul.f32 %v11409, %v11409
  %v11788 = vmul.f32 %v11414, %v11414
  %v11789 = vmul.f32 %v11419, %v11419
  %v11790 = vmul.f32 %v11424, %v11424
  %v11791 = vmul.f32 %v11429, %v11429
  %v11792 = vmul.f32 %v11434, %v11434
  %v11793 = vsel %vm103, %v11761, 0.0
  %v11794 = vsel %vm103, %v11762, 0.0
  %v11795 = vadd.f32 %v11793, %v11794
  %v11796 = vsel %vm103, %v11763, 0.0
  %v11797 = vadd.f32 %v11795, %v11796
  %v11798 = vsel %vm103, %v11764, 0.0
  %v11799 = vadd.f32 %v11797, %v11798
  %v11800 = vsel %vm103, %v11765, 0.0
  %v11801 = vadd.f32 %v11799, %v11800
  %v11802 = vsel %vm103, %v11766, 0.0
  %v11803 = vadd.f32 %v11801, %v11802
  %v11804 = vsel %vm103, %v11767, 0.0
  %v11805 = vadd.f32 %v11803, %v11804
  %v11806 = vsel %vm103, %v11768, 0.0
  %v11807 = vadd.f32 %v11805, %v11806
  %v11808 = vsel %vm103, %v11769, 0.0
  %v11809 = vadd.f32 %v11807, %v11808
  %v11810 = vsel %vm103, %v11770, 0.0
  %v11811 = vadd.f32 %v11809, %v11810
  %v11812 = vsel %vm103, %v11771, 0.0
  %v11813 = vadd.f32 %v11811, %v11812
  %v11814 = vsel %vm103, %v11772, 0.0
  %v11815 = vadd.f32 %v11813, %v11814
  %v11816 = vsel %vm103, %v11773, 0.0
  %v11817 = vadd.f32 %v11815, %v11816
  %v11818 = vsel %vm103, %v11774, 0.0
  %v11819 = vadd.f32 %v11817, %v11818
  %v11820 = vsel %vm103, %v11775, 0.0
  %v11821 = vadd.f32 %v11819, %v11820
  %v11822 = vsel %vm103, %v11776, 0.0
  %v11823 = vadd.f32 %v11821, %v11822
  %v11824 = vsel %vm103, %v11777, 0.0
  %v11825 = vadd.f32 %v11823, %v11824
  %v11826 = vsel %vm103, %v11778, 0.0
  %v11827 = vadd.f32 %v11825, %v11826
  %v11828 = vsel %vm103, %v11779, 0.0
  %v11829 = vadd.f32 %v11827, %v11828
  %v11830 = vsel %vm103, %v11780, 0.0
  %v11831 = vadd.f32 %v11829, %v11830
  %v11832 = vsel %vm103, %v11781, 0.0
  %v11833 = vadd.f32 %v11831, %v11832
  %v11834 = vsel %vm103, %v11782, 0.0
  %v11835 = vadd.f32 %v11833, %v11834
  %v11836 = vsel %vm103, %v11783, 0.0
  %v11837 = vadd.f32 %v11835, %v11836
  %v11838 = vsel %vm103, %v11784, 0.0
  %v11839 = vadd.f32 %v11837, %v11838
  %v11840 = vsel %vm103, %v11785, 0.0
  %v11841 = vadd.f32 %v11839, %v11840
  %v11842 = vsel %vm103, %v11786, 0.0
  %v11843 = vadd.f32 %v11841, %v11842
  %v11844 = vsel %vm103, %v11787, 0.0
  %v11845 = vadd.f32 %v11843, %v11844
  %v11846 = vsel %vm103, %v11788, 0.0
  %v11847 = vadd.f32 %v11845, %v11846
  %v11848 = vsel %vm103, %v11789, 0.0
  %v11849 = vadd.f32 %v11847, %v11848
  %v11850 = vsel %vm103, %v11790, 0.0
  %v11851 = vadd.f32 %v11849, %v11850
  %v11852 = vsel %vm103, %v11791, 0.0
  %v11853 = vadd.f32 %v11851, %v11852
  %v11854 = vsel %vm103, %v11792, 0.0
  %v11855 = vadd.f32 %v11853, %v11854
  %v11856 = vrot.slane %v11855, 4
  %v11857 = vadd.f32 %v11855, %v11856
  %v11858 = vrot.slane %v11857, 2
  %v11859 = vadd.f32 %v11857, %v11858
  %v11860 = vrot.slane %v11859, 1
  %v11861 = vadd.f32 %v11859, %v11860
  %v11862 = vmul.f32 %v11463, %v11463
  %v11863 = vmul.f32 %v11468, %v11468
  %v11864 = vmul.f32 %v11473, %v11473
  %v11865 = vmul.f32 %v11478, %v11478
  %v11866 = vmul.f32 %v11483, %v11483
  %v11867 = vmul.f32 %v11488, %v11488
  %v11868 = vmul.f32 %v11493, %v11493
  %v11869 = vmul.f32 %v11498, %v11498
  %v11870 = vmul.f32 %v11503, %v11503
  %v11871 = vmul.f32 %v11508, %v11508
  %v11872 = vmul.f32 %v11513, %v11513
  %v11873 = vmul.f32 %v11518, %v11518
  %v11874 = vmul.f32 %v11523, %v11523
  %v11875 = vmul.f32 %v11528, %v11528
  %v11876 = vmul.f32 %v11533, %v11533
  %v11877 = vmul.f32 %v11538, %v11538
  %v11878 = vmul.f32 %v11543, %v11543
  %v11879 = vmul.f32 %v11548, %v11548
  %v11880 = vmul.f32 %v11553, %v11553
  %v11881 = vmul.f32 %v11558, %v11558
  %v11882 = vmul.f32 %v11563, %v11563
  %v11883 = vmul.f32 %v11568, %v11568
  %v11884 = vmul.f32 %v11573, %v11573
  %v11885 = vmul.f32 %v11578, %v11578
  %v11886 = vmul.f32 %v11583, %v11583
  %v11887 = vmul.f32 %v11588, %v11588
  %v11888 = vmul.f32 %v11593, %v11593
  %v11889 = vmul.f32 %v11598, %v11598
  %v11890 = vmul.f32 %v11603, %v11603
  %v11891 = vmul.f32 %v11608, %v11608
  %v11892 = vmul.f32 %v11613, %v11613
  %v11893 = vmul.f32 %v11618, %v11618
  %v11894 = vsel %vm103, %v11862, 0.0
  %v11895 = vsel %vm103, %v11863, 0.0
  %v11896 = vadd.f32 %v11894, %v11895
  %v11897 = vsel %vm103, %v11864, 0.0
  %v11898 = vadd.f32 %v11896, %v11897
  %v11899 = vsel %vm103, %v11865, 0.0
  %v11900 = vadd.f32 %v11898, %v11899
  %v11901 = vsel %vm103, %v11866, 0.0
  %v11902 = vadd.f32 %v11900, %v11901
  %v11903 = vsel %vm103, %v11867, 0.0
  %v11904 = vadd.f32 %v11902, %v11903
  %v11905 = vsel %vm103, %v11868, 0.0
  %v11906 = vadd.f32 %v11904, %v11905
  %v11907 = vsel %vm103, %v11869, 0.0
  %v11908 = vadd.f32 %v11906, %v11907
  %v11909 = vsel %vm103, %v11870, 0.0
  %v11910 = vadd.f32 %v11908, %v11909
  %v11911 = vsel %vm103, %v11871, 0.0
  %v11912 = vadd.f32 %v11910, %v11911
  %v11913 = vsel %vm103, %v11872, 0.0
  %v11914 = vadd.f32 %v11912, %v11913
  %v11915 = vsel %vm103, %v11873, 0.0
  %v11916 = vadd.f32 %v11914, %v11915
  %v11917 = vsel %vm103, %v11874, 0.0
  %v11918 = vadd.f32 %v11916, %v11917
  %v11919 = vsel %vm103, %v11875, 0.0
  %v11920 = vadd.f32 %v11918, %v11919
  %v11921 = vsel %vm103, %v11876, 0.0
  %v11922 = vadd.f32 %v11920, %v11921
  %v11923 = vsel %vm103, %v11877, 0.0
  %v11924 = vadd.f32 %v11922, %v11923
  %v11925 = vsel %vm103, %v11878, 0.0
  %v11926 = vadd.f32 %v11924, %v11925
  %v11927 = vsel %vm103, %v11879, 0.0
  %v11928 = vadd.f32 %v11926, %v11927
  %v11929 = vsel %vm103, %v11880, 0.0
  %v11930 = vadd.f32 %v11928, %v11929
  %v11931 = vsel %vm103, %v11881, 0.0
  %v11932 = vadd.f32 %v11930, %v11931
  %v11933 = vsel %vm103, %v11882, 0.0
  %v11934 = vadd.f32 %v11932, %v11933
  %v11935 = vsel %vm103, %v11883, 0.0
  %v11936 = vadd.f32 %v11934, %v11935
  %v11937 = vsel %vm103, %v11884, 0.0
  %v11938 = vadd.f32 %v11936, %v11937
  %v11939 = vsel %vm103, %v11885, 0.0
  %v11940 = vadd.f32 %v11938, %v11939
  %v11941 = vsel %vm103, %v11886, 0.0
  %v11942 = vadd.f32 %v11940, %v11941
  %v11943 = vsel %vm103, %v11887, 0.0
  %v11944 = vadd.f32 %v11942, %v11943
  %v11945 = vsel %vm103, %v11888, 0.0
  %v11946 = vadd.f32 %v11944, %v11945
  %v11947 = vsel %vm103, %v11889, 0.0
  %v11948 = vadd.f32 %v11946, %v11947
  %v11949 = vsel %vm103, %v11890, 0.0
  %v11950 = vadd.f32 %v11948, %v11949
  %v11951 = vsel %vm103, %v11891, 0.0
  %v11952 = vadd.f32 %v11950, %v11951
  %v11953 = vsel %vm103, %v11892, 0.0
  %v11954 = vadd.f32 %v11952, %v11953
  %v11955 = vsel %vm103, %v11893, 0.0
  %v11956 = vadd.f32 %v11954, %v11955
  %v11957 = vrot.slane %v11956, 4
  %v11958 = vadd.f32 %v11956, %v11957
  %v11959 = vrot.slane %v11958, 2
  %v11960 = vadd.f32 %v11958, %v11959
  %v11961 = vrot.slane %v11960, 1
  %v11962 = vadd.f32 %v11960, %v11961
  %v11963 = vadd.f32 %v11691, %v11760
  %v11964 = vadd.f32 %v11861, %v11962
  %v11965 = vmul.f32 %v11963, 0.001953125
  %v11966 = vmul.f32 %v11964, 0.001953125
  %v11967 = vmul.f32 %v11965, %v11965
  %v11968 = vsub.f32 %v11966, %v11967
  %v11969 = vmax.f32 %v11968, 0.0
  %v11970 = vmul.f32 %v11691, 0.00390625
  %v11971 = vmul.f32 %v11861, 0.00390625
  %v11972 = vmul.f32 %v11970, %v11970
  %v11973 = vsub.f32 %v11971, %v11972
  %v11974 = vmax.f32 %v11973, 0.0
  %v11975 = vsel %vm7068, %v11970, %v11965
  %v11976 = vsel %vm7068, %v11974, %v11969
  %v11977 = vsub.f32 %v11279, %v11975
  %v11978 = vsub.f32 %v11284, %v11975
  %v11979 = vsub.f32 %v11289, %v11975
  %v11980 = vsub.f32 %v11294, %v11975
  %v11981 = vsub.f32 %v11299, %v11975
  %v11982 = vsub.f32 %v11304, %v11975
  %v11983 = vsub.f32 %v11309, %v11975
  %v11984 = vsub.f32 %v11314, %v11975
  %v11985 = vsub.f32 %v11319, %v11975
  %v11986 = vsub.f32 %v11324, %v11975
  %v11987 = vsub.f32 %v11329, %v11975
  %v11988 = vsub.f32 %v11334, %v11975
  %v11989 = vsub.f32 %v11339, %v11975
  %v11990 = vsub.f32 %v11344, %v11975
  %v11991 = vsub.f32 %v11349, %v11975
  %v11992 = vsub.f32 %v11354, %v11975
  %v11993 = vsub.f32 %v11359, %v11975
  %v11994 = vsub.f32 %v11364, %v11975
  %v11995 = vsub.f32 %v11369, %v11975
  %v11996 = vsub.f32 %v11374, %v11975
  %v11997 = vsub.f32 %v11379, %v11975
  %v11998 = vsub.f32 %v11384, %v11975
  %v11999 = vsub.f32 %v11389, %v11975
  %v12000 = vsub.f32 %v11394, %v11975
  %v12001 = vsub.f32 %v11399, %v11975
  %v12002 = vsub.f32 %v11404, %v11975
  %v12003 = vsub.f32 %v11409, %v11975
  %v12004 = vsub.f32 %v11414, %v11975
  %v12005 = vsub.f32 %v11419, %v11975
  %v12006 = vsub.f32 %v11424, %v11975
  %v12007 = vsub.f32 %v11429, %v11975
  %v12008 = vsub.f32 %v11434, %v11975
  %v12009 = vadd.f32 %v11976, 1e-05
  %v12010 = vrsqrt.pop %v12009
  %v12011 = vmul.f32 %v11977, %v12010
  %v12012 = vmul.f32 %v11978, %v12010
  %v12013 = vmul.f32 %v11979, %v12010
  %v12014 = vmul.f32 %v11980, %v12010
  %v12015 = vmul.f32 %v11981, %v12010
  %v12016 = vmul.f32 %v11982, %v12010
  %v12017 = vmul.f32 %v11983, %v12010
  %v12018 = vmul.f32 %v11984, %v12010
  %v12019 = vmul.f32 %v11985, %v12010
  %v12020 = vmul.f32 %v11986, %v12010
  %v12021 = vmul.f32 %v11987, %v12010
  %v12022 = vmul.f32 %v11988, %v12010
  %v12023 = vmul.f32 %v11989, %v12010
  %v12024 = vmul.f32 %v11990, %v12010
  %v12025 = vmul.f32 %v11991, %v12010
  %v12026 = vmul.f32 %v11992, %v12010
  %v12027 = vmul.f32 %v11993, %v12010
  %v12028 = vmul.f32 %v11994, %v12010
  %v12029 = vmul.f32 %v11995, %v12010
  %v12030 = vmul.f32 %v11996, %v12010
  %v12031 = vmul.f32 %v11997, %v12010
  %v12032 = vmul.f32 %v11998, %v12010
  %v12033 = vmul.f32 %v11999, %v12010
  %v12034 = vmul.f32 %v12000, %v12010
  %v12035 = vmul.f32 %v12001, %v12010
  %v12036 = vmul.f32 %v12002, %v12010
  %v12037 = vmul.f32 %v12003, %v12010
  %v12038 = vmul.f32 %v12004, %v12010
  %v12039 = vmul.f32 %v12005, %v12010
  %v12040 = vmul.f32 %v12006, %v12010
  %v12041 = vmul.f32 %v12007, %v12010
  %v12042 = vmul.f32 %v12008, %v12010
  %v12044 = vlaneseq
  %v12045 = vshrl.u32 %v12044, 7
  %v12046 = vsub.s32 0, %v12045
  %v12047 = vrot.slane %v11621, %v12046
  %v12049 = vmul.f32 %v12011, %v12047
  %v12050 = vmul.f32 %v12012, %v12047
  %v12051 = vmul.f32 %v12013, %v12047
  %v12052 = vmul.f32 %v12014, %v12047
  %v12053 = vmul.f32 %v12015, %v12047
  %v12054 = vmul.f32 %v12016, %v12047
  %v12055 = vmul.f32 %v12017, %v12047
  %v12056 = vmul.f32 %v12018, %v12047
  %v12057 = vmul.f32 %v12019, %v12047
  %v12058 = vmul.f32 %v12020, %v12047
  %v12059 = vmul.f32 %v12021, %v12047
  %v12060 = vmul.f32 %v12022, %v12047
  %v12061 = vmul.f32 %v12023, %v12047
  %v12062 = vmul.f32 %v12024, %v12047
  %v12063 = vmul.f32 %v12025, %v12047
  %v12064 = vmul.f32 %v12026, %v12047
  %v12065 = vmul.f32 %v12027, %v12047
  %v12066 = vmul.f32 %v12028, %v12047
  %v12067 = vmul.f32 %v12029, %v12047
  %v12068 = vmul.f32 %v12030, %v12047
  %v12069 = vmul.f32 %v12031, %v12047
  %v12070 = vmul.f32 %v12032, %v12047
  %v12071 = vmul.f32 %v12033, %v12047
  %v12072 = vmul.f32 %v12034, %v12047
  %v12073 = vmul.f32 %v12035, %v12047
  %v12074 = vmul.f32 %v12036, %v12047
  %v12075 = vmul.f32 %v12037, %v12047
  %v12076 = vmul.f32 %v12038, %v12047
  %v12077 = vmul.f32 %v12039, %v12047
  %v12078 = vmul.f32 %v12040, %v12047
  %v12079 = vmul.f32 %v12041, %v12047
  %v12080 = vmul.f32 %v12042, %v12047
  %v12082 = vlaneseq
  %v12083 = vshrl.u32 %v12082, 7
  %v12084 = vsub.s32 0, %v12083
  %v12085 = vrot.slane %v11622, %v12084
  %v12087 = vadd.f32 %v12049, %v12085
  %v12088 = vadd.f32 %v12050, %v12085
  %v12089 = vadd.f32 %v12051, %v12085
  %v12090 = vadd.f32 %v12052, %v12085
  %v12091 = vadd.f32 %v12053, %v12085
  %v12092 = vadd.f32 %v12054, %v12085
  %v12093 = vadd.f32 %v12055, %v12085
  %v12094 = vadd.f32 %v12056, %v12085
  %v12095 = vadd.f32 %v12057, %v12085
  %v12096 = vadd.f32 %v12058, %v12085
  %v12097 = vadd.f32 %v12059, %v12085
  %v12098 = vadd.f32 %v12060, %v12085
  %v12099 = vadd.f32 %v12061, %v12085
  %v12100 = vadd.f32 %v12062, %v12085
  %v12101 = vadd.f32 %v12063, %v12085
  %v12102 = vadd.f32 %v12064, %v12085
  %v12103 = vadd.f32 %v12065, %v12085
  %v12104 = vadd.f32 %v12066, %v12085
  %v12105 = vadd.f32 %v12067, %v12085
  %v12106 = vadd.f32 %v12068, %v12085
  %v12107 = vadd.f32 %v12069, %v12085
  %v12108 = vadd.f32 %v12070, %v12085
  %v12109 = vadd.f32 %v12071, %v12085
  %v12110 = vadd.f32 %v12072, %v12085
  %v12111 = vadd.f32 %v12073, %v12085
  %v12112 = vadd.f32 %v12074, %v12085
  %v12113 = vadd.f32 %v12075, %v12085
  %v12114 = vadd.f32 %v12076, %v12085
  %v12115 = vadd.f32 %v12077, %v12085
  %v12116 = vadd.f32 %v12078, %v12085
  %v12117 = vadd.f32 %v12079, %v12085
  %v12118 = vadd.f32 %v12080, %v12085
  %v12119 = vmax.f32 %v12087, 0.0
  %v12120 = vmax.f32 %v12088, 0.0
  %v12121 = vmax.f32 %v12089, 0.0
  %v12122 = vmax.f32 %v12090, 0.0
  %v12123 = vmax.f32 %v12091, 0.0
  %v12124 = vmax.f32 %v12092, 0.0
  %v12125 = vmax.f32 %v12093, 0.0
  %v12126 = vmax.f32 %v12094, 0.0
  %v12127 = vmax.f32 %v12095, 0.0
  %v12128 = vmax.f32 %v12096, 0.0
  %v12129 = vmax.f32 %v12097, 0.0
  %v12130 = vmax.f32 %v12098, 0.0
  %v12131 = vmax.f32 %v12099, 0.0
  %v12132 = vmax.f32 %v12100, 0.0
  %v12133 = vmax.f32 %v12101, 0.0
  %v12134 = vmax.f32 %v12102, 0.0
  %v12135 = vmax.f32 %v12103, 0.0
  %v12136 = vmax.f32 %v12104, 0.0
  %v12137 = vmax.f32 %v12105, 0.0
  %v12138 = vmax.f32 %v12106, 0.0
  %v12139 = vmax.f32 %v12107, 0.0
  %v12140 = vmax.f32 %v12108, 0.0
  %v12141 = vmax.f32 %v12109, 0.0
  %v12142 = vmax.f32 %v12110, 0.0
  %v12143 = vmax.f32 %v12111, 0.0
  %v12144 = vmax.f32 %v12112, 0.0
  %v12145 = vmax.f32 %v12113, 0.0
  %v12146 = vmax.f32 %v12114, 0.0
  %v12147 = vmax.f32 %v12115, 0.0
  %v12148 = vmax.f32 %v12116, 0.0
  %v12149 = vmax.f32 %v12117, 0.0
  %v12150 = vmax.f32 %v12118, 0.0
  %v12151 = vmul.f32 %v11760, 0.00390625
  %v12152 = vmul.f32 %v11962, 0.00390625
  %v12153 = vmul.f32 %v12151, %v12151
  %v12154 = vsub.f32 %v12152, %v12153
  %v12155 = vmax.f32 %v12154, 0.0
  %v12156 = vsel %vm7068, %v12151, %v11965
  %v12157 = vsel %vm7068, %v12155, %v11969
  %v12158 = vsub.f32 %v11463, %v12156
  %v12159 = vsub.f32 %v11468, %v12156
  %v12160 = vsub.f32 %v11473, %v12156
  %v12161 = vsub.f32 %v11478, %v12156
  %v12162 = vsub.f32 %v11483, %v12156
  %v12163 = vsub.f32 %v11488, %v12156
  %v12164 = vsub.f32 %v11493, %v12156
  %v12165 = vsub.f32 %v11498, %v12156
  %v12166 = vsub.f32 %v11503, %v12156
  %v12167 = vsub.f32 %v11508, %v12156
  %v12168 = vsub.f32 %v11513, %v12156
  %v12169 = vsub.f32 %v11518, %v12156
  %v12170 = vsub.f32 %v11523, %v12156
  %v12171 = vsub.f32 %v11528, %v12156
  %v12172 = vsub.f32 %v11533, %v12156
  %v12173 = vsub.f32 %v11538, %v12156
  %v12174 = vsub.f32 %v11543, %v12156
  %v12175 = vsub.f32 %v11548, %v12156
  %v12176 = vsub.f32 %v11553, %v12156
  %v12177 = vsub.f32 %v11558, %v12156
  %v12178 = vsub.f32 %v11563, %v12156
  %v12179 = vsub.f32 %v11568, %v12156
  %v12180 = vsub.f32 %v11573, %v12156
  %v12181 = vsub.f32 %v11578, %v12156
  %v12182 = vsub.f32 %v11583, %v12156
  %v12183 = vsub.f32 %v11588, %v12156
  %v12184 = vsub.f32 %v11593, %v12156
  %v12185 = vsub.f32 %v11598, %v12156
  %v12186 = vsub.f32 %v11603, %v12156
  %v12187 = vsub.f32 %v11608, %v12156
  %v12188 = vsub.f32 %v11613, %v12156
  %v12189 = vsub.f32 %v11618, %v12156
  %v12190 = vadd.f32 %v12157, 1e-05
  %v12191 = vrsqrt.pop %v12190
  %v12192 = vmul.f32 %v12158, %v12191
  %v12193 = vmul.f32 %v12159, %v12191
  %v12194 = vmul.f32 %v12160, %v12191
  %v12195 = vmul.f32 %v12161, %v12191
  %v12196 = vmul.f32 %v12162, %v12191
  %v12197 = vmul.f32 %v12163, %v12191
  %v12198 = vmul.f32 %v12164, %v12191
  %v12199 = vmul.f32 %v12165, %v12191
  %v12200 = vmul.f32 %v12166, %v12191
  %v12201 = vmul.f32 %v12167, %v12191
  %v12202 = vmul.f32 %v12168, %v12191
  %v12203 = vmul.f32 %v12169, %v12191
  %v12204 = vmul.f32 %v12170, %v12191
  %v12205 = vmul.f32 %v12171, %v12191
  %v12206 = vmul.f32 %v12172, %v12191
  %v12207 = vmul.f32 %v12173, %v12191
  %v12208 = vmul.f32 %v12174, %v12191
  %v12209 = vmul.f32 %v12175, %v12191
  %v12210 = vmul.f32 %v12176, %v12191
  %v12211 = vmul.f32 %v12177, %v12191
  %v12212 = vmul.f32 %v12178, %v12191
  %v12213 = vmul.f32 %v12179, %v12191
  %v12214 = vmul.f32 %v12180, %v12191
  %v12215 = vmul.f32 %v12181, %v12191
  %v12216 = vmul.f32 %v12182, %v12191
  %v12217 = vmul.f32 %v12183, %v12191
  %v12218 = vmul.f32 %v12184, %v12191
  %v12219 = vmul.f32 %v12185, %v12191
  %v12220 = vmul.f32 %v12186, %v12191
  %v12221 = vmul.f32 %v12187, %v12191
  %v12222 = vmul.f32 %v12188, %v12191
  %v12223 = vmul.f32 %v12189, %v12191
  %v12224 = vmul.f32 %v12192, %v12047
  %v12225 = vmul.f32 %v12193, %v12047
  %v12226 = vmul.f32 %v12194, %v12047
  %v12227 = vmul.f32 %v12195, %v12047
  %v12228 = vmul.f32 %v12196, %v12047
  %v12229 = vmul.f32 %v12197, %v12047
  %v12230 = vmul.f32 %v12198, %v12047
  %v12231 = vmul.f32 %v12199, %v12047
  %v12232 = vmul.f32 %v12200, %v12047
  %v12233 = vmul.f32 %v12201, %v12047
  %v12234 = vmul.f32 %v12202, %v12047
  %v12235 = vmul.f32 %v12203, %v12047
  %v12236 = vmul.f32 %v12204, %v12047
  %v12237 = vmul.f32 %v12205, %v12047
  %v12238 = vmul.f32 %v12206, %v12047
  %v12239 = vmul.f32 %v12207, %v12047
  %v12240 = vmul.f32 %v12208, %v12047
  %v12241 = vmul.f32 %v12209, %v12047
  %v12242 = vmul.f32 %v12210, %v12047
  %v12243 = vmul.f32 %v12211, %v12047
  %v12244 = vmul.f32 %v12212, %v12047
  %v12245 = vmul.f32 %v12213, %v12047
  %v12246 = vmul.f32 %v12214, %v12047
  %v12247 = vmul.f32 %v12215, %v12047
  %v12248 = vmul.f32 %v12216, %v12047
  %v12249 = vmul.f32 %v12217, %v12047
  %v12250 = vmul.f32 %v12218, %v12047
  %v12251 = vmul.f32 %v12219, %v12047
  %v12252 = vmul.f32 %v12220, %v12047
  %v12253 = vmul.f32 %v12221, %v12047
  %v12254 = vmul.f32 %v12222, %v12047
  %v12255 = vmul.f32 %v12223, %v12047
  %v12256 = vadd.f32 %v12224, %v12085
  %v12257 = vadd.f32 %v12225, %v12085
  %v12258 = vadd.f32 %v12226, %v12085
  %v12259 = vadd.f32 %v12227, %v12085
  %v12260 = vadd.f32 %v12228, %v12085
  %v12261 = vadd.f32 %v12229, %v12085
  %v12262 = vadd.f32 %v12230, %v12085
  %v12263 = vadd.f32 %v12231, %v12085
  %v12264 = vadd.f32 %v12232, %v12085
  %v12265 = vadd.f32 %v12233, %v12085
  %v12266 = vadd.f32 %v12234, %v12085
  %v12267 = vadd.f32 %v12235, %v12085
  %v12268 = vadd.f32 %v12236, %v12085
  %v12269 = vadd.f32 %v12237, %v12085
  %v12270 = vadd.f32 %v12238, %v12085
  %v12271 = vadd.f32 %v12239, %v12085
  %v12272 = vadd.f32 %v12240, %v12085
  %v12273 = vadd.f32 %v12241, %v12085
  %v12274 = vadd.f32 %v12242, %v12085
  %v12275 = vadd.f32 %v12243, %v12085
  %v12276 = vadd.f32 %v12244, %v12085
  %v12277 = vadd.f32 %v12245, %v12085
  %v12278 = vadd.f32 %v12246, %v12085
  %v12279 = vadd.f32 %v12247, %v12085
  %v12280 = vadd.f32 %v12248, %v12085
  %v12281 = vadd.f32 %v12249, %v12085
  %v12282 = vadd.f32 %v12250, %v12085
  %v12283 = vadd.f32 %v12251, %v12085
  %v12284 = vadd.f32 %v12252, %v12085
  %v12285 = vadd.f32 %v12253, %v12085
  %v12286 = vadd.f32 %v12254, %v12085
  %v12287 = vadd.f32 %v12255, %v12085
  %v12288 = vmax.f32 %v12256, 0.0
  %v12289 = vmax.f32 %v12257, 0.0
  %v12290 = vmax.f32 %v12258, 0.0
  %v12291 = vmax.f32 %v12259, 0.0
  %v12292 = vmax.f32 %v12260, 0.0
  %v12293 = vmax.f32 %v12261, 0.0
  %v12294 = vmax.f32 %v12262, 0.0
  %v12295 = vmax.f32 %v12263, 0.0
  %v12296 = vmax.f32 %v12264, 0.0
  %v12297 = vmax.f32 %v12265, 0.0
  %v12298 = vmax.f32 %v12266, 0.0
  %v12299 = vmax.f32 %v12267, 0.0
  %v12300 = vmax.f32 %v12268, 0.0
  %v12301 = vmax.f32 %v12269, 0.0
  %v12302 = vmax.f32 %v12270, 0.0
  %v12303 = vmax.f32 %v12271, 0.0
  %v12304 = vmax.f32 %v12272, 0.0
  %v12305 = vmax.f32 %v12273, 0.0
  %v12306 = vmax.f32 %v12274, 0.0
  %v12307 = vmax.f32 %v12275, 0.0
  %v12308 = vmax.f32 %v12276, 0.0
  %v12309 = vmax.f32 %v12277, 0.0
  %v12310 = vmax.f32 %v12278, 0.0
  %v12311 = vmax.f32 %v12279, 0.0
  %v12312 = vmax.f32 %v12280, 0.0
  %v12313 = vmax.f32 %v12281, 0.0
  %v12314 = vmax.f32 %v12282, 0.0
  %v12315 = vmax.f32 %v12283, 0.0
  %v12316 = vmax.f32 %v12284, 0.0
  %v12317 = vmax.f32 %v12285, 0.0
  %v12318 = vmax.f32 %v12286, 0.0
  %v12319 = vmax.f32 %v12287, 0.0
  %12320 = vst.msk [vmem:[%s7] sm:$0xff] %vm103, %v12119
  %12321 = vst.msk [vmem:[%s7 + $0x8] sm:$0xff] %vm103, %v12120
  %12322 = vst.msk [vmem:[%s7 + $0x10] sm:$0xff] %vm103, %v12121
  %12323 = vst.msk [vmem:[%s7 + $0x18] sm:$0xff] %vm103, %v12122
  %12324 = vst.msk [vmem:[%s7 + $0x20] sm:$0xff] %vm103, %v12123
  %12325 = vst.msk [vmem:[%s7 + $0x28] sm:$0xff] %vm103, %v12124
  %12326 = vst.msk [vmem:[%s7 + $0x30] sm:$0xff] %vm103, %v12125
  %12327 = vst.msk [vmem:[%s7 + $0x38] sm:$0xff] %vm103, %v12126
  %12328 = vst.msk [vmem:[%s7 + $0x40] sm:$0xff] %vm103, %v12127
  %12329 = vst.msk [vmem:[%s7 + $0x48] sm:$0xff] %vm103, %v12128
  %12330 = vst.msk [vmem:[%s7 + $0x50] sm:$0xff] %vm103, %v12129
  %12331 = vst.msk [vmem:[%s7 + $0x58] sm:$0xff] %vm103, %v12130
  %12332 = vst.msk [vmem:[%s7 + $0x60] sm:$0xff] %vm103, %v12131
  %12333 = vst.msk [vmem:[%s7 + $0x68] sm:$0xff] %vm103, %v12132
  %12334 = vst.msk [vmem:[%s7 + $0x70] sm:$0xff] %vm103, %v12133
  %12335 = vst.msk [vmem:[%s7 + $0x78] sm:$0xff] %vm103, %v12134
  %12336 = vst.msk [vmem:[%s7 + $0x80] sm:$0xff] %vm103, %v12135
  %12337 = vst.msk [vmem:[%s7 + $0x88] sm:$0xff] %vm103, %v12136
  %12338 = vst.msk [vmem:[%s7 + $0x90] sm:$0xff] %vm103, %v12137
  %12339 = vst.msk [vmem:[%s7 + $0x98] sm:$0xff] %vm103, %v12138
  %12340 = vst.msk [vmem:[%s7 + $0xa0] sm:$0xff] %vm103, %v12139
  %12341 = vst.msk [vmem:[%s7 + $0xa8] sm:$0xff] %vm103, %v12140
  %12342 = vst.msk [vmem:[%s7 + $0xb0] sm:$0xff] %vm103, %v12141
  %12343 = vst.msk [vmem:[%s7 + $0xb8] sm:$0xff] %vm103, %v12142
  %12344 = vst.msk [vmem:[%s7 + $0xc0] sm:$0xff] %vm103, %v12143
  %12345 = vst.msk [vmem:[%s7 + $0xc8] sm:$0xff] %vm103, %v12144
  %12346 = vst.msk [vmem:[%s7 + $0xd0] sm:$0xff] %vm103, %v12145
  %12347 = vst.msk [vmem:[%s7 + $0xd8] sm:$0xff] %vm103, %v12146
  %12348 = vst.msk [vmem:[%s7 + $0xe0] sm:$0xff] %vm103, %v12147
  %12349 = vst.msk [vmem:[%s7 + $0xe8] sm:$0xff] %vm103, %v12148
  %12350 = vst.msk [vmem:[%s7 + $0xf0] sm:$0xff] %vm103, %v12149
  %12351 = vst.msk [vmem:[%s7 + $0xf8] sm:$0xff] %vm103, %v12150
  %s12352 = scalar_lea.vmem %s7, 256
  %12353 = vst.msk [vmem:[%s12352] sm:$0xff] %vm103, %v12288
  %12354 = vst.msk [vmem:[%s12352 + $0x8] sm:$0xff] %vm103, %v12289
  %12355 = vst.msk [vmem:[%s12352 + $0x10] sm:$0xff] %vm103, %v12290
  %12356 = vst.msk [vmem:[%s12352 + $0x18] sm:$0xff] %vm103, %v12291
  %12357 = vst.msk [vmem:[%s12352 + $0x20] sm:$0xff] %vm103, %v12292
  %12358 = vst.msk [vmem:[%s12352 + $0x28] sm:$0xff] %vm103, %v12293
  %12359 = vst.msk [vmem:[%s12352 + $0x30] sm:$0xff] %vm103, %v12294
  %12360 = vst.msk [vmem:[%s12352 + $0x38] sm:$0xff] %vm103, %v12295
  %12361 = vst.msk [vmem:[%s12352 + $0x40] sm:$0xff] %vm103, %v12296
  %12362 = vst.msk [vmem:[%s12352 + $0x48] sm:$0xff] %vm103, %v12297
  %12363 = vst.msk [vmem:[%s12352 + $0x50] sm:$0xff] %vm103, %v12298
  %12364 = vst.msk [vmem:[%s12352 + $0x58] sm:$0xff] %vm103, %v12299
  %12365 = vst.msk [vmem:[%s12352 + $0x60] sm:$0xff] %vm103, %v12300
  %12366 = vst.msk [vmem:[%s12352 + $0x68] sm:$0xff] %vm103, %v12301
  %12367 = vst.msk [vmem:[%s12352 + $0x70] sm:$0xff] %vm103, %v12302
  %12368 = vst.msk [vmem:[%s12352 + $0x78] sm:$0xff] %vm103, %v12303
  %12369 = vst.msk [vmem:[%s12352 + $0x80] sm:$0xff] %vm103, %v12304
  %12370 = vst.msk [vmem:[%s12352 + $0x88] sm:$0xff] %vm103, %v12305
  %12371 = vst.msk [vmem:[%s12352 + $0x90] sm:$0xff] %vm103, %v12306
  %12372 = vst.msk [vmem:[%s12352 + $0x98] sm:$0xff] %vm103, %v12307
  %12373 = vst.msk [vmem:[%s12352 + $0xa0] sm:$0xff] %vm103, %v12308
  %12374 = vst.msk [vmem:[%s12352 + $0xa8] sm:$0xff] %vm103, %v12309
  %12375 = vst.msk [vmem:[%s12352 + $0xb0] sm:$0xff] %vm103, %v12310
  %12376 = vst.msk [vmem:[%s12352 + $0xb8] sm:$0xff] %vm103, %v12311
  %12377 = vst.msk [vmem:[%s12352 + $0xc0] sm:$0xff] %vm103, %v12312
  %12378 = vst.msk [vmem:[%s12352 + $0xc8] sm:$0xff] %vm103, %v12313
  %12379 = vst.msk [vmem:[%s12352 + $0xd0] sm:$0xff] %vm103, %v12314
  %12380 = vst.msk [vmem:[%s12352 + $0xd8] sm:$0xff] %vm103, %v12315
  %12381 = vst.msk [vmem:[%s12352 + $0xe0] sm:$0xff] %vm103, %v12316
  %12382 = vst.msk [vmem:[%s12352 + $0xe8] sm:$0xff] %vm103, %v12317
  %12383 = vst.msk [vmem:[%s12352 + $0xf0] sm:$0xff] %vm103, %v12318
  %12384 = vst.msk [vmem:[%s12352 + $0xf8] sm:$0xff] %vm103, %v12319
  // Predicated region
  $region30: #{tpu_custom_call.1} parent=0 // pred_check
    _
  $region31: #{tpu_custom_call.1} parent=0 // pred_check_branch
    %12386 = sbr.rel (0) target = $region33
  $region32: #{tpu_custom_call.1} parent=0 // pred_region
    _
  $region33: #{tpu_custom_call.1} parent=0 // pred_fallthru
    _
  // Predicated region
  $region34: #{tpu_custom_call.1} parent=0 // pred_check
    _
  $region35: #{tpu_custom_call.1} parent=0 // pred_check_branch
    %12388 = sbr.rel (0) target = $region37
  $region36: #{tpu_custom_call.1} parent=0 // pred_region
    _
  $region37: #{tpu_custom_call.1} parent=0 // pred_fallthru
    _

</llo_original>
